<compile_context>
chip_gen: v5e
topology: v5e:2x2
jax: 0.10.0
libtpu: 0.0.40
codegen_flags: <defaults>
</compile_context>

<pallas_src>
import jax
import jax.numpy as jnp
from jax.experimental import pallas as pl
from jax.experimental.pallas import tpu as pltpu


# ----------------------------------------------------------------------------
# Static architecture description (NOT part of the jitted params pytree).
# ----------------------------------------------------------------------------
_IN_CH = 6
_STEM = (32, 2)                                       # (out_channels, stride)
_STAGES = [(16, 1), (24, 2), (40, 2), (80, 2), (112, 1), (192, 2), (320, 1)]
_HEAD_CH = 1280
_FC1 = 512
_OUT = 3

_SPATIAL_LAYERS = [_STEM] + _STAGES[:4]   # stem + stages 1..4: real 3x3 spatial convs
_TAIL_STAGES = _STAGES[4:]                # stages 5..7: 1x1 spatial -> centre-tap matmuls


def _default_vmem_limit():
    """Generation-aware VMEM budget: ~3/4 of physical capacity, capped at 96 MiB
    (v5e/v6e: 128 MiB -> 96 MiB, v7x: 64 MiB -> 48 MiB)."""
    try:
        cap = int(pltpu.get_tpu_info().vmem_capacity_bytes)
        return max(32 * 1024 * 1024, min(cap * 3 // 4, 96 * 1024 * 1024))
    except Exception:
        return 48 * 1024 * 1024


_VMEM_LIMIT = _default_vmem_limit()


def _silu(y):
    # Exact SiLU: y * sigmoid(y) = y / (1 + exp(-y)).  f32 throughout.
    return y / (1.0 + jnp.exp(-y))


# ----------------------------------------------------------------------------
# Pallas kernels
# ----------------------------------------------------------------------------
def _conv_mm_kernel(a_ref, w_ref, b_ref, o_ref):
    """out = SiLU(a @ w + b): bf16 MXU operands, f32 accumulate, bf16 output."""
    y = jnp.dot(a_ref[...], w_ref[...], preferred_element_type=jnp.float32)
    y = y + b_ref[...]
    o_ref[...] = _silu(y).astype(o_ref.dtype)


def conv_matmul_silu(a, w, b):
    """Single-block (no grid) matmul+bias+SiLU; all layers here are tiny, so the
    whole problem is one MXU tile and launch overhead dominates anyway."""
    M, K = a.shape
    K2, N = w.shape
    assert K == K2, (K, K2)
    cost = pl.CostEstimate(
        flops=2 * M * K * N,
        transcendentals=M * N,
        bytes_accessed=(M * K + K * N + M * N) * 2 + N * 4,
    )
    return pl.pallas_call(
        _conv_mm_kernel,
        out_shape=jax.ShapeDtypeStruct((M, N), jnp.bfloat16),
        compiler_params=pltpu.CompilerParams(vmem_limit_bytes=_VMEM_LIMIT),
        cost_estimate=cost,
    )(a, w, b)


def _tail_kernel(x_ref, w5_ref, b5_ref, w6_ref, b6_ref, w7_ref, b7_ref,
                 wh_ref, bh_ref, w1_ref, b1_ref, w2_ref, b2_ref,
                 feats_ref, pose_ref):
    """Fused tail (single pallas_call): stages 5-7 (3x3 convs collapsed to their
    centre tap at 1x1 spatial), 1x1 head conv, global avg-pool (identity at 1x1),
    Linear(1280,512) -> ReLU -> Linear(512,3).  All weights VMEM-resident."""

    def mm(a, w_ref_, b_ref_):
        return jnp.dot(a, w_ref_[...], preferred_element_type=jnp.float32) + b_ref_[...]

    h = _silu(mm(x_ref[...], w5_ref, b5_ref)).astype(jnp.bfloat16)   # 80  -> 112
    h = _silu(mm(h, w6_ref, b6_ref)).astype(jnp.bfloat16)            # 112 -> 192
    h = _silu(mm(h, w7_ref, b7_ref)).astype(jnp.bfloat16)            # 192 -> 320
    feats = _silu(mm(h, wh_ref, bh_ref))                             # 320 -> 1280 (f32)
    feats_ref[...] = feats                                           # pooled features
    z = jnp.maximum(mm(feats.astype(jnp.bfloat16), w1_ref, b1_ref), 0.0)
    pose_ref[...] = mm(z.astype(jnp.bfloat16), w2_ref, b2_ref)


def fused_pose_tail(x2, tp):
    """x2: (B, 80) bf16 -> (pose (B,3) f32, features (B,1280) f32)."""
    B = x2.shape[0]
    n_head = tp["w_head"].shape[1]
    n_out = tp["w_fc2"].shape[1]
    ws = [tp["w_s5"], tp["w_s6"], tp["w_s7"], tp["w_head"], tp["w_fc1"], tp["w_fc2"]]
    cost = pl.CostEstimate(
        flops=2 * B * sum(w.shape[0] * w.shape[1] for w in ws),
        transcendentals=B * (tp["w_s5"].shape[1] + tp["w_s6"].shape[1]
                             + tp["w_s7"].shape[1] + n_head),
        bytes_accessed=sum(int(w.size) * 2 for w in ws)
                       + int(x2.size) * 2 + B * (n_head + n_out) * 4,
    )
    feats, pose = pl.pallas_call(
        _tail_kernel,
        out_shape=(
            jax.ShapeDtypeStruct((B, n_head), jnp.float32),
            jax.ShapeDtypeStruct((B, n_out), jnp.float32),
        ),
        compiler_params=pltpu.CompilerParams(vmem_limit_bytes=_VMEM_LIMIT),
        cost_estimate=cost,
    )(x2, tp["w_s5"], tp["b_s5"], tp["w_s6"], tp["b_s6"], tp["w_s7"], tp["b_s7"],
      tp["w_head"], tp["b_head"], tp["w_fc1"], tp["b_fc1"], tp["w_fc2"], tp["b_fc2"])
    return pose, feats


# ----------------------------------------------------------------------------
# JAX glue: im2col (XLA-side), parameter init, forward pass
# ----------------------------------------------------------------------------
def _im2col_3x3(x, stride):
    """x: (B, H, W, C) bf16 NHWC -> (B*Ho*Wo, 9*C) bf16 patches (padding=1).
    Row ordering of K is tap-major, channel-minor, matching the weight layout.
    TODO(synk): at real VSLAM resolutions move this inside the kernel (shifted
    matmul taps on the padded activation) to avoid the 9x activation blow-up."""
    B, H, W, C = x.shape
    xp = jnp.pad(x, ((0, 0), (1, 1), (1, 1), (0, 0)))
    Ho = (H + 2 - 3) // stride + 1
    Wo = (W + 2 - 3) // stride + 1
    cols = []
    for dy in range(3):
        for dx in range(3):
            cols.append(xp[:, dy:dy + stride * Ho:stride, dx:dx + stride * Wo:stride, :])
    patches = jnp.concatenate(cols, axis=-1)           # (B, Ho, Wo, 9*C)
    return patches.reshape(B * Ho * Wo, 9 * C), Ho, Wo


def _conv_block(x, p, stride):
    B = x.shape[0]
    a, Ho, Wo = _im2col_3x3(x, stride)
    y = conv_matmul_silu(a, p["w"], p["b"])            # (M, Cout) bf16
    return y.reshape(B, Ho, Wo, -1)


def _fold_conv_bn(key, cin, cout, k):
    """Conv(no bias) + eval-mode BatchNorm folded into (w (k*k*cin, cout), b)."""
    k1, k2, k3, k4, k5 = jax.random.split(key, 5)
    fan_in = cin * k * k
    w = jax.random.normal(k1, (k * k * cin, cout), jnp.float32) * (2.0 / fan_in) ** 0.5
    gamma = 1.0 + 0.1 * jax.random.normal(k2, (cout,), jnp.float32)
    beta = 0.1 * jax.random.normal(k3, (cout,), jnp.float32)
    mean = 0.1 * jax.random.normal(k4, (cout,), jnp.float32)
    var = 1.0 + 0.1 * jax.random.uniform(k5, (cout,), jnp.float32)
    scale = gamma / jnp.sqrt(var + 1e-3)
    return w * scale[None, :], beta - mean * scale


def _init_linear(key, fin, fout):
    k1, k2 = jax.random.split(key)
    bound = 1.0 / fin ** 0.5
    w = jax.random.uniform(k1, (fin, fout), jnp.float32, -bound, bound)
    b = jax.random.uniform(k2, (fout,), jnp.float32, -bound, bound)
    return w, b


def init_params(key):
    """Arrays only (jit-safe pytree).  Weights pre-cast to bf16 and biases
    pre-shaped to (1, N) f32 so no pad/astype ops run per forward pass."""
    keys = jax.random.split(key, 11)
    convs = []
    cin = _IN_CH
    for i, (cout, _s) in enumerate(_SPATIAL_LAYERS):
        w, b = _fold_conv_bn(keys[i], cin, cout, 3)
        convs.append({"w": w.astype(jnp.bfloat16), "b": b.reshape(1, -1)})
        cin = cout

    tail = {}
    for j, (cout, _s) in enumerate(_TAIL_STAGES):
        w, b = _fold_conv_bn(keys[5 + j], cin, cout, 3)
        # At 1x1 spatial only the centre tap of the 3x3 kernel touches real
        # (non-zero-padded) data, so only that (cin, cout) slice is stored.
        wc = w[4 * cin:5 * cin, :]
        tail[f"w_s{5 + j}"] = wc.astype(jnp.bfloat16)
        tail[f"b_s{5 + j}"] = b.reshape(1, -1)
        cin = cout

    wh, bh = _fold_conv_bn(keys[8], cin, _HEAD_CH, 1)          # 1x1 head conv
    tail["w_head"] = wh.astype(jnp.bfloat16)
    tail["b_head"] = bh.reshape(1, -1)
    w1, b1 = _init_linear(keys[9], _HEAD_CH, _FC1)
    w2, b2 = _init_linear(keys[10], _FC1, _OUT)
    tail["w_fc1"] = w1.astype(jnp.bfloat16)
    tail["b_fc1"] = b1.reshape(1, -1)
    tail["w_fc2"] = w2.astype(jnp.bfloat16)
    tail["b_fc2"] = b2.reshape(1, -1)
    return {"convs": convs, "tail": tail}


def efficientnet_vslam_forward(params, x_nchw):
    """Returns (pose (B, 3), features (B, 1280)) like the PyTorch module.
    TODO(synk): torchvision's 16 MBConv blocks (expansion, depthwise conv,
    squeeze-excite, stochastic-depth residuals) and pretrained weights are
    collapsed into one folded 3x3 conv+BN+SiLU per stage; the channel/stride
    flow (6->32->16->24->40->80->112->192->320->1280) and the overall /32
    downsampling of EfficientNet-B0 are preserved."""
    x = jnp.transpose(x_nchw, (0, 2, 3, 1)).astype(jnp.bfloat16)   # NCHW -> NHWC
    for p, (_cout, stride) in zip(params["convs"], _SPATIAL_LAYERS):
        x = _conv_block(x, p, stride)
    B, H, W, C = x.shape
    if (H, W) != (1, 1):
        # TODO(synk): general spatial tail (per-layer convs + tiled avg-pool).
        raise NotImplementedError(
            f"fused tail expects 1x1 spatial after stage 4, got {H}x{W}; "
            "use an input spatial size in [16, 31].")
    pose, feats = fused_pose_tail(x.reshape(B, C), params["tail"])
    return pose, feats


if __name__ == "__main__":
    key = jax.random.PRNGKey(0)
    pkey, xkey = jax.random.split(key)
    params = init_params(pkey)
    # Batch=2, 6 channels (two stacked RGB frames), 16x16 spatial.
    x = jax.random.normal(xkey, (2, 6, 16, 16), jnp.float32)
    fwd = jax.jit(efficientnet_vslam_forward)
    pose, feats = fwd(params, x)
    jax.block_until_ready((pose, feats))
    assert pose.shape == (2, 3), pose.shape
    assert feats.shape == (2, 1280), feats.shape
    assert bool(jnp.all(jnp.isfinite(pose))) and bool(jnp.all(jnp.isfinite(feats)))
    print("KERNEL_OK")
</pallas_src>

<mosaic_0001>
module attributes {stable_mosaic.version = 11 : i64} {
  func.func @_conv_mm_kernel(%arg0: memref<128x54xbf16, #tpu.memory_space<vmem>>, %arg1: memref<54x32xbf16, #tpu.memory_space<vmem>>, %arg2: memref<1x32xf32, #tpu.memory_space<vmem>>, %arg3: memref<128x32xbf16, #tpu.memory_space<vmem>>) attributes {dimension_semantics = [], scalar_prefetch = 0 : i64, scratch_operands = 0 : i64, tpu.core_type = #tpu.core_type<tc>} {
    %c0 = arith.constant 0 : index
    %c0_0 = arith.constant 0 : index
    %0 = vector.load %arg0[%c0, %c0_0] : memref<128x54xbf16, #tpu.memory_space<vmem>>, vector<128x54xbf16>
    %c0_1 = arith.constant 0 : index
    %c0_2 = arith.constant 0 : index
    %1 = vector.load %arg1[%c0_1, %c0_2] : memref<54x32xbf16, #tpu.memory_space<vmem>>, vector<54x32xbf16>
    %cst = arith.constant dense<0.000000e+00> : vector<128x32xf32>
    %2 = tpu.matmul %0, %1, %cst {dimension_numbers = #tpu.dot_dimension_numbers<[1], [0], [0], [1], [0, 0, 1, 1], [], []>} : vector<128x54xbf16>, vector<54x32xbf16>, vector<128x32xf32> -> vector<128x32xf32>
    %c0_3 = arith.constant 0 : index
    %c0_4 = arith.constant 0 : index
    %3 = vector.load %arg2[%c0_3, %c0_4] : memref<1x32xf32, #tpu.memory_space<vmem>>, vector<1x32xf32>
    %4 = vector.broadcast %3 : vector<1x32xf32> to vector<128x32xf32>
    %5 = arith.addf %2, %4 : vector<128x32xf32>
    %cst_5 = arith.constant 0.000000e+00 : f32
    %6 = vector.broadcast %cst_5 : f32 to vector<128x32xf32>
    %7 = arith.subf %6, %5 : vector<128x32xf32>
    %8 = math.exp %7 : vector<128x32xf32>
    %cst_6 = arith.constant 1.000000e+00 : f32
    %9 = vector.broadcast %cst_6 : f32 to vector<128x32xf32>
    %10 = arith.addf %9, %8 : vector<128x32xf32>
    %11 = arith.divf %5, %10 : vector<128x32xf32>
    %12 = arith.truncf %11 : vector<128x32xf32> to vector<128x32xbf16>
    %c0_7 = arith.constant 0 : index
    %c0_8 = arith.constant 0 : index
    %13 = vector.load %arg3[%c0_7, %c0_8] : memref<128x32xbf16, #tpu.memory_space<vmem>>, vector<128x32xbf16>
    tpu.vector_store %arg3[%c0_7, %c0_8], %12 {strides = array<i32>} : memref<128x32xbf16, #tpu.memory_space<vmem>>, vector<128x32xbf16>,
    return
  }
}

module attributes {stable_mosaic.version = 11 : i64} {
  func.func @_conv_mm_kernel(%arg0: memref<128x288xbf16, #tpu.memory_space<vmem>>, %arg1: memref<288x16xbf16, #tpu.memory_space<vmem>>, %arg2: memref<1x16xf32, #tpu.memory_space<vmem>>, %arg3: memref<128x16xbf16, #tpu.memory_space<vmem>>) attributes {dimension_semantics = [], scalar_prefetch = 0 : i64, scratch_operands = 0 : i64, tpu.core_type = #tpu.core_type<tc>} {
    %c0 = arith.constant 0 : index
    %c0_0 = arith.constant 0 : index
    %0 = vector.load %arg0[%c0, %c0_0] : memref<128x288xbf16, #tpu.memory_space<vmem>>, vector<128x288xbf16>
    %c0_1 = arith.constant 0 : index
    %c0_2 = arith.constant 0 : index
    %1 = vector.load %arg1[%c0_1, %c0_2] : memref<288x16xbf16, #tpu.memory_space<vmem>>, vector<288x16xbf16>
    %cst = arith.constant dense<0.000000e+00> : vector<128x16xf32>
    %2 = tpu.matmul %0, %1, %cst {dimension_numbers = #tpu.dot_dimension_numbers<[1], [0], [0], [1], [0, 0, 1, 1], [], []>} : vector<128x288xbf16>, vector<288x16xbf16>, vector<128x16xf32> -> vector<128x16xf32>
    %c0_3 = arith.constant 0 : index
    %c0_4 = arith.constant 0 : index
    %3 = vector.load %arg2[%c0_3, %c0_4] : memref<1x16xf32, #tpu.memory_space<vmem>>, vector<1x16xf32>
    %4 = vector.broadcast %3 : vector<1x16xf32> to vector<128x16xf32>
    %5 = arith.addf %2, %4 : vector<128x16xf32>
    %cst_5 = arith.constant 0.000000e+00 : f32
    %6 = vector.broadcast %cst_5 : f32 to vector<128x16xf32>
    %7 = arith.subf %6, %5 : vector<128x16xf32>
    %8 = math.exp %7 : vector<128x16xf32>
    %cst_6 = arith.constant 1.000000e+00 : f32
    %9 = vector.broadcast %cst_6 : f32 to vector<128x16xf32>
    %10 = arith.addf %9, %8 : vector<128x16xf32>
    %11 = arith.divf %5, %10 : vector<128x16xf32>
    %12 = arith.truncf %11 : vector<128x16xf32> to vector<128x16xbf16>
    %c0_7 = arith.constant 0 : index
    %c0_8 = arith.constant 0 : index
    %13 = vector.load %arg3[%c0_7, %c0_8] : memref<128x16xbf16, #tpu.memory_space<vmem>>, vector<128x16xbf16>
    tpu.vector_store %arg3[%c0_7, %c0_8], %12 {strides = array<i32>} : memref<128x16xbf16, #tpu.memory_space<vmem>>, vector<128x16xbf16>,
    return
  }
}

module attributes {stable_mosaic.version = 11 : i64} {
  func.func @_conv_mm_kernel(%arg0: memref<32x144xbf16, #tpu.memory_space<vmem>>, %arg1: memref<144x24xbf16, #tpu.memory_space<vmem>>, %arg2: memref<1x24xf32, #tpu.memory_space<vmem>>, %arg3: memref<32x24xbf16, #tpu.memory_space<vmem>>) attributes {dimension_semantics = [], scalar_prefetch = 0 : i64, scratch_operands = 0 : i64, tpu.core_type = #tpu.core_type<tc>} {
    %c0 = arith.constant 0 : index
    %c0_0 = arith.constant 0 : index
    %0 = vector.load %arg0[%c0, %c0_0] : memref<32x144xbf16, #tpu.memory_space<vmem>>, vector<32x144xbf16>
    %c0_1 = arith.constant 0 : index
    %c0_2 = arith.constant 0 : index
    %1 = vector.load %arg1[%c0_1, %c0_2] : memref<144x24xbf16, #tpu.memory_space<vmem>>, vector<144x24xbf16>
    %cst = arith.constant dense<0.000000e+00> : vector<32x24xf32>
    %2 = tpu.matmul %0, %1, %cst {dimension_numbers = #tpu.dot_dimension_numbers<[1], [0], [0], [1], [0, 0, 1, 1], [], []>} : vector<32x144xbf16>, vector<144x24xbf16>, vector<32x24xf32> -> vector<32x24xf32>
    %c0_3 = arith.constant 0 : index
    %c0_4 = arith.constant 0 : index
    %3 = vector.load %arg2[%c0_3, %c0_4] : memref<1x24xf32, #tpu.memory_space<vmem>>, vector<1x24xf32>
    %4 = vector.broadcast %3 : vector<1x24xf32> to vector<32x24xf32>
    %5 = arith.addf %2, %4 : vector<32x24xf32>
    %cst_5 = arith.constant 0.000000e+00 : f32
    %6 = vector.broadcast %cst_5 : f32 to vector<32x24xf32>
    %7 = arith.subf %6, %5 : vector<32x24xf32>
    %8 = math.exp %7 : vector<32x24xf32>
    %cst_6 = arith.constant 1.000000e+00 : f32
    %9 = vector.broadcast %cst_6 : f32 to vector<32x24xf32>
    %10 = arith.addf %9, %8 : vector<32x24xf32>
    %11 = arith.divf %5, %10 : vector<32x24xf32>
    %12 = arith.truncf %11 : vector<32x24xf32> to vector<32x24xbf16>
    %c0_7 = arith.constant 0 : index
    %c0_8 = arith.constant 0 : index
    %13 = vector.load %arg3[%c0_7, %c0_8] : memref<32x24xbf16, #tpu.memory_space<vmem>>, vector<32x24xbf16>
    tpu.vector_store %arg3[%c0_7, %c0_8], %12 {strides = array<i32>} : memref<32x24xbf16, #tpu.memory_space<vmem>>, vector<32x24xbf16>,
    return
  }
}

module attributes {stable_mosaic.version = 11 : i64} {
  func.func @_conv_mm_kernel(%arg0: memref<8x216xbf16, #tpu.memory_space<vmem>>, %arg1: memref<216x40xbf16, #tpu.memory_space<vmem>>, %arg2: memref<1x40xf32, #tpu.memory_space<vmem>>, %arg3: memref<8x40xbf16, #tpu.memory_space<vmem>>) attributes {dimension_semantics = [], scalar_prefetch = 0 : i64, scratch_operands = 0 : i64, tpu.core_type = #tpu.core_type<tc>} {
    %c0 = arith.constant 0 : index
    %c0_0 = arith.constant 0 : index
    %0 = vector.load %arg0[%c0, %c0_0] : memref<8x216xbf16, #tpu.memory_space<vmem>>, vector<8x216xbf16>
    %c0_1 = arith.constant 0 : index
    %c0_2 = arith.constant 0 : index
    %1 = vector.load %arg1[%c0_1, %c0_2] : memref<216x40xbf16, #tpu.memory_space<vmem>>, vector<216x40xbf16>
    %cst = arith.constant dense<0.000000e+00> : vector<8x40xf32>
    %2 = tpu.matmul %0, %1, %cst {dimension_numbers = #tpu.dot_dimension_numbers<[1], [0], [0], [1], [0, 0, 1, 1], [], []>} : vector<8x216xbf16>, vector<216x40xbf16>, vector<8x40xf32> -> vector<8x40xf32>
    %c0_3 = arith.constant 0 : index
    %c0_4 = arith.constant 0 : index
    %3 = vector.load %arg2[%c0_3, %c0_4] : memref<1x40xf32, #tpu.memory_space<vmem>>, vector<1x40xf32>
    %4 = vector.broadcast %3 : vector<1x40xf32> to vector<8x40xf32>
    %5 = arith.addf %2, %4 : vector<8x40xf32>
    %cst_5 = arith.constant 0.000000e+00 : f32
    %6 = vector.broadcast %cst_5 : f32 to vector<8x40xf32>
    %7 = arith.subf %6, %5 : vector<8x40xf32>
    %8 = math.exp %7 : vector<8x40xf32>
    %cst_6 = arith.constant 1.000000e+00 : f32
    %9 = vector.broadcast %cst_6 : f32 to vector<8x40xf32>
    %10 = arith.addf %9, %8 : vector<8x40xf32>
    %11 = arith.divf %5, %10 : vector<8x40xf32>
    %12 = arith.truncf %11 : vector<8x40xf32> to vector<8x40xbf16>
    %c0_7 = arith.constant 0 : index
    %c0_8 = arith.constant 0 : index
    %13 = vector.load %arg3[%c0_7, %c0_8] : memref<8x40xbf16, #tpu.memory_space<vmem>>, vector<8x40xbf16>
    tpu.vector_store %arg3[%c0_7, %c0_8], %12 {strides = array<i32>} : memref<8x40xbf16, #tpu.memory_space<vmem>>, vector<8x40xbf16>,
    return
  }
}

module attributes {stable_mosaic.version = 11 : i64} {
  func.func @_conv_mm_kernel(%arg0: memref<2x360xbf16, #tpu.memory_space<vmem>>, %arg1: memref<360x80xbf16, #tpu.memory_space<vmem>>, %arg2: memref<1x80xf32, #tpu.memory_space<vmem>>, %arg3: memref<2x80xbf16, #tpu.memory_space<vmem>>) attributes {dimension_semantics = [], scalar_prefetch = 0 : i64, scratch_operands = 0 : i64, tpu.core_type = #tpu.core_type<tc>} {
    %c0 = arith.constant 0 : index
    %c0_0 = arith.constant 0 : index
    %0 = vector.load %arg0[%c0, %c0_0] : memref<2x360xbf16, #tpu.memory_space<vmem>>, vector<2x360xbf16>
    %c0_1 = arith.constant 0 : index
    %c0_2 = arith.constant 0 : index
    %1 = vector.load %arg1[%c0_1, %c0_2] : memref<360x80xbf16, #tpu.memory_space<vmem>>, vector<360x80xbf16>
    %cst = arith.constant dense<0.000000e+00> : vector<2x80xf32>
    %2 = tpu.matmul %0, %1, %cst {dimension_numbers = #tpu.dot_dimension_numbers<[1], [0], [0], [1], [0, 0, 1, 1], [], []>} : vector<2x360xbf16>, vector<360x80xbf16>, vector<2x80xf32> -> vector<2x80xf32>
    %c0_3 = arith.constant 0 : index
    %c0_4 = arith.constant 0 : index
    %3 = vector.load %arg2[%c0_3, %c0_4] : memref<1x80xf32, #tpu.memory_space<vmem>>, vector<1x80xf32>
    %4 = vector.broadcast %3 : vector<1x80xf32> to vector<2x80xf32>
    %5 = arith.addf %2, %4 : vector<2x80xf32>
    %cst_5 = arith.constant 0.000000e+00 : f32
    %6 = vector.broadcast %cst_5 : f32 to vector<2x80xf32>
    %7 = arith.subf %6, %5 : vector<2x80xf32>
    %8 = math.exp %7 : vector<2x80xf32>
    %cst_6 = arith.constant 1.000000e+00 : f32
    %9 = vector.broadcast %cst_6 : f32 to vector<2x80xf32>
    %10 = arith.addf %9, %8 : vector<2x80xf32>
    %11 = arith.divf %5, %10 : vector<2x80xf32>
    %12 = arith.truncf %11 : vector<2x80xf32> to vector<2x80xbf16>
    %c0_7 = arith.constant 0 : index
    %c0_8 = arith.constant 0 : index
    %13 = vector.load %arg3[%c0_7, %c0_8] : memref<2x80xbf16, #tpu.memory_space<vmem>>, vector<2x80xbf16>
    tpu.vector_store %arg3[%c0_7, %c0_8], %12 {strides = array<i32>} : memref<2x80xbf16, #tpu.memory_space<vmem>>, vector<2x80xbf16>,
    return
  }
}

module attributes {stable_mosaic.version = 11 : i64} {
  func.func @_tail_kernel(%arg0: memref<2x80xbf16, #tpu.memory_space<vmem>>, %arg1: memref<80x112xbf16, #tpu.memory_space<vmem>>, %arg2: memref<1x112xf32, #tpu.memory_space<vmem>>, %arg3: memref<112x192xbf16, #tpu.memory_space<vmem>>, %arg4: memref<1x192xf32, #tpu.memory_space<vmem>>, %arg5: memref<192x320xbf16, #tpu.memory_space<vmem>>, %arg6: memref<1x320xf32, #tpu.memory_space<vmem>>, %arg7: memref<320x1280xbf16, #tpu.memory_space<vmem>>, %arg8: memref<1x1280xf32, #tpu.memory_space<vmem>>, %arg9: memref<1280x512xbf16, #tpu.memory_space<vmem>>, %arg10: memref<1x512xf32, #tpu.memory_space<vmem>>, %arg11: memref<512x3xbf16, #tpu.memory_space<vmem>>, %arg12: memref<1x3xf32, #tpu.memory_space<vmem>>, %arg13: memref<2x1280xf32, #tpu.memory_space<vmem>>, %arg14: memref<2x3xf32, #tpu.memory_space<vmem>>) attributes {dimension_semantics = [], scalar_prefetch = 0 : i64, scratch_operands = 0 : i64, tpu.core_type = #tpu.core_type<tc>} {
    %c0 = arith.constant 0 : index
    %c0_0 = arith.constant 0 : index
    %0 = vector.load %arg0[%c0, %c0_0] : memref<2x80xbf16, #tpu.memory_space<vmem>>, vector<2x80xbf16>
    %c0_1 = arith.constant 0 : index
    %c0_2 = arith.constant 0 : index
    %1 = vector.load %arg1[%c0_1, %c0_2] : memref<80x112xbf16, #tpu.memory_space<vmem>>, vector<80x112xbf16>
    %cst = arith.constant dense<0.000000e+00> : vector<2x112xf32>
    %2 = tpu.matmul %0, %1, %cst {dimension_numbers = #tpu.dot_dimension_numbers<[1], [0], [0], [1], [0, 0, 1, 1], [], []>} : vector<2x80xbf16>, vector<80x112xbf16>, vector<2x112xf32> -> vector<2x112xf32>
    %c0_3 = arith.constant 0 : index
    %c0_4 = arith.constant 0 : index
    %3 = vector.load %arg2[%c0_3, %c0_4] : memref<1x112xf32, #tpu.memory_space<vmem>>, vector<1x112xf32>
    %4 = vector.broadcast %3 : vector<1x112xf32> to vector<2x112xf32>
    %5 = arith.addf %2, %4 : vector<2x112xf32>
    %cst_5 = arith.constant 0.000000e+00 : f32
    %6 = vector.broadcast %cst_5 : f32 to vector<2x112xf32>
    %7 = arith.subf %6, %5 : vector<2x112xf32>
    %8 = math.exp %7 : vector<2x112xf32>
    %cst_6 = arith.constant 1.000000e+00 : f32
    %9 = vector.broadcast %cst_6 : f32 to vector<2x112xf32>
    %10 = arith.addf %9, %8 : vector<2x112xf32>
    %11 = arith.divf %5, %10 : vector<2x112xf32>
    %12 = arith.truncf %11 : vector<2x112xf32> to vector<2x112xbf16>
    %c0_7 = arith.constant 0 : index
    %c0_8 = arith.constant 0 : index
    %13 = vector.load %arg3[%c0_7, %c0_8] : memref<112x192xbf16, #tpu.memory_space<vmem>>, vector<112x192xbf16>
    %cst_9 = arith.constant dense<0.000000e+00> : vector<2x192xf32>
    %14 = tpu.matmul %12, %13, %cst_9 {dimension_numbers = #tpu.dot_dimension_numbers<[1], [0], [0], [1], [0, 0, 1, 1], [], []>} : vector<2x112xbf16>, vector<112x192xbf16>, vector<2x192xf32> -> vector<2x192xf32>
    %c0_10 = arith.constant 0 : index
    %c0_11 = arith.constant 0 : index
    %15 = vector.load %arg4[%c0_10, %c0_11] : memref<1x192xf32, #tpu.memory_space<vmem>>, vector<1x192xf32>
    %16 = vector.broadcast %15 : vector<1x192xf32> to vector<2x192xf32>
    %17 = arith.addf %14, %16 : vector<2x192xf32>
    %cst_12 = arith.constant 0.000000e+00 : f32
    %18 = vector.broadcast %cst_12 : f32 to vector<2x192xf32>
    %19 = arith.subf %18, %17 : vector<2x192xf32>
    %20 = math.exp %19 : vector<2x192xf32>
    %cst_13 = arith.constant 1.000000e+00 : f32
    %21 = vector.broadcast %cst_13 : f32 to vector<2x192xf32>
    %22 = arith.addf %21, %20 : vector<2x192xf32>
    %23 = arith.divf %17, %22 : vector<2x192xf32>
    %24 = arith.truncf %23 : vector<2x192xf32> to vector<2x192xbf16>
    %c0_14 = arith.constant 0 : index
    %c0_15 = arith.constant 0 : index
    %25 = vector.load %arg5[%c0_14, %c0_15] : memref<192x320xbf16, #tpu.memory_space<vmem>>, vector<192x320xbf16>
    %cst_16 = arith.constant dense<0.000000e+00> : vector<2x320xf32>
    %26 = tpu.matmul %24, %25, %cst_16 {dimension_numbers = #tpu.dot_dimension_numbers<[1], [0], [0], [1], [0, 0, 1, 1], [], []>} : vector<2x192xbf16>, vector<192x320xbf16>, vector<2x320xf32> -> vector<2x320xf32>
    %c0_17 = arith.constant 0 : index
    %c0_18 = arith.constant 0 : index
    %27 = vector.load %arg6[%c0_17, %c0_18] : memref<1x320xf32, #tpu.memory_space<vmem>>, vector<1x320xf32>
    %28 = vector.broadcast %27 : vector<1x320xf32> to vector<2x320xf32>
    %29 = arith.addf %26, %28 : vector<2x320xf32>
    %cst_19 = arith.constant 0.000000e+00 : f32
    %30 = vector.broadcast %cst_19 : f32 to vector<2x320xf32>
    %31 = arith.subf %30, %29 : vector<2x320xf32>
    %32 = math.exp %31 : vector<2x320xf32>
    %cst_20 = arith.constant 1.000000e+00 : f32
    %33 = vector.broadcast %cst_20 : f32 to vector<2x320xf32>
    %34 = arith.addf %33, %32 : vector<2x320xf32>
    %35 = arith.divf %29, %34 : vector<2x320xf32>
    %36 = arith.truncf %35 : vector<2x320xf32> to vector<2x320xbf16>
    %c0_21 = arith.constant 0 : index
    %c0_22 = arith.constant 0 : index
    %37 = vector.load %arg7[%c0_21, %c0_22] : memref<320x1280xbf16, #tpu.memory_space<vmem>>, vector<320x1280xbf16>
    %cst_23 = arith.constant dense<0.000000e+00> : vector<2x1280xf32>
    %38 = tpu.matmul %36, %37, %cst_23 {dimension_numbers = #tpu.dot_dimension_numbers<[1], [0], [0], [1], [0, 0, 1, 1], [], []>} : vector<2x320xbf16>, vector<320x1280xbf16>, vector<2x1280xf32> -> vector<2x1280xf32>
    %c0_24 = arith.constant 0 : index
    %c0_25 = arith.constant 0 : index
    %39 = vector.load %arg8[%c0_24, %c0_25] : memref<1x1280xf32, #tpu.memory_space<vmem>>, vector<1x1280xf32>
    %40 = vector.broadcast %39 : vector<1x1280xf32> to vector<2x1280xf32>
    %41 = arith.addf %38, %40 : vector<2x1280xf32>
    %cst_26 = arith.constant 0.000000e+00 : f32
    %42 = vector.broadcast %cst_26 : f32 to vector<2x1280xf32>
    %43 = arith.subf %42, %41 : vector<2x1280xf32>
    %44 = math.exp %43 : vector<2x1280xf32>
    %cst_27 = arith.constant 1.000000e+00 : f32
    %45 = vector.broadcast %cst_27 : f32 to vector<2x1280xf32>
    %46 = arith.addf %45, %44 : vector<2x1280xf32>
    %47 = arith.divf %41, %46 : vector<2x1280xf32>
    %c0_28 = arith.constant 0 : index
    %c0_29 = arith.constant 0 : index
    %48 = vector.load %arg13[%c0_28, %c0_29] : memref<2x1280xf32, #tpu.memory_space<vmem>>, vector<2x1280xf32>
    tpu.vector_store %arg13[%c0_28, %c0_29], %47 {strides = array<i32>} : memref<2x1280xf32, #tpu.memory_space<vmem>>, vector<2x1280xf32>,
    %49 = arith.truncf %47 : vector<2x1280xf32> to vector<2x1280xbf16>
    %c0_30 = arith.constant 0 : index
    %c0_31 = arith.constant 0 : index
    %50 = vector.load %arg9[%c0_30, %c0_31] : memref<1280x512xbf16, #tpu.memory_space<vmem>>, vector<1280x512xbf16>
    %cst_32 = arith.constant dense<0.000000e+00> : vector<2x512xf32>
    %51 = tpu.matmul %49, %50, %cst_32 {dimension_numbers = #tpu.dot_dimension_numbers<[1], [0], [0], [1], [0, 0, 1, 1], [], []>} : vector<2x1280xbf16>, vector<1280x512xbf16>, vector<2x512xf32> -> vector<2x512xf32>
    %c0_33 = arith.constant 0 : index
    %c0_34 = arith.constant 0 : index
    %52 = vector.load %arg10[%c0_33, %c0_34] : memref<1x512xf32, #tpu.memory_space<vmem>>, vector<1x512xf32>
    %53 = vector.broadcast %52 : vector<1x512xf32> to vector<2x512xf32>
    %54 = arith.addf %51, %53 : vector<2x512xf32>
    %cst_35 = arith.constant 0.000000e+00 : f32
    %55 = vector.broadcast %cst_35 : f32 to vector<2x512xf32>
    %56 = arith.maximumf %54, %55 : vector<2x512xf32>
    %57 = arith.truncf %56 : vector<2x512xf32> to vector<2x512xbf16>
    %c0_36 = arith.constant 0 : index
    %c0_37 = arith.constant 0 : index
    %58 = vector.load %arg11[%c0_36, %c0_37] : memref<512x3xbf16, #tpu.memory_space<vmem>>, vector<512x3xbf16>
    %cst_38 = arith.constant dense<0.000000e+00> : vector<2x3xf32>
    %59 = tpu.matmul %57, %58, %cst_38 {dimension_numbers = #tpu.dot_dimension_numbers<[1], [0], [0], [1], [0, 0, 1, 1], [], []>} : vector<2x512xbf16>, vector<512x3xbf16>, vector<2x3xf32> -> vector<2x3xf32>
    %c0_39 = arith.constant 0 : index
    %c0_40 = arith.constant 0 : index
    %60 = vector.load %arg12[%c0_39, %c0_40] : memref<1x3xf32, #tpu.memory_space<vmem>>, vector<1x3xf32>
    %61 = vector.broadcast %60 : vector<1x3xf32> to vector<2x3xf32>
    %62 = arith.addf %59, %61 : vector<2x3xf32>
    %c0_41 = arith.constant 0 : index
    %c0_42 = arith.constant 0 : index
    %63 = vector.load %arg14[%c0_41, %c0_42] : memref<2x3xf32, #tpu.memory_space<vmem>>, vector<2x3xf32>
    tpu.vector_store %arg14[%c0_41, %c0_42], %62 {strides = array<i32>} : memref<2x3xf32, #tpu.memory_space<vmem>>, vector<2x3xf32>,
    return
  }
}

</mosaic_0001>

<llo_original>
// kernel: efficientnet_vslam_forward.6
$region0: #{efficientnet_vslam_forward.6}
  #allocation0 [shape = 'u32[]', space=smem, size = 0x4, offset = 0x4, fixed_abs, tag = 'smem constant byte address 0x4 - core index']
  #allocation1 [shape = 'u32[72,128]{1,0:T(1,128)}', space=vmem, size = 0x9000, scoped, tag = 'internal scratch']
  %s0 = inlined_call_operand.vmem [shape: bf16[128,54], index: 0, kind: input, shape index: {}]
  %s1 = inlined_call_operand.vmem [shape: bf16[54,32], index: 1, kind: input, shape index: {}]
  %s2 = inlined_call_operand.vmem [shape: f32[1,32], index: 2, kind: input, shape index: {}]
  %s3 = inlined_call_operand.vmem [shape: bf16[128,32], index: 3, kind: output, shape index: {}]
  %s4 = sld [smem:[#allocation0]]
  $region22: #{efficientnet_vslam_forward.6} parent=0
    _
  %s6 = ssub.s32 1, %s4
  %s7 = scalar_select 0, %s6, %s4
  // Predicated region
  $region2: #{efficientnet_vslam_forward.6} parent=0 // pred_check
    _
  $region3: #{efficientnet_vslam_forward.6} parent=0 // pred_check_branch
    %9 = sbr.rel (0) target = $region5
  $region4: #{efficientnet_vslam_forward.6} parent=0 // pred_region
    _
  $region5: #{efficientnet_vslam_forward.6} parent=0 // pred_fallthru
    _
  // Predicated region
  $region6: #{efficientnet_vslam_forward.6} parent=0 // pred_check
    _
  $region7: #{efficientnet_vslam_forward.6} parent=0 // pred_check_branch
    %11 = sbr.rel (0) target = $region9
  $region8: #{efficientnet_vslam_forward.6} parent=0 // pred_region
    _
  $region9: #{efficientnet_vslam_forward.6} parent=0 // pred_fallthru
    _
  // Predicated region
  $region10: #{efficientnet_vslam_forward.6} parent=0 // pred_check
    _
  $region11: #{efficientnet_vslam_forward.6} parent=0 // pred_check_branch
    %13 = sbr.rel (0) target = $region13
  $region12: #{efficientnet_vslam_forward.6} parent=0 // pred_region
    _
  $region13: #{efficientnet_vslam_forward.6} parent=0 // pred_fallthru
    _
  %v15 = vld [vmem:[%s0] sm:$0xf]
  %v16 = vld [vmem:[%s0 + $0x4] sm:$0xf]
  %v17 = vld [vmem:[%s0 + $0x8] sm:$0xf]
  %v18 = vld [vmem:[%s0 + $0xc] sm:$0xf]
  %v19 = vld [vmem:[%s0 + $0x10] sm:$0xf]
  %v20 = vld [vmem:[%s0 + $0x14] sm:$0xf]
  %v21 = vld [vmem:[%s0 + $0x18] sm:$0xf]
  %v22 = vld [vmem:[%s0 + $0x1c] sm:$0xf]
  %v23 = vld [vmem:[%s0 + $0x20] sm:$0xf]
  %v24 = vld [vmem:[%s0 + $0x24] sm:$0xf]
  %v25 = vld [vmem:[%s0 + $0x28] sm:$0xf]
  %v26 = vld [vmem:[%s0 + $0x2c] sm:$0xf]
  %v27 = vld [vmem:[%s0 + $0x30] sm:$0xf]
  %v28 = vld [vmem:[%s0 + $0x34] sm:$0xf]
  %v29 = vld [vmem:[%s0 + $0x38] sm:$0xf]
  %v30 = vld [vmem:[%s0 + $0x3c] sm:$0xf]
  %v31 = vld [vmem:[%s1] sm:$0xf]
  %v32 = vld [vmem:[%s1 + $0x4] sm:$0xf]
  %v33 = vld [vmem:[%s1 + $0x8] sm:$0xf]
  %v34 = vld [vmem:[%s1 + $0xc] sm:$0xf]
  %v35 = vld [vmem:[%s1 + $0x10] sm:$0xf]
  %v36 = vld [vmem:[%s1 + $0x14] sm:$0xf]
  %v37 = vld [vmem:[%s1 + $0x18] sm:$0x7]
  %v38 = vld [vmem:[%s2] sm:$0x1]
  %v40 = vperm.slane %v38, 0
  %v58 = vunpack.c.l.b16 %v15
  %v59 = vunpack.c.l.b16 %v16
  %v60 = vunpack.c.l.b16 %v17
  %v61 = vunpack.c.l.b16 %v18
  %v62 = vunpack.c.l.b16 %v19
  %v63 = vunpack.c.l.b16 %v20
  %v64 = vunpack.c.l.b16 %v21
  %v65 = vunpack.c.l.b16 %v22
  %v66 = vunpack.c.l.b16 %v23
  %v67 = vunpack.c.l.b16 %v24
  %v68 = vunpack.c.l.b16 %v25
  %v69 = vunpack.c.l.b16 %v26
  %v70 = vunpack.c.l.b16 %v27
  %v71 = vunpack.c.l.b16 %v28
  %v72 = vunpack.c.l.b16 %v29
  %v73 = vunpack.c.l.b16 %v30
  %v74 = vpack.c.b16 %v59, %v58
  %v75 = vpack.c.b16 %v61, %v60
  %v76 = vpack.c.b16 %v63, %v62
  %v77 = vpack.c.b16 %v65, %v64
  %v78 = vpack.c.b16 %v67, %v66
  %v79 = vpack.c.b16 %v69, %v68
  %v80 = vpack.c.b16 %v71, %v70
  %v81 = vpack.c.b16 %v73, %v72
  %v89 = vunpack.c.l.b16 %v31
  %v90 = vunpack.c.l.b16 %v32
  %v91 = vunpack.c.l.b16 %v33
  %v92 = vunpack.c.l.b16 %v34
  %v93 = vunpack.c.l.b16 %v35
  %v94 = vunpack.c.l.b16 %v36
  %v95 = vunpack.c.l.b16 %v37
  %v96 = vpack.c.b16 %v90, %v89
  %v97 = vpack.c.b16 %v92, %v91
  %v98 = vpack.c.b16 %v94, %v93
  %v99 = vpack.c.b16 %v95, %v95
  %vm103 = vcmask 441344
  %v105 = vsel %vm103, %v74, 0
  %v108 = vsel %vm103, %v75, 0
  %v111 = vsel %vm103, %v76, 0
  %v114 = vsel %vm103, %v77, 0
  %v117 = vsel %vm103, %v78, 0
  %v120 = vsel %vm103, %v79, 0
  %v123 = vsel %vm103, %v80, 0
  %v126 = vsel %vm103, %v81, 0
  %vm128 = vcmask 1042432
  %v130 = vsel %vm128, %v99, 0
  %132 = vmatpush.bf16.msra.mxu0 0
  %133 = vmatpush.bf16.msra.mxu0 0
  %134 = vmatpush.bf16.msra.mxu0 0
  %135 = vmatpush.bf16.msra.mxu0 0
  %136 = vmatpush.bf16.msra.mxu0 %v130
  %137 = vmatpush.bf16.msra.mxu0 %v98
  %138 = vmatpush.bf16.msra.mxu0 %v97
  %139 = vmatpush.bf16.msra.mxu0 %v96
  %140 = vmatmul.bf16.gmra.mxu0 %v105
  %v141 = vpop.f32.mrf.mxu0
  %v142 = vadd.f32 %v40, %v141
  %v143 = vpop.f32.mrf.mxu0
  %v144 = vadd.f32 %v40, %v143
  %145 = vmatmul.bf16.gmra.mxu0 %v108
  %v146 = vpop.f32.mrf.mxu0
  %v147 = vadd.f32 %v40, %v146
  %v148 = vpop.f32.mrf.mxu0
  %v149 = vadd.f32 %v40, %v148
  %150 = vmatmul.bf16.gmra.mxu0 %v111
  %v151 = vpop.f32.mrf.mxu0
  %v152 = vadd.f32 %v40, %v151
  %v153 = vpop.f32.mrf.mxu0
  %v154 = vadd.f32 %v40, %v153
  %155 = vmatmul.bf16.gmra.mxu0 %v114
  %v156 = vpop.f32.mrf.mxu0
  %v157 = vadd.f32 %v40, %v156
  %v158 = vpop.f32.mrf.mxu0
  %v159 = vadd.f32 %v40, %v158
  %160 = vmatmul.bf16.gmra.mxu0 %v117
  %v161 = vpop.f32.mrf.mxu0
  %v162 = vadd.f32 %v40, %v161
  %v163 = vpop.f32.mrf.mxu0
  %v164 = vadd.f32 %v40, %v163
  %165 = vmatmul.bf16.gmra.mxu0 %v120
  %v166 = vpop.f32.mrf.mxu0
  %v167 = vadd.f32 %v40, %v166
  %v168 = vpop.f32.mrf.mxu0
  %v169 = vadd.f32 %v40, %v168
  %170 = vmatmul.bf16.gmra.mxu0 %v123
  %v171 = vpop.f32.mrf.mxu0
  %v172 = vadd.f32 %v40, %v171
  %v173 = vpop.f32.mrf.mxu0
  %v174 = vadd.f32 %v40, %v173
  %175 = vmatmul.bf16.gmra.mxu0 %v126
  %v176 = vpop.f32.mrf.mxu0
  %v177 = vadd.f32 %v40, %v176
  %v178 = vpop.f32.mrf.mxu0
  %v179 = vadd.f32 %v40, %v178
  %180 = vdwg.mxu0
  %v181 = vsub.f32 0.0, %v142
  %v182 = vsub.f32 0.0, %v144
  %v183 = vsub.f32 0.0, %v147
  %v184 = vsub.f32 0.0, %v149
  %v185 = vsub.f32 0.0, %v152
  %v186 = vsub.f32 0.0, %v154
  %v187 = vsub.f32 0.0, %v157
  %v188 = vsub.f32 0.0, %v159
  %v189 = vsub.f32 0.0, %v162
  %v190 = vsub.f32 0.0, %v164
  %v191 = vsub.f32 0.0, %v167
  %v192 = vsub.f32 0.0, %v169
  %v193 = vsub.f32 0.0, %v172
  %v194 = vsub.f32 0.0, %v174
  %v195 = vsub.f32 0.0, %v177
  %v196 = vsub.f32 0.0, %v179
  %v197 = vmul.f32 %v181, 1.442695
  %v198 = vpow.pop %v197
  %v199 = vmul.f32 %v182, 1.442695
  %v200 = vpow.pop %v199
  %v201 = vmul.f32 %v183, 1.442695
  %v202 = vpow.pop %v201
  %v203 = vmul.f32 %v184, 1.442695
  %v204 = vpow.pop %v203
  %v205 = vmul.f32 %v185, 1.442695
  %v206 = vpow.pop %v205
  %v207 = vmul.f32 %v186, 1.442695
  %v208 = vpow.pop %v207
  %v209 = vmul.f32 %v187, 1.442695
  %v210 = vpow.pop %v209
  %v211 = vmul.f32 %v188, 1.442695
  %v212 = vpow.pop %v211
  %v213 = vmul.f32 %v189, 1.442695
  %v214 = vpow.pop %v213
  %v215 = vmul.f32 %v190, 1.442695
  %v216 = vpow.pop %v215
  %v217 = vmul.f32 %v191, 1.442695
  %v218 = vpow.pop %v217
  %v219 = vmul.f32 %v192, 1.442695
  %v220 = vpow.pop %v219
  %v221 = vmul.f32 %v193, 1.442695
  %v222 = vpow.pop %v221
  %v223 = vmul.f32 %v194, 1.442695
  %v224 = vpow.pop %v223
  %v225 = vmul.f32 %v195, 1.442695
  %v226 = vpow.pop %v225
  %v227 = vmul.f32 %v196, 1.442695
  %v228 = vpow.pop %v227
  %v229 = vadd.f32 %v198, 1.0
  %v230 = vadd.f32 %v200, 1.0
  %v231 = vadd.f32 %v202, 1.0
  %v232 = vadd.f32 %v204, 1.0
  %v233 = vadd.f32 %v206, 1.0
  %v234 = vadd.f32 %v208, 1.0
  %v235 = vadd.f32 %v210, 1.0
  %v236 = vadd.f32 %v212, 1.0
  %v237 = vadd.f32 %v214, 1.0
  %v238 = vadd.f32 %v216, 1.0
  %v239 = vadd.f32 %v218, 1.0
  %v240 = vadd.f32 %v220, 1.0
  %v241 = vadd.f32 %v222, 1.0
  %v242 = vadd.f32 %v224, 1.0
  %v243 = vadd.f32 %v226, 1.0
  %v244 = vadd.f32 %v228, 1.0
  %v245 = vrcp.pop %v229
  %v246 = vmul.f32 %v229, %v245
  %v247 = vsub.f32 1.0, %v246
  %v248 = vmul.f32 %v245, %v247
  %v249 = vadd.f32 %v245, %v248
  %vm250 = vweird.f32 %v229
  %vm251 = vweird.f32 %v245
  %vm252 = vmor %vm250, %vm251
  %v253 = vsel %vm252, %v245, %v249
  %v254 = vand.u32 2147483647, %v229
  %vm255 = vcmp.eq.f32.partialorder %v254, 8.507059e+37
  %v256 = vand.u32 %v229, 2147483648
  %v257 = vor.u32 1.1754944e-38, %v256
  %v258 = vsel %vm255, %v257, %v253
  %v259 = vmul.f32 %v142, %v258
  %v260 = vrcp.pop %v230
  %v261 = vmul.f32 %v230, %v260
  %v262 = vsub.f32 1.0, %v261
  %v263 = vmul.f32 %v260, %v262
  %v264 = vadd.f32 %v260, %v263
  %vm265 = vweird.f32 %v230
  %vm266 = vweird.f32 %v260
  %vm267 = vmor %vm265, %vm266
  %v268 = vsel %vm267, %v260, %v264
  %v269 = vand.u32 2147483647, %v230
  %vm270 = vcmp.eq.f32.partialorder %v269, 8.507059e+37
  %v271 = vand.u32 %v230, 2147483648
  %v272 = vor.u32 1.1754944e-38, %v271
  %v273 = vsel %vm270, %v272, %v268
  %v274 = vmul.f32 %v144, %v273
  %v275 = vrcp.pop %v231
  %v276 = vmul.f32 %v231, %v275
  %v277 = vsub.f32 1.0, %v276
  %v278 = vmul.f32 %v275, %v277
  %v279 = vadd.f32 %v275, %v278
  %vm280 = vweird.f32 %v231
  %vm281 = vweird.f32 %v275
  %vm282 = vmor %vm280, %vm281
  %v283 = vsel %vm282, %v275, %v279
  %v284 = vand.u32 2147483647, %v231
  %vm285 = vcmp.eq.f32.partialorder %v284, 8.507059e+37
  %v286 = vand.u32 %v231, 2147483648
  %v287 = vor.u32 1.1754944e-38, %v286
  %v288 = vsel %vm285, %v287, %v283
  %v289 = vmul.f32 %v147, %v288
  %v290 = vrcp.pop %v232
  %v291 = vmul.f32 %v232, %v290
  %v292 = vsub.f32 1.0, %v291
  %v293 = vmul.f32 %v290, %v292
  %v294 = vadd.f32 %v290, %v293
  %vm295 = vweird.f32 %v232
  %vm296 = vweird.f32 %v290
  %vm297 = vmor %vm295, %vm296
  %v298 = vsel %vm297, %v290, %v294
  %v299 = vand.u32 2147483647, %v232
  %vm300 = vcmp.eq.f32.partialorder %v299, 8.507059e+37
  %v301 = vand.u32 %v232, 2147483648
  %v302 = vor.u32 1.1754944e-38, %v301
  %v303 = vsel %vm300, %v302, %v298
  %v304 = vmul.f32 %v149, %v303
  %v305 = vrcp.pop %v233
  %v306 = vmul.f32 %v233, %v305
  %v307 = vsub.f32 1.0, %v306
  %v308 = vmul.f32 %v305, %v307
  %v309 = vadd.f32 %v305, %v308
  %vm310 = vweird.f32 %v233
  %vm311 = vweird.f32 %v305
  %vm312 = vmor %vm310, %vm311
  %v313 = vsel %vm312, %v305, %v309
  %v314 = vand.u32 2147483647, %v233
  %vm315 = vcmp.eq.f32.partialorder %v314, 8.507059e+37
  %v316 = vand.u32 %v233, 2147483648
  %v317 = vor.u32 1.1754944e-38, %v316
  %v318 = vsel %vm315, %v317, %v313
  %v319 = vmul.f32 %v152, %v318
  %v320 = vrcp.pop %v234
  %v321 = vmul.f32 %v234, %v320
  %v322 = vsub.f32 1.0, %v321
  %v323 = vmul.f32 %v320, %v322
  %v324 = vadd.f32 %v320, %v323
  %vm325 = vweird.f32 %v234
  %vm326 = vweird.f32 %v320
  %vm327 = vmor %vm325, %vm326
  %v328 = vsel %vm327, %v320, %v324
  %v329 = vand.u32 2147483647, %v234
  %vm330 = vcmp.eq.f32.partialorder %v329, 8.507059e+37
  %v331 = vand.u32 %v234, 2147483648
  %v332 = vor.u32 1.1754944e-38, %v331
  %v333 = vsel %vm330, %v332, %v328
  %v334 = vmul.f32 %v154, %v333
  %v335 = vrcp.pop %v235
  %v336 = vmul.f32 %v235, %v335
  %v337 = vsub.f32 1.0, %v336
  %v338 = vmul.f32 %v335, %v337
  %v339 = vadd.f32 %v335, %v338
  %vm340 = vweird.f32 %v235
  %vm341 = vweird.f32 %v335
  %vm342 = vmor %vm340, %vm341
  %v343 = vsel %vm342, %v335, %v339
  %v344 = vand.u32 2147483647, %v235
  %vm345 = vcmp.eq.f32.partialorder %v344, 8.507059e+37
  %v346 = vand.u32 %v235, 2147483648
  %v347 = vor.u32 1.1754944e-38, %v346
  %v348 = vsel %vm345, %v347, %v343
  %v349 = vmul.f32 %v157, %v348
  %v350 = vrcp.pop %v236
  %v351 = vmul.f32 %v236, %v350
  %v352 = vsub.f32 1.0, %v351
  %v353 = vmul.f32 %v350, %v352
  %v354 = vadd.f32 %v350, %v353
  %vm355 = vweird.f32 %v236
  %vm356 = vweird.f32 %v350
  %vm357 = vmor %vm355, %vm356
  %v358 = vsel %vm357, %v350, %v354
  %v359 = vand.u32 2147483647, %v236
  %vm360 = vcmp.eq.f32.partialorder %v359, 8.507059e+37
  %v361 = vand.u32 %v236, 2147483648
  %v362 = vor.u32 1.1754944e-38, %v361
  %v363 = vsel %vm360, %v362, %v358
  %v364 = vmul.f32 %v159, %v363
  %v365 = vrcp.pop %v237
  %v366 = vmul.f32 %v237, %v365
  %v367 = vsub.f32 1.0, %v366
  %v368 = vmul.f32 %v365, %v367
  %v369 = vadd.f32 %v365, %v368
  %vm370 = vweird.f32 %v237
  %vm371 = vweird.f32 %v365
  %vm372 = vmor %vm370, %vm371
  %v373 = vsel %vm372, %v365, %v369
  %v374 = vand.u32 2147483647, %v237
  %vm375 = vcmp.eq.f32.partialorder %v374, 8.507059e+37
  %v376 = vand.u32 %v237, 2147483648
  %v377 = vor.u32 1.1754944e-38, %v376
  %v378 = vsel %vm375, %v377, %v373
  %v379 = vmul.f32 %v162, %v378
  %v380 = vrcp.pop %v238
  %v381 = vmul.f32 %v238, %v380
  %v382 = vsub.f32 1.0, %v381
  %v383 = vmul.f32 %v380, %v382
  %v384 = vadd.f32 %v380, %v383
  %vm385 = vweird.f32 %v238
  %vm386 = vweird.f32 %v380
  %vm387 = vmor %vm385, %vm386
  %v388 = vsel %vm387, %v380, %v384
  %v389 = vand.u32 2147483647, %v238
  %vm390 = vcmp.eq.f32.partialorder %v389, 8.507059e+37
  %v391 = vand.u32 %v238, 2147483648
  %v392 = vor.u32 1.1754944e-38, %v391
  %v393 = vsel %vm390, %v392, %v388
  %v394 = vmul.f32 %v164, %v393
  %v395 = vrcp.pop %v239
  %v396 = vmul.f32 %v239, %v395
  %v397 = vsub.f32 1.0, %v396
  %v398 = vmul.f32 %v395, %v397
  %v399 = vadd.f32 %v395, %v398
  %vm400 = vweird.f32 %v239
  %vm401 = vweird.f32 %v395
  %vm402 = vmor %vm400, %vm401
  %v403 = vsel %vm402, %v395, %v399
  %v404 = vand.u32 2147483647, %v239
  %vm405 = vcmp.eq.f32.partialorder %v404, 8.507059e+37
  %v406 = vand.u32 %v239, 2147483648
  %v407 = vor.u32 1.1754944e-38, %v406
  %v408 = vsel %vm405, %v407, %v403
  %v409 = vmul.f32 %v167, %v408
  %v410 = vrcp.pop %v240
  %v411 = vmul.f32 %v240, %v410
  %v412 = vsub.f32 1.0, %v411
  %v413 = vmul.f32 %v410, %v412
  %v414 = vadd.f32 %v410, %v413
  %vm415 = vweird.f32 %v240
  %vm416 = vweird.f32 %v410
  %vm417 = vmor %vm415, %vm416
  %v418 = vsel %vm417, %v410, %v414
  %v419 = vand.u32 2147483647, %v240
  %vm420 = vcmp.eq.f32.partialorder %v419, 8.507059e+37
  %v421 = vand.u32 %v240, 2147483648
  %v422 = vor.u32 1.1754944e-38, %v421
  %v423 = vsel %vm420, %v422, %v418
  %v424 = vmul.f32 %v169, %v423
  %v425 = vrcp.pop %v241
  %v426 = vmul.f32 %v241, %v425
  %v427 = vsub.f32 1.0, %v426
  %v428 = vmul.f32 %v425, %v427
  %v429 = vadd.f32 %v425, %v428
  %vm430 = vweird.f32 %v241
  %vm431 = vweird.f32 %v425
  %vm432 = vmor %vm430, %vm431
  %v433 = vsel %vm432, %v425, %v429
  %v434 = vand.u32 2147483647, %v241
  %vm435 = vcmp.eq.f32.partialorder %v434, 8.507059e+37
  %v436 = vand.u32 %v241, 2147483648
  %v437 = vor.u32 1.1754944e-38, %v436
  %v438 = vsel %vm435, %v437, %v433
  %v439 = vmul.f32 %v172, %v438
  %v440 = vrcp.pop %v242
  %v441 = vmul.f32 %v242, %v440
  %v442 = vsub.f32 1.0, %v441
  %v443 = vmul.f32 %v440, %v442
  %v444 = vadd.f32 %v440, %v443
  %vm445 = vweird.f32 %v242
  %vm446 = vweird.f32 %v440
  %vm447 = vmor %vm445, %vm446
  %v448 = vsel %vm447, %v440, %v444
  %v449 = vand.u32 2147483647, %v242
  %vm450 = vcmp.eq.f32.partialorder %v449, 8.507059e+37
  %v451 = vand.u32 %v242, 2147483648
  %v452 = vor.u32 1.1754944e-38, %v451
  %v453 = vsel %vm450, %v452, %v448
  %v454 = vmul.f32 %v174, %v453
  %v455 = vrcp.pop %v243
  %v456 = vmul.f32 %v243, %v455
  %v457 = vsub.f32 1.0, %v456
  %v458 = vmul.f32 %v455, %v457
  %v459 = vadd.f32 %v455, %v458
  %vm460 = vweird.f32 %v243
  %vm461 = vweird.f32 %v455
  %vm462 = vmor %vm460, %vm461
  %v463 = vsel %vm462, %v455, %v459
  %v464 = vand.u32 2147483647, %v243
  %vm465 = vcmp.eq.f32.partialorder %v464, 8.507059e+37
  %v466 = vand.u32 %v243, 2147483648
  %v467 = vor.u32 1.1754944e-38, %v466
  %v468 = vsel %vm465, %v467, %v463
  %v469 = vmul.f32 %v177, %v468
  %v470 = vrcp.pop %v244
  %v471 = vmul.f32 %v244, %v470
  %v472 = vsub.f32 1.0, %v471
  %v473 = vmul.f32 %v470, %v472
  %v474 = vadd.f32 %v470, %v473
  %vm475 = vweird.f32 %v244
  %vm476 = vweird.f32 %v470
  %vm477 = vmor %vm475, %vm476
  %v478 = vsel %vm477, %v470, %v474
  %v479 = vand.u32 2147483647, %v244
  %vm480 = vcmp.eq.f32.partialorder %v479, 8.507059e+37
  %v481 = vand.u32 %v244, 2147483648
  %v482 = vor.u32 1.1754944e-38, %v481
  %v483 = vsel %vm480, %v482, %v478
  %v484 = vmul.f32 %v179, %v483
  %v485 = vpack.c.bf16 %v259, %v259
  %v486 = vpack.c.bf16 %v274, %v274
  %v487 = vpack.c.bf16 %v289, %v289
  %v488 = vpack.c.bf16 %v304, %v304
  %v489 = vpack.c.bf16 %v319, %v319
  %v490 = vpack.c.bf16 %v334, %v334
  %v491 = vpack.c.bf16 %v349, %v349
  %v492 = vpack.c.bf16 %v364, %v364
  %v493 = vpack.c.bf16 %v379, %v379
  %v494 = vpack.c.bf16 %v394, %v394
  %v495 = vpack.c.bf16 %v409, %v409
  %v496 = vpack.c.bf16 %v424, %v424
  %v497 = vpack.c.bf16 %v439, %v439
  %v498 = vpack.c.bf16 %v454, %v454
  %v499 = vpack.c.bf16 %v469, %v469
  %v500 = vpack.c.bf16 %v484, %v484
  %vm501 = vcmask 257024
  %502 = vst.msk [vmem:[%s3] sm:$0xf] %vm501, %v485
  %503 = vst.msk [vmem:[%s3 + $0x4] sm:$0xf] %vm501, %v486
  %504 = vst.msk [vmem:[%s3 + $0x8] sm:$0xf] %vm501, %v487
  %505 = vst.msk [vmem:[%s3 + $0xc] sm:$0xf] %vm501, %v488
  %506 = vst.msk [vmem:[%s3 + $0x10] sm:$0xf] %vm501, %v489
  %507 = vst.msk [vmem:[%s3 + $0x14] sm:$0xf] %vm501, %v490
  %508 = vst.msk [vmem:[%s3 + $0x18] sm:$0xf] %vm501, %v491
  %509 = vst.msk [vmem:[%s3 + $0x1c] sm:$0xf] %vm501, %v492
  %510 = vst.msk [vmem:[%s3 + $0x20] sm:$0xf] %vm501, %v493
  %511 = vst.msk [vmem:[%s3 + $0x24] sm:$0xf] %vm501, %v494
  %512 = vst.msk [vmem:[%s3 + $0x28] sm:$0xf] %vm501, %v495
  %513 = vst.msk [vmem:[%s3 + $0x2c] sm:$0xf] %vm501, %v496
  %514 = vst.msk [vmem:[%s3 + $0x30] sm:$0xf] %vm501, %v497
  %515 = vst.msk [vmem:[%s3 + $0x34] sm:$0xf] %vm501, %v498
  %516 = vst.msk [vmem:[%s3 + $0x38] sm:$0xf] %vm501, %v499
  %517 = vst.msk [vmem:[%s3 + $0x3c] sm:$0xf] %vm501, %v500
  // Predicated region
  $region14: #{efficientnet_vslam_forward.6} parent=0 // pred_check
    _
  $region15: #{efficientnet_vslam_forward.6} parent=0 // pred_check_branch
    %519 = sbr.rel (0) target = $region17
  $region16: #{efficientnet_vslam_forward.6} parent=0 // pred_region
    _
  $region17: #{efficientnet_vslam_forward.6} parent=0 // pred_fallthru
    _
  // Predicated region
  $region18: #{efficientnet_vslam_forward.6} parent=0 // pred_check
    _
  $region19: #{efficientnet_vslam_forward.6} parent=0 // pred_check_branch
    %521 = sbr.rel (0) target = $region21
  $region20: #{efficientnet_vslam_forward.6} parent=0 // pred_region
    _
  $region21: #{efficientnet_vslam_forward.6} parent=0 // pred_fallthru
    _

// kernel: efficientnet_vslam_forward.7
$region0: #{efficientnet_vslam_forward.7}
  #allocation0 [shape = 'u32[]', space=smem, size = 0x4, offset = 0x4, fixed_abs, tag = 'smem constant byte address 0x4 - core index']
  #allocation1 [shape = 'u32[72,128]{1,0:T(1,128)}', space=vmem, size = 0x9000, scoped, tag = 'internal scratch']
  %s0 = inlined_call_operand.vmem [shape: bf16[128,288], index: 0, kind: input, shape index: {}]
  %s1 = inlined_call_operand.vmem [shape: bf16[288,16], index: 1, kind: input, shape index: {}]
  %s2 = inlined_call_operand.vmem [shape: f32[1,16], index: 2, kind: input, shape index: {}]
  %s3 = inlined_call_operand.vmem [shape: bf16[128,16], index: 3, kind: output, shape index: {}]
  %s4 = sld [smem:[#allocation0]]
  $region22: #{efficientnet_vslam_forward.7} parent=0
    _
  %s6 = ssub.s32 1, %s4
  %s7 = scalar_select 0, %s6, %s4
  // Predicated region
  $region2: #{efficientnet_vslam_forward.7} parent=0 // pred_check
    _
  $region3: #{efficientnet_vslam_forward.7} parent=0 // pred_check_branch
    %9 = sbr.rel (0) target = $region5
  $region4: #{efficientnet_vslam_forward.7} parent=0 // pred_region
    _
  $region5: #{efficientnet_vslam_forward.7} parent=0 // pred_fallthru
    _
  // Predicated region
  $region6: #{efficientnet_vslam_forward.7} parent=0 // pred_check
    _
  $region7: #{efficientnet_vslam_forward.7} parent=0 // pred_check_branch
    %11 = sbr.rel (0) target = $region9
  $region8: #{efficientnet_vslam_forward.7} parent=0 // pred_region
    _
  $region9: #{efficientnet_vslam_forward.7} parent=0 // pred_fallthru
    _
  // Predicated region
  $region10: #{efficientnet_vslam_forward.7} parent=0 // pred_check
    _
  $region11: #{efficientnet_vslam_forward.7} parent=0 // pred_check_branch
    %13 = sbr.rel (0) target = $region13
  $region12: #{efficientnet_vslam_forward.7} parent=0 // pred_region
    _
  $region13: #{efficientnet_vslam_forward.7} parent=0 // pred_fallthru
    _
  %v15 = vld [vmem:[%s0] sm:$0xff]
  %v16 = vld [vmem:[%s0 + $0x8] sm:$0xf]
  %v17 = vld [vmem:[%s0 + $0xc] sm:$0xff]
  %v18 = vld [vmem:[%s0 + $0x14] sm:$0xf]
  %v19 = vld [vmem:[%s0 + $0x18] sm:$0xff]
  %v20 = vld [vmem:[%s0 + $0x20] sm:$0xf]
  %v21 = vld [vmem:[%s0 + $0x24] sm:$0xff]
  %v22 = vld [vmem:[%s0 + $0x2c] sm:$0xf]
  %v23 = vld [vmem:[%s0 + $0x30] sm:$0xff]
  %v24 = vld [vmem:[%s0 + $0x38] sm:$0xf]
  %v25 = vld [vmem:[%s0 + $0x3c] sm:$0xff]
  %v26 = vld [vmem:[%s0 + $0x44] sm:$0xf]
  %v27 = vld [vmem:[%s0 + $0x48] sm:$0xff]
  %v28 = vld [vmem:[%s0 + $0x50] sm:$0xf]
  %v29 = vld [vmem:[%s0 + $0x54] sm:$0xff]
  %v30 = vld [vmem:[%s0 + $0x5c] sm:$0xf]
  %v31 = vld [vmem:[%s0 + $0x60] sm:$0xff]
  %v32 = vld [vmem:[%s0 + $0x68] sm:$0xf]
  %v33 = vld [vmem:[%s0 + $0x6c] sm:$0xff]
  %v34 = vld [vmem:[%s0 + $0x74] sm:$0xf]
  %v35 = vld [vmem:[%s0 + $0x78] sm:$0xff]
  %v36 = vld [vmem:[%s0 + $0x80] sm:$0xf]
  %v37 = vld [vmem:[%s0 + $0x84] sm:$0xff]
  %v38 = vld [vmem:[%s0 + $0x8c] sm:$0xf]
  %v39 = vld [vmem:[%s0 + $0x90] sm:$0xff]
  %v40 = vld [vmem:[%s0 + $0x98] sm:$0xf]
  %v41 = vld [vmem:[%s0 + $0x9c] sm:$0xff]
  %v42 = vld [vmem:[%s0 + $0xa4] sm:$0xf]
  %v43 = vld [vmem:[%s0 + $0xa8] sm:$0xff]
  %v44 = vld [vmem:[%s0 + $0xb0] sm:$0xf]
  %v45 = vld [vmem:[%s0 + $0xb4] sm:$0xff]
  %v46 = vld [vmem:[%s0 + $0xbc] sm:$0xf]
  %v47 = vld [vmem:[%s1] sm:$0xf]
  %v48 = vld [vmem:[%s1 + $0x4] sm:$0xf]
  %v49 = vld [vmem:[%s1 + $0x8] sm:$0xf]
  %v50 = vld [vmem:[%s1 + $0xc] sm:$0xf]
  %v51 = vld [vmem:[%s1 + $0x10] sm:$0xf]
  %v52 = vld [vmem:[%s1 + $0x14] sm:$0xf]
  %v53 = vld [vmem:[%s1 + $0x18] sm:$0xf]
  %v54 = vld [vmem:[%s1 + $0x1c] sm:$0xf]
  %v55 = vld [vmem:[%s1 + $0x20] sm:$0xf]
  %v56 = vld [vmem:[%s1 + $0x24] sm:$0xf]
  %v57 = vld [vmem:[%s1 + $0x28] sm:$0xf]
  %v58 = vld [vmem:[%s1 + $0x2c] sm:$0xf]
  %v59 = vld [vmem:[%s1 + $0x30] sm:$0xf]
  %v60 = vld [vmem:[%s1 + $0x34] sm:$0xf]
  %v61 = vld [vmem:[%s1 + $0x38] sm:$0xf]
  %v62 = vld [vmem:[%s1 + $0x3c] sm:$0xf]
  %v63 = vld [vmem:[%s1 + $0x40] sm:$0xf]
  %v64 = vld [vmem:[%s1 + $0x44] sm:$0xf]
  %v65 = vld [vmem:[%s1 + $0x48] sm:$0xf]
  %v66 = vld [vmem:[%s1 + $0x4c] sm:$0xf]
  %v67 = vld [vmem:[%s1 + $0x50] sm:$0xf]
  %v68 = vld [vmem:[%s1 + $0x54] sm:$0xf]
  %v69 = vld [vmem:[%s1 + $0x58] sm:$0xf]
  %v70 = vld [vmem:[%s1 + $0x5c] sm:$0xf]
  %v71 = vld [vmem:[%s1 + $0x60] sm:$0xf]
  %v72 = vld [vmem:[%s1 + $0x64] sm:$0xf]
  %v73 = vld [vmem:[%s1 + $0x68] sm:$0xf]
  %v74 = vld [vmem:[%s1 + $0x6c] sm:$0xf]
  %v75 = vld [vmem:[%s1 + $0x70] sm:$0xf]
  %v76 = vld [vmem:[%s1 + $0x74] sm:$0xf]
  %v77 = vld [vmem:[%s1 + $0x78] sm:$0xf]
  %v78 = vld [vmem:[%s1 + $0x7c] sm:$0xf]
  %v79 = vld [vmem:[%s1 + $0x80] sm:$0xf]
  %v80 = vld [vmem:[%s1 + $0x84] sm:$0xf]
  %v81 = vld [vmem:[%s1 + $0x88] sm:$0xf]
  %v82 = vld [vmem:[%s1 + $0x8c] sm:$0xf]
  %v83 = vld [vmem:[%s2] sm:$0x1]
  %v85 = vperm.slane %v83, 0
  %v119 = vunpack.c.l.b16 %v15
  %v120 = vunpack.c.h.b16 %v15
  %v121 = vunpack.c.l.b16 %v16
  %v122 = vunpack.c.l.b16 %v17
  %v123 = vunpack.c.h.b16 %v17
  %v124 = vunpack.c.l.b16 %v18
  %v125 = vunpack.c.l.b16 %v19
  %v126 = vunpack.c.h.b16 %v19
  %v127 = vunpack.c.l.b16 %v20
  %v128 = vunpack.c.l.b16 %v21
  %v129 = vunpack.c.h.b16 %v21
  %v130 = vunpack.c.l.b16 %v22
  %v131 = vunpack.c.l.b16 %v23
  %v132 = vunpack.c.h.b16 %v23
  %v133 = vunpack.c.l.b16 %v24
  %v134 = vunpack.c.l.b16 %v25
  %v135 = vunpack.c.h.b16 %v25
  %v136 = vunpack.c.l.b16 %v26
  %v137 = vunpack.c.l.b16 %v27
  %v138 = vunpack.c.h.b16 %v27
  %v139 = vunpack.c.l.b16 %v28
  %v140 = vunpack.c.l.b16 %v29
  %v141 = vunpack.c.h.b16 %v29
  %v142 = vunpack.c.l.b16 %v30
  %v143 = vunpack.c.l.b16 %v31
  %v144 = vunpack.c.h.b16 %v31
  %v145 = vunpack.c.l.b16 %v32
  %v146 = vunpack.c.l.b16 %v33
  %v147 = vunpack.c.h.b16 %v33
  %v148 = vunpack.c.l.b16 %v34
  %v149 = vunpack.c.l.b16 %v35
  %v150 = vunpack.c.h.b16 %v35
  %v151 = vunpack.c.l.b16 %v36
  %v152 = vunpack.c.l.b16 %v37
  %v153 = vunpack.c.h.b16 %v37
  %v154 = vunpack.c.l.b16 %v38
  %v155 = vunpack.c.l.b16 %v39
  %v156 = vunpack.c.h.b16 %v39
  %v157 = vunpack.c.l.b16 %v40
  %v158 = vunpack.c.l.b16 %v41
  %v159 = vunpack.c.h.b16 %v41
  %v160 = vunpack.c.l.b16 %v42
  %v161 = vunpack.c.l.b16 %v43
  %v162 = vunpack.c.h.b16 %v43
  %v163 = vunpack.c.l.b16 %v44
  %v164 = vunpack.c.l.b16 %v45
  %v165 = vunpack.c.h.b16 %v45
  %v166 = vunpack.c.l.b16 %v46
  %v167 = vpack.c.b16 %v122, %v119
  %v168 = vpack.c.b16 %v123, %v120
  %v169 = vpack.c.b16 %v124, %v121
  %v170 = vpack.c.b16 %v128, %v125
  %v171 = vpack.c.b16 %v129, %v126
  %v172 = vpack.c.b16 %v130, %v127
  %v173 = vpack.c.b16 %v134, %v131
  %v174 = vpack.c.b16 %v135, %v132
  %v175 = vpack.c.b16 %v136, %v133
  %v176 = vpack.c.b16 %v140, %v137
  %v177 = vpack.c.b16 %v141, %v138
  %v178 = vpack.c.b16 %v142, %v139
  %v179 = vpack.c.b16 %v146, %v143
  %v180 = vpack.c.b16 %v147, %v144
  %v181 = vpack.c.b16 %v148, %v145
  %v182 = vpack.c.b16 %v152, %v149
  %v183 = vpack.c.b16 %v153, %v150
  %v184 = vpack.c.b16 %v154, %v151
  %v185 = vpack.c.b16 %v158, %v155
  %v186 = vpack.c.b16 %v159, %v156
  %v187 = vpack.c.b16 %v160, %v157
  %v188 = vpack.c.b16 %v164, %v161
  %v189 = vpack.c.b16 %v165, %v162
  %v190 = vpack.c.b16 %v166, %v163
  %v243 = vunpack.c.l.b16 %v47
  %v244 = vunpack.c.l.b16 %v48
  %v245 = vunpack.c.l.b16 %v49
  %v246 = vunpack.c.l.b16 %v50
  %v247 = vunpack.c.l.b16 %v51
  %v248 = vunpack.c.l.b16 %v52
  %v249 = vunpack.c.l.b16 %v53
  %v250 = vunpack.c.l.b16 %v54
  %v251 = vunpack.c.l.b16 %v55
  %v252 = vunpack.c.l.b16 %v56
  %v253 = vunpack.c.l.b16 %v57
  %v254 = vunpack.c.l.b16 %v58
  %v255 = vunpack.c.l.b16 %v59
  %v256 = vunpack.c.l.b16 %v60
  %v257 = vunpack.c.l.b16 %v61
  %v258 = vunpack.c.l.b16 %v62
  %v259 = vunpack.c.l.b16 %v63
  %v260 = vunpack.c.l.b16 %v64
  %v261 = vunpack.c.l.b16 %v65
  %v262 = vunpack.c.l.b16 %v66
  %v263 = vunpack.c.l.b16 %v67
  %v264 = vunpack.c.l.b16 %v68
  %v265 = vunpack.c.l.b16 %v69
  %v266 = vunpack.c.l.b16 %v70
  %v267 = vunpack.c.l.b16 %v71
  %v268 = vunpack.c.l.b16 %v72
  %v269 = vunpack.c.l.b16 %v73
  %v270 = vunpack.c.l.b16 %v74
  %v271 = vunpack.c.l.b16 %v75
  %v272 = vunpack.c.l.b16 %v76
  %v273 = vunpack.c.l.b16 %v77
  %v274 = vunpack.c.l.b16 %v78
  %v275 = vunpack.c.l.b16 %v79
  %v276 = vunpack.c.l.b16 %v80
  %v277 = vunpack.c.l.b16 %v81
  %v278 = vunpack.c.l.b16 %v82
  %v279 = vpack.c.b16 %v244, %v243
  %v280 = vpack.c.b16 %v246, %v245
  %v281 = vpack.c.b16 %v248, %v247
  %v282 = vpack.c.b16 %v250, %v249
  %v283 = vpack.c.b16 %v252, %v251
  %v284 = vpack.c.b16 %v254, %v253
  %v285 = vpack.c.b16 %v256, %v255
  %v286 = vpack.c.b16 %v258, %v257
  %v287 = vpack.c.b16 %v260, %v259
  %v288 = vpack.c.b16 %v262, %v261
  %v289 = vpack.c.b16 %v264, %v263
  %v290 = vpack.c.b16 %v266, %v265
  %v291 = vpack.c.b16 %v268, %v267
  %v292 = vpack.c.b16 %v270, %v269
  %v293 = vpack.c.b16 %v272, %v271
  %v294 = vpack.c.b16 %v274, %v273
  %v295 = vpack.c.b16 %v276, %v275
  %v296 = vpack.c.b16 %v278, %v277
  %vm315 = vcmask 261120
  %v317 = vsel %vm315, %v169, 0
  %v320 = vsel %vm315, %v172, 0
  %v323 = vsel %vm315, %v175, 0
  %v326 = vsel %vm315, %v178, 0
  %v329 = vsel %vm315, %v181, 0
  %v332 = vsel %vm315, %v184, 0
  %v335 = vsel %vm315, %v187, 0
  %v338 = vsel %vm315, %v190, 0
  %340 = vmatpush.bf16.msra.mxu0 %v286
  %341 = vmatpush.bf16.msra.mxu0 %v285
  %342 = vmatpush.bf16.msra.mxu0 %v284
  %343 = vmatpush.bf16.msra.mxu0 %v283
  %344 = vmatpush.bf16.msra.mxu0 %v282
  %345 = vmatpush.bf16.msra.mxu0 %v281
  %346 = vmatpush.bf16.msra.mxu0 %v280
  %347 = vmatpush.bf16.msra.mxu0 %v279
  %348 = vmatmul.bf16.gmra.mxu0 %v167
  %v349 = vpop.f32.mrf.mxu0
  %v350 = vadd.f32 %v85, %v349
  %v351 = vpop.f32.mrf.mxu0
  %v352 = vadd.f32 %v85, %v351
  %353 = vmatmul.bf16.gmra.mxu0 %v170
  %v354 = vpop.f32.mrf.mxu0
  %v355 = vadd.f32 %v85, %v354
  %v356 = vpop.f32.mrf.mxu0
  %v357 = vadd.f32 %v85, %v356
  %358 = vmatmul.bf16.gmra.mxu0 %v173
  %v359 = vpop.f32.mrf.mxu0
  %v360 = vadd.f32 %v85, %v359
  %v361 = vpop.f32.mrf.mxu0
  %v362 = vadd.f32 %v85, %v361
  %363 = vmatmul.bf16.gmra.mxu0 %v176
  %v364 = vpop.f32.mrf.mxu0
  %v365 = vadd.f32 %v85, %v364
  %v366 = vpop.f32.mrf.mxu0
  %v367 = vadd.f32 %v85, %v366
  %368 = vmatmul.bf16.gmra.mxu0 %v179
  %v369 = vpop.f32.mrf.mxu0
  %v370 = vadd.f32 %v85, %v369
  %v371 = vpop.f32.mrf.mxu0
  %v372 = vadd.f32 %v85, %v371
  %373 = vmatmul.bf16.gmra.mxu0 %v182
  %v374 = vpop.f32.mrf.mxu0
  %v375 = vadd.f32 %v85, %v374
  %v376 = vpop.f32.mrf.mxu0
  %v377 = vadd.f32 %v85, %v376
  %378 = vmatmul.bf16.gmra.mxu0 %v185
  %v379 = vpop.f32.mrf.mxu0
  %v380 = vadd.f32 %v85, %v379
  %v381 = vpop.f32.mrf.mxu0
  %v382 = vadd.f32 %v85, %v381
  %383 = vmatmul.bf16.gmra.mxu0 %v188
  %v384 = vpop.f32.mrf.mxu0
  %v385 = vadd.f32 %v85, %v384
  %v386 = vpop.f32.mrf.mxu0
  %v387 = vadd.f32 %v85, %v386
  %388 = vdwg.mxu0
  %389 = vmatpush.bf16.msra.mxu0 %v294
  %390 = vmatpush.bf16.msra.mxu0 %v293
  %391 = vmatpush.bf16.msra.mxu0 %v292
  %392 = vmatpush.bf16.msra.mxu0 %v291
  %393 = vmatpush.bf16.msra.mxu0 %v290
  %394 = vmatpush.bf16.msra.mxu0 %v289
  %395 = vmatpush.bf16.msra.mxu0 %v288
  %396 = vmatpush.bf16.msra.mxu0 %v287
  %397 = vmatmul.bf16.gmra.mxu0 %v168
  %v398 = vpop.f32.mrf.mxu0
  %v399 = vadd.f32 %v350, %v398
  %v400 = vpop.f32.mrf.mxu0
  %v401 = vadd.f32 %v352, %v400
  %402 = vmatmul.bf16.gmra.mxu0 %v171
  %v403 = vpop.f32.mrf.mxu0
  %v404 = vadd.f32 %v355, %v403
  %v405 = vpop.f32.mrf.mxu0
  %v406 = vadd.f32 %v357, %v405
  %407 = vmatmul.bf16.gmra.mxu0 %v174
  %v408 = vpop.f32.mrf.mxu0
  %v409 = vadd.f32 %v360, %v408
  %v410 = vpop.f32.mrf.mxu0
  %v411 = vadd.f32 %v362, %v410
  %412 = vmatmul.bf16.gmra.mxu0 %v177
  %v413 = vpop.f32.mrf.mxu0
  %v414 = vadd.f32 %v365, %v413
  %v415 = vpop.f32.mrf.mxu0
  %v416 = vadd.f32 %v367, %v415
  %417 = vmatmul.bf16.gmra.mxu0 %v180
  %v418 = vpop.f32.mrf.mxu0
  %v419 = vadd.f32 %v370, %v418
  %v420 = vpop.f32.mrf.mxu0
  %v421 = vadd.f32 %v372, %v420
  %422 = vmatmul.bf16.gmra.mxu0 %v183
  %v423 = vpop.f32.mrf.mxu0
  %v424 = vadd.f32 %v375, %v423
  %v425 = vpop.f32.mrf.mxu0
  %v426 = vadd.f32 %v377, %v425
  %427 = vmatmul.bf16.gmra.mxu0 %v186
  %v428 = vpop.f32.mrf.mxu0
  %v429 = vadd.f32 %v380, %v428
  %v430 = vpop.f32.mrf.mxu0
  %v431 = vadd.f32 %v382, %v430
  %432 = vmatmul.bf16.gmra.mxu0 %v189
  %v433 = vpop.f32.mrf.mxu0
  %v434 = vadd.f32 %v385, %v433
  %v435 = vpop.f32.mrf.mxu0
  %v436 = vadd.f32 %v387, %v435
  %437 = vdwg.mxu0
  %438 = vmatpush.bf16.msra.mxu0 0
  %439 = vmatpush.bf16.msra.mxu0 0
  %440 = vmatpush.bf16.msra.mxu0 0
  %441 = vmatpush.bf16.msra.mxu0 0
  %442 = vmatpush.bf16.msra.mxu0 0
  %443 = vmatpush.bf16.msra.mxu0 0
  %444 = vmatpush.bf16.msra.mxu0 %v296
  %445 = vmatpush.bf16.msra.mxu0 %v295
  %446 = vmatmul.bf16.gmra.mxu0 %v317
  %v447 = vpop.f32.mrf.mxu0
  %v448 = vadd.f32 %v399, %v447
  %v449 = vpop.f32.mrf.mxu0
  %v450 = vadd.f32 %v401, %v449
  %451 = vmatmul.bf16.gmra.mxu0 %v320
  %v452 = vpop.f32.mrf.mxu0
  %v453 = vadd.f32 %v404, %v452
  %v454 = vpop.f32.mrf.mxu0
  %v455 = vadd.f32 %v406, %v454
  %456 = vmatmul.bf16.gmra.mxu0 %v323
  %v457 = vpop.f32.mrf.mxu0
  %v458 = vadd.f32 %v409, %v457
  %v459 = vpop.f32.mrf.mxu0
  %v460 = vadd.f32 %v411, %v459
  %461 = vmatmul.bf16.gmra.mxu0 %v326
  %v462 = vpop.f32.mrf.mxu0
  %v463 = vadd.f32 %v414, %v462
  %v464 = vpop.f32.mrf.mxu0
  %v465 = vadd.f32 %v416, %v464
  %466 = vmatmul.bf16.gmra.mxu0 %v329
  %v467 = vpop.f32.mrf.mxu0
  %v468 = vadd.f32 %v419, %v467
  %v469 = vpop.f32.mrf.mxu0
  %v470 = vadd.f32 %v421, %v469
  %471 = vmatmul.bf16.gmra.mxu0 %v332
  %v472 = vpop.f32.mrf.mxu0
  %v473 = vadd.f32 %v424, %v472
  %v474 = vpop.f32.mrf.mxu0
  %v475 = vadd.f32 %v426, %v474
  %476 = vmatmul.bf16.gmra.mxu0 %v335
  %v477 = vpop.f32.mrf.mxu0
  %v478 = vadd.f32 %v429, %v477
  %v479 = vpop.f32.mrf.mxu0
  %v480 = vadd.f32 %v431, %v479
  %481 = vmatmul.bf16.gmra.mxu0 %v338
  %v482 = vpop.f32.mrf.mxu0
  %v483 = vadd.f32 %v434, %v482
  %v484 = vpop.f32.mrf.mxu0
  %v485 = vadd.f32 %v436, %v484
  %486 = vdwg.mxu0
  %v487 = vsub.f32 0.0, %v448
  %v488 = vsub.f32 0.0, %v450
  %v489 = vsub.f32 0.0, %v453
  %v490 = vsub.f32 0.0, %v455
  %v491 = vsub.f32 0.0, %v458
  %v492 = vsub.f32 0.0, %v460
  %v493 = vsub.f32 0.0, %v463
  %v494 = vsub.f32 0.0, %v465
  %v495 = vsub.f32 0.0, %v468
  %v496 = vsub.f32 0.0, %v470
  %v497 = vsub.f32 0.0, %v473
  %v498 = vsub.f32 0.0, %v475
  %v499 = vsub.f32 0.0, %v478
  %v500 = vsub.f32 0.0, %v480
  %v501 = vsub.f32 0.0, %v483
  %v502 = vsub.f32 0.0, %v485
  %v503 = vmul.f32 %v487, 1.442695
  %v504 = vpow.pop %v503
  %v505 = vmul.f32 %v488, 1.442695
  %v506 = vpow.pop %v505
  %v507 = vmul.f32 %v489, 1.442695
  %v508 = vpow.pop %v507
  %v509 = vmul.f32 %v490, 1.442695
  %v510 = vpow.pop %v509
  %v511 = vmul.f32 %v491, 1.442695
  %v512 = vpow.pop %v511
  %v513 = vmul.f32 %v492, 1.442695
  %v514 = vpow.pop %v513
  %v515 = vmul.f32 %v493, 1.442695
  %v516 = vpow.pop %v515
  %v517 = vmul.f32 %v494, 1.442695
  %v518 = vpow.pop %v517
  %v519 = vmul.f32 %v495, 1.442695
  %v520 = vpow.pop %v519
  %v521 = vmul.f32 %v496, 1.442695
  %v522 = vpow.pop %v521
  %v523 = vmul.f32 %v497, 1.442695
  %v524 = vpow.pop %v523
  %v525 = vmul.f32 %v498, 1.442695
  %v526 = vpow.pop %v525
  %v527 = vmul.f32 %v499, 1.442695
  %v528 = vpow.pop %v527
  %v529 = vmul.f32 %v500, 1.442695
  %v530 = vpow.pop %v529
  %v531 = vmul.f32 %v501, 1.442695
  %v532 = vpow.pop %v531
  %v533 = vmul.f32 %v502, 1.442695
  %v534 = vpow.pop %v533
  %v535 = vadd.f32 %v504, 1.0
  %v536 = vadd.f32 %v506, 1.0
  %v537 = vadd.f32 %v508, 1.0
  %v538 = vadd.f32 %v510, 1.0
  %v539 = vadd.f32 %v512, 1.0
  %v540 = vadd.f32 %v514, 1.0
  %v541 = vadd.f32 %v516, 1.0
  %v542 = vadd.f32 %v518, 1.0
  %v543 = vadd.f32 %v520, 1.0
  %v544 = vadd.f32 %v522, 1.0
  %v545 = vadd.f32 %v524, 1.0
  %v546 = vadd.f32 %v526, 1.0
  %v547 = vadd.f32 %v528, 1.0
  %v548 = vadd.f32 %v530, 1.0
  %v549 = vadd.f32 %v532, 1.0
  %v550 = vadd.f32 %v534, 1.0
  %v551 = vrcp.pop %v535
  %v552 = vmul.f32 %v535, %v551
  %v553 = vsub.f32 1.0, %v552
  %v554 = vmul.f32 %v551, %v553
  %v555 = vadd.f32 %v551, %v554
  %vm556 = vweird.f32 %v535
  %vm557 = vweird.f32 %v551
  %vm558 = vmor %vm556, %vm557
  %v559 = vsel %vm558, %v551, %v555
  %v560 = vand.u32 2147483647, %v535
  %vm561 = vcmp.eq.f32.partialorder %v560, 8.507059e+37
  %v562 = vand.u32 %v535, 2147483648
  %v563 = vor.u32 1.1754944e-38, %v562
  %v564 = vsel %vm561, %v563, %v559
  %v565 = vmul.f32 %v448, %v564
  %v566 = vrcp.pop %v536
  %v567 = vmul.f32 %v536, %v566
  %v568 = vsub.f32 1.0, %v567
  %v569 = vmul.f32 %v566, %v568
  %v570 = vadd.f32 %v566, %v569
  %vm571 = vweird.f32 %v536
  %vm572 = vweird.f32 %v566
  %vm573 = vmor %vm571, %vm572
  %v574 = vsel %vm573, %v566, %v570
  %v575 = vand.u32 2147483647, %v536
  %vm576 = vcmp.eq.f32.partialorder %v575, 8.507059e+37
  %v577 = vand.u32 %v536, 2147483648
  %v578 = vor.u32 1.1754944e-38, %v577
  %v579 = vsel %vm576, %v578, %v574
  %v580 = vmul.f32 %v450, %v579
  %v581 = vrcp.pop %v537
  %v582 = vmul.f32 %v537, %v581
  %v583 = vsub.f32 1.0, %v582
  %v584 = vmul.f32 %v581, %v583
  %v585 = vadd.f32 %v581, %v584
  %vm586 = vweird.f32 %v537
  %vm587 = vweird.f32 %v581
  %vm588 = vmor %vm586, %vm587
  %v589 = vsel %vm588, %v581, %v585
  %v590 = vand.u32 2147483647, %v537
  %vm591 = vcmp.eq.f32.partialorder %v590, 8.507059e+37
  %v592 = vand.u32 %v537, 2147483648
  %v593 = vor.u32 1.1754944e-38, %v592
  %v594 = vsel %vm591, %v593, %v589
  %v595 = vmul.f32 %v453, %v594
  %v596 = vrcp.pop %v538
  %v597 = vmul.f32 %v538, %v596
  %v598 = vsub.f32 1.0, %v597
  %v599 = vmul.f32 %v596, %v598
  %v600 = vadd.f32 %v596, %v599
  %vm601 = vweird.f32 %v538
  %vm602 = vweird.f32 %v596
  %vm603 = vmor %vm601, %vm602
  %v604 = vsel %vm603, %v596, %v600
  %v605 = vand.u32 2147483647, %v538
  %vm606 = vcmp.eq.f32.partialorder %v605, 8.507059e+37
  %v607 = vand.u32 %v538, 2147483648
  %v608 = vor.u32 1.1754944e-38, %v607
  %v609 = vsel %vm606, %v608, %v604
  %v610 = vmul.f32 %v455, %v609
  %v611 = vrcp.pop %v539
  %v612 = vmul.f32 %v539, %v611
  %v613 = vsub.f32 1.0, %v612
  %v614 = vmul.f32 %v611, %v613
  %v615 = vadd.f32 %v611, %v614
  %vm616 = vweird.f32 %v539
  %vm617 = vweird.f32 %v611
  %vm618 = vmor %vm616, %vm617
  %v619 = vsel %vm618, %v611, %v615
  %v620 = vand.u32 2147483647, %v539
  %vm621 = vcmp.eq.f32.partialorder %v620, 8.507059e+37
  %v622 = vand.u32 %v539, 2147483648
  %v623 = vor.u32 1.1754944e-38, %v622
  %v624 = vsel %vm621, %v623, %v619
  %v625 = vmul.f32 %v458, %v624
  %v626 = vrcp.pop %v540
  %v627 = vmul.f32 %v540, %v626
  %v628 = vsub.f32 1.0, %v627
  %v629 = vmul.f32 %v626, %v628
  %v630 = vadd.f32 %v626, %v629
  %vm631 = vweird.f32 %v540
  %vm632 = vweird.f32 %v626
  %vm633 = vmor %vm631, %vm632
  %v634 = vsel %vm633, %v626, %v630
  %v635 = vand.u32 2147483647, %v540
  %vm636 = vcmp.eq.f32.partialorder %v635, 8.507059e+37
  %v637 = vand.u32 %v540, 2147483648
  %v638 = vor.u32 1.1754944e-38, %v637
  %v639 = vsel %vm636, %v638, %v634
  %v640 = vmul.f32 %v460, %v639
  %v641 = vrcp.pop %v541
  %v642 = vmul.f32 %v541, %v641
  %v643 = vsub.f32 1.0, %v642
  %v644 = vmul.f32 %v641, %v643
  %v645 = vadd.f32 %v641, %v644
  %vm646 = vweird.f32 %v541
  %vm647 = vweird.f32 %v641
  %vm648 = vmor %vm646, %vm647
  %v649 = vsel %vm648, %v641, %v645
  %v650 = vand.u32 2147483647, %v541
  %vm651 = vcmp.eq.f32.partialorder %v650, 8.507059e+37
  %v652 = vand.u32 %v541, 2147483648
  %v653 = vor.u32 1.1754944e-38, %v652
  %v654 = vsel %vm651, %v653, %v649
  %v655 = vmul.f32 %v463, %v654
  %v656 = vrcp.pop %v542
  %v657 = vmul.f32 %v542, %v656
  %v658 = vsub.f32 1.0, %v657
  %v659 = vmul.f32 %v656, %v658
  %v660 = vadd.f32 %v656, %v659
  %vm661 = vweird.f32 %v542
  %vm662 = vweird.f32 %v656
  %vm663 = vmor %vm661, %vm662
  %v664 = vsel %vm663, %v656, %v660
  %v665 = vand.u32 2147483647, %v542
  %vm666 = vcmp.eq.f32.partialorder %v665, 8.507059e+37
  %v667 = vand.u32 %v542, 2147483648
  %v668 = vor.u32 1.1754944e-38, %v667
  %v669 = vsel %vm666, %v668, %v664
  %v670 = vmul.f32 %v465, %v669
  %v671 = vrcp.pop %v543
  %v672 = vmul.f32 %v543, %v671
  %v673 = vsub.f32 1.0, %v672
  %v674 = vmul.f32 %v671, %v673
  %v675 = vadd.f32 %v671, %v674
  %vm676 = vweird.f32 %v543
  %vm677 = vweird.f32 %v671
  %vm678 = vmor %vm676, %vm677
  %v679 = vsel %vm678, %v671, %v675
  %v680 = vand.u32 2147483647, %v543
  %vm681 = vcmp.eq.f32.partialorder %v680, 8.507059e+37
  %v682 = vand.u32 %v543, 2147483648
  %v683 = vor.u32 1.1754944e-38, %v682
  %v684 = vsel %vm681, %v683, %v679
  %v685 = vmul.f32 %v468, %v684
  %v686 = vrcp.pop %v544
  %v687 = vmul.f32 %v544, %v686
  %v688 = vsub.f32 1.0, %v687
  %v689 = vmul.f32 %v686, %v688
  %v690 = vadd.f32 %v686, %v689
  %vm691 = vweird.f32 %v544
  %vm692 = vweird.f32 %v686
  %vm693 = vmor %vm691, %vm692
  %v694 = vsel %vm693, %v686, %v690
  %v695 = vand.u32 2147483647, %v544
  %vm696 = vcmp.eq.f32.partialorder %v695, 8.507059e+37
  %v697 = vand.u32 %v544, 2147483648
  %v698 = vor.u32 1.1754944e-38, %v697
  %v699 = vsel %vm696, %v698, %v694
  %v700 = vmul.f32 %v470, %v699
  %v701 = vrcp.pop %v545
  %v702 = vmul.f32 %v545, %v701
  %v703 = vsub.f32 1.0, %v702
  %v704 = vmul.f32 %v701, %v703
  %v705 = vadd.f32 %v701, %v704
  %vm706 = vweird.f32 %v545
  %vm707 = vweird.f32 %v701
  %vm708 = vmor %vm706, %vm707
  %v709 = vsel %vm708, %v701, %v705
  %v710 = vand.u32 2147483647, %v545
  %vm711 = vcmp.eq.f32.partialorder %v710, 8.507059e+37
  %v712 = vand.u32 %v545, 2147483648
  %v713 = vor.u32 1.1754944e-38, %v712
  %v714 = vsel %vm711, %v713, %v709
  %v715 = vmul.f32 %v473, %v714
  %v716 = vrcp.pop %v546
  %v717 = vmul.f32 %v546, %v716
  %v718 = vsub.f32 1.0, %v717
  %v719 = vmul.f32 %v716, %v718
  %v720 = vadd.f32 %v716, %v719
  %vm721 = vweird.f32 %v546
  %vm722 = vweird.f32 %v716
  %vm723 = vmor %vm721, %vm722
  %v724 = vsel %vm723, %v716, %v720
  %v725 = vand.u32 2147483647, %v546
  %vm726 = vcmp.eq.f32.partialorder %v725, 8.507059e+37
  %v727 = vand.u32 %v546, 2147483648
  %v728 = vor.u32 1.1754944e-38, %v727
  %v729 = vsel %vm726, %v728, %v724
  %v730 = vmul.f32 %v475, %v729
  %v731 = vrcp.pop %v547
  %v732 = vmul.f32 %v547, %v731
  %v733 = vsub.f32 1.0, %v732
  %v734 = vmul.f32 %v731, %v733
  %v735 = vadd.f32 %v731, %v734
  %vm736 = vweird.f32 %v547
  %vm737 = vweird.f32 %v731
  %vm738 = vmor %vm736, %vm737
  %v739 = vsel %vm738, %v731, %v735
  %v740 = vand.u32 2147483647, %v547
  %vm741 = vcmp.eq.f32.partialorder %v740, 8.507059e+37
  %v742 = vand.u32 %v547, 2147483648
  %v743 = vor.u32 1.1754944e-38, %v742
  %v744 = vsel %vm741, %v743, %v739
  %v745 = vmul.f32 %v478, %v744
  %v746 = vrcp.pop %v548
  %v747 = vmul.f32 %v548, %v746
  %v748 = vsub.f32 1.0, %v747
  %v749 = vmul.f32 %v746, %v748
  %v750 = vadd.f32 %v746, %v749
  %vm751 = vweird.f32 %v548
  %vm752 = vweird.f32 %v746
  %vm753 = vmor %vm751, %vm752
  %v754 = vsel %vm753, %v746, %v750
  %v755 = vand.u32 2147483647, %v548
  %vm756 = vcmp.eq.f32.partialorder %v755, 8.507059e+37
  %v757 = vand.u32 %v548, 2147483648
  %v758 = vor.u32 1.1754944e-38, %v757
  %v759 = vsel %vm756, %v758, %v754
  %v760 = vmul.f32 %v480, %v759
  %v761 = vrcp.pop %v549
  %v762 = vmul.f32 %v549, %v761
  %v763 = vsub.f32 1.0, %v762
  %v764 = vmul.f32 %v761, %v763
  %v765 = vadd.f32 %v761, %v764
  %vm766 = vweird.f32 %v549
  %vm767 = vweird.f32 %v761
  %vm768 = vmor %vm766, %vm767
  %v769 = vsel %vm768, %v761, %v765
  %v770 = vand.u32 2147483647, %v549
  %vm771 = vcmp.eq.f32.partialorder %v770, 8.507059e+37
  %v772 = vand.u32 %v549, 2147483648
  %v773 = vor.u32 1.1754944e-38, %v772
  %v774 = vsel %vm771, %v773, %v769
  %v775 = vmul.f32 %v483, %v774
  %v776 = vrcp.pop %v550
  %v777 = vmul.f32 %v550, %v776
  %v778 = vsub.f32 1.0, %v777
  %v779 = vmul.f32 %v776, %v778
  %v780 = vadd.f32 %v776, %v779
  %vm781 = vweird.f32 %v550
  %vm782 = vweird.f32 %v776
  %vm783 = vmor %vm781, %vm782
  %v784 = vsel %vm783, %v776, %v780
  %v785 = vand.u32 2147483647, %v550
  %vm786 = vcmp.eq.f32.partialorder %v785, 8.507059e+37
  %v787 = vand.u32 %v550, 2147483648
  %v788 = vor.u32 1.1754944e-38, %v787
  %v789 = vsel %vm786, %v788, %v784
  %v790 = vmul.f32 %v485, %v789
  %v791 = vpack.c.bf16 %v565, %v565
  %v792 = vpack.c.bf16 %v580, %v580
  %v793 = vpack.c.bf16 %v595, %v595
  %v794 = vpack.c.bf16 %v610, %v610
  %v795 = vpack.c.bf16 %v625, %v625
  %v796 = vpack.c.bf16 %v640, %v640
  %v797 = vpack.c.bf16 %v655, %v655
  %v798 = vpack.c.bf16 %v670, %v670
  %v799 = vpack.c.bf16 %v685, %v685
  %v800 = vpack.c.bf16 %v700, %v700
  %v801 = vpack.c.bf16 %v715, %v715
  %v802 = vpack.c.bf16 %v730, %v730
  %v803 = vpack.c.bf16 %v745, %v745
  %v804 = vpack.c.bf16 %v760, %v760
  %v805 = vpack.c.bf16 %v775, %v775
  %v806 = vpack.c.bf16 %v790, %v790
  %vm807 = vcmask 125952
  %808 = vst.msk [vmem:[%s3] sm:$0xf] %vm807, %v791
  %809 = vst.msk [vmem:[%s3 + $0x4] sm:$0xf] %vm807, %v792
  %810 = vst.msk [vmem:[%s3 + $0x8] sm:$0xf] %vm807, %v793
  %811 = vst.msk [vmem:[%s3 + $0xc] sm:$0xf] %vm807, %v794
  %812 = vst.msk [vmem:[%s3 + $0x10] sm:$0xf] %vm807, %v795
  %813 = vst.msk [vmem:[%s3 + $0x14] sm:$0xf] %vm807, %v796
  %814 = vst.msk [vmem:[%s3 + $0x18] sm:$0xf] %vm807, %v797
  %815 = vst.msk [vmem:[%s3 + $0x1c] sm:$0xf] %vm807, %v798
  %816 = vst.msk [vmem:[%s3 + $0x20] sm:$0xf] %vm807, %v799
  %817 = vst.msk [vmem:[%s3 + $0x24] sm:$0xf] %vm807, %v800
  %818 = vst.msk [vmem:[%s3 + $0x28] sm:$0xf] %vm807, %v801
  %819 = vst.msk [vmem:[%s3 + $0x2c] sm:$0xf] %vm807, %v802
  %820 = vst.msk [vmem:[%s3 + $0x30] sm:$0xf] %vm807, %v803
  %821 = vst.msk [vmem:[%s3 + $0x34] sm:$0xf] %vm807, %v804
  %822 = vst.msk [vmem:[%s3 + $0x38] sm:$0xf] %vm807, %v805
  %823 = vst.msk [vmem:[%s3 + $0x3c] sm:$0xf] %vm807, %v806
  // Predicated region
  $region14: #{efficientnet_vslam_forward.7} parent=0 // pred_check
    _
  $region15: #{efficientnet_vslam_forward.7} parent=0 // pred_check_branch
    %825 = sbr.rel (0) target = $region17
  $region16: #{efficientnet_vslam_forward.7} parent=0 // pred_region
    _
  $region17: #{efficientnet_vslam_forward.7} parent=0 // pred_fallthru
    _
  // Predicated region
  $region18: #{efficientnet_vslam_forward.7} parent=0 // pred_check
    _
  $region19: #{efficientnet_vslam_forward.7} parent=0 // pred_check_branch
    %827 = sbr.rel (0) target = $region21
  $region20: #{efficientnet_vslam_forward.7} parent=0 // pred_region
    _
  $region21: #{efficientnet_vslam_forward.7} parent=0 // pred_fallthru
    _

// kernel: efficientnet_vslam_forward.8
$region0: #{efficientnet_vslam_forward.8}
  #allocation0 [shape = 'u32[]', space=smem, size = 0x4, offset = 0x4, fixed_abs, tag = 'smem constant byte address 0x4 - core index']
  #allocation1 [shape = 'u32[72,128]{1,0:T(1,128)}', space=vmem, size = 0x9000, scoped, tag = 'internal scratch']
  %s0 = inlined_call_operand.vmem [shape: bf16[32,144], index: 0, kind: input, shape index: {}]
  %s1 = inlined_call_operand.vmem [shape: bf16[144,24], index: 1, kind: input, shape index: {}]
  %s2 = inlined_call_operand.vmem [shape: f32[1,24], index: 2, kind: input, shape index: {}]
  %s3 = inlined_call_operand.vmem [shape: bf16[32,24], index: 3, kind: output, shape index: {}]
  %s4 = sld [smem:[#allocation0]]
  $region22: #{efficientnet_vslam_forward.8} parent=0
    _
  %s6 = ssub.s32 1, %s4
  %s7 = scalar_select 0, %s6, %s4
  // Predicated region
  $region2: #{efficientnet_vslam_forward.8} parent=0 // pred_check
    _
  $region3: #{efficientnet_vslam_forward.8} parent=0 // pred_check_branch
    %9 = sbr.rel (0) target = $region5
  $region4: #{efficientnet_vslam_forward.8} parent=0 // pred_region
    _
  $region5: #{efficientnet_vslam_forward.8} parent=0 // pred_fallthru
    _
  // Predicated region
  $region6: #{efficientnet_vslam_forward.8} parent=0 // pred_check
    _
  $region7: #{efficientnet_vslam_forward.8} parent=0 // pred_check_branch
    %11 = sbr.rel (0) target = $region9
  $region8: #{efficientnet_vslam_forward.8} parent=0 // pred_region
    _
  $region9: #{efficientnet_vslam_forward.8} parent=0 // pred_fallthru
    _
  // Predicated region
  $region10: #{efficientnet_vslam_forward.8} parent=0 // pred_check
    _
  $region11: #{efficientnet_vslam_forward.8} parent=0 // pred_check_branch
    %13 = sbr.rel (0) target = $region13
  $region12: #{efficientnet_vslam_forward.8} parent=0 // pred_region
    _
  $region13: #{efficientnet_vslam_forward.8} parent=0 // pred_fallthru
    _
  %v15 = vld [vmem:[%s0] sm:$0xff]
  %v16 = vld [vmem:[%s0 + $0x8] sm:$0xff]
  %v17 = vld [vmem:[%s0 + $0x10] sm:$0xff]
  %v18 = vld [vmem:[%s0 + $0x18] sm:$0xff]
  %v19 = vld [vmem:[%s1] sm:$0xf]
  %v20 = vld [vmem:[%s1 + $0x4] sm:$0xf]
  %v21 = vld [vmem:[%s1 + $0x8] sm:$0xf]
  %v22 = vld [vmem:[%s1 + $0xc] sm:$0xf]
  %v23 = vld [vmem:[%s1 + $0x10] sm:$0xf]
  %v24 = vld [vmem:[%s1 + $0x14] sm:$0xf]
  %v25 = vld [vmem:[%s1 + $0x18] sm:$0xf]
  %v26 = vld [vmem:[%s1 + $0x1c] sm:$0xf]
  %v27 = vld [vmem:[%s1 + $0x20] sm:$0xf]
  %v28 = vld [vmem:[%s1 + $0x24] sm:$0xf]
  %v29 = vld [vmem:[%s1 + $0x28] sm:$0xf]
  %v30 = vld [vmem:[%s1 + $0x2c] sm:$0xf]
  %v31 = vld [vmem:[%s1 + $0x30] sm:$0xf]
  %v32 = vld [vmem:[%s1 + $0x34] sm:$0xf]
  %v33 = vld [vmem:[%s1 + $0x38] sm:$0xf]
  %v34 = vld [vmem:[%s1 + $0x3c] sm:$0xf]
  %v35 = vld [vmem:[%s1 + $0x40] sm:$0xf]
  %v36 = vld [vmem:[%s1 + $0x44] sm:$0xf]
  %v37 = vld [vmem:[%s2] sm:$0x1]
  %v39 = vperm.slane %v37, 0
  %v45 = vunpack.c.l.b16 %v15
  %v46 = vunpack.c.h.b16 %v15
  %v47 = vunpack.c.l.b16 %v16
  %v48 = vunpack.c.h.b16 %v16
  %v49 = vunpack.c.l.b16 %v17
  %v50 = vunpack.c.h.b16 %v17
  %v51 = vunpack.c.l.b16 %v18
  %v52 = vunpack.c.h.b16 %v18
  %v53 = vpack.c.b16 %v47, %v45
  %v54 = vpack.c.b16 %v48, %v46
  %v55 = vpack.c.b16 %v51, %v49
  %v56 = vpack.c.b16 %v52, %v50
  %v77 = vunpack.c.l.b16 %v19
  %v78 = vunpack.c.l.b16 %v20
  %v79 = vunpack.c.l.b16 %v21
  %v80 = vunpack.c.l.b16 %v22
  %v81 = vunpack.c.l.b16 %v23
  %v82 = vunpack.c.l.b16 %v24
  %v83 = vunpack.c.l.b16 %v25
  %v84 = vunpack.c.l.b16 %v26
  %v85 = vunpack.c.l.b16 %v27
  %v86 = vunpack.c.l.b16 %v28
  %v87 = vunpack.c.l.b16 %v29
  %v88 = vunpack.c.l.b16 %v30
  %v89 = vunpack.c.l.b16 %v31
  %v90 = vunpack.c.l.b16 %v32
  %v91 = vunpack.c.l.b16 %v33
  %v92 = vunpack.c.l.b16 %v34
  %v93 = vunpack.c.l.b16 %v35
  %v94 = vunpack.c.l.b16 %v36
  %v95 = vpack.c.b16 %v78, %v77
  %v96 = vpack.c.b16 %v80, %v79
  %v97 = vpack.c.b16 %v82, %v81
  %v98 = vpack.c.b16 %v84, %v83
  %v99 = vpack.c.b16 %v86, %v85
  %v100 = vpack.c.b16 %v88, %v87
  %v101 = vpack.c.b16 %v90, %v89
  %v102 = vpack.c.b16 %v92, %v91
  %v103 = vpack.c.b16 %v94, %v93
  %vm113 = vcmask 130048
  %v115 = vsel %vm113, %v54, 0
  %v118 = vsel %vm113, %v56, 0
  %120 = vmatpush.bf16.msra.mxu0 %v102
  %121 = vmatpush.bf16.msra.mxu0 %v101
  %122 = vmatpush.bf16.msra.mxu0 %v100
  %123 = vmatpush.bf16.msra.mxu0 %v99
  %124 = vmatpush.bf16.msra.mxu0 %v98
  %125 = vmatpush.bf16.msra.mxu0 %v97
  %126 = vmatpush.bf16.msra.mxu0 %v96
  %127 = vmatpush.bf16.msra.mxu0 %v95
  %128 = vmatmul.bf16.gmra.mxu0 %v53
  %v129 = vpop.f32.mrf.mxu0
  %v130 = vadd.f32 %v39, %v129
  %v131 = vpop.f32.mrf.mxu0
  %v132 = vadd.f32 %v39, %v131
  %133 = vmatmul.bf16.gmra.mxu0 %v55
  %v134 = vpop.f32.mrf.mxu0
  %v135 = vadd.f32 %v39, %v134
  %v136 = vpop.f32.mrf.mxu0
  %v137 = vadd.f32 %v39, %v136
  %138 = vdwg.mxu0
  %139 = vmatpush.bf16.msra.mxu0 0
  %140 = vmatpush.bf16.msra.mxu0 0
  %141 = vmatpush.bf16.msra.mxu0 0
  %142 = vmatpush.bf16.msra.mxu0 0
  %143 = vmatpush.bf16.msra.mxu0 0
  %144 = vmatpush.bf16.msra.mxu0 0
  %145 = vmatpush.bf16.msra.mxu0 0
  %146 = vmatpush.bf16.msra.mxu0 %v103
  %147 = vmatmul.bf16.gmra.mxu0 %v115
  %v148 = vpop.f32.mrf.mxu0
  %v149 = vadd.f32 %v130, %v148
  %v150 = vpop.f32.mrf.mxu0
  %v151 = vadd.f32 %v132, %v150
  %152 = vmatmul.bf16.gmra.mxu0 %v118
  %v153 = vpop.f32.mrf.mxu0
  %v154 = vadd.f32 %v135, %v153
  %v155 = vpop.f32.mrf.mxu0
  %v156 = vadd.f32 %v137, %v155
  %157 = vdwg.mxu0
  %v158 = vsub.f32 0.0, %v149
  %v159 = vsub.f32 0.0, %v151
  %v160 = vsub.f32 0.0, %v154
  %v161 = vsub.f32 0.0, %v156
  %v162 = vmul.f32 %v158, 1.442695
  %v163 = vpow.pop %v162
  %v164 = vmul.f32 %v159, 1.442695
  %v165 = vpow.pop %v164
  %v166 = vmul.f32 %v160, 1.442695
  %v167 = vpow.pop %v166
  %v168 = vmul.f32 %v161, 1.442695
  %v169 = vpow.pop %v168
  %v170 = vadd.f32 %v163, 1.0
  %v171 = vadd.f32 %v165, 1.0
  %v172 = vadd.f32 %v167, 1.0
  %v173 = vadd.f32 %v169, 1.0
  %v174 = vrcp.pop %v170
  %v175 = vmul.f32 %v170, %v174
  %v176 = vsub.f32 1.0, %v175
  %v177 = vmul.f32 %v174, %v176
  %v178 = vadd.f32 %v174, %v177
  %vm179 = vweird.f32 %v170
  %vm180 = vweird.f32 %v174
  %vm181 = vmor %vm179, %vm180
  %v182 = vsel %vm181, %v174, %v178
  %v183 = vand.u32 2147483647, %v170
  %vm184 = vcmp.eq.f32.partialorder %v183, 8.507059e+37
  %v185 = vand.u32 %v170, 2147483648
  %v186 = vor.u32 1.1754944e-38, %v185
  %v187 = vsel %vm184, %v186, %v182
  %v188 = vmul.f32 %v149, %v187
  %v189 = vrcp.pop %v171
  %v190 = vmul.f32 %v171, %v189
  %v191 = vsub.f32 1.0, %v190
  %v192 = vmul.f32 %v189, %v191
  %v193 = vadd.f32 %v189, %v192
  %vm194 = vweird.f32 %v171
  %vm195 = vweird.f32 %v189
  %vm196 = vmor %vm194, %vm195
  %v197 = vsel %vm196, %v189, %v193
  %v198 = vand.u32 2147483647, %v171
  %vm199 = vcmp.eq.f32.partialorder %v198, 8.507059e+37
  %v200 = vand.u32 %v171, 2147483648
  %v201 = vor.u32 1.1754944e-38, %v200
  %v202 = vsel %vm199, %v201, %v197
  %v203 = vmul.f32 %v151, %v202
  %v204 = vrcp.pop %v172
  %v205 = vmul.f32 %v172, %v204
  %v206 = vsub.f32 1.0, %v205
  %v207 = vmul.f32 %v204, %v206
  %v208 = vadd.f32 %v204, %v207
  %vm209 = vweird.f32 %v172
  %vm210 = vweird.f32 %v204
  %vm211 = vmor %vm209, %vm210
  %v212 = vsel %vm211, %v204, %v208
  %v213 = vand.u32 2147483647, %v172
  %vm214 = vcmp.eq.f32.partialorder %v213, 8.507059e+37
  %v215 = vand.u32 %v172, 2147483648
  %v216 = vor.u32 1.1754944e-38, %v215
  %v217 = vsel %vm214, %v216, %v212
  %v218 = vmul.f32 %v154, %v217
  %v219 = vrcp.pop %v173
  %v220 = vmul.f32 %v173, %v219
  %v221 = vsub.f32 1.0, %v220
  %v222 = vmul.f32 %v219, %v221
  %v223 = vadd.f32 %v219, %v222
  %vm224 = vweird.f32 %v173
  %vm225 = vweird.f32 %v219
  %vm226 = vmor %vm224, %vm225
  %v227 = vsel %vm226, %v219, %v223
  %v228 = vand.u32 2147483647, %v173
  %vm229 = vcmp.eq.f32.partialorder %v228, 8.507059e+37
  %v230 = vand.u32 %v173, 2147483648
  %v231 = vor.u32 1.1754944e-38, %v230
  %v232 = vsel %vm229, %v231, %v227
  %v233 = vmul.f32 %v156, %v232
  %v234 = vpack.c.bf16 %v188, %v188
  %v235 = vpack.c.bf16 %v203, %v203
  %v236 = vpack.c.bf16 %v218, %v218
  %v237 = vpack.c.bf16 %v233, %v233
  %vm238 = vcmask 191488
  %239 = vst.msk [vmem:[%s3] sm:$0xf] %vm238, %v234
  %240 = vst.msk [vmem:[%s3 + $0x4] sm:$0xf] %vm238, %v235
  %241 = vst.msk [vmem:[%s3 + $0x8] sm:$0xf] %vm238, %v236
  %242 = vst.msk [vmem:[%s3 + $0xc] sm:$0xf] %vm238, %v237
  // Predicated region
  $region14: #{efficientnet_vslam_forward.8} parent=0 // pred_check
    _
  $region15: #{efficientnet_vslam_forward.8} parent=0 // pred_check_branch
    %244 = sbr.rel (0) target = $region17
  $region16: #{efficientnet_vslam_forward.8} parent=0 // pred_region
    _
  $region17: #{efficientnet_vslam_forward.8} parent=0 // pred_fallthru
    _
  // Predicated region
  $region18: #{efficientnet_vslam_forward.8} parent=0 // pred_check
    _
  $region19: #{efficientnet_vslam_forward.8} parent=0 // pred_check_branch
    %246 = sbr.rel (0) target = $region21
  $region20: #{efficientnet_vslam_forward.8} parent=0 // pred_region
    _
  $region21: #{efficientnet_vslam_forward.8} parent=0 // pred_fallthru
    _

// kernel: efficientnet_vslam_forward.9
$region0: #{efficientnet_vslam_forward.9}
  #allocation0 [shape = 'u32[]', space=smem, size = 0x4, offset = 0x4, fixed_abs, tag = 'smem constant byte address 0x4 - core index']
  #allocation1 [shape = 'u32[72,128]{1,0:T(1,128)}', space=vmem, size = 0x9000, scoped, tag = 'internal scratch']
  %s0 = inlined_call_operand.vmem [shape: bf16[8,216], index: 0, kind: input, shape index: {}]
  %s1 = inlined_call_operand.vmem [shape: bf16[216,40], index: 1, kind: input, shape index: {}]
  %s2 = inlined_call_operand.vmem [shape: f32[1,40], index: 2, kind: input, shape index: {}]
  %s3 = inlined_call_operand.vmem [shape: bf16[8,40], index: 3, kind: output, shape index: {}]
  %s4 = sld [smem:[#allocation0]]
  $region22: #{efficientnet_vslam_forward.9} parent=0
    _
  %s6 = ssub.s32 1, %s4
  %s7 = scalar_select 0, %s6, %s4
  // Predicated region
  $region2: #{efficientnet_vslam_forward.9} parent=0 // pred_check
    _
  $region3: #{efficientnet_vslam_forward.9} parent=0 // pred_check_branch
    %9 = sbr.rel (0) target = $region5
  $region4: #{efficientnet_vslam_forward.9} parent=0 // pred_region
    _
  $region5: #{efficientnet_vslam_forward.9} parent=0 // pred_fallthru
    _
  // Predicated region
  $region6: #{efficientnet_vslam_forward.9} parent=0 // pred_check
    _
  $region7: #{efficientnet_vslam_forward.9} parent=0 // pred_check_branch
    %11 = sbr.rel (0) target = $region9
  $region8: #{efficientnet_vslam_forward.9} parent=0 // pred_region
    _
  $region9: #{efficientnet_vslam_forward.9} parent=0 // pred_fallthru
    _
  // Predicated region
  $region10: #{efficientnet_vslam_forward.9} parent=0 // pred_check
    _
  $region11: #{efficientnet_vslam_forward.9} parent=0 // pred_check_branch
    %13 = sbr.rel (0) target = $region13
  $region12: #{efficientnet_vslam_forward.9} parent=0 // pred_region
    _
  $region13: #{efficientnet_vslam_forward.9} parent=0 // pred_fallthru
    _
  %v15 = vld [vmem:[%s0] sm:$0xff]
  %v16 = vld [vmem:[%s1] sm:$0xf]
  %v17 = vld [vmem:[%s1 + $0x4] sm:$0xf]
  %v18 = vld [vmem:[%s1 + $0x8] sm:$0xf]
  %v19 = vld [vmem:[%s1 + $0xc] sm:$0xf]
  %v20 = vld [vmem:[%s1 + $0x10] sm:$0xf]
  %v21 = vld [vmem:[%s1 + $0x14] sm:$0xf]
  %v22 = vld [vmem:[%s1 + $0x18] sm:$0xf]
  %v23 = vld [vmem:[%s1 + $0x1c] sm:$0xf]
  %v24 = vld [vmem:[%s1 + $0x20] sm:$0xf]
  %v25 = vld [vmem:[%s1 + $0x24] sm:$0xf]
  %v26 = vld [vmem:[%s1 + $0x28] sm:$0xf]
  %v27 = vld [vmem:[%s1 + $0x2c] sm:$0xf]
  %v28 = vld [vmem:[%s1 + $0x30] sm:$0xf]
  %v29 = vld [vmem:[%s1 + $0x34] sm:$0xf]
  %v30 = vld [vmem:[%s1 + $0x38] sm:$0xf]
  %v31 = vld [vmem:[%s1 + $0x3c] sm:$0xf]
  %v32 = vld [vmem:[%s1 + $0x40] sm:$0xf]
  %v33 = vld [vmem:[%s1 + $0x44] sm:$0xf]
  %v34 = vld [vmem:[%s1 + $0x48] sm:$0xf]
  %v35 = vld [vmem:[%s1 + $0x4c] sm:$0xf]
  %v36 = vld [vmem:[%s1 + $0x50] sm:$0xf]
  %v37 = vld [vmem:[%s1 + $0x54] sm:$0xf]
  %v38 = vld [vmem:[%s1 + $0x58] sm:$0xf]
  %v39 = vld [vmem:[%s1 + $0x5c] sm:$0xf]
  %v40 = vld [vmem:[%s1 + $0x60] sm:$0xf]
  %v41 = vld [vmem:[%s1 + $0x64] sm:$0xf]
  %v42 = vld [vmem:[%s1 + $0x68] sm:$0xf]
  %v43 = vld [vmem:[%s2] sm:$0x1]
  %v45 = vperm.slane %v43, 0
  %v48 = vunpack.c.l.b16 %v15
  %v49 = vunpack.c.h.b16 %v15
  %v50 = vpack.c.b16 %v48, %v48
  %v51 = vpack.c.b16 %v49, %v49
  %v80 = vunpack.c.l.b16 %v16
  %v81 = vunpack.c.l.b16 %v17
  %v82 = vunpack.c.l.b16 %v18
  %v83 = vunpack.c.l.b16 %v19
  %v84 = vunpack.c.l.b16 %v20
  %v85 = vunpack.c.l.b16 %v21
  %v86 = vunpack.c.l.b16 %v22
  %v87 = vunpack.c.l.b16 %v23
  %v88 = vunpack.c.l.b16 %v24
  %v89 = vunpack.c.l.b16 %v25
  %v90 = vunpack.c.l.b16 %v26
  %v91 = vunpack.c.l.b16 %v27
  %v92 = vunpack.c.l.b16 %v28
  %v93 = vunpack.c.l.b16 %v29
  %v94 = vunpack.c.l.b16 %v30
  %v95 = vunpack.c.l.b16 %v31
  %v96 = vunpack.c.l.b16 %v32
  %v97 = vunpack.c.l.b16 %v33
  %v98 = vunpack.c.l.b16 %v34
  %v99 = vunpack.c.l.b16 %v35
  %v100 = vunpack.c.l.b16 %v36
  %v101 = vunpack.c.l.b16 %v37
  %v102 = vunpack.c.l.b16 %v38
  %v103 = vunpack.c.l.b16 %v39
  %v104 = vunpack.c.l.b16 %v40
  %v105 = vunpack.c.l.b16 %v41
  %v106 = vunpack.c.l.b16 %v42
  %v107 = vpack.c.b16 %v81, %v80
  %v108 = vpack.c.b16 %v83, %v82
  %v109 = vpack.c.b16 %v85, %v84
  %v110 = vpack.c.b16 %v87, %v86
  %v111 = vpack.c.b16 %v89, %v88
  %v112 = vpack.c.b16 %v91, %v90
  %v113 = vpack.c.b16 %v93, %v92
  %v114 = vpack.c.b16 %v95, %v94
  %v115 = vpack.c.b16 %v97, %v96
  %v116 = vpack.c.b16 %v99, %v98
  %v117 = vpack.c.b16 %v101, %v100
  %v118 = vpack.c.b16 %v103, %v102
  %v119 = vpack.c.b16 %v105, %v104
  %v120 = vpack.c.b16 %v106, %v106
  %vm134 = vcmask 719872
  %v136 = vsel %vm134, %v51, 0
  %vm138 = vcmask 1043456
  %v140 = vsel %vm138, %v120, 0
  %142 = vmatpush.bf16.msra.mxu0 %v114
  %143 = vmatpush.bf16.msra.mxu0 %v113
  %144 = vmatpush.bf16.msra.mxu0 %v112
  %145 = vmatpush.bf16.msra.mxu0 %v111
  %146 = vmatpush.bf16.msra.mxu0 %v110
  %147 = vmatpush.bf16.msra.mxu0 %v109
  %148 = vmatpush.bf16.msra.mxu0 %v108
  %149 = vmatpush.bf16.msra.mxu0 %v107
  %150 = vmatmul.bf16.gmra.mxu0 %v50
  %v151 = vpop.f32.mrf.mxu0
  %v152 = vadd.f32 %v45, %v151
  %v153 = vpop.f32.mrf.mxu0
  %154 = vdwg.mxu0
  %155 = vmatpush.bf16.msra.mxu0 0
  %156 = vmatpush.bf16.msra.mxu0 0
  %157 = vmatpush.bf16.msra.mxu0 %v140
  %158 = vmatpush.bf16.msra.mxu0 %v119
  %159 = vmatpush.bf16.msra.mxu0 %v118
  %160 = vmatpush.bf16.msra.mxu0 %v117
  %161 = vmatpush.bf16.msra.mxu0 %v116
  %162 = vmatpush.bf16.msra.mxu0 %v115
  %163 = vmatmul.bf16.gmra.mxu0 %v136
  %v164 = vpop.f32.mrf.mxu0
  %v165 = vadd.f32 %v152, %v164
  %v166 = vpop.f32.mrf.mxu0
  %167 = vdwg.mxu0
  %v168 = vsub.f32 0.0, %v165
  %v169 = vmul.f32 %v168, 1.442695
  %v170 = vpow.pop %v169
  %v171 = vadd.f32 %v170, 1.0
  %v172 = vrcp.pop %v171
  %v173 = vmul.f32 %v171, %v172
  %v174 = vsub.f32 1.0, %v173
  %v175 = vmul.f32 %v172, %v174
  %v176 = vadd.f32 %v172, %v175
  %vm177 = vweird.f32 %v171
  %vm178 = vweird.f32 %v172
  %vm179 = vmor %vm177, %vm178
  %v180 = vsel %vm179, %v172, %v176
  %v181 = vand.u32 2147483647, %v171
  %vm182 = vcmp.eq.f32.partialorder %v181, 8.507059e+37
  %v183 = vand.u32 %v171, 2147483648
  %v184 = vor.u32 1.1754944e-38, %v183
  %v185 = vsel %vm182, %v184, %v180
  %v186 = vmul.f32 %v165, %v185
  %v187 = vpack.c.bf16 %v186, %v186
  %vm188 = vcmask 322560
  %189 = vst.msk [vmem:[%s3] sm:$0xf] %vm188, %v187
  // Predicated region
  $region14: #{efficientnet_vslam_forward.9} parent=0 // pred_check
    _
  $region15: #{efficientnet_vslam_forward.9} parent=0 // pred_check_branch
    %191 = sbr.rel (0) target = $region17
  $region16: #{efficientnet_vslam_forward.9} parent=0 // pred_region
    _
  $region17: #{efficientnet_vslam_forward.9} parent=0 // pred_fallthru
    _
  // Predicated region
  $region18: #{efficientnet_vslam_forward.9} parent=0 // pred_check
    _
  $region19: #{efficientnet_vslam_forward.9} parent=0 // pred_check_branch
    %193 = sbr.rel (0) target = $region21
  $region20: #{efficientnet_vslam_forward.9} parent=0 // pred_region
    _
  $region21: #{efficientnet_vslam_forward.9} parent=0 // pred_fallthru
    _

// kernel: efficientnet_vslam_forward.10
$region0: #{efficientnet_vslam_forward.10}
  #allocation0 [shape = 'u32[]', space=smem, size = 0x4, offset = 0x4, fixed_abs, tag = 'smem constant byte address 0x4 - core index']
  #allocation1 [shape = 'u32[72,128]{1,0:T(1,128)}', space=vmem, size = 0x9000, scoped, tag = 'internal scratch']
  %s0 = inlined_call_operand.vmem [shape: bf16[2,360], index: 0, kind: input, shape index: {}]
  %s1 = inlined_call_operand.vmem [shape: bf16[360,80], index: 1, kind: input, shape index: {}]
  %s2 = inlined_call_operand.vmem [shape: f32[1,80], index: 2, kind: input, shape index: {}]
  %s3 = inlined_call_operand.vmem [shape: bf16[2,80], index: 3, kind: output, shape index: {}]
  %s4 = sld [smem:[#allocation0]]
  $region22: #{efficientnet_vslam_forward.10} parent=0
    _
  %s6 = ssub.s32 1, %s4
  %s7 = scalar_select 0, %s6, %s4
  // Predicated region
  $region2: #{efficientnet_vslam_forward.10} parent=0 // pred_check
    _
  $region3: #{efficientnet_vslam_forward.10} parent=0 // pred_check_branch
    %9 = sbr.rel (0) target = $region5
  $region4: #{efficientnet_vslam_forward.10} parent=0 // pred_region
    _
  $region5: #{efficientnet_vslam_forward.10} parent=0 // pred_fallthru
    _
  // Predicated region
  $region6: #{efficientnet_vslam_forward.10} parent=0 // pred_check
    _
  $region7: #{efficientnet_vslam_forward.10} parent=0 // pred_check_branch
    %11 = sbr.rel (0) target = $region9
  $region8: #{efficientnet_vslam_forward.10} parent=0 // pred_region
    _
  $region9: #{efficientnet_vslam_forward.10} parent=0 // pred_fallthru
    _
  // Predicated region
  $region10: #{efficientnet_vslam_forward.10} parent=0 // pred_check
    _
  $region11: #{efficientnet_vslam_forward.10} parent=0 // pred_check_branch
    %13 = sbr.rel (0) target = $region13
  $region12: #{efficientnet_vslam_forward.10} parent=0 // pred_region
    _
  $region13: #{efficientnet_vslam_forward.10} parent=0 // pred_fallthru
    _
  %v15 = vld [vmem:[%s0] sm:$0x7]
  %v16 = vld [vmem:[%s1] sm:$0xf]
  %v17 = vld [vmem:[%s1 + $0x4] sm:$0xf]
  %v18 = vld [vmem:[%s1 + $0x8] sm:$0xf]
  %v19 = vld [vmem:[%s1 + $0xc] sm:$0xf]
  %v20 = vld [vmem:[%s1 + $0x10] sm:$0xf]
  %v21 = vld [vmem:[%s1 + $0x14] sm:$0xf]
  %v22 = vld [vmem:[%s1 + $0x18] sm:$0xf]
  %v23 = vld [vmem:[%s1 + $0x1c] sm:$0xf]
  %v24 = vld [vmem:[%s1 + $0x20] sm:$0xf]
  %v25 = vld [vmem:[%s1 + $0x24] sm:$0xf]
  %v26 = vld [vmem:[%s1 + $0x28] sm:$0xf]
  %v27 = vld [vmem:[%s1 + $0x2c] sm:$0xf]
  %v28 = vld [vmem:[%s1 + $0x30] sm:$0xf]
  %v29 = vld [vmem:[%s1 + $0x34] sm:$0xf]
  %v30 = vld [vmem:[%s1 + $0x38] sm:$0xf]
  %v31 = vld [vmem:[%s1 + $0x3c] sm:$0xf]
  %v32 = vld [vmem:[%s1 + $0x40] sm:$0xf]
  %v33 = vld [vmem:[%s1 + $0x44] sm:$0xf]
  %v34 = vld [vmem:[%s1 + $0x48] sm:$0xf]
  %v35 = vld [vmem:[%s1 + $0x4c] sm:$0xf]
  %v36 = vld [vmem:[%s1 + $0x50] sm:$0xf]
  %v37 = vld [vmem:[%s1 + $0x54] sm:$0xf]
  %v38 = vld [vmem:[%s1 + $0x58] sm:$0xf]
  %v39 = vld [vmem:[%s1 + $0x5c] sm:$0xf]
  %v40 = vld [vmem:[%s1 + $0x60] sm:$0xf]
  %v41 = vld [vmem:[%s1 + $0x64] sm:$0xf]
  %v42 = vld [vmem:[%s1 + $0x68] sm:$0xf]
  %v43 = vld [vmem:[%s1 + $0x6c] sm:$0xf]
  %v44 = vld [vmem:[%s1 + $0x70] sm:$0xf]
  %v45 = vld [vmem:[%s1 + $0x74] sm:$0xf]
  %v46 = vld [vmem:[%s1 + $0x78] sm:$0xf]
  %v47 = vld [vmem:[%s1 + $0x7c] sm:$0xf]
  %v48 = vld [vmem:[%s1 + $0x80] sm:$0xf]
  %v49 = vld [vmem:[%s1 + $0x84] sm:$0xf]
  %v50 = vld [vmem:[%s1 + $0x88] sm:$0xf]
  %v51 = vld [vmem:[%s1 + $0x8c] sm:$0xf]
  %v52 = vld [vmem:[%s1 + $0x90] sm:$0xf]
  %v53 = vld [vmem:[%s1 + $0x94] sm:$0xf]
  %v54 = vld [vmem:[%s1 + $0x98] sm:$0xf]
  %v55 = vld [vmem:[%s1 + $0x9c] sm:$0xf]
  %v56 = vld [vmem:[%s1 + $0xa0] sm:$0xf]
  %v57 = vld [vmem:[%s1 + $0xa4] sm:$0xf]
  %v58 = vld [vmem:[%s1 + $0xa8] sm:$0xf]
  %v59 = vld [vmem:[%s1 + $0xac] sm:$0xf]
  %v60 = vld [vmem:[%s1 + $0xb0] sm:$0xf]
  %v61 = vld [vmem:[%s2] sm:$0x1]
  %v63 = vperm.slane %v61, 0
  %66 = vst [vmem:[#allocation1] ss:$9 sm:$0xff] %v15
  %v67 = vld [vmem:[#allocation1] sm:$0xff]
  %v68 = vld [vmem:[#allocation1 + $0x9] sm:$0xff]
  %v69 = vld [vmem:[#allocation1 + $0x12] sm:$0xff]
  %v117 = vunpack.c.l.b16 %v16
  %v118 = vunpack.c.l.b16 %v17
  %v119 = vunpack.c.l.b16 %v18
  %v120 = vunpack.c.l.b16 %v19
  %v121 = vunpack.c.l.b16 %v20
  %v122 = vunpack.c.l.b16 %v21
  %v123 = vunpack.c.l.b16 %v22
  %v124 = vunpack.c.l.b16 %v23
  %v125 = vunpack.c.l.b16 %v24
  %v126 = vunpack.c.l.b16 %v25
  %v127 = vunpack.c.l.b16 %v26
  %v128 = vunpack.c.l.b16 %v27
  %v129 = vunpack.c.l.b16 %v28
  %v130 = vunpack.c.l.b16 %v29
  %v131 = vunpack.c.l.b16 %v30
  %v132 = vunpack.c.l.b16 %v31
  %v133 = vunpack.c.l.b16 %v32
  %v134 = vunpack.c.l.b16 %v33
  %v135 = vunpack.c.l.b16 %v34
  %v136 = vunpack.c.l.b16 %v35
  %v137 = vunpack.c.l.b16 %v36
  %v138 = vunpack.c.l.b16 %v37
  %v139 = vunpack.c.l.b16 %v38
  %v140 = vunpack.c.l.b16 %v39
  %v141 = vunpack.c.l.b16 %v40
  %v142 = vunpack.c.l.b16 %v41
  %v143 = vunpack.c.l.b16 %v42
  %v144 = vunpack.c.l.b16 %v43
  %v145 = vunpack.c.l.b16 %v44
  %v146 = vunpack.c.l.b16 %v45
  %v147 = vunpack.c.l.b16 %v46
  %v148 = vunpack.c.l.b16 %v47
  %v149 = vunpack.c.l.b16 %v48
  %v150 = vunpack.c.l.b16 %v49
  %v151 = vunpack.c.l.b16 %v50
  %v152 = vunpack.c.l.b16 %v51
  %v153 = vunpack.c.l.b16 %v52
  %v154 = vunpack.c.l.b16 %v53
  %v155 = vunpack.c.l.b16 %v54
  %v156 = vunpack.c.l.b16 %v55
  %v157 = vunpack.c.l.b16 %v56
  %v158 = vunpack.c.l.b16 %v57
  %v159 = vunpack.c.l.b16 %v58
  %v160 = vunpack.c.l.b16 %v59
  %v161 = vunpack.c.l.b16 %v60
  %v162 = vpack.c.b16 %v118, %v117
  %v163 = vpack.c.b16 %v120, %v119
  %v164 = vpack.c.b16 %v122, %v121
  %v165 = vpack.c.b16 %v124, %v123
  %v166 = vpack.c.b16 %v126, %v125
  %v167 = vpack.c.b16 %v128, %v127
  %v168 = vpack.c.b16 %v130, %v129
  %v169 = vpack.c.b16 %v132, %v131
  %v170 = vpack.c.b16 %v134, %v133
  %v171 = vpack.c.b16 %v136, %v135
  %v172 = vpack.c.b16 %v138, %v137
  %v173 = vpack.c.b16 %v140, %v139
  %v174 = vpack.c.b16 %v142, %v141
  %v175 = vpack.c.b16 %v144, %v143
  %v176 = vpack.c.b16 %v146, %v145
  %v177 = vpack.c.b16 %v148, %v147
  %v178 = vpack.c.b16 %v150, %v149
  %v179 = vpack.c.b16 %v152, %v151
  %v180 = vpack.c.b16 %v154, %v153
  %v181 = vpack.c.b16 %v156, %v155
  %v182 = vpack.c.b16 %v158, %v157
  %v183 = vpack.c.b16 %v160, %v159
  %v184 = vpack.c.b16 %v161, %v161
  %vm207 = vcmask 850944
  %v208 = vsel %vm207, %v69, 0
  %vm210 = vcmask 1043456
  %v212 = vsel %vm210, %v184, 0
  %214 = vmatpush.bf16.msra.mxu0 %v169
  %215 = vmatpush.bf16.msra.mxu0 %v168
  %216 = vmatpush.bf16.msra.mxu0 %v167
  %217 = vmatpush.bf16.msra.mxu0 %v166
  %218 = vmatpush.bf16.msra.mxu0 %v165
  %219 = vmatpush.bf16.msra.mxu0 %v164
  %220 = vmatpush.bf16.msra.mxu0 %v163
  %221 = vmatpush.bf16.msra.mxu0 %v162
  %222 = vmatmul.bf16.gmra.mxu0 %v67
  %v223 = vpop.f32.mrf.mxu0
  %v224 = vadd.f32 %v63, %v223
  %v225 = vpop.f32.mrf.mxu0
  %226 = vdwg.mxu0
  %227 = vmatpush.bf16.msra.mxu0 %v177
  %228 = vmatpush.bf16.msra.mxu0 %v176
  %229 = vmatpush.bf16.msra.mxu0 %v175
  %230 = vmatpush.bf16.msra.mxu0 %v174
  %231 = vmatpush.bf16.msra.mxu0 %v173
  %232 = vmatpush.bf16.msra.mxu0 %v172
  %233 = vmatpush.bf16.msra.mxu0 %v171
  %234 = vmatpush.bf16.msra.mxu0 %v170
  %235 = vmatmul.bf16.gmra.mxu0 %v68
  %v236 = vpop.f32.mrf.mxu0
  %v237 = vadd.f32 %v224, %v236
  %v238 = vpop.f32.mrf.mxu0
  %239 = vdwg.mxu0
  %240 = vmatpush.bf16.msra.mxu0 0
  %241 = vmatpush.bf16.msra.mxu0 %v212
  %242 = vmatpush.bf16.msra.mxu0 %v183
  %243 = vmatpush.bf16.msra.mxu0 %v182
  %244 = vmatpush.bf16.msra.mxu0 %v181
  %245 = vmatpush.bf16.msra.mxu0 %v180
  %246 = vmatpush.bf16.msra.mxu0 %v179
  %247 = vmatpush.bf16.msra.mxu0 %v178
  %248 = vmatmul.bf16.gmra.mxu0 %v208
  %v249 = vpop.f32.mrf.mxu0
  %v250 = vadd.f32 %v237, %v249
  %v251 = vpop.f32.mrf.mxu0
  %252 = vdwg.mxu0
  %v253 = vsub.f32 0.0, %v250
  %v254 = vmul.f32 %v253, 1.442695
  %v255 = vpow.pop %v254
  %v256 = vadd.f32 %v255, 1.0
  %v257 = vrcp.pop %v256
  %v258 = vmul.f32 %v256, %v257
  %v259 = vsub.f32 1.0, %v258
  %v260 = vmul.f32 %v257, %v259
  %v261 = vadd.f32 %v257, %v260
  %vm262 = vweird.f32 %v256
  %vm263 = vweird.f32 %v257
  %vm264 = vmor %vm262, %vm263
  %v265 = vsel %vm264, %v257, %v261
  %v266 = vand.u32 2147483647, %v256
  %vm267 = vcmp.eq.f32.partialorder %v266, 8.507059e+37
  %v268 = vand.u32 %v256, 2147483648
  %v269 = vor.u32 1.1754944e-38, %v268
  %v270 = vsel %vm267, %v269, %v265
  %v271 = vmul.f32 %v250, %v270
  %v272 = vpack.c.bf16 %v271, %v271
  %vm273 = vcmask 647168
  %274 = vst.msk [vmem:[%s3] sm:$0x1] %vm273, %v272
  // Predicated region
  $region14: #{efficientnet_vslam_forward.10} parent=0 // pred_check
    _
  $region15: #{efficientnet_vslam_forward.10} parent=0 // pred_check_branch
    %276 = sbr.rel (0) target = $region17
  $region16: #{efficientnet_vslam_forward.10} parent=0 // pred_region
    _
  $region17: #{efficientnet_vslam_forward.10} parent=0 // pred_fallthru
    _
  // Predicated region
  $region18: #{efficientnet_vslam_forward.10} parent=0 // pred_check
    _
  $region19: #{efficientnet_vslam_forward.10} parent=0 // pred_check_branch
    %278 = sbr.rel (0) target = $region21
  $region20: #{efficientnet_vslam_forward.10} parent=0 // pred_region
    _
  $region21: #{efficientnet_vslam_forward.10} parent=0 // pred_fallthru
    _

// kernel: efficientnet_vslam_forward.11
$region0: #{efficientnet_vslam_forward.11}
  #allocation0 [shape = 'u32[]', space=smem, size = 0x4, offset = 0x4, fixed_abs, tag = 'smem constant byte address 0x4 - core index']
  #allocation1 [shape = 'u32[72,128]{1,0:T(1,128)}', space=vmem, size = 0x9000, scoped, tag = 'internal scratch']
  %s0 = inlined_call_operand.vmem [shape: bf16[2,80], index: 0, kind: input, shape index: {}]
  %s1 = inlined_call_operand.vmem [shape: bf16[80,112], index: 1, kind: input, shape index: {}]
  %s2 = inlined_call_operand.vmem [shape: f32[1,112], index: 2, kind: input, shape index: {}]
  %s3 = inlined_call_operand.vmem [shape: bf16[112,192], index: 3, kind: input, shape index: {}]
  %s4 = inlined_call_operand.vmem [shape: f32[1,192], index: 4, kind: input, shape index: {}]
  %s5 = inlined_call_operand.vmem [shape: bf16[192,320], index: 5, kind: input, shape index: {}]
  %s6 = inlined_call_operand.vmem [shape: f32[1,320], index: 6, kind: input, shape index: {}]
  %s7 = inlined_call_operand.vmem [shape: bf16[320,1280], index: 7, kind: input, shape index: {}]
  %s8 = inlined_call_operand.vmem [shape: f32[1,1280], index: 8, kind: input, shape index: {}]
  %s9 = inlined_call_operand.vmem [shape: bf16[1280,512], index: 9, kind: input, shape index: {}]
  %s10 = inlined_call_operand.vmem [shape: f32[1,512], index: 10, kind: input, shape index: {}]
  %s11 = inlined_call_operand.vmem [shape: bf16[512,3], index: 11, kind: input, shape index: {}]
  %s12 = inlined_call_operand.vmem [shape: f32[1,3], index: 12, kind: input, shape index: {}]
  %s13 = inlined_call_operand.hbm [shape: f32[2,1280], index: 13, kind: output, shape index: {0}]
  %s14 = inlined_call_operand.hbm [shape: f32[2,3], index: 14, kind: output, shape index: {1}]
  %15 = xla_tuple %s13, %s14
  %s16 = sld [smem:[#allocation0]]
  $region70: #{efficientnet_vslam_forward.11} parent=0
    _
  %s18 = ssub.s32 1, %s16
  %s19 = scalar_select 0, %s18, %s16
  $region1: #{efficientnet_vslam_forward.11} parent=0
    #allocation2 [shape = 'u8[10240]{0}', space=vmem, size = 0x2800, scoped, tag = 'output window, operand 0, single buffered']
    #allocation3 [shape = 's32[1]{0}', space=sflag, size = 0x4, scoped, tag = 'scoped memory for efficientnet_vslam_forward.11']
    #allocation4 [shape = 'u8[1024]{0}', space=vmem, size = 0x400, scoped, tag = 'output window, operand 1, single buffered']
    #allocation5 [shape = 's32[1]{0}', space=sflag, size = 0x4, scoped, tag = 'scoped memory for efficientnet_vslam_forward.11']
    %20 = vsyncpa [#allocation3], 0
    %21 = vsyncpa [#allocation5], 0
    // Predicated region
    $region2: #{efficientnet_vslam_forward.11} parent=1 // pred_check
      _
    $region3: #{efficientnet_vslam_forward.11} parent=1 // pred_check_branch
      %23 = sbr.rel (0) target = $region5
    $region4: #{efficientnet_vslam_forward.11} parent=1 // pred_region
      _
    $region5: #{efficientnet_vslam_forward.11} parent=1 // pred_fallthru
      _
    // Predicated region
    $region6: #{efficientnet_vslam_forward.11} parent=1 // pred_check
      _
    $region7: #{efficientnet_vslam_forward.11} parent=1 // pred_check_branch
      %25 = sbr.rel (0) target = $region9
    $region8: #{efficientnet_vslam_forward.11} parent=1 // pred_region
      _
    $region9: #{efficientnet_vslam_forward.11} parent=1 // pred_fallthru
      _
    // Predicated region
    $region10: #{efficientnet_vslam_forward.11} parent=1 // pred_check
      _
    $region11: #{efficientnet_vslam_forward.11} parent=1 // pred_check_branch
      %27 = sbr.rel (0) target = $region13
    $region12: #{efficientnet_vslam_forward.11} parent=1 // pred_region
      _
    $region13: #{efficientnet_vslam_forward.11} parent=1 // pred_fallthru
      _
    // Predicated region
    $region14: #{efficientnet_vslam_forward.11} parent=1 // pred_check
      _
    $region15: #{efficientnet_vslam_forward.11} parent=1 // pred_check_branch
      %29 = sbr.rel (0) target = $region17
    $region16: #{efficientnet_vslam_forward.11} parent=1 // pred_region
      _
    $region17: #{efficientnet_vslam_forward.11} parent=1 // pred_fallthru
      _
    // Predicated region
    $region18: #{efficientnet_vslam_forward.11} parent=1 // pred_check
      _
    $region19: #{efficientnet_vslam_forward.11} parent=1 // pred_check_branch
      %31 = sbr.rel (0) target = $region21
    $region20: #{efficientnet_vslam_forward.11} parent=1 // pred_region
      _
    $region21: #{efficientnet_vslam_forward.11} parent=1 // pred_fallthru
      _
    // Predicated region
    $region22: #{efficientnet_vslam_forward.11} parent=1 // pred_check
      _
    $region23: #{efficientnet_vslam_forward.11} parent=1 // pred_check_branch
      %33 = sbr.rel (0) target = $region25
    $region24: #{efficientnet_vslam_forward.11} parent=1 // pred_region
      _
    $region25: #{efficientnet_vslam_forward.11} parent=1 // pred_fallthru
      _
    // Predicated region
    $region26: #{efficientnet_vslam_forward.11} parent=1 // pred_check
      _
    $region27: #{efficientnet_vslam_forward.11} parent=1 // pred_check_branch
      %35 = sbr.rel (0) target = $region29
    $region28: #{efficientnet_vslam_forward.11} parent=1 // pred_region
      _
    $region29: #{efficientnet_vslam_forward.11} parent=1 // pred_fallthru
      _
    // Predicated region
    $region30: #{efficientnet_vslam_forward.11} parent=1 // pred_check
      _
    $region31: #{efficientnet_vslam_forward.11} parent=1 // pred_check_branch
      %37 = sbr.rel (0) target = $region33
    $region32: #{efficientnet_vslam_forward.11} parent=1 // pred_region
      _
    $region33: #{efficientnet_vslam_forward.11} parent=1 // pred_fallthru
      _
    // Predicated region
    $region34: #{efficientnet_vslam_forward.11} parent=1 // pred_check
      _
    $region35: #{efficientnet_vslam_forward.11} parent=1 // pred_check_branch
      %39 = sbr.rel (0) target = $region37
    $region36: #{efficientnet_vslam_forward.11} parent=1 // pred_region
      _
    $region37: #{efficientnet_vslam_forward.11} parent=1 // pred_fallthru
      _
    // Predicated region
    $region38: #{efficientnet_vslam_forward.11} parent=1 // pred_check
      _
    $region39: #{efficientnet_vslam_forward.11} parent=1 // pred_check_branch
      %41 = sbr.rel (0) target = $region41
    $region40: #{efficientnet_vslam_forward.11} parent=1 // pred_region
      _
    $region41: #{efficientnet_vslam_forward.11} parent=1 // pred_fallthru
      _
    // Predicated region
    $region42: #{efficientnet_vslam_forward.11} parent=1 // pred_check
      _
    $region43: #{efficientnet_vslam_forward.11} parent=1 // pred_check_branch
      %43 = sbr.rel (0) target = $region45
    $region44: #{efficientnet_vslam_forward.11} parent=1 // pred_region
      _
    $region45: #{efficientnet_vslam_forward.11} parent=1 // pred_fallthru
      _
    // Predicated region
    $region46: #{efficientnet_vslam_forward.11} parent=1 // pred_check
      _
    $region47: #{efficientnet_vslam_forward.11} parent=1 // pred_check_branch
      %45 = sbr.rel (0) target = $region49
    $region48: #{efficientnet_vslam_forward.11} parent=1 // pred_region
      _
    $region49: #{efficientnet_vslam_forward.11} parent=1 // pred_fallthru
      _
    // Predicated region
    $region50: #{efficientnet_vslam_forward.11} parent=1 // pred_check
      _
    $region51: #{efficientnet_vslam_forward.11} parent=1 // pred_check_branch
      %47 = sbr.rel (0) target = $region53
    $region52: #{efficientnet_vslam_forward.11} parent=1 // pred_region
      _
    $region53: #{efficientnet_vslam_forward.11} parent=1 // pred_fallthru
      _
    %v49 = vld [vmem:[%s0] sm:$0x1]
    %v50 = vld [vmem:[%s1] sm:$0xf]
    %v51 = vld [vmem:[%s1 + $0x4] sm:$0xf]
    %v52 = vld [vmem:[%s1 + $0x8] sm:$0xf]
    %v53 = vld [vmem:[%s1 + $0xc] sm:$0xf]
    %v54 = vld [vmem:[%s1 + $0x10] sm:$0xf]
    %v55 = vld [vmem:[%s1 + $0x14] sm:$0xf]
    %v56 = vld [vmem:[%s1 + $0x18] sm:$0xf]
    %v57 = vld [vmem:[%s1 + $0x1c] sm:$0xf]
    %v58 = vld [vmem:[%s1 + $0x20] sm:$0xf]
    %v59 = vld [vmem:[%s1 + $0x24] sm:$0xf]
    %v60 = vld [vmem:[%s2] sm:$0x1]
    %v62 = vperm.slane %v60, 0
    %v74 = vunpack.c.l.b16 %v50
    %v75 = vunpack.c.l.b16 %v51
    %v76 = vunpack.c.l.b16 %v52
    %v77 = vunpack.c.l.b16 %v53
    %v78 = vunpack.c.l.b16 %v54
    %v79 = vunpack.c.l.b16 %v55
    %v80 = vunpack.c.l.b16 %v56
    %v81 = vunpack.c.l.b16 %v57
    %v82 = vunpack.c.l.b16 %v58
    %v83 = vunpack.c.l.b16 %v59
    %v84 = vpack.c.b16 %v75, %v74
    %v85 = vpack.c.b16 %v77, %v76
    %v86 = vpack.c.b16 %v79, %v78
    %v87 = vpack.c.b16 %v81, %v80
    %v88 = vpack.c.b16 %v83, %v82
    %vm94 = vcmask 654336
    %v96 = vsel %vm94, %v49, 0
    %98 = vmatpush.bf16.msra.mxu0 0
    %99 = vmatpush.bf16.msra.mxu0 0
    %100 = vmatpush.bf16.msra.mxu0 0
    %101 = vmatpush.bf16.msra.mxu0 %v88
    %102 = vmatpush.bf16.msra.mxu0 %v87
    %103 = vmatpush.bf16.msra.mxu0 %v86
    %104 = vmatpush.bf16.msra.mxu0 %v85
    %105 = vmatpush.bf16.msra.mxu0 %v84
    %106 = vmatmul.bf16.gmra.mxu0 %v96
    %v107 = vpop.f32.mrf.mxu0
    %v108 = vadd.f32 %v62, %v107
    %v109 = vpop.f32.mrf.mxu0
    %110 = vdwg.mxu0
    %v111 = vsub.f32 0.0, %v108
    %v112 = vmul.f32 %v111, 1.442695
    %v113 = vpow.pop %v112
    %v114 = vadd.f32 %v113, 1.0
    %v115 = vrcp.pop %v114
    %v116 = vmul.f32 %v114, %v115
    %v117 = vsub.f32 1.0, %v116
    %v118 = vmul.f32 %v115, %v117
    %v119 = vadd.f32 %v115, %v118
    %vm120 = vweird.f32 %v114
    %vm121 = vweird.f32 %v115
    %vm122 = vmor %vm120, %vm121
    %v123 = vsel %vm122, %v115, %v119
    %v124 = vand.u32 2147483647, %v114
    %vm125 = vcmp.eq.f32.partialorder %v124, 8.507059e+37
    %v126 = vand.u32 %v114, 2147483648
    %v127 = vor.u32 1.1754944e-38, %v126
    %v128 = vsel %vm125, %v127, %v123
    %v129 = vmul.f32 %v108, %v128
    %v130 = vpack.c.bf16 %v129, %v129
    %v131 = vld [vmem:[%s3] sm:$0xff]
    %v132 = vld [vmem:[%s3 + $0x8] sm:$0xff]
    %v133 = vld [vmem:[%s3 + $0x10] sm:$0xff]
    %v134 = vld [vmem:[%s3 + $0x18] sm:$0xff]
    %v135 = vld [vmem:[%s3 + $0x20] sm:$0xff]
    %v136 = vld [vmem:[%s3 + $0x28] sm:$0xff]
    %v137 = vld [vmem:[%s3 + $0x30] sm:$0xff]
    %v138 = vld [vmem:[%s3 + $0x38] sm:$0xff]
    %v139 = vld [vmem:[%s3 + $0x40] sm:$0xff]
    %v140 = vld [vmem:[%s3 + $0x48] sm:$0xff]
    %v141 = vld [vmem:[%s3 + $0x50] sm:$0xff]
    %v142 = vld [vmem:[%s3 + $0x58] sm:$0xff]
    %v143 = vld [vmem:[%s3 + $0x60] sm:$0xff]
    %v144 = vld [vmem:[%s3 + $0x68] sm:$0xff]
    %v145 = vld [vmem:[%s4] sm:$0x3]
    %v147 = vperm.slane %v145, 0
    %v148 = vperm.slane %v145, 1
    %v165 = vunpack.c.l.b16 %v131
    %v166 = vunpack.c.h.b16 %v131
    %v167 = vunpack.c.l.b16 %v132
    %v168 = vunpack.c.h.b16 %v132
    %v169 = vunpack.c.l.b16 %v133
    %v170 = vunpack.c.h.b16 %v133
    %v171 = vunpack.c.l.b16 %v134
    %v172 = vunpack.c.h.b16 %v134
    %v173 = vunpack.c.l.b16 %v135
    %v174 = vunpack.c.h.b16 %v135
    %v175 = vunpack.c.l.b16 %v136
    %v176 = vunpack.c.h.b16 %v136
    %v177 = vunpack.c.l.b16 %v137
    %v178 = vunpack.c.h.b16 %v137
    %v179 = vunpack.c.l.b16 %v138
    %v180 = vunpack.c.h.b16 %v138
    %v181 = vunpack.c.l.b16 %v139
    %v182 = vunpack.c.h.b16 %v139
    %v183 = vunpack.c.l.b16 %v140
    %v184 = vunpack.c.h.b16 %v140
    %v185 = vunpack.c.l.b16 %v141
    %v186 = vunpack.c.h.b16 %v141
    %v187 = vunpack.c.l.b16 %v142
    %v188 = vunpack.c.h.b16 %v142
    %v189 = vunpack.c.l.b16 %v143
    %v190 = vunpack.c.h.b16 %v143
    %v191 = vunpack.c.l.b16 %v144
    %v192 = vunpack.c.h.b16 %v144
    %v193 = vpack.c.b16 %v167, %v165
    %v194 = vpack.c.b16 %v168, %v166
    %v195 = vpack.c.b16 %v171, %v169
    %v196 = vpack.c.b16 %v172, %v170
    %v197 = vpack.c.b16 %v175, %v173
    %v198 = vpack.c.b16 %v176, %v174
    %v199 = vpack.c.b16 %v179, %v177
    %v200 = vpack.c.b16 %v180, %v178
    %v201 = vpack.c.b16 %v183, %v181
    %v202 = vpack.c.b16 %v184, %v182
    %v203 = vpack.c.b16 %v187, %v185
    %v204 = vpack.c.b16 %v188, %v186
    %v205 = vpack.c.b16 %v191, %v189
    %v206 = vpack.c.b16 %v192, %v190
    %vm221 = vcmask 916480
    %v223 = vsel %vm221, %v130, 0
    %225 = vmatpush.bf16.msra.mxu0 0
    %226 = vmatpush.bf16.msra.mxu0 %v205
    %227 = vmatpush.bf16.msra.mxu0 %v203
    %228 = vmatpush.bf16.msra.mxu0 %v201
    %229 = vmatpush.bf16.msra.mxu0 %v199
    %230 = vmatpush.bf16.msra.mxu0 %v197
    %231 = vmatpush.bf16.msra.mxu0 %v195
    %232 = vmatpush.bf16.msra.mxu0 %v193
    %233 = vmatmul.bf16.gmra.mxu0 %v223
    %v234 = vpop.f32.mrf.mxu0
    %v235 = vadd.f32 %v147, %v234
    %v236 = vpop.f32.mrf.mxu0
    %237 = vdwg.mxu0
    %238 = vmatpush.bf16.msra.mxu0 0
    %239 = vmatpush.bf16.msra.mxu0 %v206
    %240 = vmatpush.bf16.msra.mxu0 %v204
    %241 = vmatpush.bf16.msra.mxu0 %v202
    %242 = vmatpush.bf16.msra.mxu0 %v200
    %243 = vmatpush.bf16.msra.mxu0 %v198
    %244 = vmatpush.bf16.msra.mxu0 %v196
    %245 = vmatpush.bf16.msra.mxu0 %v194
    %246 = vmatmul.bf16.gmra.mxu0 %v223
    %v247 = vpop.f32.mrf.mxu0
    %v248 = vadd.f32 %v148, %v247
    %v249 = vpop.f32.mrf.mxu0
    %250 = vdwg.mxu0
    %v251 = vsub.f32 0.0, %v235
    %v252 = vsub.f32 0.0, %v248
    %v253 = vmul.f32 %v251, 1.442695
    %v254 = vpow.pop %v253
    %v255 = vmul.f32 %v252, 1.442695
    %v256 = vpow.pop %v255
    %v257 = vadd.f32 %v254, 1.0
    %v258 = vadd.f32 %v256, 1.0
    %v259 = vrcp.pop %v257
    %v260 = vmul.f32 %v257, %v259
    %v261 = vsub.f32 1.0, %v260
    %v262 = vmul.f32 %v259, %v261
    %v263 = vadd.f32 %v259, %v262
    %vm264 = vweird.f32 %v257
    %vm265 = vweird.f32 %v259
    %vm266 = vmor %vm264, %vm265
    %v267 = vsel %vm266, %v259, %v263
    %v268 = vand.u32 2147483647, %v257
    %vm269 = vcmp.eq.f32.partialorder %v268, 8.507059e+37
    %v270 = vand.u32 %v257, 2147483648
    %v271 = vor.u32 1.1754944e-38, %v270
    %v272 = vsel %vm269, %v271, %v267
    %v273 = vmul.f32 %v235, %v272
    %v274 = vrcp.pop %v258
    %v275 = vmul.f32 %v258, %v274
    %v276 = vsub.f32 1.0, %v275
    %v277 = vmul.f32 %v274, %v276
    %v278 = vadd.f32 %v274, %v277
    %vm279 = vweird.f32 %v258
    %vm280 = vweird.f32 %v274
    %vm281 = vmor %vm279, %vm280
    %v282 = vsel %vm281, %v274, %v278
    %v283 = vand.u32 2147483647, %v258
    %vm284 = vcmp.eq.f32.partialorder %v283, 8.507059e+37
    %v285 = vand.u32 %v258, 2147483648
    %v286 = vor.u32 1.1754944e-38, %v285
    %v287 = vsel %vm284, %v286, %v282
    %v288 = vmul.f32 %v248, %v287
    %v289 = vpack.c.bf16 %v273, %v273
    %v290 = vpack.c.bf16 %v288, %v288
    %v291 = vld [vmem:[%s5] sm:$0xff]
    %v292 = vld [vmem:[%s5 + $0x8] sm:$0xf]
    %v293 = vld [vmem:[%s5 + $0xc] sm:$0xff]
    %v294 = vld [vmem:[%s5 + $0x14] sm:$0xf]
    %v295 = vld [vmem:[%s5 + $0x18] sm:$0xff]
    %v296 = vld [vmem:[%s5 + $0x20] sm:$0xf]
    %v297 = vld [vmem:[%s5 + $0x24] sm:$0xff]
    %v298 = vld [vmem:[%s5 + $0x2c] sm:$0xf]
    %v299 = vld [vmem:[%s5 + $0x30] sm:$0xff]
    %v300 = vld [vmem:[%s5 + $0x38] sm:$0xf]
    %v301 = vld [vmem:[%s5 + $0x3c] sm:$0xff]
    %v302 = vld [vmem:[%s5 + $0x44] sm:$0xf]
    %v303 = vld [vmem:[%s5 + $0x48] sm:$0xff]
    %v304 = vld [vmem:[%s5 + $0x50] sm:$0xf]
    %v305 = vld [vmem:[%s5 + $0x54] sm:$0xff]
    %v306 = vld [vmem:[%s5 + $0x5c] sm:$0xf]
    %v307 = vld [vmem:[%s5 + $0x60] sm:$0xff]
    %v308 = vld [vmem:[%s5 + $0x68] sm:$0xf]
    %v309 = vld [vmem:[%s5 + $0x6c] sm:$0xff]
    %v310 = vld [vmem:[%s5 + $0x74] sm:$0xf]
    %v311 = vld [vmem:[%s5 + $0x78] sm:$0xff]
    %v312 = vld [vmem:[%s5 + $0x80] sm:$0xf]
    %v313 = vld [vmem:[%s5 + $0x84] sm:$0xff]
    %v314 = vld [vmem:[%s5 + $0x8c] sm:$0xf]
    %v315 = vld [vmem:[%s5 + $0x90] sm:$0xff]
    %v316 = vld [vmem:[%s5 + $0x98] sm:$0xf]
    %v317 = vld [vmem:[%s5 + $0x9c] sm:$0xff]
    %v318 = vld [vmem:[%s5 + $0xa4] sm:$0xf]
    %v319 = vld [vmem:[%s5 + $0xa8] sm:$0xff]
    %v320 = vld [vmem:[%s5 + $0xb0] sm:$0xf]
    %v321 = vld [vmem:[%s5 + $0xb4] sm:$0xff]
    %v322 = vld [vmem:[%s5 + $0xbc] sm:$0xf]
    %v323 = vld [vmem:[%s5 + $0xc0] sm:$0xff]
    %v324 = vld [vmem:[%s5 + $0xc8] sm:$0xf]
    %v325 = vld [vmem:[%s5 + $0xcc] sm:$0xff]
    %v326 = vld [vmem:[%s5 + $0xd4] sm:$0xf]
    %v327 = vld [vmem:[%s5 + $0xd8] sm:$0xff]
    %v328 = vld [vmem:[%s5 + $0xe0] sm:$0xf]
    %v329 = vld [vmem:[%s5 + $0xe4] sm:$0xff]
    %v330 = vld [vmem:[%s5 + $0xec] sm:$0xf]
    %v331 = vld [vmem:[%s5 + $0xf0] sm:$0xff]
    %v332 = vld [vmem:[%s5 + $0xf8] sm:$0xf]
    %v333 = vld [vmem:[%s5 + $0xfc] sm:$0xff]
    %v334 = vld [vmem:[%s5 + $0x104] sm:$0xf]
    %v335 = vld [vmem:[%s5 + $0x108] sm:$0xff]
    %v336 = vld [vmem:[%s5 + $0x110] sm:$0xf]
    %v337 = vld [vmem:[%s5 + $0x114] sm:$0xff]
    %v338 = vld [vmem:[%s5 + $0x11c] sm:$0xf]
    %v339 = vld [vmem:[%s6] sm:$0x7]
    %v341 = vperm.slane %v339, 0
    %v342 = vperm.slane %v339, 1
    %v343 = vperm.slane %v339, 2
    %v395 = vunpack.c.l.b16 %v291
    %v396 = vunpack.c.h.b16 %v291
    %v397 = vunpack.c.l.b16 %v292
    %v398 = vunpack.c.l.b16 %v293
    %v399 = vunpack.c.h.b16 %v293
    %v400 = vunpack.c.l.b16 %v294
    %v401 = vunpack.c.l.b16 %v295
    %v402 = vunpack.c.h.b16 %v295
    %v403 = vunpack.c.l.b16 %v296
    %v404 = vunpack.c.l.b16 %v297
    %v405 = vunpack.c.h.b16 %v297
    %v406 = vunpack.c.l.b16 %v298
    %v407 = vunpack.c.l.b16 %v299
    %v408 = vunpack.c.h.b16 %v299
    %v409 = vunpack.c.l.b16 %v300
    %v410 = vunpack.c.l.b16 %v301
    %v411 = vunpack.c.h.b16 %v301
    %v412 = vunpack.c.l.b16 %v302
    %v413 = vunpack.c.l.b16 %v303
    %v414 = vunpack.c.h.b16 %v303
    %v415 = vunpack.c.l.b16 %v304
    %v416 = vunpack.c.l.b16 %v305
    %v417 = vunpack.c.h.b16 %v305
    %v418 = vunpack.c.l.b16 %v306
    %v419 = vunpack.c.l.b16 %v307
    %v420 = vunpack.c.h.b16 %v307
    %v421 = vunpack.c.l.b16 %v308
    %v422 = vunpack.c.l.b16 %v309
    %v423 = vunpack.c.h.b16 %v309
    %v424 = vunpack.c.l.b16 %v310
    %v425 = vunpack.c.l.b16 %v311
    %v426 = vunpack.c.h.b16 %v311
    %v427 = vunpack.c.l.b16 %v312
    %v428 = vunpack.c.l.b16 %v313
    %v429 = vunpack.c.h.b16 %v313
    %v430 = vunpack.c.l.b16 %v314
    %v431 = vunpack.c.l.b16 %v315
    %v432 = vunpack.c.h.b16 %v315
    %v433 = vunpack.c.l.b16 %v316
    %v434 = vunpack.c.l.b16 %v317
    %v435 = vunpack.c.h.b16 %v317
    %v436 = vunpack.c.l.b16 %v318
    %v437 = vunpack.c.l.b16 %v319
    %v438 = vunpack.c.h.b16 %v319
    %v439 = vunpack.c.l.b16 %v320
    %v440 = vunpack.c.l.b16 %v321
    %v441 = vunpack.c.h.b16 %v321
    %v442 = vunpack.c.l.b16 %v322
    %v443 = vunpack.c.l.b16 %v323
    %v444 = vunpack.c.h.b16 %v323
    %v445 = vunpack.c.l.b16 %v324
    %v446 = vunpack.c.l.b16 %v325
    %v447 = vunpack.c.h.b16 %v325
    %v448 = vunpack.c.l.b16 %v326
    %v449 = vunpack.c.l.b16 %v327
    %v450 = vunpack.c.h.b16 %v327
    %v451 = vunpack.c.l.b16 %v328
    %v452 = vunpack.c.l.b16 %v329
    %v453 = vunpack.c.h.b16 %v329
    %v454 = vunpack.c.l.b16 %v330
    %v455 = vunpack.c.l.b16 %v331
    %v456 = vunpack.c.h.b16 %v331
    %v457 = vunpack.c.l.b16 %v332
    %v458 = vunpack.c.l.b16 %v333
    %v459 = vunpack.c.h.b16 %v333
    %v460 = vunpack.c.l.b16 %v334
    %v461 = vunpack.c.l.b16 %v335
    %v462 = vunpack.c.h.b16 %v335
    %v463 = vunpack.c.l.b16 %v336
    %v464 = vunpack.c.l.b16 %v337
    %v465 = vunpack.c.h.b16 %v337
    %v466 = vunpack.c.l.b16 %v338
    %v467 = vpack.c.b16 %v398, %v395
    %v468 = vpack.c.b16 %v399, %v396
    %v469 = vpack.c.b16 %v400, %v397
    %v470 = vpack.c.b16 %v404, %v401
    %v471 = vpack.c.b16 %v405, %v402
    %v472 = vpack.c.b16 %v406, %v403
    %v473 = vpack.c.b16 %v410, %v407
    %v474 = vpack.c.b16 %v411, %v408
    %v475 = vpack.c.b16 %v412, %v409
    %v476 = vpack.c.b16 %v416, %v413
    %v477 = vpack.c.b16 %v417, %v414
    %v478 = vpack.c.b16 %v418, %v415
    %v479 = vpack.c.b16 %v422, %v419
    %v480 = vpack.c.b16 %v423, %v420
    %v481 = vpack.c.b16 %v424, %v421
    %v482 = vpack.c.b16 %v428, %v425
    %v483 = vpack.c.b16 %v429, %v426
    %v484 = vpack.c.b16 %v430, %v427
    %v485 = vpack.c.b16 %v434, %v431
    %v486 = vpack.c.b16 %v435, %v432
    %v487 = vpack.c.b16 %v436, %v433
    %v488 = vpack.c.b16 %v440, %v437
    %v489 = vpack.c.b16 %v441, %v438
    %v490 = vpack.c.b16 %v442, %v439
    %v491 = vpack.c.b16 %v446, %v443
    %v492 = vpack.c.b16 %v447, %v444
    %v493 = vpack.c.b16 %v448, %v445
    %v494 = vpack.c.b16 %v452, %v449
    %v495 = vpack.c.b16 %v453, %v450
    %v496 = vpack.c.b16 %v454, %v451
    %v497 = vpack.c.b16 %v458, %v455
    %v498 = vpack.c.b16 %v459, %v456
    %v499 = vpack.c.b16 %v460, %v457
    %v500 = vpack.c.b16 %v464, %v461
    %v501 = vpack.c.b16 %v465, %v462
    %v502 = vpack.c.b16 %v466, %v463
    %vm539 = vcmask 523264
    %v541 = vsel %vm539, %v290, 0
    %543 = vmatpush.bf16.msra.mxu0 %v488
    %544 = vmatpush.bf16.msra.mxu0 %v485
    %545 = vmatpush.bf16.msra.mxu0 %v482
    %546 = vmatpush.bf16.msra.mxu0 %v479
    %547 = vmatpush.bf16.msra.mxu0 %v476
    %548 = vmatpush.bf16.msra.mxu0 %v473
    %549 = vmatpush.bf16.msra.mxu0 %v470
    %550 = vmatpush.bf16.msra.mxu0 %v467
    %551 = vmatmul.bf16.gmra.mxu0 %v289
    %v552 = vpop.f32.mrf.mxu0
    %v553 = vadd.f32 %v341, %v552
    %v554 = vpop.f32.mrf.mxu0
    %555 = vdwg.mxu0
    %556 = vmatpush.bf16.msra.mxu0 0
    %557 = vmatpush.bf16.msra.mxu0 0
    %558 = vmatpush.bf16.msra.mxu0 0
    %559 = vmatpush.bf16.msra.mxu0 0
    %560 = vmatpush.bf16.msra.mxu0 %v500
    %561 = vmatpush.bf16.msra.mxu0 %v497
    %562 = vmatpush.bf16.msra.mxu0 %v494
    %563 = vmatpush.bf16.msra.mxu0 %v491
    %564 = vmatmul.bf16.gmra.mxu0 %v541
    %v565 = vpop.f32.mrf.mxu0
    %v566 = vadd.f32 %v553, %v565
    %v567 = vpop.f32.mrf.mxu0
    %568 = vdwg.mxu0
    %569 = vmatpush.bf16.msra.mxu0 %v489
    %570 = vmatpush.bf16.msra.mxu0 %v486
    %571 = vmatpush.bf16.msra.mxu0 %v483
    %572 = vmatpush.bf16.msra.mxu0 %v480
    %573 = vmatpush.bf16.msra.mxu0 %v477
    %574 = vmatpush.bf16.msra.mxu0 %v474
    %575 = vmatpush.bf16.msra.mxu0 %v471
    %576 = vmatpush.bf16.msra.mxu0 %v468
    %577 = vmatmul.bf16.gmra.mxu0 %v289
    %v578 = vpop.f32.mrf.mxu0
    %v579 = vadd.f32 %v342, %v578
    %v580 = vpop.f32.mrf.mxu0
    %581 = vdwg.mxu0
    %582 = vmatpush.bf16.msra.mxu0 0
    %583 = vmatpush.bf16.msra.mxu0 0
    %584 = vmatpush.bf16.msra.mxu0 0
    %585 = vmatpush.bf16.msra.mxu0 0
    %586 = vmatpush.bf16.msra.mxu0 %v501
    %587 = vmatpush.bf16.msra.mxu0 %v498
    %588 = vmatpush.bf16.msra.mxu0 %v495
    %589 = vmatpush.bf16.msra.mxu0 %v492
    %590 = vmatmul.bf16.gmra.mxu0 %v541
    %v591 = vpop.f32.mrf.mxu0
    %v592 = vadd.f32 %v579, %v591
    %v593 = vpop.f32.mrf.mxu0
    %594 = vdwg.mxu0
    %595 = vmatpush.bf16.msra.mxu0 %v490
    %596 = vmatpush.bf16.msra.mxu0 %v487
    %597 = vmatpush.bf16.msra.mxu0 %v484
    %598 = vmatpush.bf16.msra.mxu0 %v481
    %599 = vmatpush.bf16.msra.mxu0 %v478
    %600 = vmatpush.bf16.msra.mxu0 %v475
    %601 = vmatpush.bf16.msra.mxu0 %v472
    %602 = vmatpush.bf16.msra.mxu0 %v469
    %603 = vmatmul.bf16.gmra.mxu0 %v289
    %v604 = vpop.f32.mrf.mxu0
    %v605 = vadd.f32 %v343, %v604
    %v606 = vpop.f32.mrf.mxu0
    %607 = vdwg.mxu0
    %608 = vmatpush.bf16.msra.mxu0 0
    %609 = vmatpush.bf16.msra.mxu0 0
    %610 = vmatpush.bf16.msra.mxu0 0
    %611 = vmatpush.bf16.msra.mxu0 0
    %612 = vmatpush.bf16.msra.mxu0 %v502
    %613 = vmatpush.bf16.msra.mxu0 %v499
    %614 = vmatpush.bf16.msra.mxu0 %v496
    %615 = vmatpush.bf16.msra.mxu0 %v493
    %616 = vmatmul.bf16.gmra.mxu0 %v541
    %v617 = vpop.f32.mrf.mxu0
    %v618 = vadd.f32 %v605, %v617
    %v619 = vpop.f32.mrf.mxu0
    %620 = vdwg.mxu0
    %v621 = vsub.f32 0.0, %v566
    %v622 = vsub.f32 0.0, %v592
    %v623 = vsub.f32 0.0, %v618
    %v624 = vmul.f32 %v621, 1.442695
    %v625 = vpow.pop %v624
    %v626 = vmul.f32 %v622, 1.442695
    %v627 = vpow.pop %v626
    %v628 = vmul.f32 %v623, 1.442695
    %v629 = vpow.pop %v628
    %v630 = vadd.f32 %v625, 1.0
    %v631 = vadd.f32 %v627, 1.0
    %v632 = vadd.f32 %v629, 1.0
    %v633 = vrcp.pop %v630
    %v634 = vmul.f32 %v630, %v633
    %v635 = vsub.f32 1.0, %v634
    %v636 = vmul.f32 %v633, %v635
    %v637 = vadd.f32 %v633, %v636
    %vm638 = vweird.f32 %v630
    %vm639 = vweird.f32 %v633
    %vm640 = vmor %vm638, %vm639
    %v641 = vsel %vm640, %v633, %v637
    %v642 = vand.u32 2147483647, %v630
    %vm643 = vcmp.eq.f32.partialorder %v642, 8.507059e+37
    %v644 = vand.u32 %v630, 2147483648
    %v645 = vor.u32 1.1754944e-38, %v644
    %v646 = vsel %vm643, %v645, %v641
    %v647 = vmul.f32 %v566, %v646
    %v648 = vrcp.pop %v631
    %v649 = vmul.f32 %v631, %v648
    %v650 = vsub.f32 1.0, %v649
    %v651 = vmul.f32 %v648, %v650
    %v652 = vadd.f32 %v648, %v651
    %vm653 = vweird.f32 %v631
    %vm654 = vweird.f32 %v648
    %vm655 = vmor %vm653, %vm654
    %v656 = vsel %vm655, %v648, %v652
    %v657 = vand.u32 2147483647, %v631
    %vm658 = vcmp.eq.f32.partialorder %v657, 8.507059e+37
    %v659 = vand.u32 %v631, 2147483648
    %v660 = vor.u32 1.1754944e-38, %v659
    %v661 = vsel %vm658, %v660, %v656
    %v662 = vmul.f32 %v592, %v661
    %v663 = vrcp.pop %v632
    %v664 = vmul.f32 %v632, %v663
    %v665 = vsub.f32 1.0, %v664
    %v666 = vmul.f32 %v663, %v665
    %v667 = vadd.f32 %v663, %v666
    %vm668 = vweird.f32 %v632
    %vm669 = vweird.f32 %v663
    %vm670 = vmor %vm668, %vm669
    %v671 = vsel %vm670, %v663, %v667
    %v672 = vand.u32 2147483647, %v632
    %vm673 = vcmp.eq.f32.partialorder %v672, 8.507059e+37
    %v674 = vand.u32 %v632, 2147483648
    %v675 = vor.u32 1.1754944e-38, %v674
    %v676 = vsel %vm673, %v675, %v671
    %v677 = vmul.f32 %v618, %v676
    %v678 = vpack.c.bf16 %v647, %v647
    %v679 = vpack.c.bf16 %v662, %v662
    %v680 = vpack.c.bf16 %v677, %v677
    %v681 = vld [vmem:[%s7] sm:$0xff]
    %v682 = vld [vmem:[%s7 + $0x8] sm:$0xff]
    %v683 = vld [vmem:[%s7 + $0x10] sm:$0xff]
    %v684 = vld [vmem:[%s7 + $0x18] sm:$0xff]
    %v685 = vld [vmem:[%s7 + $0x20] sm:$0xff]
    %v686 = vld [vmem:[%s7 + $0x28] sm:$0xff]
    %v687 = vld [vmem:[%s7 + $0x30] sm:$0xff]
    %v688 = vld [vmem:[%s7 + $0x38] sm:$0xff]
    %v689 = vld [vmem:[%s7 + $0x40] sm:$0xff]
    %v690 = vld [vmem:[%s7 + $0x48] sm:$0xff]
    %v691 = vld [vmem:[%s7 + $0x50] sm:$0xff]
    %v692 = vld [vmem:[%s7 + $0x58] sm:$0xff]
    %v693 = vld [vmem:[%s7 + $0x60] sm:$0xff]
    %v694 = vld [vmem:[%s7 + $0x68] sm:$0xff]
    %v695 = vld [vmem:[%s7 + $0x70] sm:$0xff]
    %v696 = vld [vmem:[%s7 + $0x78] sm:$0xff]
    %v697 = vld [vmem:[%s7 + $0x80] sm:$0xff]
    %v698 = vld [vmem:[%s7 + $0x88] sm:$0xff]
    %v699 = vld [vmem:[%s7 + $0x90] sm:$0xff]
    %v700 = vld [vmem:[%s7 + $0x98] sm:$0xff]
    %v701 = vld [vmem:[%s7 + $0xa0] sm:$0xff]
    %v702 = vld [vmem:[%s7 + $0xa8] sm:$0xff]
    %v703 = vld [vmem:[%s7 + $0xb0] sm:$0xff]
    %v704 = vld [vmem:[%s7 + $0xb8] sm:$0xff]
    %v705 = vld [vmem:[%s7 + $0xc0] sm:$0xff]
    %v706 = vld [vmem:[%s7 + $0xc8] sm:$0xff]
    %v707 = vld [vmem:[%s7 + $0xd0] sm:$0xff]
    %v708 = vld [vmem:[%s7 + $0xd8] sm:$0xff]
    %v709 = vld [vmem:[%s7 + $0xe0] sm:$0xff]
    %v710 = vld [vmem:[%s7 + $0xe8] sm:$0xff]
    %v711 = vld [vmem:[%s7 + $0xf0] sm:$0xff]
    %v712 = vld [vmem:[%s7 + $0xf8] sm:$0xff]
    %v713 = vld [vmem:[%s7 + $0x100] sm:$0xff]
    %v714 = vld [vmem:[%s7 + $0x108] sm:$0xff]
    %v715 = vld [vmem:[%s7 + $0x110] sm:$0xff]
    %v716 = vld [vmem:[%s7 + $0x118] sm:$0xff]
    %v717 = vld [vmem:[%s7 + $0x120] sm:$0xff]
    %v718 = vld [vmem:[%s7 + $0x128] sm:$0xff]
    %v719 = vld [vmem:[%s7 + $0x130] sm:$0xff]
    %v720 = vld [vmem:[%s7 + $0x138] sm:$0xff]
    %v721 = vld [vmem:[%s7 + $0x140] sm:$0xff]
    %v722 = vld [vmem:[%s7 + $0x148] sm:$0xff]
    %v723 = vld [vmem:[%s7 + $0x150] sm:$0xff]
    %v724 = vld [vmem:[%s7 + $0x158] sm:$0xff]
    %v725 = vld [vmem:[%s7 + $0x160] sm:$0xff]
    %v726 = vld [vmem:[%s7 + $0x168] sm:$0xff]
    %v727 = vld [vmem:[%s7 + $0x170] sm:$0xff]
    %v728 = vld [vmem:[%s7 + $0x178] sm:$0xff]
    %v729 = vld [vmem:[%s7 + $0x180] sm:$0xff]
    %v730 = vld [vmem:[%s7 + $0x188] sm:$0xff]
    %v731 = vld [vmem:[%s7 + $0x190] sm:$0xff]
    %v732 = vld [vmem:[%s7 + $0x198] sm:$0xff]
    %v733 = vld [vmem:[%s7 + $0x1a0] sm:$0xff]
    %v734 = vld [vmem:[%s7 + $0x1a8] sm:$0xff]
    %v735 = vld [vmem:[%s7 + $0x1b0] sm:$0xff]
    %v736 = vld [vmem:[%s7 + $0x1b8] sm:$0xff]
    %v737 = vld [vmem:[%s7 + $0x1c0] sm:$0xff]
    %v738 = vld [vmem:[%s7 + $0x1c8] sm:$0xff]
    %v739 = vld [vmem:[%s7 + $0x1d0] sm:$0xff]
    %v740 = vld [vmem:[%s7 + $0x1d8] sm:$0xff]
    %v741 = vld [vmem:[%s7 + $0x1e0] sm:$0xff]
    %v742 = vld [vmem:[%s7 + $0x1e8] sm:$0xff]
    %v743 = vld [vmem:[%s7 + $0x1f0] sm:$0xff]
    %v744 = vld [vmem:[%s7 + $0x1f8] sm:$0xff]
    %v745 = vld [vmem:[%s7 + $0x200] sm:$0xff]
    %v746 = vld [vmem:[%s7 + $0x208] sm:$0xff]
    %v747 = vld [vmem:[%s7 + $0x210] sm:$0xff]
    %v748 = vld [vmem:[%s7 + $0x218] sm:$0xff]
    %v749 = vld [vmem:[%s7 + $0x220] sm:$0xff]
    %v750 = vld [vmem:[%s7 + $0x228] sm:$0xff]
    %v751 = vld [vmem:[%s7 + $0x230] sm:$0xff]
    %v752 = vld [vmem:[%s7 + $0x238] sm:$0xff]
    %v753 = vld [vmem:[%s7 + $0x240] sm:$0xff]
    %v754 = vld [vmem:[%s7 + $0x248] sm:$0xff]
    %v755 = vld [vmem:[%s7 + $0x250] sm:$0xff]
    %v756 = vld [vmem:[%s7 + $0x258] sm:$0xff]
    %v757 = vld [vmem:[%s7 + $0x260] sm:$0xff]
    %v758 = vld [vmem:[%s7 + $0x268] sm:$0xff]
    %v759 = vld [vmem:[%s7 + $0x270] sm:$0xff]
    %v760 = vld [vmem:[%s7 + $0x278] sm:$0xff]
    %v761 = vld [vmem:[%s7 + $0x280] sm:$0xff]
    %v762 = vld [vmem:[%s7 + $0x288] sm:$0xff]
    %v763 = vld [vmem:[%s7 + $0x290] sm:$0xff]
    %v764 = vld [vmem:[%s7 + $0x298] sm:$0xff]
    %v765 = vld [vmem:[%s7 + $0x2a0] sm:$0xff]
    %v766 = vld [vmem:[%s7 + $0x2a8] sm:$0xff]
    %v767 = vld [vmem:[%s7 + $0x2b0] sm:$0xff]
    %v768 = vld [vmem:[%s7 + $0x2b8] sm:$0xff]
    %v769 = vld [vmem:[%s7 + $0x2c0] sm:$0xff]
    %v770 = vld [vmem:[%s7 + $0x2c8] sm:$0xff]
    %v771 = vld [vmem:[%s7 + $0x2d0] sm:$0xff]
    %v772 = vld [vmem:[%s7 + $0x2d8] sm:$0xff]
    %v773 = vld [vmem:[%s7 + $0x2e0] sm:$0xff]
    %v774 = vld [vmem:[%s7 + $0x2e8] sm:$0xff]
    %v775 = vld [vmem:[%s7 + $0x2f0] sm:$0xff]
    %v776 = vld [vmem:[%s7 + $0x2f8] sm:$0xff]
    %v777 = vld [vmem:[%s7 + $0x300] sm:$0xff]
    %v778 = vld [vmem:[%s7 + $0x308] sm:$0xff]
    %v779 = vld [vmem:[%s7 + $0x310] sm:$0xff]
    %v780 = vld [vmem:[%s7 + $0x318] sm:$0xff]
    %v781 = vld [vmem:[%s7 + $0x320] sm:$0xff]
    %v782 = vld [vmem:[%s7 + $0x328] sm:$0xff]
    %v783 = vld [vmem:[%s7 + $0x330] sm:$0xff]
    %v784 = vld [vmem:[%s7 + $0x338] sm:$0xff]
    %v785 = vld [vmem:[%s7 + $0x340] sm:$0xff]
    %v786 = vld [vmem:[%s7 + $0x348] sm:$0xff]
    %v787 = vld [vmem:[%s7 + $0x350] sm:$0xff]
    %v788 = vld [vmem:[%s7 + $0x358] sm:$0xff]
    %v789 = vld [vmem:[%s7 + $0x360] sm:$0xff]
    %v790 = vld [vmem:[%s7 + $0x368] sm:$0xff]
    %v791 = vld [vmem:[%s7 + $0x370] sm:$0xff]
    %v792 = vld [vmem:[%s7 + $0x378] sm:$0xff]
    %v793 = vld [vmem:[%s7 + $0x380] sm:$0xff]
    %v794 = vld [vmem:[%s7 + $0x388] sm:$0xff]
    %v795 = vld [vmem:[%s7 + $0x390] sm:$0xff]
    %v796 = vld [vmem:[%s7 + $0x398] sm:$0xff]
    %v797 = vld [vmem:[%s7 + $0x3a0] sm:$0xff]
    %v798 = vld [vmem:[%s7 + $0x3a8] sm:$0xff]
    %v799 = vld [vmem:[%s7 + $0x3b0] sm:$0xff]
    %v800 = vld [vmem:[%s7 + $0x3b8] sm:$0xff]
    %v801 = vld [vmem:[%s7 + $0x3c0] sm:$0xff]
    %v802 = vld [vmem:[%s7 + $0x3c8] sm:$0xff]
    %v803 = vld [vmem:[%s7 + $0x3d0] sm:$0xff]
    %v804 = vld [vmem:[%s7 + $0x3d8] sm:$0xff]
    %v805 = vld [vmem:[%s7 + $0x3e0] sm:$0xff]
    %v806 = vld [vmem:[%s7 + $0x3e8] sm:$0xff]
    %v807 = vld [vmem:[%s7 + $0x3f0] sm:$0xff]
    %v808 = vld [vmem:[%s7 + $0x3f8] sm:$0xff]
    %v809 = vld [vmem:[%s7 + $0x400] sm:$0xff]
    %v810 = vld [vmem:[%s7 + $0x408] sm:$0xff]
    %v811 = vld [vmem:[%s7 + $0x410] sm:$0xff]
    %v812 = vld [vmem:[%s7 + $0x418] sm:$0xff]
    %v813 = vld [vmem:[%s7 + $0x420] sm:$0xff]
    %v814 = vld [vmem:[%s7 + $0x428] sm:$0xff]
    %v815 = vld [vmem:[%s7 + $0x430] sm:$0xff]
    %v816 = vld [vmem:[%s7 + $0x438] sm:$0xff]
    %v817 = vld [vmem:[%s7 + $0x440] sm:$0xff]
    %v818 = vld [vmem:[%s7 + $0x448] sm:$0xff]
    %v819 = vld [vmem:[%s7 + $0x450] sm:$0xff]
    %v820 = vld [vmem:[%s7 + $0x458] sm:$0xff]
    %v821 = vld [vmem:[%s7 + $0x460] sm:$0xff]
    %v822 = vld [vmem:[%s7 + $0x468] sm:$0xff]
    %v823 = vld [vmem:[%s7 + $0x470] sm:$0xff]
    %v824 = vld [vmem:[%s7 + $0x478] sm:$0xff]
    %v825 = vld [vmem:[%s7 + $0x480] sm:$0xff]
    %v826 = vld [vmem:[%s7 + $0x488] sm:$0xff]
    %v827 = vld [vmem:[%s7 + $0x490] sm:$0xff]
    %v828 = vld [vmem:[%s7 + $0x498] sm:$0xff]
    %v829 = vld [vmem:[%s7 + $0x4a0] sm:$0xff]
    %v830 = vld [vmem:[%s7 + $0x4a8] sm:$0xff]
    %v831 = vld [vmem:[%s7 + $0x4b0] sm:$0xff]
    %v832 = vld [vmem:[%s7 + $0x4b8] sm:$0xff]
    %v833 = vld [vmem:[%s7 + $0x4c0] sm:$0xff]
    %v834 = vld [vmem:[%s7 + $0x4c8] sm:$0xff]
    %v835 = vld [vmem:[%s7 + $0x4d0] sm:$0xff]
    %v836 = vld [vmem:[%s7 + $0x4d8] sm:$0xff]
    %v837 = vld [vmem:[%s7 + $0x4e0] sm:$0xff]
    %v838 = vld [vmem:[%s7 + $0x4e8] sm:$0xff]
    %v839 = vld [vmem:[%s7 + $0x4f0] sm:$0xff]
    %v840 = vld [vmem:[%s7 + $0x4f8] sm:$0xff]
    %v841 = vld [vmem:[%s7 + $0x500] sm:$0xff]
    %v842 = vld [vmem:[%s7 + $0x508] sm:$0xff]
    %v843 = vld [vmem:[%s7 + $0x510] sm:$0xff]
    %v844 = vld [vmem:[%s7 + $0x518] sm:$0xff]
    %v845 = vld [vmem:[%s7 + $0x520] sm:$0xff]
    %v846 = vld [vmem:[%s7 + $0x528] sm:$0xff]
    %v847 = vld [vmem:[%s7 + $0x530] sm:$0xff]
    %v848 = vld [vmem:[%s7 + $0x538] sm:$0xff]
    %v849 = vld [vmem:[%s7 + $0x540] sm:$0xff]
    %v850 = vld [vmem:[%s7 + $0x548] sm:$0xff]
    %v851 = vld [vmem:[%s7 + $0x550] sm:$0xff]
    %v852 = vld [vmem:[%s7 + $0x558] sm:$0xff]
    %v853 = vld [vmem:[%s7 + $0x560] sm:$0xff]
    %v854 = vld [vmem:[%s7 + $0x568] sm:$0xff]
    %v855 = vld [vmem:[%s7 + $0x570] sm:$0xff]
    %v856 = vld [vmem:[%s7 + $0x578] sm:$0xff]
    %v857 = vld [vmem:[%s7 + $0x580] sm:$0xff]
    %v858 = vld [vmem:[%s7 + $0x588] sm:$0xff]
    %v859 = vld [vmem:[%s7 + $0x590] sm:$0xff]
    %v860 = vld [vmem:[%s7 + $0x598] sm:$0xff]
    %v861 = vld [vmem:[%s7 + $0x5a0] sm:$0xff]
    %v862 = vld [vmem:[%s7 + $0x5a8] sm:$0xff]
    %v863 = vld [vmem:[%s7 + $0x5b0] sm:$0xff]
    %v864 = vld [vmem:[%s7 + $0x5b8] sm:$0xff]
    %v865 = vld [vmem:[%s7 + $0x5c0] sm:$0xff]
    %v866 = vld [vmem:[%s7 + $0x5c8] sm:$0xff]
    %v867 = vld [vmem:[%s7 + $0x5d0] sm:$0xff]
    %v868 = vld [vmem:[%s7 + $0x5d8] sm:$0xff]
    %v869 = vld [vmem:[%s7 + $0x5e0] sm:$0xff]
    %v870 = vld [vmem:[%s7 + $0x5e8] sm:$0xff]
    %v871 = vld [vmem:[%s7 + $0x5f0] sm:$0xff]
    %v872 = vld [vmem:[%s7 + $0x5f8] sm:$0xff]
    %v873 = vld [vmem:[%s7 + $0x600] sm:$0xff]
    %v874 = vld [vmem:[%s7 + $0x608] sm:$0xff]
    %v875 = vld [vmem:[%s7 + $0x610] sm:$0xff]
    %v876 = vld [vmem:[%s7 + $0x618] sm:$0xff]
    %v877 = vld [vmem:[%s7 + $0x620] sm:$0xff]
    %v878 = vld [vmem:[%s7 + $0x628] sm:$0xff]
    %v879 = vld [vmem:[%s7 + $0x630] sm:$0xff]
    %v880 = vld [vmem:[%s7 + $0x638] sm:$0xff]
    %v881 = vld [vmem:[%s8] sm:$0xff]
    %v882 = vld [vmem:[%s8 + $0x8] sm:$0x3]
    %v885 = vperm.slane %v881, 0
    %v886 = vperm.slane %v881, 1
    %v887 = vperm.slane %v881, 2
    %v888 = vperm.slane %v881, 3
    %v889 = vperm.slane %v881, 4
    %v890 = vperm.slane %v881, 5
    %v891 = vperm.slane %v881, 6
    %v892 = vperm.slane %v881, 7
    %v893 = vperm.slane %v882, 0
    %v894 = vperm.slane %v882, 1
    %v1105 = vunpack.c.l.b16 %v681
    %v1106 = vunpack.c.h.b16 %v681
    %v1107 = vunpack.c.l.b16 %v682
    %v1108 = vunpack.c.h.b16 %v682
    %v1109 = vunpack.c.l.b16 %v683
    %v1110 = vunpack.c.h.b16 %v683
    %v1111 = vunpack.c.l.b16 %v684
    %v1112 = vunpack.c.h.b16 %v684
    %v1113 = vunpack.c.l.b16 %v685
    %v1114 = vunpack.c.h.b16 %v685
    %v1115 = vunpack.c.l.b16 %v686
    %v1116 = vunpack.c.h.b16 %v686
    %v1117 = vunpack.c.l.b16 %v687
    %v1118 = vunpack.c.h.b16 %v687
    %v1119 = vunpack.c.l.b16 %v688
    %v1120 = vunpack.c.h.b16 %v688
    %v1121 = vunpack.c.l.b16 %v689
    %v1122 = vunpack.c.h.b16 %v689
    %v1123 = vunpack.c.l.b16 %v690
    %v1124 = vunpack.c.h.b16 %v690
    %v1125 = vunpack.c.l.b16 %v691
    %v1126 = vunpack.c.h.b16 %v691
    %v1127 = vunpack.c.l.b16 %v692
    %v1128 = vunpack.c.h.b16 %v692
    %v1129 = vunpack.c.l.b16 %v693
    %v1130 = vunpack.c.h.b16 %v693
    %v1131 = vunpack.c.l.b16 %v694
    %v1132 = vunpack.c.h.b16 %v694
    %v1133 = vunpack.c.l.b16 %v695
    %v1134 = vunpack.c.h.b16 %v695
    %v1135 = vunpack.c.l.b16 %v696
    %v1136 = vunpack.c.h.b16 %v696
    %v1137 = vunpack.c.l.b16 %v697
    %v1138 = vunpack.c.h.b16 %v697
    %v1139 = vunpack.c.l.b16 %v698
    %v1140 = vunpack.c.h.b16 %v698
    %v1141 = vunpack.c.l.b16 %v699
    %v1142 = vunpack.c.h.b16 %v699
    %v1143 = vunpack.c.l.b16 %v700
    %v1144 = vunpack.c.h.b16 %v700
    %v1145 = vunpack.c.l.b16 %v701
    %v1146 = vunpack.c.h.b16 %v701
    %v1147 = vunpack.c.l.b16 %v702
    %v1148 = vunpack.c.h.b16 %v702
    %v1149 = vunpack.c.l.b16 %v703
    %v1150 = vunpack.c.h.b16 %v703
    %v1151 = vunpack.c.l.b16 %v704
    %v1152 = vunpack.c.h.b16 %v704
    %v1153 = vunpack.c.l.b16 %v705
    %v1154 = vunpack.c.h.b16 %v705
    %v1155 = vunpack.c.l.b16 %v706
    %v1156 = vunpack.c.h.b16 %v706
    %v1157 = vunpack.c.l.b16 %v707
    %v1158 = vunpack.c.h.b16 %v707
    %v1159 = vunpack.c.l.b16 %v708
    %v1160 = vunpack.c.h.b16 %v708
    %v1161 = vunpack.c.l.b16 %v709
    %v1162 = vunpack.c.h.b16 %v709
    %v1163 = vunpack.c.l.b16 %v710
    %v1164 = vunpack.c.h.b16 %v710
    %v1165 = vunpack.c.l.b16 %v711
    %v1166 = vunpack.c.h.b16 %v711
    %v1167 = vunpack.c.l.b16 %v712
    %v1168 = vunpack.c.h.b16 %v712
    %v1169 = vunpack.c.l.b16 %v713
    %v1170 = vunpack.c.h.b16 %v713
    %v1171 = vunpack.c.l.b16 %v714
    %v1172 = vunpack.c.h.b16 %v714
    %v1173 = vunpack.c.l.b16 %v715
    %v1174 = vunpack.c.h.b16 %v715
    %v1175 = vunpack.c.l.b16 %v716
    %v1176 = vunpack.c.h.b16 %v716
    %v1177 = vunpack.c.l.b16 %v717
    %v1178 = vunpack.c.h.b16 %v717
    %v1179 = vunpack.c.l.b16 %v718
    %v1180 = vunpack.c.h.b16 %v718
    %v1181 = vunpack.c.l.b16 %v719
    %v1182 = vunpack.c.h.b16 %v719
    %v1183 = vunpack.c.l.b16 %v720
    %v1184 = vunpack.c.h.b16 %v720
    %v1185 = vunpack.c.l.b16 %v721
    %v1186 = vunpack.c.h.b16 %v721
    %v1187 = vunpack.c.l.b16 %v722
    %v1188 = vunpack.c.h.b16 %v722
    %v1189 = vunpack.c.l.b16 %v723
    %v1190 = vunpack.c.h.b16 %v723
    %v1191 = vunpack.c.l.b16 %v724
    %v1192 = vunpack.c.h.b16 %v724
    %v1193 = vunpack.c.l.b16 %v725
    %v1194 = vunpack.c.h.b16 %v725
    %v1195 = vunpack.c.l.b16 %v726
    %v1196 = vunpack.c.h.b16 %v726
    %v1197 = vunpack.c.l.b16 %v727
    %v1198 = vunpack.c.h.b16 %v727
    %v1199 = vunpack.c.l.b16 %v728
    %v1200 = vunpack.c.h.b16 %v728
    %v1201 = vunpack.c.l.b16 %v729
    %v1202 = vunpack.c.h.b16 %v729
    %v1203 = vunpack.c.l.b16 %v730
    %v1204 = vunpack.c.h.b16 %v730
    %v1205 = vunpack.c.l.b16 %v731
    %v1206 = vunpack.c.h.b16 %v731
    %v1207 = vunpack.c.l.b16 %v732
    %v1208 = vunpack.c.h.b16 %v732
    %v1209 = vunpack.c.l.b16 %v733
    %v1210 = vunpack.c.h.b16 %v733
    %v1211 = vunpack.c.l.b16 %v734
    %v1212 = vunpack.c.h.b16 %v734
    %v1213 = vunpack.c.l.b16 %v735
    %v1214 = vunpack.c.h.b16 %v735
    %v1215 = vunpack.c.l.b16 %v736
    %v1216 = vunpack.c.h.b16 %v736
    %v1217 = vunpack.c.l.b16 %v737
    %v1218 = vunpack.c.h.b16 %v737
    %v1219 = vunpack.c.l.b16 %v738
    %v1220 = vunpack.c.h.b16 %v738
    %v1221 = vunpack.c.l.b16 %v739
    %v1222 = vunpack.c.h.b16 %v739
    %v1223 = vunpack.c.l.b16 %v740
    %v1224 = vunpack.c.h.b16 %v740
    %v1225 = vunpack.c.l.b16 %v741
    %v1226 = vunpack.c.h.b16 %v741
    %v1227 = vunpack.c.l.b16 %v742
    %v1228 = vunpack.c.h.b16 %v742
    %v1229 = vunpack.c.l.b16 %v743
    %v1230 = vunpack.c.h.b16 %v743
    %v1231 = vunpack.c.l.b16 %v744
    %v1232 = vunpack.c.h.b16 %v744
    %v1233 = vunpack.c.l.b16 %v745
    %v1234 = vunpack.c.h.b16 %v745
    %v1235 = vunpack.c.l.b16 %v746
    %v1236 = vunpack.c.h.b16 %v746
    %v1237 = vunpack.c.l.b16 %v747
    %v1238 = vunpack.c.h.b16 %v747
    %v1239 = vunpack.c.l.b16 %v748
    %v1240 = vunpack.c.h.b16 %v748
    %v1241 = vunpack.c.l.b16 %v749
    %v1242 = vunpack.c.h.b16 %v749
    %v1243 = vunpack.c.l.b16 %v750
    %v1244 = vunpack.c.h.b16 %v750
    %v1245 = vunpack.c.l.b16 %v751
    %v1246 = vunpack.c.h.b16 %v751
    %v1247 = vunpack.c.l.b16 %v752
    %v1248 = vunpack.c.h.b16 %v752
    %v1249 = vunpack.c.l.b16 %v753
    %v1250 = vunpack.c.h.b16 %v753
    %v1251 = vunpack.c.l.b16 %v754
    %v1252 = vunpack.c.h.b16 %v754
    %v1253 = vunpack.c.l.b16 %v755
    %v1254 = vunpack.c.h.b16 %v755
    %v1255 = vunpack.c.l.b16 %v756
    %v1256 = vunpack.c.h.b16 %v756
    %v1257 = vunpack.c.l.b16 %v757
    %v1258 = vunpack.c.h.b16 %v757
    %v1259 = vunpack.c.l.b16 %v758
    %v1260 = vunpack.c.h.b16 %v758
    %v1261 = vunpack.c.l.b16 %v759
    %v1262 = vunpack.c.h.b16 %v759
    %v1263 = vunpack.c.l.b16 %v760
    %v1264 = vunpack.c.h.b16 %v760
    %v1265 = vunpack.c.l.b16 %v761
    %v1266 = vunpack.c.h.b16 %v761
    %v1267 = vunpack.c.l.b16 %v762
    %v1268 = vunpack.c.h.b16 %v762
    %v1269 = vunpack.c.l.b16 %v763
    %v1270 = vunpack.c.h.b16 %v763
    %v1271 = vunpack.c.l.b16 %v764
    %v1272 = vunpack.c.h.b16 %v764
    %v1273 = vunpack.c.l.b16 %v765
    %v1274 = vunpack.c.h.b16 %v765
    %v1275 = vunpack.c.l.b16 %v766
    %v1276 = vunpack.c.h.b16 %v766
    %v1277 = vunpack.c.l.b16 %v767
    %v1278 = vunpack.c.h.b16 %v767
    %v1279 = vunpack.c.l.b16 %v768
    %v1280 = vunpack.c.h.b16 %v768
    %v1281 = vunpack.c.l.b16 %v769
    %v1282 = vunpack.c.h.b16 %v769
    %v1283 = vunpack.c.l.b16 %v770
    %v1284 = vunpack.c.h.b16 %v770
    %v1285 = vunpack.c.l.b16 %v771
    %v1286 = vunpack.c.h.b16 %v771
    %v1287 = vunpack.c.l.b16 %v772
    %v1288 = vunpack.c.h.b16 %v772
    %v1289 = vunpack.c.l.b16 %v773
    %v1290 = vunpack.c.h.b16 %v773
    %v1291 = vunpack.c.l.b16 %v774
    %v1292 = vunpack.c.h.b16 %v774
    %v1293 = vunpack.c.l.b16 %v775
    %v1294 = vunpack.c.h.b16 %v775
    %v1295 = vunpack.c.l.b16 %v776
    %v1296 = vunpack.c.h.b16 %v776
    %v1297 = vunpack.c.l.b16 %v777
    %v1298 = vunpack.c.h.b16 %v777
    %v1299 = vunpack.c.l.b16 %v778
    %v1300 = vunpack.c.h.b16 %v778
    %v1301 = vunpack.c.l.b16 %v779
    %v1302 = vunpack.c.h.b16 %v779
    %v1303 = vunpack.c.l.b16 %v780
    %v1304 = vunpack.c.h.b16 %v780
    %v1305 = vunpack.c.l.b16 %v781
    %v1306 = vunpack.c.h.b16 %v781
    %v1307 = vunpack.c.l.b16 %v782
    %v1308 = vunpack.c.h.b16 %v782
    %v1309 = vunpack.c.l.b16 %v783
    %v1310 = vunpack.c.h.b16 %v783
    %v1311 = vunpack.c.l.b16 %v784
    %v1312 = vunpack.c.h.b16 %v784
    %v1313 = vunpack.c.l.b16 %v785
    %v1314 = vunpack.c.h.b16 %v785
    %v1315 = vunpack.c.l.b16 %v786
    %v1316 = vunpack.c.h.b16 %v786
    %v1317 = vunpack.c.l.b16 %v787
    %v1318 = vunpack.c.h.b16 %v787
    %v1319 = vunpack.c.l.b16 %v788
    %v1320 = vunpack.c.h.b16 %v788
    %v1321 = vunpack.c.l.b16 %v789
    %v1322 = vunpack.c.h.b16 %v789
    %v1323 = vunpack.c.l.b16 %v790
    %v1324 = vunpack.c.h.b16 %v790
    %v1325 = vunpack.c.l.b16 %v791
    %v1326 = vunpack.c.h.b16 %v791
    %v1327 = vunpack.c.l.b16 %v792
    %v1328 = vunpack.c.h.b16 %v792
    %v1329 = vunpack.c.l.b16 %v793
    %v1330 = vunpack.c.h.b16 %v793
    %v1331 = vunpack.c.l.b16 %v794
    %v1332 = vunpack.c.h.b16 %v794
    %v1333 = vunpack.c.l.b16 %v795
    %v1334 = vunpack.c.h.b16 %v795
    %v1335 = vunpack.c.l.b16 %v796
    %v1336 = vunpack.c.h.b16 %v796
    %v1337 = vunpack.c.l.b16 %v797
    %v1338 = vunpack.c.h.b16 %v797
    %v1339 = vunpack.c.l.b16 %v798
    %v1340 = vunpack.c.h.b16 %v798
    %v1341 = vunpack.c.l.b16 %v799
    %v1342 = vunpack.c.h.b16 %v799
    %v1343 = vunpack.c.l.b16 %v800
    %v1344 = vunpack.c.h.b16 %v800
    %v1345 = vunpack.c.l.b16 %v801
    %v1346 = vunpack.c.h.b16 %v801
    %v1347 = vunpack.c.l.b16 %v802
    %v1348 = vunpack.c.h.b16 %v802
    %v1349 = vunpack.c.l.b16 %v803
    %v1350 = vunpack.c.h.b16 %v803
    %v1351 = vunpack.c.l.b16 %v804
    %v1352 = vunpack.c.h.b16 %v804
    %v1353 = vunpack.c.l.b16 %v805
    %v1354 = vunpack.c.h.b16 %v805
    %v1355 = vunpack.c.l.b16 %v806
    %v1356 = vunpack.c.h.b16 %v806
    %v1357 = vunpack.c.l.b16 %v807
    %v1358 = vunpack.c.h.b16 %v807
    %v1359 = vunpack.c.l.b16 %v808
    %v1360 = vunpack.c.h.b16 %v808
    %v1361 = vunpack.c.l.b16 %v809
    %v1362 = vunpack.c.h.b16 %v809
    %v1363 = vunpack.c.l.b16 %v810
    %v1364 = vunpack.c.h.b16 %v810
    %v1365 = vunpack.c.l.b16 %v811
    %v1366 = vunpack.c.h.b16 %v811
    %v1367 = vunpack.c.l.b16 %v812
    %v1368 = vunpack.c.h.b16 %v812
    %v1369 = vunpack.c.l.b16 %v813
    %v1370 = vunpack.c.h.b16 %v813
    %v1371 = vunpack.c.l.b16 %v814
    %v1372 = vunpack.c.h.b16 %v814
    %v1373 = vunpack.c.l.b16 %v815
    %v1374 = vunpack.c.h.b16 %v815
    %v1375 = vunpack.c.l.b16 %v816
    %v1376 = vunpack.c.h.b16 %v816
    %v1377 = vunpack.c.l.b16 %v817
    %v1378 = vunpack.c.h.b16 %v817
    %v1379 = vunpack.c.l.b16 %v818
    %v1380 = vunpack.c.h.b16 %v818
    %v1381 = vunpack.c.l.b16 %v819
    %v1382 = vunpack.c.h.b16 %v819
    %v1383 = vunpack.c.l.b16 %v820
    %v1384 = vunpack.c.h.b16 %v820
    %v1385 = vunpack.c.l.b16 %v821
    %v1386 = vunpack.c.h.b16 %v821
    %v1387 = vunpack.c.l.b16 %v822
    %v1388 = vunpack.c.h.b16 %v822
    %v1389 = vunpack.c.l.b16 %v823
    %v1390 = vunpack.c.h.b16 %v823
    %v1391 = vunpack.c.l.b16 %v824
    %v1392 = vunpack.c.h.b16 %v824
    %v1393 = vunpack.c.l.b16 %v825
    %v1394 = vunpack.c.h.b16 %v825
    %v1395 = vunpack.c.l.b16 %v826
    %v1396 = vunpack.c.h.b16 %v826
    %v1397 = vunpack.c.l.b16 %v827
    %v1398 = vunpack.c.h.b16 %v827
    %v1399 = vunpack.c.l.b16 %v828
    %v1400 = vunpack.c.h.b16 %v828
    %v1401 = vunpack.c.l.b16 %v829
    %v1402 = vunpack.c.h.b16 %v829
    %v1403 = vunpack.c.l.b16 %v830
    %v1404 = vunpack.c.h.b16 %v830
    %v1405 = vunpack.c.l.b16 %v831
    %v1406 = vunpack.c.h.b16 %v831
    %v1407 = vunpack.c.l.b16 %v832
    %v1408 = vunpack.c.h.b16 %v832
    %v1409 = vunpack.c.l.b16 %v833
    %v1410 = vunpack.c.h.b16 %v833
    %v1411 = vunpack.c.l.b16 %v834
    %v1412 = vunpack.c.h.b16 %v834
    %v1413 = vunpack.c.l.b16 %v835
    %v1414 = vunpack.c.h.b16 %v835
    %v1415 = vunpack.c.l.b16 %v836
    %v1416 = vunpack.c.h.b16 %v836
    %v1417 = vunpack.c.l.b16 %v837
    %v1418 = vunpack.c.h.b16 %v837
    %v1419 = vunpack.c.l.b16 %v838
    %v1420 = vunpack.c.h.b16 %v838
    %v1421 = vunpack.c.l.b16 %v839
    %v1422 = vunpack.c.h.b16 %v839
    %v1423 = vunpack.c.l.b16 %v840
    %v1424 = vunpack.c.h.b16 %v840
    %v1425 = vunpack.c.l.b16 %v841
    %v1426 = vunpack.c.h.b16 %v841
    %v1427 = vunpack.c.l.b16 %v842
    %v1428 = vunpack.c.h.b16 %v842
    %v1429 = vunpack.c.l.b16 %v843
    %v1430 = vunpack.c.h.b16 %v843
    %v1431 = vunpack.c.l.b16 %v844
    %v1432 = vunpack.c.h.b16 %v844
    %v1433 = vunpack.c.l.b16 %v845
    %v1434 = vunpack.c.h.b16 %v845
    %v1435 = vunpack.c.l.b16 %v846
    %v1436 = vunpack.c.h.b16 %v846
    %v1437 = vunpack.c.l.b16 %v847
    %v1438 = vunpack.c.h.b16 %v847
    %v1439 = vunpack.c.l.b16 %v848
    %v1440 = vunpack.c.h.b16 %v848
    %v1441 = vunpack.c.l.b16 %v849
    %v1442 = vunpack.c.h.b16 %v849
    %v1443 = vunpack.c.l.b16 %v850
    %v1444 = vunpack.c.h.b16 %v850
    %v1445 = vunpack.c.l.b16 %v851
    %v1446 = vunpack.c.h.b16 %v851
    %v1447 = vunpack.c.l.b16 %v852
    %v1448 = vunpack.c.h.b16 %v852
    %v1449 = vunpack.c.l.b16 %v853
    %v1450 = vunpack.c.h.b16 %v853
    %v1451 = vunpack.c.l.b16 %v854
    %v1452 = vunpack.c.h.b16 %v854
    %v1453 = vunpack.c.l.b16 %v855
    %v1454 = vunpack.c.h.b16 %v855
    %v1455 = vunpack.c.l.b16 %v856
    %v1456 = vunpack.c.h.b16 %v856
    %v1457 = vunpack.c.l.b16 %v857
    %v1458 = vunpack.c.h.b16 %v857
    %v1459 = vunpack.c.l.b16 %v858
    %v1460 = vunpack.c.h.b16 %v858
    %v1461 = vunpack.c.l.b16 %v859
    %v1462 = vunpack.c.h.b16 %v859
    %v1463 = vunpack.c.l.b16 %v860
    %v1464 = vunpack.c.h.b16 %v860
    %v1465 = vunpack.c.l.b16 %v861
    %v1466 = vunpack.c.h.b16 %v861
    %v1467 = vunpack.c.l.b16 %v862
    %v1468 = vunpack.c.h.b16 %v862
    %v1469 = vunpack.c.l.b16 %v863
    %v1470 = vunpack.c.h.b16 %v863
    %v1471 = vunpack.c.l.b16 %v864
    %v1472 = vunpack.c.h.b16 %v864
    %v1473 = vunpack.c.l.b16 %v865
    %v1474 = vunpack.c.h.b16 %v865
    %v1475 = vunpack.c.l.b16 %v866
    %v1476 = vunpack.c.h.b16 %v866
    %v1477 = vunpack.c.l.b16 %v867
    %v1478 = vunpack.c.h.b16 %v867
    %v1479 = vunpack.c.l.b16 %v868
    %v1480 = vunpack.c.h.b16 %v868
    %v1481 = vunpack.c.l.b16 %v869
    %v1482 = vunpack.c.h.b16 %v869
    %v1483 = vunpack.c.l.b16 %v870
    %v1484 = vunpack.c.h.b16 %v870
    %v1485 = vunpack.c.l.b16 %v871
    %v1486 = vunpack.c.h.b16 %v871
    %v1487 = vunpack.c.l.b16 %v872
    %v1488 = vunpack.c.h.b16 %v872
    %v1489 = vunpack.c.l.b16 %v873
    %v1490 = vunpack.c.h.b16 %v873
    %v1491 = vunpack.c.l.b16 %v874
    %v1492 = vunpack.c.h.b16 %v874
    %v1493 = vunpack.c.l.b16 %v875
    %v1494 = vunpack.c.h.b16 %v875
    %v1495 = vunpack.c.l.b16 %v876
    %v1496 = vunpack.c.h.b16 %v876
    %v1497 = vunpack.c.l.b16 %v877
    %v1498 = vunpack.c.h.b16 %v877
    %v1499 = vunpack.c.l.b16 %v878
    %v1500 = vunpack.c.h.b16 %v878
    %v1501 = vunpack.c.l.b16 %v879
    %v1502 = vunpack.c.h.b16 %v879
    %v1503 = vunpack.c.l.b16 %v880
    %v1504 = vunpack.c.h.b16 %v880
    %v1505 = vpack.c.b16 %v1115, %v1105
    %v1506 = vpack.c.b16 %v1116, %v1106
    %v1507 = vpack.c.b16 %v1117, %v1107
    %v1508 = vpack.c.b16 %v1118, %v1108
    %v1509 = vpack.c.b16 %v1119, %v1109
    %v1510 = vpack.c.b16 %v1120, %v1110
    %v1511 = vpack.c.b16 %v1121, %v1111
    %v1512 = vpack.c.b16 %v1122, %v1112
    %v1513 = vpack.c.b16 %v1123, %v1113
    %v1514 = vpack.c.b16 %v1124, %v1114
    %v1515 = vpack.c.b16 %v1135, %v1125
    %v1516 = vpack.c.b16 %v1136, %v1126
    %v1517 = vpack.c.b16 %v1137, %v1127
    %v1518 = vpack.c.b16 %v1138, %v1128
    %v1519 = vpack.c.b16 %v1139, %v1129
    %v1520 = vpack.c.b16 %v1140, %v1130
    %v1521 = vpack.c.b16 %v1141, %v1131
    %v1522 = vpack.c.b16 %v1142, %v1132
    %v1523 = vpack.c.b16 %v1143, %v1133
    %v1524 = vpack.c.b16 %v1144, %v1134
    %v1525 = vpack.c.b16 %v1155, %v1145
    %v1526 = vpack.c.b16 %v1156, %v1146
    %v1527 = vpack.c.b16 %v1157, %v1147
    %v1528 = vpack.c.b16 %v1158, %v1148
    %v1529 = vpack.c.b16 %v1159, %v1149
    %v1530 = vpack.c.b16 %v1160, %v1150
    %v1531 = vpack.c.b16 %v1161, %v1151
    %v1532 = vpack.c.b16 %v1162, %v1152
    %v1533 = vpack.c.b16 %v1163, %v1153
    %v1534 = vpack.c.b16 %v1164, %v1154
    %v1535 = vpack.c.b16 %v1175, %v1165
    %v1536 = vpack.c.b16 %v1176, %v1166
    %v1537 = vpack.c.b16 %v1177, %v1167
    %v1538 = vpack.c.b16 %v1178, %v1168
    %v1539 = vpack.c.b16 %v1179, %v1169
    %v1540 = vpack.c.b16 %v1180, %v1170
    %v1541 = vpack.c.b16 %v1181, %v1171
    %v1542 = vpack.c.b16 %v1182, %v1172
    %v1543 = vpack.c.b16 %v1183, %v1173
    %v1544 = vpack.c.b16 %v1184, %v1174
    %v1545 = vpack.c.b16 %v1195, %v1185
    %v1546 = vpack.c.b16 %v1196, %v1186
    %v1547 = vpack.c.b16 %v1197, %v1187
    %v1548 = vpack.c.b16 %v1198, %v1188
    %v1549 = vpack.c.b16 %v1199, %v1189
    %v1550 = vpack.c.b16 %v1200, %v1190
    %v1551 = vpack.c.b16 %v1201, %v1191
    %v1552 = vpack.c.b16 %v1202, %v1192
    %v1553 = vpack.c.b16 %v1203, %v1193
    %v1554 = vpack.c.b16 %v1204, %v1194
    %v1555 = vpack.c.b16 %v1215, %v1205
    %v1556 = vpack.c.b16 %v1216, %v1206
    %v1557 = vpack.c.b16 %v1217, %v1207
    %v1558 = vpack.c.b16 %v1218, %v1208
    %v1559 = vpack.c.b16 %v1219, %v1209
    %v1560 = vpack.c.b16 %v1220, %v1210
    %v1561 = vpack.c.b16 %v1221, %v1211
    %v1562 = vpack.c.b16 %v1222, %v1212
    %v1563 = vpack.c.b16 %v1223, %v1213
    %v1564 = vpack.c.b16 %v1224, %v1214
    %v1565 = vpack.c.b16 %v1235, %v1225
    %v1566 = vpack.c.b16 %v1236, %v1226
    %v1567 = vpack.c.b16 %v1237, %v1227
    %v1568 = vpack.c.b16 %v1238, %v1228
    %v1569 = vpack.c.b16 %v1239, %v1229
    %v1570 = vpack.c.b16 %v1240, %v1230
    %v1571 = vpack.c.b16 %v1241, %v1231
    %v1572 = vpack.c.b16 %v1242, %v1232
    %v1573 = vpack.c.b16 %v1243, %v1233
    %v1574 = vpack.c.b16 %v1244, %v1234
    %v1575 = vpack.c.b16 %v1255, %v1245
    %v1576 = vpack.c.b16 %v1256, %v1246
    %v1577 = vpack.c.b16 %v1257, %v1247
    %v1578 = vpack.c.b16 %v1258, %v1248
    %v1579 = vpack.c.b16 %v1259, %v1249
    %v1580 = vpack.c.b16 %v1260, %v1250
    %v1581 = vpack.c.b16 %v1261, %v1251
    %v1582 = vpack.c.b16 %v1262, %v1252
    %v1583 = vpack.c.b16 %v1263, %v1253
    %v1584 = vpack.c.b16 %v1264, %v1254
    %v1585 = vpack.c.b16 %v1275, %v1265
    %v1586 = vpack.c.b16 %v1276, %v1266
    %v1587 = vpack.c.b16 %v1277, %v1267
    %v1588 = vpack.c.b16 %v1278, %v1268
    %v1589 = vpack.c.b16 %v1279, %v1269
    %v1590 = vpack.c.b16 %v1280, %v1270
    %v1591 = vpack.c.b16 %v1281, %v1271
    %v1592 = vpack.c.b16 %v1282, %v1272
    %v1593 = vpack.c.b16 %v1283, %v1273
    %v1594 = vpack.c.b16 %v1284, %v1274
    %v1595 = vpack.c.b16 %v1295, %v1285
    %v1596 = vpack.c.b16 %v1296, %v1286
    %v1597 = vpack.c.b16 %v1297, %v1287
    %v1598 = vpack.c.b16 %v1298, %v1288
    %v1599 = vpack.c.b16 %v1299, %v1289
    %v1600 = vpack.c.b16 %v1300, %v1290
    %v1601 = vpack.c.b16 %v1301, %v1291
    %v1602 = vpack.c.b16 %v1302, %v1292
    %v1603 = vpack.c.b16 %v1303, %v1293
    %v1604 = vpack.c.b16 %v1304, %v1294
    %v1605 = vpack.c.b16 %v1315, %v1305
    %v1606 = vpack.c.b16 %v1316, %v1306
    %v1607 = vpack.c.b16 %v1317, %v1307
    %v1608 = vpack.c.b16 %v1318, %v1308
    %v1609 = vpack.c.b16 %v1319, %v1309
    %v1610 = vpack.c.b16 %v1320, %v1310
    %v1611 = vpack.c.b16 %v1321, %v1311
    %v1612 = vpack.c.b16 %v1322, %v1312
    %v1613 = vpack.c.b16 %v1323, %v1313
    %v1614 = vpack.c.b16 %v1324, %v1314
    %v1615 = vpack.c.b16 %v1335, %v1325
    %v1616 = vpack.c.b16 %v1336, %v1326
    %v1617 = vpack.c.b16 %v1337, %v1327
    %v1618 = vpack.c.b16 %v1338, %v1328
    %v1619 = vpack.c.b16 %v1339, %v1329
    %v1620 = vpack.c.b16 %v1340, %v1330
    %v1621 = vpack.c.b16 %v1341, %v1331
    %v1622 = vpack.c.b16 %v1342, %v1332
    %v1623 = vpack.c.b16 %v1343, %v1333
    %v1624 = vpack.c.b16 %v1344, %v1334
    %v1625 = vpack.c.b16 %v1355, %v1345
    %v1626 = vpack.c.b16 %v1356, %v1346
    %v1627 = vpack.c.b16 %v1357, %v1347
    %v1628 = vpack.c.b16 %v1358, %v1348
    %v1629 = vpack.c.b16 %v1359, %v1349
    %v1630 = vpack.c.b16 %v1360, %v1350
    %v1631 = vpack.c.b16 %v1361, %v1351
    %v1632 = vpack.c.b16 %v1362, %v1352
    %v1633 = vpack.c.b16 %v1363, %v1353
    %v1634 = vpack.c.b16 %v1364, %v1354
    %v1635 = vpack.c.b16 %v1375, %v1365
    %v1636 = vpack.c.b16 %v1376, %v1366
    %v1637 = vpack.c.b16 %v1377, %v1367
    %v1638 = vpack.c.b16 %v1378, %v1368
    %v1639 = vpack.c.b16 %v1379, %v1369
    %v1640 = vpack.c.b16 %v1380, %v1370
    %v1641 = vpack.c.b16 %v1381, %v1371
    %v1642 = vpack.c.b16 %v1382, %v1372
    %v1643 = vpack.c.b16 %v1383, %v1373
    %v1644 = vpack.c.b16 %v1384, %v1374
    %v1645 = vpack.c.b16 %v1395, %v1385
    %v1646 = vpack.c.b16 %v1396, %v1386
    %v1647 = vpack.c.b16 %v1397, %v1387
    %v1648 = vpack.c.b16 %v1398, %v1388
    %v1649 = vpack.c.b16 %v1399, %v1389
    %v1650 = vpack.c.b16 %v1400, %v1390
    %v1651 = vpack.c.b16 %v1401, %v1391
    %v1652 = vpack.c.b16 %v1402, %v1392
    %v1653 = vpack.c.b16 %v1403, %v1393
    %v1654 = vpack.c.b16 %v1404, %v1394
    %v1655 = vpack.c.b16 %v1415, %v1405
    %v1656 = vpack.c.b16 %v1416, %v1406
    %v1657 = vpack.c.b16 %v1417, %v1407
    %v1658 = vpack.c.b16 %v1418, %v1408
    %v1659 = vpack.c.b16 %v1419, %v1409
    %v1660 = vpack.c.b16 %v1420, %v1410
    %v1661 = vpack.c.b16 %v1421, %v1411
    %v1662 = vpack.c.b16 %v1422, %v1412
    %v1663 = vpack.c.b16 %v1423, %v1413
    %v1664 = vpack.c.b16 %v1424, %v1414
    %v1665 = vpack.c.b16 %v1435, %v1425
    %v1666 = vpack.c.b16 %v1436, %v1426
    %v1667 = vpack.c.b16 %v1437, %v1427
    %v1668 = vpack.c.b16 %v1438, %v1428
    %v1669 = vpack.c.b16 %v1439, %v1429
    %v1670 = vpack.c.b16 %v1440, %v1430
    %v1671 = vpack.c.b16 %v1441, %v1431
    %v1672 = vpack.c.b16 %v1442, %v1432
    %v1673 = vpack.c.b16 %v1443, %v1433
    %v1674 = vpack.c.b16 %v1444, %v1434
    %v1675 = vpack.c.b16 %v1455, %v1445
    %v1676 = vpack.c.b16 %v1456, %v1446
    %v1677 = vpack.c.b16 %v1457, %v1447
    %v1678 = vpack.c.b16 %v1458, %v1448
    %v1679 = vpack.c.b16 %v1459, %v1449
    %v1680 = vpack.c.b16 %v1460, %v1450
    %v1681 = vpack.c.b16 %v1461, %v1451
    %v1682 = vpack.c.b16 %v1462, %v1452
    %v1683 = vpack.c.b16 %v1463, %v1453
    %v1684 = vpack.c.b16 %v1464, %v1454
    %v1685 = vpack.c.b16 %v1475, %v1465
    %v1686 = vpack.c.b16 %v1476, %v1466
    %v1687 = vpack.c.b16 %v1477, %v1467
    %v1688 = vpack.c.b16 %v1478, %v1468
    %v1689 = vpack.c.b16 %v1479, %v1469
    %v1690 = vpack.c.b16 %v1480, %v1470
    %v1691 = vpack.c.b16 %v1481, %v1471
    %v1692 = vpack.c.b16 %v1482, %v1472
    %v1693 = vpack.c.b16 %v1483, %v1473
    %v1694 = vpack.c.b16 %v1484, %v1474
    %v1695 = vpack.c.b16 %v1495, %v1485
    %v1696 = vpack.c.b16 %v1496, %v1486
    %v1697 = vpack.c.b16 %v1497, %v1487
    %v1698 = vpack.c.b16 %v1498, %v1488
    %v1699 = vpack.c.b16 %v1499, %v1489
    %v1700 = vpack.c.b16 %v1500, %v1490
    %v1701 = vpack.c.b16 %v1501, %v1491
    %v1702 = vpack.c.b16 %v1502, %v1492
    %v1703 = vpack.c.b16 %v1503, %v1493
    %v1704 = vpack.c.b16 %v1504, %v1494
    %v1906 = vsel %vm539, %v680, 0
    %1908 = vmatpush.bf16.msra.mxu0 %v1575
    %1909 = vmatpush.bf16.msra.mxu0 %v1565
    %1910 = vmatpush.bf16.msra.mxu0 %v1555
    %1911 = vmatpush.bf16.msra.mxu0 %v1545
    %1912 = vmatpush.bf16.msra.mxu0 %v1535
    %1913 = vmatpush.bf16.msra.mxu0 %v1525
    %1914 = vmatpush.bf16.msra.mxu0 %v1515
    %1915 = vmatpush.bf16.msra.mxu0 %v1505
    %1916 = vmatmul.bf16.gmra.mxu0 %v678
    %v1917 = vpop.f32.mrf.mxu0
    %v1918 = vadd.f32 %v885, %v1917
    %v1919 = vpop.f32.mrf.mxu0
    %1920 = vdwg.mxu0
    %1921 = vmatpush.bf16.msra.mxu0 %v1655
    %1922 = vmatpush.bf16.msra.mxu0 %v1645
    %1923 = vmatpush.bf16.msra.mxu0 %v1635
    %1924 = vmatpush.bf16.msra.mxu0 %v1625
    %1925 = vmatpush.bf16.msra.mxu0 %v1615
    %1926 = vmatpush.bf16.msra.mxu0 %v1605
    %1927 = vmatpush.bf16.msra.mxu0 %v1595
    %1928 = vmatpush.bf16.msra.mxu0 %v1585
    %1929 = vmatmul.bf16.gmra.mxu0 %v679
    %v1930 = vpop.f32.mrf.mxu0
    %v1931 = vadd.f32 %v1918, %v1930
    %v1932 = vpop.f32.mrf.mxu0
    %1933 = vdwg.mxu0
    %1934 = vmatpush.bf16.msra.mxu0 0
    %1935 = vmatpush.bf16.msra.mxu0 0
    %1936 = vmatpush.bf16.msra.mxu0 0
    %1937 = vmatpush.bf16.msra.mxu0 0
    %1938 = vmatpush.bf16.msra.mxu0 %v1695
    %1939 = vmatpush.bf16.msra.mxu0 %v1685
    %1940 = vmatpush.bf16.msra.mxu0 %v1675
    %1941 = vmatpush.bf16.msra.mxu0 %v1665
    %1942 = vmatmul.bf16.gmra.mxu0 %v1906
    %v1943 = vpop.f32.mrf.mxu0
    %v1944 = vadd.f32 %v1931, %v1943
    %v1945 = vpop.f32.mrf.mxu0
    %1946 = vdwg.mxu0
    %1947 = vmatpush.bf16.msra.mxu0 %v1576
    %1948 = vmatpush.bf16.msra.mxu0 %v1566
    %1949 = vmatpush.bf16.msra.mxu0 %v1556
    %1950 = vmatpush.bf16.msra.mxu0 %v1546
    %1951 = vmatpush.bf16.msra.mxu0 %v1536
    %1952 = vmatpush.bf16.msra.mxu0 %v1526
    %1953 = vmatpush.bf16.msra.mxu0 %v1516
    %1954 = vmatpush.bf16.msra.mxu0 %v1506
    %1955 = vmatmul.bf16.gmra.mxu0 %v678
    %v1956 = vpop.f32.mrf.mxu0
    %v1957 = vadd.f32 %v886, %v1956
    %v1958 = vpop.f32.mrf.mxu0
    %1959 = vdwg.mxu0
    %1960 = vmatpush.bf16.msra.mxu0 %v1656
    %1961 = vmatpush.bf16.msra.mxu0 %v1646
    %1962 = vmatpush.bf16.msra.mxu0 %v1636
    %1963 = vmatpush.bf16.msra.mxu0 %v1626
    %1964 = vmatpush.bf16.msra.mxu0 %v1616
    %1965 = vmatpush.bf16.msra.mxu0 %v1606
    %1966 = vmatpush.bf16.msra.mxu0 %v1596
    %1967 = vmatpush.bf16.msra.mxu0 %v1586
    %1968 = vmatmul.bf16.gmra.mxu0 %v679
    %v1969 = vpop.f32.mrf.mxu0
    %v1970 = vadd.f32 %v1957, %v1969
    %v1971 = vpop.f32.mrf.mxu0
    %1972 = vdwg.mxu0
    %1973 = vmatpush.bf16.msra.mxu0 0
    %1974 = vmatpush.bf16.msra.mxu0 0
    %1975 = vmatpush.bf16.msra.mxu0 0
    %1976 = vmatpush.bf16.msra.mxu0 0
    %1977 = vmatpush.bf16.msra.mxu0 %v1696
    %1978 = vmatpush.bf16.msra.mxu0 %v1686
    %1979 = vmatpush.bf16.msra.mxu0 %v1676
    %1980 = vmatpush.bf16.msra.mxu0 %v1666
    %1981 = vmatmul.bf16.gmra.mxu0 %v1906
    %v1982 = vpop.f32.mrf.mxu0
    %v1983 = vadd.f32 %v1970, %v1982
    %v1984 = vpop.f32.mrf.mxu0
    %1985 = vdwg.mxu0
    %1986 = vmatpush.bf16.msra.mxu0 %v1577
    %1987 = vmatpush.bf16.msra.mxu0 %v1567
    %1988 = vmatpush.bf16.msra.mxu0 %v1557
    %1989 = vmatpush.bf16.msra.mxu0 %v1547
    %1990 = vmatpush.bf16.msra.mxu0 %v1537
    %1991 = vmatpush.bf16.msra.mxu0 %v1527
    %1992 = vmatpush.bf16.msra.mxu0 %v1517
    %1993 = vmatpush.bf16.msra.mxu0 %v1507
    %1994 = vmatmul.bf16.gmra.mxu0 %v678
    %v1995 = vpop.f32.mrf.mxu0
    %v1996 = vadd.f32 %v887, %v1995
    %v1997 = vpop.f32.mrf.mxu0
    %1998 = vdwg.mxu0
    %1999 = vmatpush.bf16.msra.mxu0 %v1657
    %2000 = vmatpush.bf16.msra.mxu0 %v1647
    %2001 = vmatpush.bf16.msra.mxu0 %v1637
    %2002 = vmatpush.bf16.msra.mxu0 %v1627
    %2003 = vmatpush.bf16.msra.mxu0 %v1617
    %2004 = vmatpush.bf16.msra.mxu0 %v1607
    %2005 = vmatpush.bf16.msra.mxu0 %v1597
    %2006 = vmatpush.bf16.msra.mxu0 %v1587
    %2007 = vmatmul.bf16.gmra.mxu0 %v679
    %v2008 = vpop.f32.mrf.mxu0
    %v2009 = vadd.f32 %v1996, %v2008
    %v2010 = vpop.f32.mrf.mxu0
    %2011 = vdwg.mxu0
    %2012 = vmatpush.bf16.msra.mxu0 0
    %2013 = vmatpush.bf16.msra.mxu0 0
    %2014 = vmatpush.bf16.msra.mxu0 0
    %2015 = vmatpush.bf16.msra.mxu0 0
    %2016 = vmatpush.bf16.msra.mxu0 %v1697
    %2017 = vmatpush.bf16.msra.mxu0 %v1687
    %2018 = vmatpush.bf16.msra.mxu0 %v1677
    %2019 = vmatpush.bf16.msra.mxu0 %v1667
    %2020 = vmatmul.bf16.gmra.mxu0 %v1906
    %v2021 = vpop.f32.mrf.mxu0
    %v2022 = vadd.f32 %v2009, %v2021
    %v2023 = vpop.f32.mrf.mxu0
    %2024 = vdwg.mxu0
    %2025 = vmatpush.bf16.msra.mxu0 %v1578
    %2026 = vmatpush.bf16.msra.mxu0 %v1568
    %2027 = vmatpush.bf16.msra.mxu0 %v1558
    %2028 = vmatpush.bf16.msra.mxu0 %v1548
    %2029 = vmatpush.bf16.msra.mxu0 %v1538
    %2030 = vmatpush.bf16.msra.mxu0 %v1528
    %2031 = vmatpush.bf16.msra.mxu0 %v1518
    %2032 = vmatpush.bf16.msra.mxu0 %v1508
    %2033 = vmatmul.bf16.gmra.mxu0 %v678
    %v2034 = vpop.f32.mrf.mxu0
    %v2035 = vadd.f32 %v888, %v2034
    %v2036 = vpop.f32.mrf.mxu0
    %2037 = vdwg.mxu0
    %2038 = vmatpush.bf16.msra.mxu0 %v1658
    %2039 = vmatpush.bf16.msra.mxu0 %v1648
    %2040 = vmatpush.bf16.msra.mxu0 %v1638
    %2041 = vmatpush.bf16.msra.mxu0 %v1628
    %2042 = vmatpush.bf16.msra.mxu0 %v1618
    %2043 = vmatpush.bf16.msra.mxu0 %v1608
    %2044 = vmatpush.bf16.msra.mxu0 %v1598
    %2045 = vmatpush.bf16.msra.mxu0 %v1588
    %2046 = vmatmul.bf16.gmra.mxu0 %v679
    %v2047 = vpop.f32.mrf.mxu0
    %v2048 = vadd.f32 %v2035, %v2047
    %v2049 = vpop.f32.mrf.mxu0
    %2050 = vdwg.mxu0
    %2051 = vmatpush.bf16.msra.mxu0 0
    %2052 = vmatpush.bf16.msra.mxu0 0
    %2053 = vmatpush.bf16.msra.mxu0 0
    %2054 = vmatpush.bf16.msra.mxu0 0
    %2055 = vmatpush.bf16.msra.mxu0 %v1698
    %2056 = vmatpush.bf16.msra.mxu0 %v1688
    %2057 = vmatpush.bf16.msra.mxu0 %v1678
    %2058 = vmatpush.bf16.msra.mxu0 %v1668
    %2059 = vmatmul.bf16.gmra.mxu0 %v1906
    %v2060 = vpop.f32.mrf.mxu0
    %v2061 = vadd.f32 %v2048, %v2060
    %v2062 = vpop.f32.mrf.mxu0
    %2063 = vdwg.mxu0
    %2064 = vmatpush.bf16.msra.mxu0 %v1579
    %2065 = vmatpush.bf16.msra.mxu0 %v1569
    %2066 = vmatpush.bf16.msra.mxu0 %v1559
    %2067 = vmatpush.bf16.msra.mxu0 %v1549
    %2068 = vmatpush.bf16.msra.mxu0 %v1539
    %2069 = vmatpush.bf16.msra.mxu0 %v1529
    %2070 = vmatpush.bf16.msra.mxu0 %v1519
    %2071 = vmatpush.bf16.msra.mxu0 %v1509
    %2072 = vmatmul.bf16.gmra.mxu0 %v678
    %v2073 = vpop.f32.mrf.mxu0
    %v2074 = vadd.f32 %v889, %v2073
    %v2075 = vpop.f32.mrf.mxu0
    %2076 = vdwg.mxu0
    %2077 = vmatpush.bf16.msra.mxu0 %v1659
    %2078 = vmatpush.bf16.msra.mxu0 %v1649
    %2079 = vmatpush.bf16.msra.mxu0 %v1639
    %2080 = vmatpush.bf16.msra.mxu0 %v1629
    %2081 = vmatpush.bf16.msra.mxu0 %v1619
    %2082 = vmatpush.bf16.msra.mxu0 %v1609
    %2083 = vmatpush.bf16.msra.mxu0 %v1599
    %2084 = vmatpush.bf16.msra.mxu0 %v1589
    %2085 = vmatmul.bf16.gmra.mxu0 %v679
    %v2086 = vpop.f32.mrf.mxu0
    %v2087 = vadd.f32 %v2074, %v2086
    %v2088 = vpop.f32.mrf.mxu0
    %2089 = vdwg.mxu0
    %2090 = vmatpush.bf16.msra.mxu0 0
    %2091 = vmatpush.bf16.msra.mxu0 0
    %2092 = vmatpush.bf16.msra.mxu0 0
    %2093 = vmatpush.bf16.msra.mxu0 0
    %2094 = vmatpush.bf16.msra.mxu0 %v1699
    %2095 = vmatpush.bf16.msra.mxu0 %v1689
    %2096 = vmatpush.bf16.msra.mxu0 %v1679
    %2097 = vmatpush.bf16.msra.mxu0 %v1669
    %2098 = vmatmul.bf16.gmra.mxu0 %v1906
    %v2099 = vpop.f32.mrf.mxu0
    %v2100 = vadd.f32 %v2087, %v2099
    %v2101 = vpop.f32.mrf.mxu0
    %2102 = vdwg.mxu0
    %2103 = vmatpush.bf16.msra.mxu0 %v1580
    %2104 = vmatpush.bf16.msra.mxu0 %v1570
    %2105 = vmatpush.bf16.msra.mxu0 %v1560
    %2106 = vmatpush.bf16.msra.mxu0 %v1550
    %2107 = vmatpush.bf16.msra.mxu0 %v1540
    %2108 = vmatpush.bf16.msra.mxu0 %v1530
    %2109 = vmatpush.bf16.msra.mxu0 %v1520
    %2110 = vmatpush.bf16.msra.mxu0 %v1510
    %2111 = vmatmul.bf16.gmra.mxu0 %v678
    %v2112 = vpop.f32.mrf.mxu0
    %v2113 = vadd.f32 %v890, %v2112
    %v2114 = vpop.f32.mrf.mxu0
    %2115 = vdwg.mxu0
    %2116 = vmatpush.bf16.msra.mxu0 %v1660
    %2117 = vmatpush.bf16.msra.mxu0 %v1650
    %2118 = vmatpush.bf16.msra.mxu0 %v1640
    %2119 = vmatpush.bf16.msra.mxu0 %v1630
    %2120 = vmatpush.bf16.msra.mxu0 %v1620
    %2121 = vmatpush.bf16.msra.mxu0 %v1610
    %2122 = vmatpush.bf16.msra.mxu0 %v1600
    %2123 = vmatpush.bf16.msra.mxu0 %v1590
    %2124 = vmatmul.bf16.gmra.mxu0 %v679
    %v2125 = vpop.f32.mrf.mxu0
    %v2126 = vadd.f32 %v2113, %v2125
    %v2127 = vpop.f32.mrf.mxu0
    %2128 = vdwg.mxu0
    %2129 = vmatpush.bf16.msra.mxu0 0
    %2130 = vmatpush.bf16.msra.mxu0 0
    %2131 = vmatpush.bf16.msra.mxu0 0
    %2132 = vmatpush.bf16.msra.mxu0 0
    %2133 = vmatpush.bf16.msra.mxu0 %v1700
    %2134 = vmatpush.bf16.msra.mxu0 %v1690
    %2135 = vmatpush.bf16.msra.mxu0 %v1680
    %2136 = vmatpush.bf16.msra.mxu0 %v1670
    %2137 = vmatmul.bf16.gmra.mxu0 %v1906
    %v2138 = vpop.f32.mrf.mxu0
    %v2139 = vadd.f32 %v2126, %v2138
    %v2140 = vpop.f32.mrf.mxu0
    %2141 = vdwg.mxu0
    %2142 = vmatpush.bf16.msra.mxu0 %v1581
    %2143 = vmatpush.bf16.msra.mxu0 %v1571
    %2144 = vmatpush.bf16.msra.mxu0 %v1561
    %2145 = vmatpush.bf16.msra.mxu0 %v1551
    %2146 = vmatpush.bf16.msra.mxu0 %v1541
    %2147 = vmatpush.bf16.msra.mxu0 %v1531
    %2148 = vmatpush.bf16.msra.mxu0 %v1521
    %2149 = vmatpush.bf16.msra.mxu0 %v1511
    %2150 = vmatmul.bf16.gmra.mxu0 %v678
    %v2151 = vpop.f32.mrf.mxu0
    %v2152 = vadd.f32 %v891, %v2151
    %v2153 = vpop.f32.mrf.mxu0
    %2154 = vdwg.mxu0
    %2155 = vmatpush.bf16.msra.mxu0 %v1661
    %2156 = vmatpush.bf16.msra.mxu0 %v1651
    %2157 = vmatpush.bf16.msra.mxu0 %v1641
    %2158 = vmatpush.bf16.msra.mxu0 %v1631
    %2159 = vmatpush.bf16.msra.mxu0 %v1621
    %2160 = vmatpush.bf16.msra.mxu0 %v1611
    %2161 = vmatpush.bf16.msra.mxu0 %v1601
    %2162 = vmatpush.bf16.msra.mxu0 %v1591
    %2163 = vmatmul.bf16.gmra.mxu0 %v679
    %v2164 = vpop.f32.mrf.mxu0
    %v2165 = vadd.f32 %v2152, %v2164
    %v2166 = vpop.f32.mrf.mxu0
    %2167 = vdwg.mxu0
    %2168 = vmatpush.bf16.msra.mxu0 0
    %2169 = vmatpush.bf16.msra.mxu0 0
    %2170 = vmatpush.bf16.msra.mxu0 0
    %2171 = vmatpush.bf16.msra.mxu0 0
    %2172 = vmatpush.bf16.msra.mxu0 %v1701
    %2173 = vmatpush.bf16.msra.mxu0 %v1691
    %2174 = vmatpush.bf16.msra.mxu0 %v1681
    %2175 = vmatpush.bf16.msra.mxu0 %v1671
    %2176 = vmatmul.bf16.gmra.mxu0 %v1906
    %v2177 = vpop.f32.mrf.mxu0
    %v2178 = vadd.f32 %v2165, %v2177
    %v2179 = vpop.f32.mrf.mxu0
    %2180 = vdwg.mxu0
    %2181 = vmatpush.bf16.msra.mxu0 %v1582
    %2182 = vmatpush.bf16.msra.mxu0 %v1572
    %2183 = vmatpush.bf16.msra.mxu0 %v1562
    %2184 = vmatpush.bf16.msra.mxu0 %v1552
    %2185 = vmatpush.bf16.msra.mxu0 %v1542
    %2186 = vmatpush.bf16.msra.mxu0 %v1532
    %2187 = vmatpush.bf16.msra.mxu0 %v1522
    %2188 = vmatpush.bf16.msra.mxu0 %v1512
    %2189 = vmatmul.bf16.gmra.mxu0 %v678
    %v2190 = vpop.f32.mrf.mxu0
    %v2191 = vadd.f32 %v892, %v2190
    %v2192 = vpop.f32.mrf.mxu0
    %2193 = vdwg.mxu0
    %2194 = vmatpush.bf16.msra.mxu0 %v1662
    %2195 = vmatpush.bf16.msra.mxu0 %v1652
    %2196 = vmatpush.bf16.msra.mxu0 %v1642
    %2197 = vmatpush.bf16.msra.mxu0 %v1632
    %2198 = vmatpush.bf16.msra.mxu0 %v1622
    %2199 = vmatpush.bf16.msra.mxu0 %v1612
    %2200 = vmatpush.bf16.msra.mxu0 %v1602
    %2201 = vmatpush.bf16.msra.mxu0 %v1592
    %2202 = vmatmul.bf16.gmra.mxu0 %v679
    %v2203 = vpop.f32.mrf.mxu0
    %v2204 = vadd.f32 %v2191, %v2203
    %v2205 = vpop.f32.mrf.mxu0
    %2206 = vdwg.mxu0
    %2207 = vmatpush.bf16.msra.mxu0 0
    %2208 = vmatpush.bf16.msra.mxu0 0
    %2209 = vmatpush.bf16.msra.mxu0 0
    %2210 = vmatpush.bf16.msra.mxu0 0
    %2211 = vmatpush.bf16.msra.mxu0 %v1702
    %2212 = vmatpush.bf16.msra.mxu0 %v1692
    %2213 = vmatpush.bf16.msra.mxu0 %v1682
    %2214 = vmatpush.bf16.msra.mxu0 %v1672
    %2215 = vmatmul.bf16.gmra.mxu0 %v1906
    %v2216 = vpop.f32.mrf.mxu0
    %v2217 = vadd.f32 %v2204, %v2216
    %v2218 = vpop.f32.mrf.mxu0
    %2219 = vdwg.mxu0
    %2220 = vmatpush.bf16.msra.mxu0 %v1583
    %2221 = vmatpush.bf16.msra.mxu0 %v1573
    %2222 = vmatpush.bf16.msra.mxu0 %v1563
    %2223 = vmatpush.bf16.msra.mxu0 %v1553
    %2224 = vmatpush.bf16.msra.mxu0 %v1543
    %2225 = vmatpush.bf16.msra.mxu0 %v1533
    %2226 = vmatpush.bf16.msra.mxu0 %v1523
    %2227 = vmatpush.bf16.msra.mxu0 %v1513
    %2228 = vmatmul.bf16.gmra.mxu0 %v678
    %v2229 = vpop.f32.mrf.mxu0
    %v2230 = vadd.f32 %v893, %v2229
    %v2231 = vpop.f32.mrf.mxu0
    %2232 = vdwg.mxu0
    %2233 = vmatpush.bf16.msra.mxu0 %v1663
    %2234 = vmatpush.bf16.msra.mxu0 %v1653
    %2235 = vmatpush.bf16.msra.mxu0 %v1643
    %2236 = vmatpush.bf16.msra.mxu0 %v1633
    %2237 = vmatpush.bf16.msra.mxu0 %v1623
    %2238 = vmatpush.bf16.msra.mxu0 %v1613
    %2239 = vmatpush.bf16.msra.mxu0 %v1603
    %2240 = vmatpush.bf16.msra.mxu0 %v1593
    %2241 = vmatmul.bf16.gmra.mxu0 %v679
    %v2242 = vpop.f32.mrf.mxu0
    %v2243 = vadd.f32 %v2230, %v2242
    %v2244 = vpop.f32.mrf.mxu0
    %2245 = vdwg.mxu0
    %2246 = vmatpush.bf16.msra.mxu0 0
    %2247 = vmatpush.bf16.msra.mxu0 0
    %2248 = vmatpush.bf16.msra.mxu0 0
    %2249 = vmatpush.bf16.msra.mxu0 0
    %2250 = vmatpush.bf16.msra.mxu0 %v1703
    %2251 = vmatpush.bf16.msra.mxu0 %v1693
    %2252 = vmatpush.bf16.msra.mxu0 %v1683
    %2253 = vmatpush.bf16.msra.mxu0 %v1673
    %2254 = vmatmul.bf16.gmra.mxu0 %v1906
    %v2255 = vpop.f32.mrf.mxu0
    %v2256 = vadd.f32 %v2243, %v2255
    %v2257 = vpop.f32.mrf.mxu0
    %2258 = vdwg.mxu0
    %2259 = vmatpush.bf16.msra.mxu0 %v1584
    %2260 = vmatpush.bf16.msra.mxu0 %v1574
    %2261 = vmatpush.bf16.msra.mxu0 %v1564
    %2262 = vmatpush.bf16.msra.mxu0 %v1554
    %2263 = vmatpush.bf16.msra.mxu0 %v1544
    %2264 = vmatpush.bf16.msra.mxu0 %v1534
    %2265 = vmatpush.bf16.msra.mxu0 %v1524
    %2266 = vmatpush.bf16.msra.mxu0 %v1514
    %2267 = vmatmul.bf16.gmra.mxu0 %v678
    %v2268 = vpop.f32.mrf.mxu0
    %v2269 = vadd.f32 %v894, %v2268
    %v2270 = vpop.f32.mrf.mxu0
    %2271 = vdwg.mxu0
    %2272 = vmatpush.bf16.msra.mxu0 %v1664
    %2273 = vmatpush.bf16.msra.mxu0 %v1654
    %2274 = vmatpush.bf16.msra.mxu0 %v1644
    %2275 = vmatpush.bf16.msra.mxu0 %v1634
    %2276 = vmatpush.bf16.msra.mxu0 %v1624
    %2277 = vmatpush.bf16.msra.mxu0 %v1614
    %2278 = vmatpush.bf16.msra.mxu0 %v1604
    %2279 = vmatpush.bf16.msra.mxu0 %v1594
    %2280 = vmatmul.bf16.gmra.mxu0 %v679
    %v2281 = vpop.f32.mrf.mxu0
    %v2282 = vadd.f32 %v2269, %v2281
    %v2283 = vpop.f32.mrf.mxu0
    %2284 = vdwg.mxu0
    %2285 = vmatpush.bf16.msra.mxu0 0
    %2286 = vmatpush.bf16.msra.mxu0 0
    %2287 = vmatpush.bf16.msra.mxu0 0
    %2288 = vmatpush.bf16.msra.mxu0 0
    %2289 = vmatpush.bf16.msra.mxu0 %v1704
    %2290 = vmatpush.bf16.msra.mxu0 %v1694
    %2291 = vmatpush.bf16.msra.mxu0 %v1684
    %2292 = vmatpush.bf16.msra.mxu0 %v1674
    %2293 = vmatmul.bf16.gmra.mxu0 %v1906
    %v2294 = vpop.f32.mrf.mxu0
    %v2295 = vadd.f32 %v2282, %v2294
    %v2296 = vpop.f32.mrf.mxu0
    %2297 = vdwg.mxu0
    %v2298 = vsub.f32 0.0, %v1944
    %v2299 = vsub.f32 0.0, %v1983
    %v2300 = vsub.f32 0.0, %v2022
    %v2301 = vsub.f32 0.0, %v2061
    %v2302 = vsub.f32 0.0, %v2100
    %v2303 = vsub.f32 0.0, %v2139
    %v2304 = vsub.f32 0.0, %v2178
    %v2305 = vsub.f32 0.0, %v2217
    %v2306 = vsub.f32 0.0, %v2256
    %v2307 = vsub.f32 0.0, %v2295
    %v2308 = vmul.f32 %v2298, 1.442695
    %v2309 = vpow.pop %v2308
    %v2310 = vmul.f32 %v2299, 1.442695
    %v2311 = vpow.pop %v2310
    %v2312 = vmul.f32 %v2300, 1.442695
    %v2313 = vpow.pop %v2312
    %v2314 = vmul.f32 %v2301, 1.442695
    %v2315 = vpow.pop %v2314
    %v2316 = vmul.f32 %v2302, 1.442695
    %v2317 = vpow.pop %v2316
    %v2318 = vmul.f32 %v2303, 1.442695
    %v2319 = vpow.pop %v2318
    %v2320 = vmul.f32 %v2304, 1.442695
    %v2321 = vpow.pop %v2320
    %v2322 = vmul.f32 %v2305, 1.442695
    %v2323 = vpow.pop %v2322
    %v2324 = vmul.f32 %v2306, 1.442695
    %v2325 = vpow.pop %v2324
    %v2326 = vmul.f32 %v2307, 1.442695
    %v2327 = vpow.pop %v2326
    %v2328 = vadd.f32 %v2309, 1.0
    %v2329 = vadd.f32 %v2311, 1.0
    %v2330 = vadd.f32 %v2313, 1.0
    %v2331 = vadd.f32 %v2315, 1.0
    %v2332 = vadd.f32 %v2317, 1.0
    %v2333 = vadd.f32 %v2319, 1.0
    %v2334 = vadd.f32 %v2321, 1.0
    %v2335 = vadd.f32 %v2323, 1.0
    %v2336 = vadd.f32 %v2325, 1.0
    %v2337 = vadd.f32 %v2327, 1.0
    %v2338 = vrcp.pop %v2328
    %v2339 = vmul.f32 %v2328, %v2338
    %v2340 = vsub.f32 1.0, %v2339
    %v2341 = vmul.f32 %v2338, %v2340
    %v2342 = vadd.f32 %v2338, %v2341
    %vm2343 = vweird.f32 %v2328
    %vm2344 = vweird.f32 %v2338
    %vm2345 = vmor %vm2343, %vm2344
    %v2346 = vsel %vm2345, %v2338, %v2342
    %v2347 = vand.u32 2147483647, %v2328
    %vm2348 = vcmp.eq.f32.partialorder %v2347, 8.507059e+37
    %v2349 = vand.u32 %v2328, 2147483648
    %v2350 = vor.u32 1.1754944e-38, %v2349
    %v2351 = vsel %vm2348, %v2350, %v2346
    %v2352 = vmul.f32 %v1944, %v2351
    %v2353 = vrcp.pop %v2329
    %v2354 = vmul.f32 %v2329, %v2353
    %v2355 = vsub.f32 1.0, %v2354
    %v2356 = vmul.f32 %v2353, %v2355
    %v2357 = vadd.f32 %v2353, %v2356
    %vm2358 = vweird.f32 %v2329
    %vm2359 = vweird.f32 %v2353
    %vm2360 = vmor %vm2358, %vm2359
    %v2361 = vsel %vm2360, %v2353, %v2357
    %v2362 = vand.u32 2147483647, %v2329
    %vm2363 = vcmp.eq.f32.partialorder %v2362, 8.507059e+37
    %v2364 = vand.u32 %v2329, 2147483648
    %v2365 = vor.u32 1.1754944e-38, %v2364
    %v2366 = vsel %vm2363, %v2365, %v2361
    %v2367 = vmul.f32 %v1983, %v2366
    %v2368 = vrcp.pop %v2330
    %v2369 = vmul.f32 %v2330, %v2368
    %v2370 = vsub.f32 1.0, %v2369
    %v2371 = vmul.f32 %v2368, %v2370
    %v2372 = vadd.f32 %v2368, %v2371
    %vm2373 = vweird.f32 %v2330
    %vm2374 = vweird.f32 %v2368
    %vm2375 = vmor %vm2373, %vm2374
    %v2376 = vsel %vm2375, %v2368, %v2372
    %v2377 = vand.u32 2147483647, %v2330
    %vm2378 = vcmp.eq.f32.partialorder %v2377, 8.507059e+37
    %v2379 = vand.u32 %v2330, 2147483648
    %v2380 = vor.u32 1.1754944e-38, %v2379
    %v2381 = vsel %vm2378, %v2380, %v2376
    %v2382 = vmul.f32 %v2022, %v2381
    %v2383 = vrcp.pop %v2331
    %v2384 = vmul.f32 %v2331, %v2383
    %v2385 = vsub.f32 1.0, %v2384
    %v2386 = vmul.f32 %v2383, %v2385
    %v2387 = vadd.f32 %v2383, %v2386
    %vm2388 = vweird.f32 %v2331
    %vm2389 = vweird.f32 %v2383
    %vm2390 = vmor %vm2388, %vm2389
    %v2391 = vsel %vm2390, %v2383, %v2387
    %v2392 = vand.u32 2147483647, %v2331
    %vm2393 = vcmp.eq.f32.partialorder %v2392, 8.507059e+37
    %v2394 = vand.u32 %v2331, 2147483648
    %v2395 = vor.u32 1.1754944e-38, %v2394
    %v2396 = vsel %vm2393, %v2395, %v2391
    %v2397 = vmul.f32 %v2061, %v2396
    %v2398 = vrcp.pop %v2332
    %v2399 = vmul.f32 %v2332, %v2398
    %v2400 = vsub.f32 1.0, %v2399
    %v2401 = vmul.f32 %v2398, %v2400
    %v2402 = vadd.f32 %v2398, %v2401
    %vm2403 = vweird.f32 %v2332
    %vm2404 = vweird.f32 %v2398
    %vm2405 = vmor %vm2403, %vm2404
    %v2406 = vsel %vm2405, %v2398, %v2402
    %v2407 = vand.u32 2147483647, %v2332
    %vm2408 = vcmp.eq.f32.partialorder %v2407, 8.507059e+37
    %v2409 = vand.u32 %v2332, 2147483648
    %v2410 = vor.u32 1.1754944e-38, %v2409
    %v2411 = vsel %vm2408, %v2410, %v2406
    %v2412 = vmul.f32 %v2100, %v2411
    %v2413 = vrcp.pop %v2333
    %v2414 = vmul.f32 %v2333, %v2413
    %v2415 = vsub.f32 1.0, %v2414
    %v2416 = vmul.f32 %v2413, %v2415
    %v2417 = vadd.f32 %v2413, %v2416
    %vm2418 = vweird.f32 %v2333
    %vm2419 = vweird.f32 %v2413
    %vm2420 = vmor %vm2418, %vm2419
    %v2421 = vsel %vm2420, %v2413, %v2417
    %v2422 = vand.u32 2147483647, %v2333
    %vm2423 = vcmp.eq.f32.partialorder %v2422, 8.507059e+37
    %v2424 = vand.u32 %v2333, 2147483648
    %v2425 = vor.u32 1.1754944e-38, %v2424
    %v2426 = vsel %vm2423, %v2425, %v2421
    %v2427 = vmul.f32 %v2139, %v2426
    %v2428 = vrcp.pop %v2334
    %v2429 = vmul.f32 %v2334, %v2428
    %v2430 = vsub.f32 1.0, %v2429
    %v2431 = vmul.f32 %v2428, %v2430
    %v2432 = vadd.f32 %v2428, %v2431
    %vm2433 = vweird.f32 %v2334
    %vm2434 = vweird.f32 %v2428
    %vm2435 = vmor %vm2433, %vm2434
    %v2436 = vsel %vm2435, %v2428, %v2432
    %v2437 = vand.u32 2147483647, %v2334
    %vm2438 = vcmp.eq.f32.partialorder %v2437, 8.507059e+37
    %v2439 = vand.u32 %v2334, 2147483648
    %v2440 = vor.u32 1.1754944e-38, %v2439
    %v2441 = vsel %vm2438, %v2440, %v2436
    %v2442 = vmul.f32 %v2178, %v2441
    %v2443 = vrcp.pop %v2335
    %v2444 = vmul.f32 %v2335, %v2443
    %v2445 = vsub.f32 1.0, %v2444
    %v2446 = vmul.f32 %v2443, %v2445
    %v2447 = vadd.f32 %v2443, %v2446
    %vm2448 = vweird.f32 %v2335
    %vm2449 = vweird.f32 %v2443
    %vm2450 = vmor %vm2448, %vm2449
    %v2451 = vsel %vm2450, %v2443, %v2447
    %v2452 = vand.u32 2147483647, %v2335
    %vm2453 = vcmp.eq.f32.partialorder %v2452, 8.507059e+37
    %v2454 = vand.u32 %v2335, 2147483648
    %v2455 = vor.u32 1.1754944e-38, %v2454
    %v2456 = vsel %vm2453, %v2455, %v2451
    %v2457 = vmul.f32 %v2217, %v2456
    %v2458 = vrcp.pop %v2336
    %v2459 = vmul.f32 %v2336, %v2458
    %v2460 = vsub.f32 1.0, %v2459
    %v2461 = vmul.f32 %v2458, %v2460
    %v2462 = vadd.f32 %v2458, %v2461
    %vm2463 = vweird.f32 %v2336
    %vm2464 = vweird.f32 %v2458
    %vm2465 = vmor %vm2463, %vm2464
    %v2466 = vsel %vm2465, %v2458, %v2462
    %v2467 = vand.u32 2147483647, %v2336
    %vm2468 = vcmp.eq.f32.partialorder %v2467, 8.507059e+37
    %v2469 = vand.u32 %v2336, 2147483648
    %v2470 = vor.u32 1.1754944e-38, %v2469
    %v2471 = vsel %vm2468, %v2470, %v2466
    %v2472 = vmul.f32 %v2256, %v2471
    %v2473 = vrcp.pop %v2337
    %v2474 = vmul.f32 %v2337, %v2473
    %v2475 = vsub.f32 1.0, %v2474
    %v2476 = vmul.f32 %v2473, %v2475
    %v2477 = vadd.f32 %v2473, %v2476
    %vm2478 = vweird.f32 %v2337
    %vm2479 = vweird.f32 %v2473
    %vm2480 = vmor %vm2478, %vm2479
    %v2481 = vsel %vm2480, %v2473, %v2477
    %v2482 = vand.u32 2147483647, %v2337
    %vm2483 = vcmp.eq.f32.partialorder %v2482, 8.507059e+37
    %v2484 = vand.u32 %v2337, 2147483648
    %v2485 = vor.u32 1.1754944e-38, %v2484
    %v2486 = vsel %vm2483, %v2485, %v2481
    %v2487 = vmul.f32 %v2295, %v2486
    %v2498 = vrot.slane %v2367, 6
    %v2499 = vrot.slane %v2382, 4
    %v2500 = vrot.slane %v2397, 2
    %v2501 = vrot.slane %v2427, 6
    %v2502 = vrot.slane %v2442, 4
    %v2503 = vrot.slane %v2457, 2
    %v2504 = vrot.slane %v2487, 6
    %vm2505 = vcmask 1041408
    %v2506 = vsel %vm2505, %v2352, %v2498
    %vm2507 = vcmask 1045508
    %v2508 = vsel %vm2507, %v2499, %v2500
    %vm2509 = vcmask 1043456
    %v2510 = vsel %vm2509, %v2506, %v2508
    %v2511 = vsel %vm2505, %v2412, %v2501
    %v2512 = vsel %vm2507, %v2502, %v2503
    %v2513 = vsel %vm2509, %v2511, %v2512
    %v2514 = vsel %vm2505, %v2472, %v2504
    %2518 = vst [vmem:[#allocation2] sm:$0xff] %v2510
    %2519 = vst [vmem:[#allocation2 + $0x8] sm:$0xff] %v2513
    %2520 = vst [vmem:[#allocation2 + $0x10] sm:$0xf] %v2514
    %v2521 = vpack.c.bf16 %v2352, %v2352
    %v2522 = vpack.c.bf16 %v2367, %v2367
    %v2523 = vpack.c.bf16 %v2382, %v2382
    %v2524 = vpack.c.bf16 %v2397, %v2397
    %v2525 = vpack.c.bf16 %v2412, %v2412
    %v2526 = vpack.c.bf16 %v2427, %v2427
    %v2527 = vpack.c.bf16 %v2442, %v2442
    %v2528 = vpack.c.bf16 %v2457, %v2457
    %v2529 = vpack.c.bf16 %v2472, %v2472
    %v2530 = vpack.c.bf16 %v2487, %v2487
    %v2531 = vld [vmem:[%s9] sm:$0xff]
    %v2532 = vld [vmem:[%s9 + $0x8] sm:$0xff]
    %v2533 = vld [vmem:[%s9 + $0x10] sm:$0xff]
    %v2534 = vld [vmem:[%s9 + $0x18] sm:$0xff]
    %v2535 = vld [vmem:[%s9 + $0x20] sm:$0xff]
    %v2536 = vld [vmem:[%s9 + $0x28] sm:$0xff]
    %v2537 = vld [vmem:[%s9 + $0x30] sm:$0xff]
    %v2538 = vld [vmem:[%s9 + $0x38] sm:$0xff]
    %v2539 = vld [vmem:[%s9 + $0x40] sm:$0xff]
    %v2540 = vld [vmem:[%s9 + $0x48] sm:$0xff]
    %v2541 = vld [vmem:[%s9 + $0x50] sm:$0xff]
    %v2542 = vld [vmem:[%s9 + $0x58] sm:$0xff]
    %v2543 = vld [vmem:[%s9 + $0x60] sm:$0xff]
    %v2544 = vld [vmem:[%s9 + $0x68] sm:$0xff]
    %v2545 = vld [vmem:[%s9 + $0x70] sm:$0xff]
    %v2546 = vld [vmem:[%s9 + $0x78] sm:$0xff]
    %v2547 = vld [vmem:[%s9 + $0x80] sm:$0xff]
    %v2548 = vld [vmem:[%s9 + $0x88] sm:$0xff]
    %v2549 = vld [vmem:[%s9 + $0x90] sm:$0xff]
    %v2550 = vld [vmem:[%s9 + $0x98] sm:$0xff]
    %v2551 = vld [vmem:[%s9 + $0xa0] sm:$0xff]
    %v2552 = vld [vmem:[%s9 + $0xa8] sm:$0xff]
    %v2553 = vld [vmem:[%s9 + $0xb0] sm:$0xff]
    %v2554 = vld [vmem:[%s9 + $0xb8] sm:$0xff]
    %v2555 = vld [vmem:[%s9 + $0xc0] sm:$0xff]
    %v2556 = vld [vmem:[%s9 + $0xc8] sm:$0xff]
    %v2557 = vld [vmem:[%s9 + $0xd0] sm:$0xff]
    %v2558 = vld [vmem:[%s9 + $0xd8] sm:$0xff]
    %v2559 = vld [vmem:[%s9 + $0xe0] sm:$0xff]
    %v2560 = vld [vmem:[%s9 + $0xe8] sm:$0xff]
    %v2561 = vld [vmem:[%s9 + $0xf0] sm:$0xff]
    %v2562 = vld [vmem:[%s9 + $0xf8] sm:$0xff]
    %v2563 = vld [vmem:[%s9 + $0x100] sm:$0xff]
    %v2564 = vld [vmem:[%s9 + $0x108] sm:$0xff]
    %v2565 = vld [vmem:[%s9 + $0x110] sm:$0xff]
    %v2566 = vld [vmem:[%s9 + $0x118] sm:$0xff]
    %v2567 = vld [vmem:[%s9 + $0x120] sm:$0xff]
    %v2568 = vld [vmem:[%s9 + $0x128] sm:$0xff]
    %v2569 = vld [vmem:[%s9 + $0x130] sm:$0xff]
    %v2570 = vld [vmem:[%s9 + $0x138] sm:$0xff]
    %v2571 = vld [vmem:[%s9 + $0x140] sm:$0xff]
    %v2572 = vld [vmem:[%s9 + $0x148] sm:$0xff]
    %v2573 = vld [vmem:[%s9 + $0x150] sm:$0xff]
    %v2574 = vld [vmem:[%s9 + $0x158] sm:$0xff]
    %v2575 = vld [vmem:[%s9 + $0x160] sm:$0xff]
    %v2576 = vld [vmem:[%s9 + $0x168] sm:$0xff]
    %v2577 = vld [vmem:[%s9 + $0x170] sm:$0xff]
    %v2578 = vld [vmem:[%s9 + $0x178] sm:$0xff]
    %v2579 = vld [vmem:[%s9 + $0x180] sm:$0xff]
    %v2580 = vld [vmem:[%s9 + $0x188] sm:$0xff]
    %v2581 = vld [vmem:[%s9 + $0x190] sm:$0xff]
    %v2582 = vld [vmem:[%s9 + $0x198] sm:$0xff]
    %v2583 = vld [vmem:[%s9 + $0x1a0] sm:$0xff]
    %v2584 = vld [vmem:[%s9 + $0x1a8] sm:$0xff]
    %v2585 = vld [vmem:[%s9 + $0x1b0] sm:$0xff]
    %v2586 = vld [vmem:[%s9 + $0x1b8] sm:$0xff]
    %v2587 = vld [vmem:[%s9 + $0x1c0] sm:$0xff]
    %v2588 = vld [vmem:[%s9 + $0x1c8] sm:$0xff]
    %v2589 = vld [vmem:[%s9 + $0x1d0] sm:$0xff]
    %v2590 = vld [vmem:[%s9 + $0x1d8] sm:$0xff]
    %v2591 = vld [vmem:[%s9 + $0x1e0] sm:$0xff]
    %v2592 = vld [vmem:[%s9 + $0x1e8] sm:$0xff]
    %v2593 = vld [vmem:[%s9 + $0x1f0] sm:$0xff]
    %v2594 = vld [vmem:[%s9 + $0x1f8] sm:$0xff]
    %v2595 = vld [vmem:[%s9 + $0x200] sm:$0xff]
    %v2596 = vld [vmem:[%s9 + $0x208] sm:$0xff]
    %v2597 = vld [vmem:[%s9 + $0x210] sm:$0xff]
    %v2598 = vld [vmem:[%s9 + $0x218] sm:$0xff]
    %v2599 = vld [vmem:[%s9 + $0x220] sm:$0xff]
    %v2600 = vld [vmem:[%s9 + $0x228] sm:$0xff]
    %v2601 = vld [vmem:[%s9 + $0x230] sm:$0xff]
    %v2602 = vld [vmem:[%s9 + $0x238] sm:$0xff]
    %v2603 = vld [vmem:[%s9 + $0x240] sm:$0xff]
    %v2604 = vld [vmem:[%s9 + $0x248] sm:$0xff]
    %v2605 = vld [vmem:[%s9 + $0x250] sm:$0xff]
    %v2606 = vld [vmem:[%s9 + $0x258] sm:$0xff]
    %v2607 = vld [vmem:[%s9 + $0x260] sm:$0xff]
    %v2608 = vld [vmem:[%s9 + $0x268] sm:$0xff]
    %v2609 = vld [vmem:[%s9 + $0x270] sm:$0xff]
    %v2610 = vld [vmem:[%s9 + $0x278] sm:$0xff]
    %v2611 = vld [vmem:[%s9 + $0x280] sm:$0xff]
    %v2612 = vld [vmem:[%s9 + $0x288] sm:$0xff]
    %v2613 = vld [vmem:[%s9 + $0x290] sm:$0xff]
    %v2614 = vld [vmem:[%s9 + $0x298] sm:$0xff]
    %v2615 = vld [vmem:[%s9 + $0x2a0] sm:$0xff]
    %v2616 = vld [vmem:[%s9 + $0x2a8] sm:$0xff]
    %v2617 = vld [vmem:[%s9 + $0x2b0] sm:$0xff]
    %v2618 = vld [vmem:[%s9 + $0x2b8] sm:$0xff]
    %v2619 = vld [vmem:[%s9 + $0x2c0] sm:$0xff]
    %v2620 = vld [vmem:[%s9 + $0x2c8] sm:$0xff]
    %v2621 = vld [vmem:[%s9 + $0x2d0] sm:$0xff]
    %v2622 = vld [vmem:[%s9 + $0x2d8] sm:$0xff]
    %v2623 = vld [vmem:[%s9 + $0x2e0] sm:$0xff]
    %v2624 = vld [vmem:[%s9 + $0x2e8] sm:$0xff]
    %v2625 = vld [vmem:[%s9 + $0x2f0] sm:$0xff]
    %v2626 = vld [vmem:[%s9 + $0x2f8] sm:$0xff]
    %v2627 = vld [vmem:[%s9 + $0x300] sm:$0xff]
    %v2628 = vld [vmem:[%s9 + $0x308] sm:$0xff]
    %v2629 = vld [vmem:[%s9 + $0x310] sm:$0xff]
    %v2630 = vld [vmem:[%s9 + $0x318] sm:$0xff]
    %v2631 = vld [vmem:[%s9 + $0x320] sm:$0xff]
    %v2632 = vld [vmem:[%s9 + $0x328] sm:$0xff]
    %v2633 = vld [vmem:[%s9 + $0x330] sm:$0xff]
    %v2634 = vld [vmem:[%s9 + $0x338] sm:$0xff]
    %v2635 = vld [vmem:[%s9 + $0x340] sm:$0xff]
    %v2636 = vld [vmem:[%s9 + $0x348] sm:$0xff]
    %v2637 = vld [vmem:[%s9 + $0x350] sm:$0xff]
    %v2638 = vld [vmem:[%s9 + $0x358] sm:$0xff]
    %v2639 = vld [vmem:[%s9 + $0x360] sm:$0xff]
    %v2640 = vld [vmem:[%s9 + $0x368] sm:$0xff]
    %v2641 = vld [vmem:[%s9 + $0x370] sm:$0xff]
    %v2642 = vld [vmem:[%s9 + $0x378] sm:$0xff]
    %v2643 = vld [vmem:[%s9 + $0x380] sm:$0xff]
    %v2644 = vld [vmem:[%s9 + $0x388] sm:$0xff]
    %v2645 = vld [vmem:[%s9 + $0x390] sm:$0xff]
    %v2646 = vld [vmem:[%s9 + $0x398] sm:$0xff]
    %v2647 = vld [vmem:[%s9 + $0x3a0] sm:$0xff]
    %v2648 = vld [vmem:[%s9 + $0x3a8] sm:$0xff]
    %v2649 = vld [vmem:[%s9 + $0x3b0] sm:$0xff]
    %v2650 = vld [vmem:[%s9 + $0x3b8] sm:$0xff]
    %v2651 = vld [vmem:[%s9 + $0x3c0] sm:$0xff]
    %v2652 = vld [vmem:[%s9 + $0x3c8] sm:$0xff]
    %v2653 = vld [vmem:[%s9 + $0x3d0] sm:$0xff]
    %v2654 = vld [vmem:[%s9 + $0x3d8] sm:$0xff]
    %v2655 = vld [vmem:[%s9 + $0x3e0] sm:$0xff]
    %v2656 = vld [vmem:[%s9 + $0x3e8] sm:$0xff]
    %v2657 = vld [vmem:[%s9 + $0x3f0] sm:$0xff]
    %v2658 = vld [vmem:[%s9 + $0x3f8] sm:$0xff]
    %v2659 = vld [vmem:[%s9 + $0x400] sm:$0xff]
    %v2660 = vld [vmem:[%s9 + $0x408] sm:$0xff]
    %v2661 = vld [vmem:[%s9 + $0x410] sm:$0xff]
    %v2662 = vld [vmem:[%s9 + $0x418] sm:$0xff]
    %v2663 = vld [vmem:[%s9 + $0x420] sm:$0xff]
    %v2664 = vld [vmem:[%s9 + $0x428] sm:$0xff]
    %v2665 = vld [vmem:[%s9 + $0x430] sm:$0xff]
    %v2666 = vld [vmem:[%s9 + $0x438] sm:$0xff]
    %v2667 = vld [vmem:[%s9 + $0x440] sm:$0xff]
    %v2668 = vld [vmem:[%s9 + $0x448] sm:$0xff]
    %v2669 = vld [vmem:[%s9 + $0x450] sm:$0xff]
    %v2670 = vld [vmem:[%s9 + $0x458] sm:$0xff]
    %v2671 = vld [vmem:[%s9 + $0x460] sm:$0xff]
    %v2672 = vld [vmem:[%s9 + $0x468] sm:$0xff]
    %v2673 = vld [vmem:[%s9 + $0x470] sm:$0xff]
    %v2674 = vld [vmem:[%s9 + $0x478] sm:$0xff]
    %v2675 = vld [vmem:[%s9 + $0x480] sm:$0xff]
    %v2676 = vld [vmem:[%s9 + $0x488] sm:$0xff]
    %v2677 = vld [vmem:[%s9 + $0x490] sm:$0xff]
    %v2678 = vld [vmem:[%s9 + $0x498] sm:$0xff]
    %v2679 = vld [vmem:[%s9 + $0x4a0] sm:$0xff]
    %v2680 = vld [vmem:[%s9 + $0x4a8] sm:$0xff]
    %v2681 = vld [vmem:[%s9 + $0x4b0] sm:$0xff]
    %v2682 = vld [vmem:[%s9 + $0x4b8] sm:$0xff]
    %v2683 = vld [vmem:[%s9 + $0x4c0] sm:$0xff]
    %v2684 = vld [vmem:[%s9 + $0x4c8] sm:$0xff]
    %v2685 = vld [vmem:[%s9 + $0x4d0] sm:$0xff]
    %v2686 = vld [vmem:[%s9 + $0x4d8] sm:$0xff]
    %v2687 = vld [vmem:[%s9 + $0x4e0] sm:$0xff]
    %v2688 = vld [vmem:[%s9 + $0x4e8] sm:$0xff]
    %v2689 = vld [vmem:[%s9 + $0x4f0] sm:$0xff]
    %v2690 = vld [vmem:[%s9 + $0x4f8] sm:$0xff]
    %v2691 = vld [vmem:[%s9 + $0x500] sm:$0xff]
    %v2692 = vld [vmem:[%s9 + $0x508] sm:$0xff]
    %v2693 = vld [vmem:[%s9 + $0x510] sm:$0xff]
    %v2694 = vld [vmem:[%s9 + $0x518] sm:$0xff]
    %v2695 = vld [vmem:[%s9 + $0x520] sm:$0xff]
    %v2696 = vld [vmem:[%s9 + $0x528] sm:$0xff]
    %v2697 = vld [vmem:[%s9 + $0x530] sm:$0xff]
    %v2698 = vld [vmem:[%s9 + $0x538] sm:$0xff]
    %v2699 = vld [vmem:[%s9 + $0x540] sm:$0xff]
    %v2700 = vld [vmem:[%s9 + $0x548] sm:$0xff]
    %v2701 = vld [vmem:[%s9 + $0x550] sm:$0xff]
    %v2702 = vld [vmem:[%s9 + $0x558] sm:$0xff]
    %v2703 = vld [vmem:[%s9 + $0x560] sm:$0xff]
    %v2704 = vld [vmem:[%s9 + $0x568] sm:$0xff]
    %v2705 = vld [vmem:[%s9 + $0x570] sm:$0xff]
    %v2706 = vld [vmem:[%s9 + $0x578] sm:$0xff]
    %v2707 = vld [vmem:[%s9 + $0x580] sm:$0xff]
    %v2708 = vld [vmem:[%s9 + $0x588] sm:$0xff]
    %v2709 = vld [vmem:[%s9 + $0x590] sm:$0xff]
    %v2710 = vld [vmem:[%s9 + $0x598] sm:$0xff]
    %v2711 = vld [vmem:[%s9 + $0x5a0] sm:$0xff]
    %v2712 = vld [vmem:[%s9 + $0x5a8] sm:$0xff]
    %v2713 = vld [vmem:[%s9 + $0x5b0] sm:$0xff]
    %v2714 = vld [vmem:[%s9 + $0x5b8] sm:$0xff]
    %v2715 = vld [vmem:[%s9 + $0x5c0] sm:$0xff]
    %v2716 = vld [vmem:[%s9 + $0x5c8] sm:$0xff]
    %v2717 = vld [vmem:[%s9 + $0x5d0] sm:$0xff]
    %v2718 = vld [vmem:[%s9 + $0x5d8] sm:$0xff]
    %v2719 = vld [vmem:[%s9 + $0x5e0] sm:$0xff]
    %v2720 = vld [vmem:[%s9 + $0x5e8] sm:$0xff]
    %v2721 = vld [vmem:[%s9 + $0x5f0] sm:$0xff]
    %v2722 = vld [vmem:[%s9 + $0x5f8] sm:$0xff]
    %v2723 = vld [vmem:[%s9 + $0x600] sm:$0xff]
    %v2724 = vld [vmem:[%s9 + $0x608] sm:$0xff]
    %v2725 = vld [vmem:[%s9 + $0x610] sm:$0xff]
    %v2726 = vld [vmem:[%s9 + $0x618] sm:$0xff]
    %v2727 = vld [vmem:[%s9 + $0x620] sm:$0xff]
    %v2728 = vld [vmem:[%s9 + $0x628] sm:$0xff]
    %v2729 = vld [vmem:[%s9 + $0x630] sm:$0xff]
    %v2730 = vld [vmem:[%s9 + $0x638] sm:$0xff]
    %v2731 = vld [vmem:[%s9 + $0x640] sm:$0xff]
    %v2732 = vld [vmem:[%s9 + $0x648] sm:$0xff]
    %v2733 = vld [vmem:[%s9 + $0x650] sm:$0xff]
    %v2734 = vld [vmem:[%s9 + $0x658] sm:$0xff]
    %v2735 = vld [vmem:[%s9 + $0x660] sm:$0xff]
    %v2736 = vld [vmem:[%s9 + $0x668] sm:$0xff]
    %v2737 = vld [vmem:[%s9 + $0x670] sm:$0xff]
    %v2738 = vld [vmem:[%s9 + $0x678] sm:$0xff]
    %v2739 = vld [vmem:[%s9 + $0x680] sm:$0xff]
    %v2740 = vld [vmem:[%s9 + $0x688] sm:$0xff]
    %v2741 = vld [vmem:[%s9 + $0x690] sm:$0xff]
    %v2742 = vld [vmem:[%s9 + $0x698] sm:$0xff]
    %v2743 = vld [vmem:[%s9 + $0x6a0] sm:$0xff]
    %v2744 = vld [vmem:[%s9 + $0x6a8] sm:$0xff]
    %v2745 = vld [vmem:[%s9 + $0x6b0] sm:$0xff]
    %v2746 = vld [vmem:[%s9 + $0x6b8] sm:$0xff]
    %v2747 = vld [vmem:[%s9 + $0x6c0] sm:$0xff]
    %v2748 = vld [vmem:[%s9 + $0x6c8] sm:$0xff]
    %v2749 = vld [vmem:[%s9 + $0x6d0] sm:$0xff]
    %v2750 = vld [vmem:[%s9 + $0x6d8] sm:$0xff]
    %v2751 = vld [vmem:[%s9 + $0x6e0] sm:$0xff]
    %v2752 = vld [vmem:[%s9 + $0x6e8] sm:$0xff]
    %v2753 = vld [vmem:[%s9 + $0x6f0] sm:$0xff]
    %v2754 = vld [vmem:[%s9 + $0x6f8] sm:$0xff]
    %v2755 = vld [vmem:[%s9 + $0x700] sm:$0xff]
    %v2756 = vld [vmem:[%s9 + $0x708] sm:$0xff]
    %v2757 = vld [vmem:[%s9 + $0x710] sm:$0xff]
    %v2758 = vld [vmem:[%s9 + $0x718] sm:$0xff]
    %v2759 = vld [vmem:[%s9 + $0x720] sm:$0xff]
    %v2760 = vld [vmem:[%s9 + $0x728] sm:$0xff]
    %v2761 = vld [vmem:[%s9 + $0x730] sm:$0xff]
    %v2762 = vld [vmem:[%s9 + $0x738] sm:$0xff]
    %v2763 = vld [vmem:[%s9 + $0x740] sm:$0xff]
    %v2764 = vld [vmem:[%s9 + $0x748] sm:$0xff]
    %v2765 = vld [vmem:[%s9 + $0x750] sm:$0xff]
    %v2766 = vld [vmem:[%s9 + $0x758] sm:$0xff]
    %v2767 = vld [vmem:[%s9 + $0x760] sm:$0xff]
    %v2768 = vld [vmem:[%s9 + $0x768] sm:$0xff]
    %v2769 = vld [vmem:[%s9 + $0x770] sm:$0xff]
    %v2770 = vld [vmem:[%s9 + $0x778] sm:$0xff]
    %v2771 = vld [vmem:[%s9 + $0x780] sm:$0xff]
    %v2772 = vld [vmem:[%s9 + $0x788] sm:$0xff]
    %v2773 = vld [vmem:[%s9 + $0x790] sm:$0xff]
    %v2774 = vld [vmem:[%s9 + $0x798] sm:$0xff]
    %v2775 = vld [vmem:[%s9 + $0x7a0] sm:$0xff]
    %v2776 = vld [vmem:[%s9 + $0x7a8] sm:$0xff]
    %v2777 = vld [vmem:[%s9 + $0x7b0] sm:$0xff]
    %v2778 = vld [vmem:[%s9 + $0x7b8] sm:$0xff]
    %v2779 = vld [vmem:[%s9 + $0x7c0] sm:$0xff]
    %v2780 = vld [vmem:[%s9 + $0x7c8] sm:$0xff]
    %v2781 = vld [vmem:[%s9 + $0x7d0] sm:$0xff]
    %v2782 = vld [vmem:[%s9 + $0x7d8] sm:$0xff]
    %v2783 = vld [vmem:[%s9 + $0x7e0] sm:$0xff]
    %v2784 = vld [vmem:[%s9 + $0x7e8] sm:$0xff]
    %v2785 = vld [vmem:[%s9 + $0x7f0] sm:$0xff]
    %v2786 = vld [vmem:[%s9 + $0x7f8] sm:$0xff]
    %v2787 = vld [vmem:[%s9 + $0x800] sm:$0xff]
    %v2788 = vld [vmem:[%s9 + $0x808] sm:$0xff]
    %v2789 = vld [vmem:[%s9 + $0x810] sm:$0xff]
    %v2790 = vld [vmem:[%s9 + $0x818] sm:$0xff]
    %v2791 = vld [vmem:[%s9 + $0x820] sm:$0xff]
    %v2792 = vld [vmem:[%s9 + $0x828] sm:$0xff]
    %v2793 = vld [vmem:[%s9 + $0x830] sm:$0xff]
    %v2794 = vld [vmem:[%s9 + $0x838] sm:$0xff]
    %v2795 = vld [vmem:[%s9 + $0x840] sm:$0xff]
    %v2796 = vld [vmem:[%s9 + $0x848] sm:$0xff]
    %v2797 = vld [vmem:[%s9 + $0x850] sm:$0xff]
    %v2798 = vld [vmem:[%s9 + $0x858] sm:$0xff]
    %v2799 = vld [vmem:[%s9 + $0x860] sm:$0xff]
    %v2800 = vld [vmem:[%s9 + $0x868] sm:$0xff]
    %v2801 = vld [vmem:[%s9 + $0x870] sm:$0xff]
    %v2802 = vld [vmem:[%s9 + $0x878] sm:$0xff]
    %v2803 = vld [vmem:[%s9 + $0x880] sm:$0xff]
    %v2804 = vld [vmem:[%s9 + $0x888] sm:$0xff]
    %v2805 = vld [vmem:[%s9 + $0x890] sm:$0xff]
    %v2806 = vld [vmem:[%s9 + $0x898] sm:$0xff]
    %v2807 = vld [vmem:[%s9 + $0x8a0] sm:$0xff]
    %v2808 = vld [vmem:[%s9 + $0x8a8] sm:$0xff]
    %v2809 = vld [vmem:[%s9 + $0x8b0] sm:$0xff]
    %v2810 = vld [vmem:[%s9 + $0x8b8] sm:$0xff]
    %v2811 = vld [vmem:[%s9 + $0x8c0] sm:$0xff]
    %v2812 = vld [vmem:[%s9 + $0x8c8] sm:$0xff]
    %v2813 = vld [vmem:[%s9 + $0x8d0] sm:$0xff]
    %v2814 = vld [vmem:[%s9 + $0x8d8] sm:$0xff]
    %v2815 = vld [vmem:[%s9 + $0x8e0] sm:$0xff]
    %v2816 = vld [vmem:[%s9 + $0x8e8] sm:$0xff]
    %v2817 = vld [vmem:[%s9 + $0x8f0] sm:$0xff]
    %v2818 = vld [vmem:[%s9 + $0x8f8] sm:$0xff]
    %v2819 = vld [vmem:[%s9 + $0x900] sm:$0xff]
    %v2820 = vld [vmem:[%s9 + $0x908] sm:$0xff]
    %v2821 = vld [vmem:[%s9 + $0x910] sm:$0xff]
    %v2822 = vld [vmem:[%s9 + $0x918] sm:$0xff]
    %v2823 = vld [vmem:[%s9 + $0x920] sm:$0xff]
    %v2824 = vld [vmem:[%s9 + $0x928] sm:$0xff]
    %v2825 = vld [vmem:[%s9 + $0x930] sm:$0xff]
    %v2826 = vld [vmem:[%s9 + $0x938] sm:$0xff]
    %v2827 = vld [vmem:[%s9 + $0x940] sm:$0xff]
    %v2828 = vld [vmem:[%s9 + $0x948] sm:$0xff]
    %v2829 = vld [vmem:[%s9 + $0x950] sm:$0xff]
    %v2830 = vld [vmem:[%s9 + $0x958] sm:$0xff]
    %v2831 = vld [vmem:[%s9 + $0x960] sm:$0xff]
    %v2832 = vld [vmem:[%s9 + $0x968] sm:$0xff]
    %v2833 = vld [vmem:[%s9 + $0x970] sm:$0xff]
    %v2834 = vld [vmem:[%s9 + $0x978] sm:$0xff]
    %v2835 = vld [vmem:[%s9 + $0x980] sm:$0xff]
    %v2836 = vld [vmem:[%s9 + $0x988] sm:$0xff]
    %v2837 = vld [vmem:[%s9 + $0x990] sm:$0xff]
    %v2838 = vld [vmem:[%s9 + $0x998] sm:$0xff]
    %v2839 = vld [vmem:[%s9 + $0x9a0] sm:$0xff]
    %v2840 = vld [vmem:[%s9 + $0x9a8] sm:$0xff]
    %v2841 = vld [vmem:[%s9 + $0x9b0] sm:$0xff]
    %v2842 = vld [vmem:[%s9 + $0x9b8] sm:$0xff]
    %v2843 = vld [vmem:[%s9 + $0x9c0] sm:$0xff]
    %v2844 = vld [vmem:[%s9 + $0x9c8] sm:$0xff]
    %v2845 = vld [vmem:[%s9 + $0x9d0] sm:$0xff]
    %v2846 = vld [vmem:[%s9 + $0x9d8] sm:$0xff]
    %v2847 = vld [vmem:[%s9 + $0x9e0] sm:$0xff]
    %v2848 = vld [vmem:[%s9 + $0x9e8] sm:$0xff]
    %v2849 = vld [vmem:[%s9 + $0x9f0] sm:$0xff]
    %v2850 = vld [vmem:[%s9 + $0x9f8] sm:$0xff]
    %v2851 = vld [vmem:[%s10] sm:$0xf]
    %v2853 = vperm.slane %v2851, 0
    %v2854 = vperm.slane %v2851, 1
    %v2855 = vperm.slane %v2851, 2
    %v2856 = vperm.slane %v2851, 3
    %v3181 = vunpack.c.l.b16 %v2531
    %v3182 = vunpack.c.h.b16 %v2531
    %v3183 = vunpack.c.l.b16 %v2532
    %v3184 = vunpack.c.h.b16 %v2532
    %v3185 = vunpack.c.l.b16 %v2533
    %v3186 = vunpack.c.h.b16 %v2533
    %v3187 = vunpack.c.l.b16 %v2534
    %v3188 = vunpack.c.h.b16 %v2534
    %v3189 = vunpack.c.l.b16 %v2535
    %v3190 = vunpack.c.h.b16 %v2535
    %v3191 = vunpack.c.l.b16 %v2536
    %v3192 = vunpack.c.h.b16 %v2536
    %v3193 = vunpack.c.l.b16 %v2537
    %v3194 = vunpack.c.h.b16 %v2537
    %v3195 = vunpack.c.l.b16 %v2538
    %v3196 = vunpack.c.h.b16 %v2538
    %v3197 = vunpack.c.l.b16 %v2539
    %v3198 = vunpack.c.h.b16 %v2539
    %v3199 = vunpack.c.l.b16 %v2540
    %v3200 = vunpack.c.h.b16 %v2540
    %v3201 = vunpack.c.l.b16 %v2541
    %v3202 = vunpack.c.h.b16 %v2541
    %v3203 = vunpack.c.l.b16 %v2542
    %v3204 = vunpack.c.h.b16 %v2542
    %v3205 = vunpack.c.l.b16 %v2543
    %v3206 = vunpack.c.h.b16 %v2543
    %v3207 = vunpack.c.l.b16 %v2544
    %v3208 = vunpack.c.h.b16 %v2544
    %v3209 = vunpack.c.l.b16 %v2545
    %v3210 = vunpack.c.h.b16 %v2545
    %v3211 = vunpack.c.l.b16 %v2546
    %v3212 = vunpack.c.h.b16 %v2546
    %v3213 = vunpack.c.l.b16 %v2547
    %v3214 = vunpack.c.h.b16 %v2547
    %v3215 = vunpack.c.l.b16 %v2548
    %v3216 = vunpack.c.h.b16 %v2548
    %v3217 = vunpack.c.l.b16 %v2549
    %v3218 = vunpack.c.h.b16 %v2549
    %v3219 = vunpack.c.l.b16 %v2550
    %v3220 = vunpack.c.h.b16 %v2550
    %v3221 = vunpack.c.l.b16 %v2551
    %v3222 = vunpack.c.h.b16 %v2551
    %v3223 = vunpack.c.l.b16 %v2552
    %v3224 = vunpack.c.h.b16 %v2552
    %v3225 = vunpack.c.l.b16 %v2553
    %v3226 = vunpack.c.h.b16 %v2553
    %v3227 = vunpack.c.l.b16 %v2554
    %v3228 = vunpack.c.h.b16 %v2554
    %v3229 = vunpack.c.l.b16 %v2555
    %v3230 = vunpack.c.h.b16 %v2555
    %v3231 = vunpack.c.l.b16 %v2556
    %v3232 = vunpack.c.h.b16 %v2556
    %v3233 = vunpack.c.l.b16 %v2557
    %v3234 = vunpack.c.h.b16 %v2557
    %v3235 = vunpack.c.l.b16 %v2558
    %v3236 = vunpack.c.h.b16 %v2558
    %v3237 = vunpack.c.l.b16 %v2559
    %v3238 = vunpack.c.h.b16 %v2559
    %v3239 = vunpack.c.l.b16 %v2560
    %v3240 = vunpack.c.h.b16 %v2560
    %v3241 = vunpack.c.l.b16 %v2561
    %v3242 = vunpack.c.h.b16 %v2561
    %v3243 = vunpack.c.l.b16 %v2562
    %v3244 = vunpack.c.h.b16 %v2562
    %v3245 = vunpack.c.l.b16 %v2563
    %v3246 = vunpack.c.h.b16 %v2563
    %v3247 = vunpack.c.l.b16 %v2564
    %v3248 = vunpack.c.h.b16 %v2564
    %v3249 = vunpack.c.l.b16 %v2565
    %v3250 = vunpack.c.h.b16 %v2565
    %v3251 = vunpack.c.l.b16 %v2566
    %v3252 = vunpack.c.h.b16 %v2566
    %v3253 = vunpack.c.l.b16 %v2567
    %v3254 = vunpack.c.h.b16 %v2567
    %v3255 = vunpack.c.l.b16 %v2568
    %v3256 = vunpack.c.h.b16 %v2568
    %v3257 = vunpack.c.l.b16 %v2569
    %v3258 = vunpack.c.h.b16 %v2569
    %v3259 = vunpack.c.l.b16 %v2570
    %v3260 = vunpack.c.h.b16 %v2570
    %v3261 = vunpack.c.l.b16 %v2571
    %v3262 = vunpack.c.h.b16 %v2571
    %v3263 = vunpack.c.l.b16 %v2572
    %v3264 = vunpack.c.h.b16 %v2572
    %v3265 = vunpack.c.l.b16 %v2573
    %v3266 = vunpack.c.h.b16 %v2573
    %v3267 = vunpack.c.l.b16 %v2574
    %v3268 = vunpack.c.h.b16 %v2574
    %v3269 = vunpack.c.l.b16 %v2575
    %v3270 = vunpack.c.h.b16 %v2575
    %v3271 = vunpack.c.l.b16 %v2576
    %v3272 = vunpack.c.h.b16 %v2576
    %v3273 = vunpack.c.l.b16 %v2577
    %v3274 = vunpack.c.h.b16 %v2577
    %v3275 = vunpack.c.l.b16 %v2578
    %v3276 = vunpack.c.h.b16 %v2578
    %v3277 = vunpack.c.l.b16 %v2579
    %v3278 = vunpack.c.h.b16 %v2579
    %v3279 = vunpack.c.l.b16 %v2580
    %v3280 = vunpack.c.h.b16 %v2580
    %v3281 = vunpack.c.l.b16 %v2581
    %v3282 = vunpack.c.h.b16 %v2581
    %v3283 = vunpack.c.l.b16 %v2582
    %v3284 = vunpack.c.h.b16 %v2582
    %v3285 = vunpack.c.l.b16 %v2583
    %v3286 = vunpack.c.h.b16 %v2583
    %v3287 = vunpack.c.l.b16 %v2584
    %v3288 = vunpack.c.h.b16 %v2584
    %v3289 = vunpack.c.l.b16 %v2585
    %v3290 = vunpack.c.h.b16 %v2585
    %v3291 = vunpack.c.l.b16 %v2586
    %v3292 = vunpack.c.h.b16 %v2586
    %v3293 = vunpack.c.l.b16 %v2587
    %v3294 = vunpack.c.h.b16 %v2587
    %v3295 = vunpack.c.l.b16 %v2588
    %v3296 = vunpack.c.h.b16 %v2588
    %v3297 = vunpack.c.l.b16 %v2589
    %v3298 = vunpack.c.h.b16 %v2589
    %v3299 = vunpack.c.l.b16 %v2590
    %v3300 = vunpack.c.h.b16 %v2590
    %v3301 = vunpack.c.l.b16 %v2591
    %v3302 = vunpack.c.h.b16 %v2591
    %v3303 = vunpack.c.l.b16 %v2592
    %v3304 = vunpack.c.h.b16 %v2592
    %v3305 = vunpack.c.l.b16 %v2593
    %v3306 = vunpack.c.h.b16 %v2593
    %v3307 = vunpack.c.l.b16 %v2594
    %v3308 = vunpack.c.h.b16 %v2594
    %v3309 = vunpack.c.l.b16 %v2595
    %v3310 = vunpack.c.h.b16 %v2595
    %v3311 = vunpack.c.l.b16 %v2596
    %v3312 = vunpack.c.h.b16 %v2596
    %v3313 = vunpack.c.l.b16 %v2597
    %v3314 = vunpack.c.h.b16 %v2597
    %v3315 = vunpack.c.l.b16 %v2598
    %v3316 = vunpack.c.h.b16 %v2598
    %v3317 = vunpack.c.l.b16 %v2599
    %v3318 = vunpack.c.h.b16 %v2599
    %v3319 = vunpack.c.l.b16 %v2600
    %v3320 = vunpack.c.h.b16 %v2600
    %v3321 = vunpack.c.l.b16 %v2601
    %v3322 = vunpack.c.h.b16 %v2601
    %v3323 = vunpack.c.l.b16 %v2602
    %v3324 = vunpack.c.h.b16 %v2602
    %v3325 = vunpack.c.l.b16 %v2603
    %v3326 = vunpack.c.h.b16 %v2603
    %v3327 = vunpack.c.l.b16 %v2604
    %v3328 = vunpack.c.h.b16 %v2604
    %v3329 = vunpack.c.l.b16 %v2605
    %v3330 = vunpack.c.h.b16 %v2605
    %v3331 = vunpack.c.l.b16 %v2606
    %v3332 = vunpack.c.h.b16 %v2606
    %v3333 = vunpack.c.l.b16 %v2607
    %v3334 = vunpack.c.h.b16 %v2607
    %v3335 = vunpack.c.l.b16 %v2608
    %v3336 = vunpack.c.h.b16 %v2608
    %v3337 = vunpack.c.l.b16 %v2609
    %v3338 = vunpack.c.h.b16 %v2609
    %v3339 = vunpack.c.l.b16 %v2610
    %v3340 = vunpack.c.h.b16 %v2610
    %v3341 = vunpack.c.l.b16 %v2611
    %v3342 = vunpack.c.h.b16 %v2611
    %v3343 = vunpack.c.l.b16 %v2612
    %v3344 = vunpack.c.h.b16 %v2612
    %v3345 = vunpack.c.l.b16 %v2613
    %v3346 = vunpack.c.h.b16 %v2613
    %v3347 = vunpack.c.l.b16 %v2614
    %v3348 = vunpack.c.h.b16 %v2614
    %v3349 = vunpack.c.l.b16 %v2615
    %v3350 = vunpack.c.h.b16 %v2615
    %v3351 = vunpack.c.l.b16 %v2616
    %v3352 = vunpack.c.h.b16 %v2616
    %v3353 = vunpack.c.l.b16 %v2617
    %v3354 = vunpack.c.h.b16 %v2617
    %v3355 = vunpack.c.l.b16 %v2618
    %v3356 = vunpack.c.h.b16 %v2618
    %v3357 = vunpack.c.l.b16 %v2619
    %v3358 = vunpack.c.h.b16 %v2619
    %v3359 = vunpack.c.l.b16 %v2620
    %v3360 = vunpack.c.h.b16 %v2620
    %v3361 = vunpack.c.l.b16 %v2621
    %v3362 = vunpack.c.h.b16 %v2621
    %v3363 = vunpack.c.l.b16 %v2622
    %v3364 = vunpack.c.h.b16 %v2622
    %v3365 = vunpack.c.l.b16 %v2623
    %v3366 = vunpack.c.h.b16 %v2623
    %v3367 = vunpack.c.l.b16 %v2624
    %v3368 = vunpack.c.h.b16 %v2624
    %v3369 = vunpack.c.l.b16 %v2625
    %v3370 = vunpack.c.h.b16 %v2625
    %v3371 = vunpack.c.l.b16 %v2626
    %v3372 = vunpack.c.h.b16 %v2626
    %v3373 = vunpack.c.l.b16 %v2627
    %v3374 = vunpack.c.h.b16 %v2627
    %v3375 = vunpack.c.l.b16 %v2628
    %v3376 = vunpack.c.h.b16 %v2628
    %v3377 = vunpack.c.l.b16 %v2629
    %v3378 = vunpack.c.h.b16 %v2629
    %v3379 = vunpack.c.l.b16 %v2630
    %v3380 = vunpack.c.h.b16 %v2630
    %v3381 = vunpack.c.l.b16 %v2631
    %v3382 = vunpack.c.h.b16 %v2631
    %v3383 = vunpack.c.l.b16 %v2632
    %v3384 = vunpack.c.h.b16 %v2632
    %v3385 = vunpack.c.l.b16 %v2633
    %v3386 = vunpack.c.h.b16 %v2633
    %v3387 = vunpack.c.l.b16 %v2634
    %v3388 = vunpack.c.h.b16 %v2634
    %v3389 = vunpack.c.l.b16 %v2635
    %v3390 = vunpack.c.h.b16 %v2635
    %v3391 = vunpack.c.l.b16 %v2636
    %v3392 = vunpack.c.h.b16 %v2636
    %v3393 = vunpack.c.l.b16 %v2637
    %v3394 = vunpack.c.h.b16 %v2637
    %v3395 = vunpack.c.l.b16 %v2638
    %v3396 = vunpack.c.h.b16 %v2638
    %v3397 = vunpack.c.l.b16 %v2639
    %v3398 = vunpack.c.h.b16 %v2639
    %v3399 = vunpack.c.l.b16 %v2640
    %v3400 = vunpack.c.h.b16 %v2640
    %v3401 = vunpack.c.l.b16 %v2641
    %v3402 = vunpack.c.h.b16 %v2641
    %v3403 = vunpack.c.l.b16 %v2642
    %v3404 = vunpack.c.h.b16 %v2642
    %v3405 = vunpack.c.l.b16 %v2643
    %v3406 = vunpack.c.h.b16 %v2643
    %v3407 = vunpack.c.l.b16 %v2644
    %v3408 = vunpack.c.h.b16 %v2644
    %v3409 = vunpack.c.l.b16 %v2645
    %v3410 = vunpack.c.h.b16 %v2645
    %v3411 = vunpack.c.l.b16 %v2646
    %v3412 = vunpack.c.h.b16 %v2646
    %v3413 = vunpack.c.l.b16 %v2647
    %v3414 = vunpack.c.h.b16 %v2647
    %v3415 = vunpack.c.l.b16 %v2648
    %v3416 = vunpack.c.h.b16 %v2648
    %v3417 = vunpack.c.l.b16 %v2649
    %v3418 = vunpack.c.h.b16 %v2649
    %v3419 = vunpack.c.l.b16 %v2650
    %v3420 = vunpack.c.h.b16 %v2650
    %v3421 = vunpack.c.l.b16 %v2651
    %v3422 = vunpack.c.h.b16 %v2651
    %v3423 = vunpack.c.l.b16 %v2652
    %v3424 = vunpack.c.h.b16 %v2652
    %v3425 = vunpack.c.l.b16 %v2653
    %v3426 = vunpack.c.h.b16 %v2653
    %v3427 = vunpack.c.l.b16 %v2654
    %v3428 = vunpack.c.h.b16 %v2654
    %v3429 = vunpack.c.l.b16 %v2655
    %v3430 = vunpack.c.h.b16 %v2655
    %v3431 = vunpack.c.l.b16 %v2656
    %v3432 = vunpack.c.h.b16 %v2656
    %v3433 = vunpack.c.l.b16 %v2657
    %v3434 = vunpack.c.h.b16 %v2657
    %v3435 = vunpack.c.l.b16 %v2658
    %v3436 = vunpack.c.h.b16 %v2658
    %v3437 = vunpack.c.l.b16 %v2659
    %v3438 = vunpack.c.h.b16 %v2659
    %v3439 = vunpack.c.l.b16 %v2660
    %v3440 = vunpack.c.h.b16 %v2660
    %v3441 = vunpack.c.l.b16 %v2661
    %v3442 = vunpack.c.h.b16 %v2661
    %v3443 = vunpack.c.l.b16 %v2662
    %v3444 = vunpack.c.h.b16 %v2662
    %v3445 = vunpack.c.l.b16 %v2663
    %v3446 = vunpack.c.h.b16 %v2663
    %v3447 = vunpack.c.l.b16 %v2664
    %v3448 = vunpack.c.h.b16 %v2664
    %v3449 = vunpack.c.l.b16 %v2665
    %v3450 = vunpack.c.h.b16 %v2665
    %v3451 = vunpack.c.l.b16 %v2666
    %v3452 = vunpack.c.h.b16 %v2666
    %v3453 = vunpack.c.l.b16 %v2667
    %v3454 = vunpack.c.h.b16 %v2667
    %v3455 = vunpack.c.l.b16 %v2668
    %v3456 = vunpack.c.h.b16 %v2668
    %v3457 = vunpack.c.l.b16 %v2669
    %v3458 = vunpack.c.h.b16 %v2669
    %v3459 = vunpack.c.l.b16 %v2670
    %v3460 = vunpack.c.h.b16 %v2670
    %v3461 = vunpack.c.l.b16 %v2671
    %v3462 = vunpack.c.h.b16 %v2671
    %v3463 = vunpack.c.l.b16 %v2672
    %v3464 = vunpack.c.h.b16 %v2672
    %v3465 = vunpack.c.l.b16 %v2673
    %v3466 = vunpack.c.h.b16 %v2673
    %v3467 = vunpack.c.l.b16 %v2674
    %v3468 = vunpack.c.h.b16 %v2674
    %v3469 = vunpack.c.l.b16 %v2675
    %v3470 = vunpack.c.h.b16 %v2675
    %v3471 = vunpack.c.l.b16 %v2676
    %v3472 = vunpack.c.h.b16 %v2676
    %v3473 = vunpack.c.l.b16 %v2677
    %v3474 = vunpack.c.h.b16 %v2677
    %v3475 = vunpack.c.l.b16 %v2678
    %v3476 = vunpack.c.h.b16 %v2678
    %v3477 = vunpack.c.l.b16 %v2679
    %v3478 = vunpack.c.h.b16 %v2679
    %v3479 = vunpack.c.l.b16 %v2680
    %v3480 = vunpack.c.h.b16 %v2680
    %v3481 = vunpack.c.l.b16 %v2681
    %v3482 = vunpack.c.h.b16 %v2681
    %v3483 = vunpack.c.l.b16 %v2682
    %v3484 = vunpack.c.h.b16 %v2682
    %v3485 = vunpack.c.l.b16 %v2683
    %v3486 = vunpack.c.h.b16 %v2683
    %v3487 = vunpack.c.l.b16 %v2684
    %v3488 = vunpack.c.h.b16 %v2684
    %v3489 = vunpack.c.l.b16 %v2685
    %v3490 = vunpack.c.h.b16 %v2685
    %v3491 = vunpack.c.l.b16 %v2686
    %v3492 = vunpack.c.h.b16 %v2686
    %v3493 = vunpack.c.l.b16 %v2687
    %v3494 = vunpack.c.h.b16 %v2687
    %v3495 = vunpack.c.l.b16 %v2688
    %v3496 = vunpack.c.h.b16 %v2688
    %v3497 = vunpack.c.l.b16 %v2689
    %v3498 = vunpack.c.h.b16 %v2689
    %v3499 = vunpack.c.l.b16 %v2690
    %v3500 = vunpack.c.h.b16 %v2690
    %v3501 = vunpack.c.l.b16 %v2691
    %v3502 = vunpack.c.h.b16 %v2691
    %v3503 = vunpack.c.l.b16 %v2692
    %v3504 = vunpack.c.h.b16 %v2692
    %v3505 = vunpack.c.l.b16 %v2693
    %v3506 = vunpack.c.h.b16 %v2693
    %v3507 = vunpack.c.l.b16 %v2694
    %v3508 = vunpack.c.h.b16 %v2694
    %v3509 = vunpack.c.l.b16 %v2695
    %v3510 = vunpack.c.h.b16 %v2695
    %v3511 = vunpack.c.l.b16 %v2696
    %v3512 = vunpack.c.h.b16 %v2696
    %v3513 = vunpack.c.l.b16 %v2697
    %v3514 = vunpack.c.h.b16 %v2697
    %v3515 = vunpack.c.l.b16 %v2698
    %v3516 = vunpack.c.h.b16 %v2698
    %v3517 = vunpack.c.l.b16 %v2699
    %v3518 = vunpack.c.h.b16 %v2699
    %v3519 = vunpack.c.l.b16 %v2700
    %v3520 = vunpack.c.h.b16 %v2700
    %v3521 = vunpack.c.l.b16 %v2701
    %v3522 = vunpack.c.h.b16 %v2701
    %v3523 = vunpack.c.l.b16 %v2702
    %v3524 = vunpack.c.h.b16 %v2702
    %v3525 = vunpack.c.l.b16 %v2703
    %v3526 = vunpack.c.h.b16 %v2703
    %v3527 = vunpack.c.l.b16 %v2704
    %v3528 = vunpack.c.h.b16 %v2704
    %v3529 = vunpack.c.l.b16 %v2705
    %v3530 = vunpack.c.h.b16 %v2705
    %v3531 = vunpack.c.l.b16 %v2706
    %v3532 = vunpack.c.h.b16 %v2706
    %v3533 = vunpack.c.l.b16 %v2707
    %v3534 = vunpack.c.h.b16 %v2707
    %v3535 = vunpack.c.l.b16 %v2708
    %v3536 = vunpack.c.h.b16 %v2708
    %v3537 = vunpack.c.l.b16 %v2709
    %v3538 = vunpack.c.h.b16 %v2709
    %v3539 = vunpack.c.l.b16 %v2710
    %v3540 = vunpack.c.h.b16 %v2710
    %v3541 = vunpack.c.l.b16 %v2711
    %v3542 = vunpack.c.h.b16 %v2711
    %v3543 = vunpack.c.l.b16 %v2712
    %v3544 = vunpack.c.h.b16 %v2712
    %v3545 = vunpack.c.l.b16 %v2713
    %v3546 = vunpack.c.h.b16 %v2713
    %v3547 = vunpack.c.l.b16 %v2714
    %v3548 = vunpack.c.h.b16 %v2714
    %v3549 = vunpack.c.l.b16 %v2715
    %v3550 = vunpack.c.h.b16 %v2715
    %v3551 = vunpack.c.l.b16 %v2716
    %v3552 = vunpack.c.h.b16 %v2716
    %v3553 = vunpack.c.l.b16 %v2717
    %v3554 = vunpack.c.h.b16 %v2717
    %v3555 = vunpack.c.l.b16 %v2718
    %v3556 = vunpack.c.h.b16 %v2718
    %v3557 = vunpack.c.l.b16 %v2719
    %v3558 = vunpack.c.h.b16 %v2719
    %v3559 = vunpack.c.l.b16 %v2720
    %v3560 = vunpack.c.h.b16 %v2720
    %v3561 = vunpack.c.l.b16 %v2721
    %v3562 = vunpack.c.h.b16 %v2721
    %v3563 = vunpack.c.l.b16 %v2722
    %v3564 = vunpack.c.h.b16 %v2722
    %v3565 = vunpack.c.l.b16 %v2723
    %v3566 = vunpack.c.h.b16 %v2723
    %v3567 = vunpack.c.l.b16 %v2724
    %v3568 = vunpack.c.h.b16 %v2724
    %v3569 = vunpack.c.l.b16 %v2725
    %v3570 = vunpack.c.h.b16 %v2725
    %v3571 = vunpack.c.l.b16 %v2726
    %v3572 = vunpack.c.h.b16 %v2726
    %v3573 = vunpack.c.l.b16 %v2727
    %v3574 = vunpack.c.h.b16 %v2727
    %v3575 = vunpack.c.l.b16 %v2728
    %v3576 = vunpack.c.h.b16 %v2728
    %v3577 = vunpack.c.l.b16 %v2729
    %v3578 = vunpack.c.h.b16 %v2729
    %v3579 = vunpack.c.l.b16 %v2730
    %v3580 = vunpack.c.h.b16 %v2730
    %v3581 = vunpack.c.l.b16 %v2731
    %v3582 = vunpack.c.h.b16 %v2731
    %v3583 = vunpack.c.l.b16 %v2732
    %v3584 = vunpack.c.h.b16 %v2732
    %v3585 = vunpack.c.l.b16 %v2733
    %v3586 = vunpack.c.h.b16 %v2733
    %v3587 = vunpack.c.l.b16 %v2734
    %v3588 = vunpack.c.h.b16 %v2734
    %v3589 = vunpack.c.l.b16 %v2735
    %v3590 = vunpack.c.h.b16 %v2735
    %v3591 = vunpack.c.l.b16 %v2736
    %v3592 = vunpack.c.h.b16 %v2736
    %v3593 = vunpack.c.l.b16 %v2737
    %v3594 = vunpack.c.h.b16 %v2737
    %v3595 = vunpack.c.l.b16 %v2738
    %v3596 = vunpack.c.h.b16 %v2738
    %v3597 = vunpack.c.l.b16 %v2739
    %v3598 = vunpack.c.h.b16 %v2739
    %v3599 = vunpack.c.l.b16 %v2740
    %v3600 = vunpack.c.h.b16 %v2740
    %v3601 = vunpack.c.l.b16 %v2741
    %v3602 = vunpack.c.h.b16 %v2741
    %v3603 = vunpack.c.l.b16 %v2742
    %v3604 = vunpack.c.h.b16 %v2742
    %v3605 = vunpack.c.l.b16 %v2743
    %v3606 = vunpack.c.h.b16 %v2743
    %v3607 = vunpack.c.l.b16 %v2744
    %v3608 = vunpack.c.h.b16 %v2744
    %v3609 = vunpack.c.l.b16 %v2745
    %v3610 = vunpack.c.h.b16 %v2745
    %v3611 = vunpack.c.l.b16 %v2746
    %v3612 = vunpack.c.h.b16 %v2746
    %v3613 = vunpack.c.l.b16 %v2747
    %v3614 = vunpack.c.h.b16 %v2747
    %v3615 = vunpack.c.l.b16 %v2748
    %v3616 = vunpack.c.h.b16 %v2748
    %v3617 = vunpack.c.l.b16 %v2749
    %v3618 = vunpack.c.h.b16 %v2749
    %v3619 = vunpack.c.l.b16 %v2750
    %v3620 = vunpack.c.h.b16 %v2750
    %v3621 = vunpack.c.l.b16 %v2751
    %v3622 = vunpack.c.h.b16 %v2751
    %v3623 = vunpack.c.l.b16 %v2752
    %v3624 = vunpack.c.h.b16 %v2752
    %v3625 = vunpack.c.l.b16 %v2753
    %v3626 = vunpack.c.h.b16 %v2753
    %v3627 = vunpack.c.l.b16 %v2754
    %v3628 = vunpack.c.h.b16 %v2754
    %v3629 = vunpack.c.l.b16 %v2755
    %v3630 = vunpack.c.h.b16 %v2755
    %v3631 = vunpack.c.l.b16 %v2756
    %v3632 = vunpack.c.h.b16 %v2756
    %v3633 = vunpack.c.l.b16 %v2757
    %v3634 = vunpack.c.h.b16 %v2757
    %v3635 = vunpack.c.l.b16 %v2758
    %v3636 = vunpack.c.h.b16 %v2758
    %v3637 = vunpack.c.l.b16 %v2759
    %v3638 = vunpack.c.h.b16 %v2759
    %v3639 = vunpack.c.l.b16 %v2760
    %v3640 = vunpack.c.h.b16 %v2760
    %v3641 = vunpack.c.l.b16 %v2761
    %v3642 = vunpack.c.h.b16 %v2761
    %v3643 = vunpack.c.l.b16 %v2762
    %v3644 = vunpack.c.h.b16 %v2762
    %v3645 = vunpack.c.l.b16 %v2763
    %v3646 = vunpack.c.h.b16 %v2763
    %v3647 = vunpack.c.l.b16 %v2764
    %v3648 = vunpack.c.h.b16 %v2764
    %v3649 = vunpack.c.l.b16 %v2765
    %v3650 = vunpack.c.h.b16 %v2765
    %v3651 = vunpack.c.l.b16 %v2766
    %v3652 = vunpack.c.h.b16 %v2766
    %v3653 = vunpack.c.l.b16 %v2767
    %v3654 = vunpack.c.h.b16 %v2767
    %v3655 = vunpack.c.l.b16 %v2768
    %v3656 = vunpack.c.h.b16 %v2768
    %v3657 = vunpack.c.l.b16 %v2769
    %v3658 = vunpack.c.h.b16 %v2769
    %v3659 = vunpack.c.l.b16 %v2770
    %v3660 = vunpack.c.h.b16 %v2770
    %v3661 = vunpack.c.l.b16 %v2771
    %v3662 = vunpack.c.h.b16 %v2771
    %v3663 = vunpack.c.l.b16 %v2772
    %v3664 = vunpack.c.h.b16 %v2772
    %v3665 = vunpack.c.l.b16 %v2773
    %v3666 = vunpack.c.h.b16 %v2773
    %v3667 = vunpack.c.l.b16 %v2774
    %v3668 = vunpack.c.h.b16 %v2774
    %v3669 = vunpack.c.l.b16 %v2775
    %v3670 = vunpack.c.h.b16 %v2775
    %v3671 = vunpack.c.l.b16 %v2776
    %v3672 = vunpack.c.h.b16 %v2776
    %v3673 = vunpack.c.l.b16 %v2777
    %v3674 = vunpack.c.h.b16 %v2777
    %v3675 = vunpack.c.l.b16 %v2778
    %v3676 = vunpack.c.h.b16 %v2778
    %v3677 = vunpack.c.l.b16 %v2779
    %v3678 = vunpack.c.h.b16 %v2779
    %v3679 = vunpack.c.l.b16 %v2780
    %v3680 = vunpack.c.h.b16 %v2780
    %v3681 = vunpack.c.l.b16 %v2781
    %v3682 = vunpack.c.h.b16 %v2781
    %v3683 = vunpack.c.l.b16 %v2782
    %v3684 = vunpack.c.h.b16 %v2782
    %v3685 = vunpack.c.l.b16 %v2783
    %v3686 = vunpack.c.h.b16 %v2783
    %v3687 = vunpack.c.l.b16 %v2784
    %v3688 = vunpack.c.h.b16 %v2784
    %v3689 = vunpack.c.l.b16 %v2785
    %v3690 = vunpack.c.h.b16 %v2785
    %v3691 = vunpack.c.l.b16 %v2786
    %v3692 = vunpack.c.h.b16 %v2786
    %v3693 = vunpack.c.l.b16 %v2787
    %v3694 = vunpack.c.h.b16 %v2787
    %v3695 = vunpack.c.l.b16 %v2788
    %v3696 = vunpack.c.h.b16 %v2788
    %v3697 = vunpack.c.l.b16 %v2789
    %v3698 = vunpack.c.h.b16 %v2789
    %v3699 = vunpack.c.l.b16 %v2790
    %v3700 = vunpack.c.h.b16 %v2790
    %v3701 = vunpack.c.l.b16 %v2791
    %v3702 = vunpack.c.h.b16 %v2791
    %v3703 = vunpack.c.l.b16 %v2792
    %v3704 = vunpack.c.h.b16 %v2792
    %v3705 = vunpack.c.l.b16 %v2793
    %v3706 = vunpack.c.h.b16 %v2793
    %v3707 = vunpack.c.l.b16 %v2794
    %v3708 = vunpack.c.h.b16 %v2794
    %v3709 = vunpack.c.l.b16 %v2795
    %v3710 = vunpack.c.h.b16 %v2795
    %v3711 = vunpack.c.l.b16 %v2796
    %v3712 = vunpack.c.h.b16 %v2796
    %v3713 = vunpack.c.l.b16 %v2797
    %v3714 = vunpack.c.h.b16 %v2797
    %v3715 = vunpack.c.l.b16 %v2798
    %v3716 = vunpack.c.h.b16 %v2798
    %v3717 = vunpack.c.l.b16 %v2799
    %v3718 = vunpack.c.h.b16 %v2799
    %v3719 = vunpack.c.l.b16 %v2800
    %v3720 = vunpack.c.h.b16 %v2800
    %v3721 = vunpack.c.l.b16 %v2801
    %v3722 = vunpack.c.h.b16 %v2801
    %v3723 = vunpack.c.l.b16 %v2802
    %v3724 = vunpack.c.h.b16 %v2802
    %v3725 = vunpack.c.l.b16 %v2803
    %v3726 = vunpack.c.h.b16 %v2803
    %v3727 = vunpack.c.l.b16 %v2804
    %v3728 = vunpack.c.h.b16 %v2804
    %v3729 = vunpack.c.l.b16 %v2805
    %v3730 = vunpack.c.h.b16 %v2805
    %v3731 = vunpack.c.l.b16 %v2806
    %v3732 = vunpack.c.h.b16 %v2806
    %v3733 = vunpack.c.l.b16 %v2807
    %v3734 = vunpack.c.h.b16 %v2807
    %v3735 = vunpack.c.l.b16 %v2808
    %v3736 = vunpack.c.h.b16 %v2808
    %v3737 = vunpack.c.l.b16 %v2809
    %v3738 = vunpack.c.h.b16 %v2809
    %v3739 = vunpack.c.l.b16 %v2810
    %v3740 = vunpack.c.h.b16 %v2810
    %v3741 = vunpack.c.l.b16 %v2811
    %v3742 = vunpack.c.h.b16 %v2811
    %v3743 = vunpack.c.l.b16 %v2812
    %v3744 = vunpack.c.h.b16 %v2812
    %v3745 = vunpack.c.l.b16 %v2813
    %v3746 = vunpack.c.h.b16 %v2813
    %v3747 = vunpack.c.l.b16 %v2814
    %v3748 = vunpack.c.h.b16 %v2814
    %v3749 = vunpack.c.l.b16 %v2815
    %v3750 = vunpack.c.h.b16 %v2815
    %v3751 = vunpack.c.l.b16 %v2816
    %v3752 = vunpack.c.h.b16 %v2816
    %v3753 = vunpack.c.l.b16 %v2817
    %v3754 = vunpack.c.h.b16 %v2817
    %v3755 = vunpack.c.l.b16 %v2818
    %v3756 = vunpack.c.h.b16 %v2818
    %v3757 = vunpack.c.l.b16 %v2819
    %v3758 = vunpack.c.h.b16 %v2819
    %v3759 = vunpack.c.l.b16 %v2820
    %v3760 = vunpack.c.h.b16 %v2820
    %v3761 = vunpack.c.l.b16 %v2821
    %v3762 = vunpack.c.h.b16 %v2821
    %v3763 = vunpack.c.l.b16 %v2822
    %v3764 = vunpack.c.h.b16 %v2822
    %v3765 = vunpack.c.l.b16 %v2823
    %v3766 = vunpack.c.h.b16 %v2823
    %v3767 = vunpack.c.l.b16 %v2824
    %v3768 = vunpack.c.h.b16 %v2824
    %v3769 = vunpack.c.l.b16 %v2825
    %v3770 = vunpack.c.h.b16 %v2825
    %v3771 = vunpack.c.l.b16 %v2826
    %v3772 = vunpack.c.h.b16 %v2826
    %v3773 = vunpack.c.l.b16 %v2827
    %v3774 = vunpack.c.h.b16 %v2827
    %v3775 = vunpack.c.l.b16 %v2828
    %v3776 = vunpack.c.h.b16 %v2828
    %v3777 = vunpack.c.l.b16 %v2829
    %v3778 = vunpack.c.h.b16 %v2829
    %v3779 = vunpack.c.l.b16 %v2830
    %v3780 = vunpack.c.h.b16 %v2830
    %v3781 = vunpack.c.l.b16 %v2831
    %v3782 = vunpack.c.h.b16 %v2831
    %v3783 = vunpack.c.l.b16 %v2832
    %v3784 = vunpack.c.h.b16 %v2832
    %v3785 = vunpack.c.l.b16 %v2833
    %v3786 = vunpack.c.h.b16 %v2833
    %v3787 = vunpack.c.l.b16 %v2834
    %v3788 = vunpack.c.h.b16 %v2834
    %v3789 = vunpack.c.l.b16 %v2835
    %v3790 = vunpack.c.h.b16 %v2835
    %v3791 = vunpack.c.l.b16 %v2836
    %v3792 = vunpack.c.h.b16 %v2836
    %v3793 = vunpack.c.l.b16 %v2837
    %v3794 = vunpack.c.h.b16 %v2837
    %v3795 = vunpack.c.l.b16 %v2838
    %v3796 = vunpack.c.h.b16 %v2838
    %v3797 = vunpack.c.l.b16 %v2839
    %v3798 = vunpack.c.h.b16 %v2839
    %v3799 = vunpack.c.l.b16 %v2840
    %v3800 = vunpack.c.h.b16 %v2840
    %v3801 = vunpack.c.l.b16 %v2841
    %v3802 = vunpack.c.h.b16 %v2841
    %v3803 = vunpack.c.l.b16 %v2842
    %v3804 = vunpack.c.h.b16 %v2842
    %v3805 = vunpack.c.l.b16 %v2843
    %v3806 = vunpack.c.h.b16 %v2843
    %v3807 = vunpack.c.l.b16 %v2844
    %v3808 = vunpack.c.h.b16 %v2844
    %v3809 = vunpack.c.l.b16 %v2845
    %v3810 = vunpack.c.h.b16 %v2845
    %v3811 = vunpack.c.l.b16 %v2846
    %v3812 = vunpack.c.h.b16 %v2846
    %v3813 = vunpack.c.l.b16 %v2847
    %v3814 = vunpack.c.h.b16 %v2847
    %v3815 = vunpack.c.l.b16 %v2848
    %v3816 = vunpack.c.h.b16 %v2848
    %v3817 = vunpack.c.l.b16 %v2849
    %v3818 = vunpack.c.h.b16 %v2849
    %v3819 = vunpack.c.l.b16 %v2850
    %v3820 = vunpack.c.h.b16 %v2850
    %v3821 = vpack.c.b16 %v3185, %v3181
    %v3822 = vpack.c.b16 %v3186, %v3182
    %v3823 = vpack.c.b16 %v3187, %v3183
    %v3824 = vpack.c.b16 %v3188, %v3184
    %v3825 = vpack.c.b16 %v3193, %v3189
    %v3826 = vpack.c.b16 %v3194, %v3190
    %v3827 = vpack.c.b16 %v3195, %v3191
    %v3828 = vpack.c.b16 %v3196, %v3192
    %v3829 = vpack.c.b16 %v3201, %v3197
    %v3830 = vpack.c.b16 %v3202, %v3198
    %v3831 = vpack.c.b16 %v3203, %v3199
    %v3832 = vpack.c.b16 %v3204, %v3200
    %v3833 = vpack.c.b16 %v3209, %v3205
    %v3834 = vpack.c.b16 %v3210, %v3206
    %v3835 = vpack.c.b16 %v3211, %v3207
    %v3836 = vpack.c.b16 %v3212, %v3208
    %v3837 = vpack.c.b16 %v3217, %v3213
    %v3838 = vpack.c.b16 %v3218, %v3214
    %v3839 = vpack.c.b16 %v3219, %v3215
    %v3840 = vpack.c.b16 %v3220, %v3216
    %v3841 = vpack.c.b16 %v3225, %v3221
    %v3842 = vpack.c.b16 %v3226, %v3222
    %v3843 = vpack.c.b16 %v3227, %v3223
    %v3844 = vpack.c.b16 %v3228, %v3224
    %v3845 = vpack.c.b16 %v3233, %v3229
    %v3846 = vpack.c.b16 %v3234, %v3230
    %v3847 = vpack.c.b16 %v3235, %v3231
    %v3848 = vpack.c.b16 %v3236, %v3232
    %v3849 = vpack.c.b16 %v3241, %v3237
    %v3850 = vpack.c.b16 %v3242, %v3238
    %v3851 = vpack.c.b16 %v3243, %v3239
    %v3852 = vpack.c.b16 %v3244, %v3240
    %v3853 = vpack.c.b16 %v3249, %v3245
    %v3854 = vpack.c.b16 %v3250, %v3246
    %v3855 = vpack.c.b16 %v3251, %v3247
    %v3856 = vpack.c.b16 %v3252, %v3248
    %v3857 = vpack.c.b16 %v3257, %v3253
    %v3858 = vpack.c.b16 %v3258, %v3254
    %v3859 = vpack.c.b16 %v3259, %v3255
    %v3860 = vpack.c.b16 %v3260, %v3256
    %v3861 = vpack.c.b16 %v3265, %v3261
    %v3862 = vpack.c.b16 %v3266, %v3262
    %v3863 = vpack.c.b16 %v3267, %v3263
    %v3864 = vpack.c.b16 %v3268, %v3264
    %v3865 = vpack.c.b16 %v3273, %v3269
    %v3866 = vpack.c.b16 %v3274, %v3270
    %v3867 = vpack.c.b16 %v3275, %v3271
    %v3868 = vpack.c.b16 %v3276, %v3272
    %v3869 = vpack.c.b16 %v3281, %v3277
    %v3870 = vpack.c.b16 %v3282, %v3278
    %v3871 = vpack.c.b16 %v3283, %v3279
    %v3872 = vpack.c.b16 %v3284, %v3280
    %v3873 = vpack.c.b16 %v3289, %v3285
    %v3874 = vpack.c.b16 %v3290, %v3286
    %v3875 = vpack.c.b16 %v3291, %v3287
    %v3876 = vpack.c.b16 %v3292, %v3288
    %v3877 = vpack.c.b16 %v3297, %v3293
    %v3878 = vpack.c.b16 %v3298, %v3294
    %v3879 = vpack.c.b16 %v3299, %v3295
    %v3880 = vpack.c.b16 %v3300, %v3296
    %v3881 = vpack.c.b16 %v3305, %v3301
    %v3882 = vpack.c.b16 %v3306, %v3302
    %v3883 = vpack.c.b16 %v3307, %v3303
    %v3884 = vpack.c.b16 %v3308, %v3304
    %v3885 = vpack.c.b16 %v3313, %v3309
    %v3886 = vpack.c.b16 %v3314, %v3310
    %v3887 = vpack.c.b16 %v3315, %v3311
    %v3888 = vpack.c.b16 %v3316, %v3312
    %v3889 = vpack.c.b16 %v3321, %v3317
    %v3890 = vpack.c.b16 %v3322, %v3318
    %v3891 = vpack.c.b16 %v3323, %v3319
    %v3892 = vpack.c.b16 %v3324, %v3320
    %v3893 = vpack.c.b16 %v3329, %v3325
    %v3894 = vpack.c.b16 %v3330, %v3326
    %v3895 = vpack.c.b16 %v3331, %v3327
    %v3896 = vpack.c.b16 %v3332, %v3328
    %v3897 = vpack.c.b16 %v3337, %v3333
    %v3898 = vpack.c.b16 %v3338, %v3334
    %v3899 = vpack.c.b16 %v3339, %v3335
    %v3900 = vpack.c.b16 %v3340, %v3336
    %v3901 = vpack.c.b16 %v3345, %v3341
    %v3902 = vpack.c.b16 %v3346, %v3342
    %v3903 = vpack.c.b16 %v3347, %v3343
    %v3904 = vpack.c.b16 %v3348, %v3344
    %v3905 = vpack.c.b16 %v3353, %v3349
    %v3906 = vpack.c.b16 %v3354, %v3350
    %v3907 = vpack.c.b16 %v3355, %v3351
    %v3908 = vpack.c.b16 %v3356, %v3352
    %v3909 = vpack.c.b16 %v3361, %v3357
    %v3910 = vpack.c.b16 %v3362, %v3358
    %v3911 = vpack.c.b16 %v3363, %v3359
    %v3912 = vpack.c.b16 %v3364, %v3360
    %v3913 = vpack.c.b16 %v3369, %v3365
    %v3914 = vpack.c.b16 %v3370, %v3366
    %v3915 = vpack.c.b16 %v3371, %v3367
    %v3916 = vpack.c.b16 %v3372, %v3368
    %v3917 = vpack.c.b16 %v3377, %v3373
    %v3918 = vpack.c.b16 %v3378, %v3374
    %v3919 = vpack.c.b16 %v3379, %v3375
    %v3920 = vpack.c.b16 %v3380, %v3376
    %v3921 = vpack.c.b16 %v3385, %v3381
    %v3922 = vpack.c.b16 %v3386, %v3382
    %v3923 = vpack.c.b16 %v3387, %v3383
    %v3924 = vpack.c.b16 %v3388, %v3384
    %v3925 = vpack.c.b16 %v3393, %v3389
    %v3926 = vpack.c.b16 %v3394, %v3390
    %v3927 = vpack.c.b16 %v3395, %v3391
    %v3928 = vpack.c.b16 %v3396, %v3392
    %v3929 = vpack.c.b16 %v3401, %v3397
    %v3930 = vpack.c.b16 %v3402, %v3398
    %v3931 = vpack.c.b16 %v3403, %v3399
    %v3932 = vpack.c.b16 %v3404, %v3400
    %v3933 = vpack.c.b16 %v3409, %v3405
    %v3934 = vpack.c.b16 %v3410, %v3406
    %v3935 = vpack.c.b16 %v3411, %v3407
    %v3936 = vpack.c.b16 %v3412, %v3408
    %v3937 = vpack.c.b16 %v3417, %v3413
    %v3938 = vpack.c.b16 %v3418, %v3414
    %v3939 = vpack.c.b16 %v3419, %v3415
    %v3940 = vpack.c.b16 %v3420, %v3416
    %v3941 = vpack.c.b16 %v3425, %v3421
    %v3942 = vpack.c.b16 %v3426, %v3422
    %v3943 = vpack.c.b16 %v3427, %v3423
    %v3944 = vpack.c.b16 %v3428, %v3424
    %v3945 = vpack.c.b16 %v3433, %v3429
    %v3946 = vpack.c.b16 %v3434, %v3430
    %v3947 = vpack.c.b16 %v3435, %v3431
    %v3948 = vpack.c.b16 %v3436, %v3432
    %v3949 = vpack.c.b16 %v3441, %v3437
    %v3950 = vpack.c.b16 %v3442, %v3438
    %v3951 = vpack.c.b16 %v3443, %v3439
    %v3952 = vpack.c.b16 %v3444, %v3440
    %v3953 = vpack.c.b16 %v3449, %v3445
    %v3954 = vpack.c.b16 %v3450, %v3446
    %v3955 = vpack.c.b16 %v3451, %v3447
    %v3956 = vpack.c.b16 %v3452, %v3448
    %v3957 = vpack.c.b16 %v3457, %v3453
    %v3958 = vpack.c.b16 %v3458, %v3454
    %v3959 = vpack.c.b16 %v3459, %v3455
    %v3960 = vpack.c.b16 %v3460, %v3456
    %v3961 = vpack.c.b16 %v3465, %v3461
    %v3962 = vpack.c.b16 %v3466, %v3462
    %v3963 = vpack.c.b16 %v3467, %v3463
    %v3964 = vpack.c.b16 %v3468, %v3464
    %v3965 = vpack.c.b16 %v3473, %v3469
    %v3966 = vpack.c.b16 %v3474, %v3470
    %v3967 = vpack.c.b16 %v3475, %v3471
    %v3968 = vpack.c.b16 %v3476, %v3472
    %v3969 = vpack.c.b16 %v3481, %v3477
    %v3970 = vpack.c.b16 %v3482, %v3478
    %v3971 = vpack.c.b16 %v3483, %v3479
    %v3972 = vpack.c.b16 %v3484, %v3480
    %v3973 = vpack.c.b16 %v3489, %v3485
    %v3974 = vpack.c.b16 %v3490, %v3486
    %v3975 = vpack.c.b16 %v3491, %v3487
    %v3976 = vpack.c.b16 %v3492, %v3488
    %v3977 = vpack.c.b16 %v3497, %v3493
    %v3978 = vpack.c.b16 %v3498, %v3494
    %v3979 = vpack.c.b16 %v3499, %v3495
    %v3980 = vpack.c.b16 %v3500, %v3496
    %v3981 = vpack.c.b16 %v3505, %v3501
    %v3982 = vpack.c.b16 %v3506, %v3502
    %v3983 = vpack.c.b16 %v3507, %v3503
    %v3984 = vpack.c.b16 %v3508, %v3504
    %v3985 = vpack.c.b16 %v3513, %v3509
    %v3986 = vpack.c.b16 %v3514, %v3510
    %v3987 = vpack.c.b16 %v3515, %v3511
    %v3988 = vpack.c.b16 %v3516, %v3512
    %v3989 = vpack.c.b16 %v3521, %v3517
    %v3990 = vpack.c.b16 %v3522, %v3518
    %v3991 = vpack.c.b16 %v3523, %v3519
    %v3992 = vpack.c.b16 %v3524, %v3520
    %v3993 = vpack.c.b16 %v3529, %v3525
    %v3994 = vpack.c.b16 %v3530, %v3526
    %v3995 = vpack.c.b16 %v3531, %v3527
    %v3996 = vpack.c.b16 %v3532, %v3528
    %v3997 = vpack.c.b16 %v3537, %v3533
    %v3998 = vpack.c.b16 %v3538, %v3534
    %v3999 = vpack.c.b16 %v3539, %v3535
    %v4000 = vpack.c.b16 %v3540, %v3536
    %v4001 = vpack.c.b16 %v3545, %v3541
    %v4002 = vpack.c.b16 %v3546, %v3542
    %v4003 = vpack.c.b16 %v3547, %v3543
    %v4004 = vpack.c.b16 %v3548, %v3544
    %v4005 = vpack.c.b16 %v3553, %v3549
    %v4006 = vpack.c.b16 %v3554, %v3550
    %v4007 = vpack.c.b16 %v3555, %v3551
    %v4008 = vpack.c.b16 %v3556, %v3552
    %v4009 = vpack.c.b16 %v3561, %v3557
    %v4010 = vpack.c.b16 %v3562, %v3558
    %v4011 = vpack.c.b16 %v3563, %v3559
    %v4012 = vpack.c.b16 %v3564, %v3560
    %v4013 = vpack.c.b16 %v3569, %v3565
    %v4014 = vpack.c.b16 %v3570, %v3566
    %v4015 = vpack.c.b16 %v3571, %v3567
    %v4016 = vpack.c.b16 %v3572, %v3568
    %v4017 = vpack.c.b16 %v3577, %v3573
    %v4018 = vpack.c.b16 %v3578, %v3574
    %v4019 = vpack.c.b16 %v3579, %v3575
    %v4020 = vpack.c.b16 %v3580, %v3576
    %v4021 = vpack.c.b16 %v3585, %v3581
    %v4022 = vpack.c.b16 %v3586, %v3582
    %v4023 = vpack.c.b16 %v3587, %v3583
    %v4024 = vpack.c.b16 %v3588, %v3584
    %v4025 = vpack.c.b16 %v3593, %v3589
    %v4026 = vpack.c.b16 %v3594, %v3590
    %v4027 = vpack.c.b16 %v3595, %v3591
    %v4028 = vpack.c.b16 %v3596, %v3592
    %v4029 = vpack.c.b16 %v3601, %v3597
    %v4030 = vpack.c.b16 %v3602, %v3598
    %v4031 = vpack.c.b16 %v3603, %v3599
    %v4032 = vpack.c.b16 %v3604, %v3600
    %v4033 = vpack.c.b16 %v3609, %v3605
    %v4034 = vpack.c.b16 %v3610, %v3606
    %v4035 = vpack.c.b16 %v3611, %v3607
    %v4036 = vpack.c.b16 %v3612, %v3608
    %v4037 = vpack.c.b16 %v3617, %v3613
    %v4038 = vpack.c.b16 %v3618, %v3614
    %v4039 = vpack.c.b16 %v3619, %v3615
    %v4040 = vpack.c.b16 %v3620, %v3616
    %v4041 = vpack.c.b16 %v3625, %v3621
    %v4042 = vpack.c.b16 %v3626, %v3622
    %v4043 = vpack.c.b16 %v3627, %v3623
    %v4044 = vpack.c.b16 %v3628, %v3624
    %v4045 = vpack.c.b16 %v3633, %v3629
    %v4046 = vpack.c.b16 %v3634, %v3630
    %v4047 = vpack.c.b16 %v3635, %v3631
    %v4048 = vpack.c.b16 %v3636, %v3632
    %v4049 = vpack.c.b16 %v3641, %v3637
    %v4050 = vpack.c.b16 %v3642, %v3638
    %v4051 = vpack.c.b16 %v3643, %v3639
    %v4052 = vpack.c.b16 %v3644, %v3640
    %v4053 = vpack.c.b16 %v3649, %v3645
    %v4054 = vpack.c.b16 %v3650, %v3646
    %v4055 = vpack.c.b16 %v3651, %v3647
    %v4056 = vpack.c.b16 %v3652, %v3648
    %v4057 = vpack.c.b16 %v3657, %v3653
    %v4058 = vpack.c.b16 %v3658, %v3654
    %v4059 = vpack.c.b16 %v3659, %v3655
    %v4060 = vpack.c.b16 %v3660, %v3656
    %v4061 = vpack.c.b16 %v3665, %v3661
    %v4062 = vpack.c.b16 %v3666, %v3662
    %v4063 = vpack.c.b16 %v3667, %v3663
    %v4064 = vpack.c.b16 %v3668, %v3664
    %v4065 = vpack.c.b16 %v3673, %v3669
    %v4066 = vpack.c.b16 %v3674, %v3670
    %v4067 = vpack.c.b16 %v3675, %v3671
    %v4068 = vpack.c.b16 %v3676, %v3672
    %v4069 = vpack.c.b16 %v3681, %v3677
    %v4070 = vpack.c.b16 %v3682, %v3678
    %v4071 = vpack.c.b16 %v3683, %v3679
    %v4072 = vpack.c.b16 %v3684, %v3680
    %v4073 = vpack.c.b16 %v3689, %v3685
    %v4074 = vpack.c.b16 %v3690, %v3686
    %v4075 = vpack.c.b16 %v3691, %v3687
    %v4076 = vpack.c.b16 %v3692, %v3688
    %v4077 = vpack.c.b16 %v3697, %v3693
    %v4078 = vpack.c.b16 %v3698, %v3694
    %v4079 = vpack.c.b16 %v3699, %v3695
    %v4080 = vpack.c.b16 %v3700, %v3696
    %v4081 = vpack.c.b16 %v3705, %v3701
    %v4082 = vpack.c.b16 %v3706, %v3702
    %v4083 = vpack.c.b16 %v3707, %v3703
    %v4084 = vpack.c.b16 %v3708, %v3704
    %v4085 = vpack.c.b16 %v3713, %v3709
    %v4086 = vpack.c.b16 %v3714, %v3710
    %v4087 = vpack.c.b16 %v3715, %v3711
    %v4088 = vpack.c.b16 %v3716, %v3712
    %v4089 = vpack.c.b16 %v3721, %v3717
    %v4090 = vpack.c.b16 %v3722, %v3718
    %v4091 = vpack.c.b16 %v3723, %v3719
    %v4092 = vpack.c.b16 %v3724, %v3720
    %v4093 = vpack.c.b16 %v3729, %v3725
    %v4094 = vpack.c.b16 %v3730, %v3726
    %v4095 = vpack.c.b16 %v3731, %v3727
    %v4096 = vpack.c.b16 %v3732, %v3728
    %v4097 = vpack.c.b16 %v3737, %v3733
    %v4098 = vpack.c.b16 %v3738, %v3734
    %v4099 = vpack.c.b16 %v3739, %v3735
    %v4100 = vpack.c.b16 %v3740, %v3736
    %v4101 = vpack.c.b16 %v3745, %v3741
    %v4102 = vpack.c.b16 %v3746, %v3742
    %v4103 = vpack.c.b16 %v3747, %v3743
    %v4104 = vpack.c.b16 %v3748, %v3744
    %v4105 = vpack.c.b16 %v3753, %v3749
    %v4106 = vpack.c.b16 %v3754, %v3750
    %v4107 = vpack.c.b16 %v3755, %v3751
    %v4108 = vpack.c.b16 %v3756, %v3752
    %v4109 = vpack.c.b16 %v3761, %v3757
    %v4110 = vpack.c.b16 %v3762, %v3758
    %v4111 = vpack.c.b16 %v3763, %v3759
    %v4112 = vpack.c.b16 %v3764, %v3760
    %v4113 = vpack.c.b16 %v3769, %v3765
    %v4114 = vpack.c.b16 %v3770, %v3766
    %v4115 = vpack.c.b16 %v3771, %v3767
    %v4116 = vpack.c.b16 %v3772, %v3768
    %v4117 = vpack.c.b16 %v3777, %v3773
    %v4118 = vpack.c.b16 %v3778, %v3774
    %v4119 = vpack.c.b16 %v3779, %v3775
    %v4120 = vpack.c.b16 %v3780, %v3776
    %v4121 = vpack.c.b16 %v3785, %v3781
    %v4122 = vpack.c.b16 %v3786, %v3782
    %v4123 = vpack.c.b16 %v3787, %v3783
    %v4124 = vpack.c.b16 %v3788, %v3784
    %v4125 = vpack.c.b16 %v3793, %v3789
    %v4126 = vpack.c.b16 %v3794, %v3790
    %v4127 = vpack.c.b16 %v3795, %v3791
    %v4128 = vpack.c.b16 %v3796, %v3792
    %v4129 = vpack.c.b16 %v3801, %v3797
    %v4130 = vpack.c.b16 %v3802, %v3798
    %v4131 = vpack.c.b16 %v3803, %v3799
    %v4132 = vpack.c.b16 %v3804, %v3800
    %v4133 = vpack.c.b16 %v3809, %v3805
    %v4134 = vpack.c.b16 %v3810, %v3806
    %v4135 = vpack.c.b16 %v3811, %v3807
    %v4136 = vpack.c.b16 %v3812, %v3808
    %v4137 = vpack.c.b16 %v3817, %v3813
    %v4138 = vpack.c.b16 %v3818, %v3814
    %v4139 = vpack.c.b16 %v3819, %v3815
    %v4140 = vpack.c.b16 %v3820, %v3816
    %4461 = vmatpush.bf16.msra.mxu0 %v3849
    %4462 = vmatpush.bf16.msra.mxu0 %v3845
    %4463 = vmatpush.bf16.msra.mxu0 %v3841
    %4464 = vmatpush.bf16.msra.mxu0 %v3837
    %4465 = vmatpush.bf16.msra.mxu0 %v3833
    %4466 = vmatpush.bf16.msra.mxu0 %v3829
    %4467 = vmatpush.bf16.msra.mxu0 %v3825
    %4468 = vmatpush.bf16.msra.mxu0 %v3821
    %4469 = vmatmul.bf16.gmra.mxu0 %v2521
    %v4470 = vpop.f32.mrf.mxu0
    %v4471 = vadd.f32 %v2853, %v4470
    %v4472 = vpop.f32.mrf.mxu0
    %4473 = vdwg.mxu0
    %4474 = vmatpush.bf16.msra.mxu0 %v3881
    %4475 = vmatpush.bf16.msra.mxu0 %v3877
    %4476 = vmatpush.bf16.msra.mxu0 %v3873
    %4477 = vmatpush.bf16.msra.mxu0 %v3869
    %4478 = vmatpush.bf16.msra.mxu0 %v3865
    %4479 = vmatpush.bf16.msra.mxu0 %v3861
    %4480 = vmatpush.bf16.msra.mxu0 %v3857
    %4481 = vmatpush.bf16.msra.mxu0 %v3853
    %4482 = vmatmul.bf16.gmra.mxu0 %v2522
    %v4483 = vpop.f32.mrf.mxu0
    %v4484 = vadd.f32 %v4471, %v4483
    %v4485 = vpop.f32.mrf.mxu0
    %4486 = vdwg.mxu0
    %4487 = vmatpush.bf16.msra.mxu0 %v3913
    %4488 = vmatpush.bf16.msra.mxu0 %v3909
    %4489 = vmatpush.bf16.msra.mxu0 %v3905
    %4490 = vmatpush.bf16.msra.mxu0 %v3901
    %4491 = vmatpush.bf16.msra.mxu0 %v3897
    %4492 = vmatpush.bf16.msra.mxu0 %v3893
    %4493 = vmatpush.bf16.msra.mxu0 %v3889
    %4494 = vmatpush.bf16.msra.mxu0 %v3885
    %4495 = vmatmul.bf16.gmra.mxu0 %v2523
    %v4496 = vpop.f32.mrf.mxu0
    %v4497 = vadd.f32 %v4484, %v4496
    %v4498 = vpop.f32.mrf.mxu0
    %4499 = vdwg.mxu0
    %4500 = vmatpush.bf16.msra.mxu0 %v3945
    %4501 = vmatpush.bf16.msra.mxu0 %v3941
    %4502 = vmatpush.bf16.msra.mxu0 %v3937
    %4503 = vmatpush.bf16.msra.mxu0 %v3933
    %4504 = vmatpush.bf16.msra.mxu0 %v3929
    %4505 = vmatpush.bf16.msra.mxu0 %v3925
    %4506 = vmatpush.bf16.msra.mxu0 %v3921
    %4507 = vmatpush.bf16.msra.mxu0 %v3917
    %4508 = vmatmul.bf16.gmra.mxu0 %v2524
    %v4509 = vpop.f32.mrf.mxu0
    %v4510 = vadd.f32 %v4497, %v4509
    %v4511 = vpop.f32.mrf.mxu0
    %4512 = vdwg.mxu0
    %4513 = vmatpush.bf16.msra.mxu0 %v3977
    %4514 = vmatpush.bf16.msra.mxu0 %v3973
    %4515 = vmatpush.bf16.msra.mxu0 %v3969
    %4516 = vmatpush.bf16.msra.mxu0 %v3965
    %4517 = vmatpush.bf16.msra.mxu0 %v3961
    %4518 = vmatpush.bf16.msra.mxu0 %v3957
    %4519 = vmatpush.bf16.msra.mxu0 %v3953
    %4520 = vmatpush.bf16.msra.mxu0 %v3949
    %4521 = vmatmul.bf16.gmra.mxu0 %v2525
    %v4522 = vpop.f32.mrf.mxu0
    %v4523 = vadd.f32 %v4510, %v4522
    %v4524 = vpop.f32.mrf.mxu0
    %4525 = vdwg.mxu0
    %4526 = vmatpush.bf16.msra.mxu0 %v4009
    %4527 = vmatpush.bf16.msra.mxu0 %v4005
    %4528 = vmatpush.bf16.msra.mxu0 %v4001
    %4529 = vmatpush.bf16.msra.mxu0 %v3997
    %4530 = vmatpush.bf16.msra.mxu0 %v3993
    %4531 = vmatpush.bf16.msra.mxu0 %v3989
    %4532 = vmatpush.bf16.msra.mxu0 %v3985
    %4533 = vmatpush.bf16.msra.mxu0 %v3981
    %4534 = vmatmul.bf16.gmra.mxu0 %v2526
    %v4535 = vpop.f32.mrf.mxu0
    %v4536 = vadd.f32 %v4523, %v4535
    %v4537 = vpop.f32.mrf.mxu0
    %4538 = vdwg.mxu0
    %4539 = vmatpush.bf16.msra.mxu0 %v4041
    %4540 = vmatpush.bf16.msra.mxu0 %v4037
    %4541 = vmatpush.bf16.msra.mxu0 %v4033
    %4542 = vmatpush.bf16.msra.mxu0 %v4029
    %4543 = vmatpush.bf16.msra.mxu0 %v4025
    %4544 = vmatpush.bf16.msra.mxu0 %v4021
    %4545 = vmatpush.bf16.msra.mxu0 %v4017
    %4546 = vmatpush.bf16.msra.mxu0 %v4013
    %4547 = vmatmul.bf16.gmra.mxu0 %v2527
    %v4548 = vpop.f32.mrf.mxu0
    %v4549 = vadd.f32 %v4536, %v4548
    %v4550 = vpop.f32.mrf.mxu0
    %4551 = vdwg.mxu0
    %4552 = vmatpush.bf16.msra.mxu0 %v4073
    %4553 = vmatpush.bf16.msra.mxu0 %v4069
    %4554 = vmatpush.bf16.msra.mxu0 %v4065
    %4555 = vmatpush.bf16.msra.mxu0 %v4061
    %4556 = vmatpush.bf16.msra.mxu0 %v4057
    %4557 = vmatpush.bf16.msra.mxu0 %v4053
    %4558 = vmatpush.bf16.msra.mxu0 %v4049
    %4559 = vmatpush.bf16.msra.mxu0 %v4045
    %4560 = vmatmul.bf16.gmra.mxu0 %v2528
    %v4561 = vpop.f32.mrf.mxu0
    %v4562 = vadd.f32 %v4549, %v4561
    %v4563 = vpop.f32.mrf.mxu0
    %4564 = vdwg.mxu0
    %4565 = vmatpush.bf16.msra.mxu0 %v4105
    %4566 = vmatpush.bf16.msra.mxu0 %v4101
    %4567 = vmatpush.bf16.msra.mxu0 %v4097
    %4568 = vmatpush.bf16.msra.mxu0 %v4093
    %4569 = vmatpush.bf16.msra.mxu0 %v4089
    %4570 = vmatpush.bf16.msra.mxu0 %v4085
    %4571 = vmatpush.bf16.msra.mxu0 %v4081
    %4572 = vmatpush.bf16.msra.mxu0 %v4077
    %4573 = vmatmul.bf16.gmra.mxu0 %v2529
    %v4574 = vpop.f32.mrf.mxu0
    %v4575 = vadd.f32 %v4562, %v4574
    %v4576 = vpop.f32.mrf.mxu0
    %4577 = vdwg.mxu0
    %4578 = vmatpush.bf16.msra.mxu0 %v4137
    %4579 = vmatpush.bf16.msra.mxu0 %v4133
    %4580 = vmatpush.bf16.msra.mxu0 %v4129
    %4581 = vmatpush.bf16.msra.mxu0 %v4125
    %4582 = vmatpush.bf16.msra.mxu0 %v4121
    %4583 = vmatpush.bf16.msra.mxu0 %v4117
    %4584 = vmatpush.bf16.msra.mxu0 %v4113
    %4585 = vmatpush.bf16.msra.mxu0 %v4109
    %4586 = vmatmul.bf16.gmra.mxu0 %v2530
    %v4587 = vpop.f32.mrf.mxu0
    %v4588 = vadd.f32 %v4575, %v4587
    %v4589 = vpop.f32.mrf.mxu0
    %4590 = vdwg.mxu0
    %4591 = vmatpush.bf16.msra.mxu0 %v3850
    %4592 = vmatpush.bf16.msra.mxu0 %v3846
    %4593 = vmatpush.bf16.msra.mxu0 %v3842
    %4594 = vmatpush.bf16.msra.mxu0 %v3838
    %4595 = vmatpush.bf16.msra.mxu0 %v3834
    %4596 = vmatpush.bf16.msra.mxu0 %v3830
    %4597 = vmatpush.bf16.msra.mxu0 %v3826
    %4598 = vmatpush.bf16.msra.mxu0 %v3822
    %4599 = vmatmul.bf16.gmra.mxu0 %v2521
    %v4600 = vpop.f32.mrf.mxu0
    %v4601 = vadd.f32 %v2854, %v4600
    %v4602 = vpop.f32.mrf.mxu0
    %4603 = vdwg.mxu0
    %4604 = vmatpush.bf16.msra.mxu0 %v3882
    %4605 = vmatpush.bf16.msra.mxu0 %v3878
    %4606 = vmatpush.bf16.msra.mxu0 %v3874
    %4607 = vmatpush.bf16.msra.mxu0 %v3870
    %4608 = vmatpush.bf16.msra.mxu0 %v3866
    %4609 = vmatpush.bf16.msra.mxu0 %v3862
    %4610 = vmatpush.bf16.msra.mxu0 %v3858
    %4611 = vmatpush.bf16.msra.mxu0 %v3854
    %4612 = vmatmul.bf16.gmra.mxu0 %v2522
    %v4613 = vpop.f32.mrf.mxu0
    %v4614 = vadd.f32 %v4601, %v4613
    %v4615 = vpop.f32.mrf.mxu0
    %4616 = vdwg.mxu0
    %4617 = vmatpush.bf16.msra.mxu0 %v3914
    %4618 = vmatpush.bf16.msra.mxu0 %v3910
    %4619 = vmatpush.bf16.msra.mxu0 %v3906
    %4620 = vmatpush.bf16.msra.mxu0 %v3902
    %4621 = vmatpush.bf16.msra.mxu0 %v3898
    %4622 = vmatpush.bf16.msra.mxu0 %v3894
    %4623 = vmatpush.bf16.msra.mxu0 %v3890
    %4624 = vmatpush.bf16.msra.mxu0 %v3886
    %4625 = vmatmul.bf16.gmra.mxu0 %v2523
    %v4626 = vpop.f32.mrf.mxu0
    %v4627 = vadd.f32 %v4614, %v4626
    %v4628 = vpop.f32.mrf.mxu0
    %4629 = vdwg.mxu0
    %4630 = vmatpush.bf16.msra.mxu0 %v3946
    %4631 = vmatpush.bf16.msra.mxu0 %v3942
    %4632 = vmatpush.bf16.msra.mxu0 %v3938
    %4633 = vmatpush.bf16.msra.mxu0 %v3934
    %4634 = vmatpush.bf16.msra.mxu0 %v3930
    %4635 = vmatpush.bf16.msra.mxu0 %v3926
    %4636 = vmatpush.bf16.msra.mxu0 %v3922
    %4637 = vmatpush.bf16.msra.mxu0 %v3918
    %4638 = vmatmul.bf16.gmra.mxu0 %v2524
    %v4639 = vpop.f32.mrf.mxu0
    %v4640 = vadd.f32 %v4627, %v4639
    %v4641 = vpop.f32.mrf.mxu0
    %4642 = vdwg.mxu0
    %4643 = vmatpush.bf16.msra.mxu0 %v3978
    %4644 = vmatpush.bf16.msra.mxu0 %v3974
    %4645 = vmatpush.bf16.msra.mxu0 %v3970
    %4646 = vmatpush.bf16.msra.mxu0 %v3966
    %4647 = vmatpush.bf16.msra.mxu0 %v3962
    %4648 = vmatpush.bf16.msra.mxu0 %v3958
    %4649 = vmatpush.bf16.msra.mxu0 %v3954
    %4650 = vmatpush.bf16.msra.mxu0 %v3950
    %4651 = vmatmul.bf16.gmra.mxu0 %v2525
    %v4652 = vpop.f32.mrf.mxu0
    %v4653 = vadd.f32 %v4640, %v4652
    %v4654 = vpop.f32.mrf.mxu0
    %4655 = vdwg.mxu0
    %4656 = vmatpush.bf16.msra.mxu0 %v4010
    %4657 = vmatpush.bf16.msra.mxu0 %v4006
    %4658 = vmatpush.bf16.msra.mxu0 %v4002
    %4659 = vmatpush.bf16.msra.mxu0 %v3998
    %4660 = vmatpush.bf16.msra.mxu0 %v3994
    %4661 = vmatpush.bf16.msra.mxu0 %v3990
    %4662 = vmatpush.bf16.msra.mxu0 %v3986
    %4663 = vmatpush.bf16.msra.mxu0 %v3982
    %4664 = vmatmul.bf16.gmra.mxu0 %v2526
    %v4665 = vpop.f32.mrf.mxu0
    %v4666 = vadd.f32 %v4653, %v4665
    %v4667 = vpop.f32.mrf.mxu0
    %4668 = vdwg.mxu0
    %4669 = vmatpush.bf16.msra.mxu0 %v4042
    %4670 = vmatpush.bf16.msra.mxu0 %v4038
    %4671 = vmatpush.bf16.msra.mxu0 %v4034
    %4672 = vmatpush.bf16.msra.mxu0 %v4030
    %4673 = vmatpush.bf16.msra.mxu0 %v4026
    %4674 = vmatpush.bf16.msra.mxu0 %v4022
    %4675 = vmatpush.bf16.msra.mxu0 %v4018
    %4676 = vmatpush.bf16.msra.mxu0 %v4014
    %4677 = vmatmul.bf16.gmra.mxu0 %v2527
    %v4678 = vpop.f32.mrf.mxu0
    %v4679 = vadd.f32 %v4666, %v4678
    %v4680 = vpop.f32.mrf.mxu0
    %4681 = vdwg.mxu0
    %4682 = vmatpush.bf16.msra.mxu0 %v4074
    %4683 = vmatpush.bf16.msra.mxu0 %v4070
    %4684 = vmatpush.bf16.msra.mxu0 %v4066
    %4685 = vmatpush.bf16.msra.mxu0 %v4062
    %4686 = vmatpush.bf16.msra.mxu0 %v4058
    %4687 = vmatpush.bf16.msra.mxu0 %v4054
    %4688 = vmatpush.bf16.msra.mxu0 %v4050
    %4689 = vmatpush.bf16.msra.mxu0 %v4046
    %4690 = vmatmul.bf16.gmra.mxu0 %v2528
    %v4691 = vpop.f32.mrf.mxu0
    %v4692 = vadd.f32 %v4679, %v4691
    %v4693 = vpop.f32.mrf.mxu0
    %4694 = vdwg.mxu0
    %4695 = vmatpush.bf16.msra.mxu0 %v4106
    %4696 = vmatpush.bf16.msra.mxu0 %v4102
    %4697 = vmatpush.bf16.msra.mxu0 %v4098
    %4698 = vmatpush.bf16.msra.mxu0 %v4094
    %4699 = vmatpush.bf16.msra.mxu0 %v4090
    %4700 = vmatpush.bf16.msra.mxu0 %v4086
    %4701 = vmatpush.bf16.msra.mxu0 %v4082
    %4702 = vmatpush.bf16.msra.mxu0 %v4078
    %4703 = vmatmul.bf16.gmra.mxu0 %v2529
    %v4704 = vpop.f32.mrf.mxu0
    %v4705 = vadd.f32 %v4692, %v4704
    %v4706 = vpop.f32.mrf.mxu0
    %4707 = vdwg.mxu0
    %4708 = vmatpush.bf16.msra.mxu0 %v4138
    %4709 = vmatpush.bf16.msra.mxu0 %v4134
    %4710 = vmatpush.bf16.msra.mxu0 %v4130
    %4711 = vmatpush.bf16.msra.mxu0 %v4126
    %4712 = vmatpush.bf16.msra.mxu0 %v4122
    %4713 = vmatpush.bf16.msra.mxu0 %v4118
    %4714 = vmatpush.bf16.msra.mxu0 %v4114
    %4715 = vmatpush.bf16.msra.mxu0 %v4110
    %4716 = vmatmul.bf16.gmra.mxu0 %v2530
    %v4717 = vpop.f32.mrf.mxu0
    %v4718 = vadd.f32 %v4705, %v4717
    %v4719 = vpop.f32.mrf.mxu0
    %4720 = vdwg.mxu0
    %4721 = vmatpush.bf16.msra.mxu0 %v3851
    %4722 = vmatpush.bf16.msra.mxu0 %v3847
    %4723 = vmatpush.bf16.msra.mxu0 %v3843
    %4724 = vmatpush.bf16.msra.mxu0 %v3839
    %4725 = vmatpush.bf16.msra.mxu0 %v3835
    %4726 = vmatpush.bf16.msra.mxu0 %v3831
    %4727 = vmatpush.bf16.msra.mxu0 %v3827
    %4728 = vmatpush.bf16.msra.mxu0 %v3823
    %4729 = vmatmul.bf16.gmra.mxu0 %v2521
    %v4730 = vpop.f32.mrf.mxu0
    %v4731 = vadd.f32 %v2855, %v4730
    %v4732 = vpop.f32.mrf.mxu0
    %4733 = vdwg.mxu0
    %4734 = vmatpush.bf16.msra.mxu0 %v3883
    %4735 = vmatpush.bf16.msra.mxu0 %v3879
    %4736 = vmatpush.bf16.msra.mxu0 %v3875
    %4737 = vmatpush.bf16.msra.mxu0 %v3871
    %4738 = vmatpush.bf16.msra.mxu0 %v3867
    %4739 = vmatpush.bf16.msra.mxu0 %v3863
    %4740 = vmatpush.bf16.msra.mxu0 %v3859
    %4741 = vmatpush.bf16.msra.mxu0 %v3855
    %4742 = vmatmul.bf16.gmra.mxu0 %v2522
    %v4743 = vpop.f32.mrf.mxu0
    %v4744 = vadd.f32 %v4731, %v4743
    %v4745 = vpop.f32.mrf.mxu0
    %4746 = vdwg.mxu0
    %4747 = vmatpush.bf16.msra.mxu0 %v3915
    %4748 = vmatpush.bf16.msra.mxu0 %v3911
    %4749 = vmatpush.bf16.msra.mxu0 %v3907
    %4750 = vmatpush.bf16.msra.mxu0 %v3903
    %4751 = vmatpush.bf16.msra.mxu0 %v3899
    %4752 = vmatpush.bf16.msra.mxu0 %v3895
    %4753 = vmatpush.bf16.msra.mxu0 %v3891
    %4754 = vmatpush.bf16.msra.mxu0 %v3887
    %4755 = vmatmul.bf16.gmra.mxu0 %v2523
    %v4756 = vpop.f32.mrf.mxu0
    %v4757 = vadd.f32 %v4744, %v4756
    %v4758 = vpop.f32.mrf.mxu0
    %4759 = vdwg.mxu0
    %4760 = vmatpush.bf16.msra.mxu0 %v3947
    %4761 = vmatpush.bf16.msra.mxu0 %v3943
    %4762 = vmatpush.bf16.msra.mxu0 %v3939
    %4763 = vmatpush.bf16.msra.mxu0 %v3935
    %4764 = vmatpush.bf16.msra.mxu0 %v3931
    %4765 = vmatpush.bf16.msra.mxu0 %v3927
    %4766 = vmatpush.bf16.msra.mxu0 %v3923
    %4767 = vmatpush.bf16.msra.mxu0 %v3919
    %4768 = vmatmul.bf16.gmra.mxu0 %v2524
    %v4769 = vpop.f32.mrf.mxu0
    %v4770 = vadd.f32 %v4757, %v4769
    %v4771 = vpop.f32.mrf.mxu0
    %4772 = vdwg.mxu0
    %4773 = vmatpush.bf16.msra.mxu0 %v3979
    %4774 = vmatpush.bf16.msra.mxu0 %v3975
    %4775 = vmatpush.bf16.msra.mxu0 %v3971
    %4776 = vmatpush.bf16.msra.mxu0 %v3967
    %4777 = vmatpush.bf16.msra.mxu0 %v3963
    %4778 = vmatpush.bf16.msra.mxu0 %v3959
    %4779 = vmatpush.bf16.msra.mxu0 %v3955
    %4780 = vmatpush.bf16.msra.mxu0 %v3951
    %4781 = vmatmul.bf16.gmra.mxu0 %v2525
    %v4782 = vpop.f32.mrf.mxu0
    %v4783 = vadd.f32 %v4770, %v4782
    %v4784 = vpop.f32.mrf.mxu0
    %4785 = vdwg.mxu0
    %4786 = vmatpush.bf16.msra.mxu0 %v4011
    %4787 = vmatpush.bf16.msra.mxu0 %v4007
    %4788 = vmatpush.bf16.msra.mxu0 %v4003
    %4789 = vmatpush.bf16.msra.mxu0 %v3999
    %4790 = vmatpush.bf16.msra.mxu0 %v3995
    %4791 = vmatpush.bf16.msra.mxu0 %v3991
    %4792 = vmatpush.bf16.msra.mxu0 %v3987
    %4793 = vmatpush.bf16.msra.mxu0 %v3983
    %4794 = vmatmul.bf16.gmra.mxu0 %v2526
    %v4795 = vpop.f32.mrf.mxu0
    %v4796 = vadd.f32 %v4783, %v4795
    %v4797 = vpop.f32.mrf.mxu0
    %4798 = vdwg.mxu0
    %4799 = vmatpush.bf16.msra.mxu0 %v4043
    %4800 = vmatpush.bf16.msra.mxu0 %v4039
    %4801 = vmatpush.bf16.msra.mxu0 %v4035
    %4802 = vmatpush.bf16.msra.mxu0 %v4031
    %4803 = vmatpush.bf16.msra.mxu0 %v4027
    %4804 = vmatpush.bf16.msra.mxu0 %v4023
    %4805 = vmatpush.bf16.msra.mxu0 %v4019
    %4806 = vmatpush.bf16.msra.mxu0 %v4015
    %4807 = vmatmul.bf16.gmra.mxu0 %v2527
    %v4808 = vpop.f32.mrf.mxu0
    %v4809 = vadd.f32 %v4796, %v4808
    %v4810 = vpop.f32.mrf.mxu0
    %4811 = vdwg.mxu0
    %4812 = vmatpush.bf16.msra.mxu0 %v4075
    %4813 = vmatpush.bf16.msra.mxu0 %v4071
    %4814 = vmatpush.bf16.msra.mxu0 %v4067
    %4815 = vmatpush.bf16.msra.mxu0 %v4063
    %4816 = vmatpush.bf16.msra.mxu0 %v4059
    %4817 = vmatpush.bf16.msra.mxu0 %v4055
    %4818 = vmatpush.bf16.msra.mxu0 %v4051
    %4819 = vmatpush.bf16.msra.mxu0 %v4047
    %4820 = vmatmul.bf16.gmra.mxu0 %v2528
    %v4821 = vpop.f32.mrf.mxu0
    %v4822 = vadd.f32 %v4809, %v4821
    %v4823 = vpop.f32.mrf.mxu0
    %4824 = vdwg.mxu0
    %4825 = vmatpush.bf16.msra.mxu0 %v4107
    %4826 = vmatpush.bf16.msra.mxu0 %v4103
    %4827 = vmatpush.bf16.msra.mxu0 %v4099
    %4828 = vmatpush.bf16.msra.mxu0 %v4095
    %4829 = vmatpush.bf16.msra.mxu0 %v4091
    %4830 = vmatpush.bf16.msra.mxu0 %v4087
    %4831 = vmatpush.bf16.msra.mxu0 %v4083
    %4832 = vmatpush.bf16.msra.mxu0 %v4079
    %4833 = vmatmul.bf16.gmra.mxu0 %v2529
    %v4834 = vpop.f32.mrf.mxu0
    %v4835 = vadd.f32 %v4822, %v4834
    %v4836 = vpop.f32.mrf.mxu0
    %4837 = vdwg.mxu0
    %4838 = vmatpush.bf16.msra.mxu0 %v4139
    %4839 = vmatpush.bf16.msra.mxu0 %v4135
    %4840 = vmatpush.bf16.msra.mxu0 %v4131
    %4841 = vmatpush.bf16.msra.mxu0 %v4127
    %4842 = vmatpush.bf16.msra.mxu0 %v4123
    %4843 = vmatpush.bf16.msra.mxu0 %v4119
    %4844 = vmatpush.bf16.msra.mxu0 %v4115
    %4845 = vmatpush.bf16.msra.mxu0 %v4111
    %4846 = vmatmul.bf16.gmra.mxu0 %v2530
    %v4847 = vpop.f32.mrf.mxu0
    %v4848 = vadd.f32 %v4835, %v4847
    %v4849 = vpop.f32.mrf.mxu0
    %4850 = vdwg.mxu0
    %4851 = vmatpush.bf16.msra.mxu0 %v3852
    %4852 = vmatpush.bf16.msra.mxu0 %v3848
    %4853 = vmatpush.bf16.msra.mxu0 %v3844
    %4854 = vmatpush.bf16.msra.mxu0 %v3840
    %4855 = vmatpush.bf16.msra.mxu0 %v3836
    %4856 = vmatpush.bf16.msra.mxu0 %v3832
    %4857 = vmatpush.bf16.msra.mxu0 %v3828
    %4858 = vmatpush.bf16.msra.mxu0 %v3824
    %4859 = vmatmul.bf16.gmra.mxu0 %v2521
    %v4860 = vpop.f32.mrf.mxu0
    %v4861 = vadd.f32 %v2856, %v4860
    %v4862 = vpop.f32.mrf.mxu0
    %4863 = vdwg.mxu0
    %4864 = vmatpush.bf16.msra.mxu0 %v3884
    %4865 = vmatpush.bf16.msra.mxu0 %v3880
    %4866 = vmatpush.bf16.msra.mxu0 %v3876
    %4867 = vmatpush.bf16.msra.mxu0 %v3872
    %4868 = vmatpush.bf16.msra.mxu0 %v3868
    %4869 = vmatpush.bf16.msra.mxu0 %v3864
    %4870 = vmatpush.bf16.msra.mxu0 %v3860
    %4871 = vmatpush.bf16.msra.mxu0 %v3856
    %4872 = vmatmul.bf16.gmra.mxu0 %v2522
    %v4873 = vpop.f32.mrf.mxu0
    %v4874 = vadd.f32 %v4861, %v4873
    %v4875 = vpop.f32.mrf.mxu0
    %4876 = vdwg.mxu0
    %4877 = vmatpush.bf16.msra.mxu0 %v3916
    %4878 = vmatpush.bf16.msra.mxu0 %v3912
    %4879 = vmatpush.bf16.msra.mxu0 %v3908
    %4880 = vmatpush.bf16.msra.mxu0 %v3904
    %4881 = vmatpush.bf16.msra.mxu0 %v3900
    %4882 = vmatpush.bf16.msra.mxu0 %v3896
    %4883 = vmatpush.bf16.msra.mxu0 %v3892
    %4884 = vmatpush.bf16.msra.mxu0 %v3888
    %4885 = vmatmul.bf16.gmra.mxu0 %v2523
    %v4886 = vpop.f32.mrf.mxu0
    %v4887 = vadd.f32 %v4874, %v4886
    %v4888 = vpop.f32.mrf.mxu0
    %4889 = vdwg.mxu0
    %4890 = vmatpush.bf16.msra.mxu0 %v3948
    %4891 = vmatpush.bf16.msra.mxu0 %v3944
    %4892 = vmatpush.bf16.msra.mxu0 %v3940
    %4893 = vmatpush.bf16.msra.mxu0 %v3936
    %4894 = vmatpush.bf16.msra.mxu0 %v3932
    %4895 = vmatpush.bf16.msra.mxu0 %v3928
    %4896 = vmatpush.bf16.msra.mxu0 %v3924
    %4897 = vmatpush.bf16.msra.mxu0 %v3920
    %4898 = vmatmul.bf16.gmra.mxu0 %v2524
    %v4899 = vpop.f32.mrf.mxu0
    %v4900 = vadd.f32 %v4887, %v4899
    %v4901 = vpop.f32.mrf.mxu0
    %4902 = vdwg.mxu0
    %4903 = vmatpush.bf16.msra.mxu0 %v3980
    %4904 = vmatpush.bf16.msra.mxu0 %v3976
    %4905 = vmatpush.bf16.msra.mxu0 %v3972
    %4906 = vmatpush.bf16.msra.mxu0 %v3968
    %4907 = vmatpush.bf16.msra.mxu0 %v3964
    %4908 = vmatpush.bf16.msra.mxu0 %v3960
    %4909 = vmatpush.bf16.msra.mxu0 %v3956
    %4910 = vmatpush.bf16.msra.mxu0 %v3952
    %4911 = vmatmul.bf16.gmra.mxu0 %v2525
    %v4912 = vpop.f32.mrf.mxu0
    %v4913 = vadd.f32 %v4900, %v4912
    %v4914 = vpop.f32.mrf.mxu0
    %4915 = vdwg.mxu0
    %4916 = vmatpush.bf16.msra.mxu0 %v4012
    %4917 = vmatpush.bf16.msra.mxu0 %v4008
    %4918 = vmatpush.bf16.msra.mxu0 %v4004
    %4919 = vmatpush.bf16.msra.mxu0 %v4000
    %4920 = vmatpush.bf16.msra.mxu0 %v3996
    %4921 = vmatpush.bf16.msra.mxu0 %v3992
    %4922 = vmatpush.bf16.msra.mxu0 %v3988
    %4923 = vmatpush.bf16.msra.mxu0 %v3984
    %4924 = vmatmul.bf16.gmra.mxu0 %v2526
    %v4925 = vpop.f32.mrf.mxu0
    %v4926 = vadd.f32 %v4913, %v4925
    %v4927 = vpop.f32.mrf.mxu0
    %4928 = vdwg.mxu0
    %4929 = vmatpush.bf16.msra.mxu0 %v4044
    %4930 = vmatpush.bf16.msra.mxu0 %v4040
    %4931 = vmatpush.bf16.msra.mxu0 %v4036
    %4932 = vmatpush.bf16.msra.mxu0 %v4032
    %4933 = vmatpush.bf16.msra.mxu0 %v4028
    %4934 = vmatpush.bf16.msra.mxu0 %v4024
    %4935 = vmatpush.bf16.msra.mxu0 %v4020
    %4936 = vmatpush.bf16.msra.mxu0 %v4016
    %4937 = vmatmul.bf16.gmra.mxu0 %v2527
    %v4938 = vpop.f32.mrf.mxu0
    %v4939 = vadd.f32 %v4926, %v4938
    %v4940 = vpop.f32.mrf.mxu0
    %4941 = vdwg.mxu0
    %4942 = vmatpush.bf16.msra.mxu0 %v4076
    %4943 = vmatpush.bf16.msra.mxu0 %v4072
    %4944 = vmatpush.bf16.msra.mxu0 %v4068
    %4945 = vmatpush.bf16.msra.mxu0 %v4064
    %4946 = vmatpush.bf16.msra.mxu0 %v4060
    %4947 = vmatpush.bf16.msra.mxu0 %v4056
    %4948 = vmatpush.bf16.msra.mxu0 %v4052
    %4949 = vmatpush.bf16.msra.mxu0 %v4048
    %4950 = vmatmul.bf16.gmra.mxu0 %v2528
    %v4951 = vpop.f32.mrf.mxu0
    %v4952 = vadd.f32 %v4939, %v4951
    %v4953 = vpop.f32.mrf.mxu0
    %4954 = vdwg.mxu0
    %4955 = vmatpush.bf16.msra.mxu0 %v4108
    %4956 = vmatpush.bf16.msra.mxu0 %v4104
    %4957 = vmatpush.bf16.msra.mxu0 %v4100
    %4958 = vmatpush.bf16.msra.mxu0 %v4096
    %4959 = vmatpush.bf16.msra.mxu0 %v4092
    %4960 = vmatpush.bf16.msra.mxu0 %v4088
    %4961 = vmatpush.bf16.msra.mxu0 %v4084
    %4962 = vmatpush.bf16.msra.mxu0 %v4080
    %4963 = vmatmul.bf16.gmra.mxu0 %v2529
    %v4964 = vpop.f32.mrf.mxu0
    %v4965 = vadd.f32 %v4952, %v4964
    %v4966 = vpop.f32.mrf.mxu0
    %4967 = vdwg.mxu0
    %4968 = vmatpush.bf16.msra.mxu0 %v4140
    %4969 = vmatpush.bf16.msra.mxu0 %v4136
    %4970 = vmatpush.bf16.msra.mxu0 %v4132
    %4971 = vmatpush.bf16.msra.mxu0 %v4128
    %4972 = vmatpush.bf16.msra.mxu0 %v4124
    %4973 = vmatpush.bf16.msra.mxu0 %v4120
    %4974 = vmatpush.bf16.msra.mxu0 %v4116
    %4975 = vmatpush.bf16.msra.mxu0 %v4112
    %4976 = vmatmul.bf16.gmra.mxu0 %v2530
    %v4977 = vpop.f32.mrf.mxu0
    %v4978 = vadd.f32 %v4965, %v4977
    %v4979 = vpop.f32.mrf.mxu0
    %4980 = vdwg.mxu0
    %v4981 = vmax.f32 %v4588, 0.0
    %v4982 = vmax.f32 %v4718, 0.0
    %v4983 = vmax.f32 %v4848, 0.0
    %v4984 = vmax.f32 %v4978, 0.0
    %v4985 = vpack.c.bf16 %v4981, %v4981
    %v4986 = vpack.c.bf16 %v4982, %v4982
    %v4987 = vpack.c.bf16 %v4983, %v4983
    %v4988 = vpack.c.bf16 %v4984, %v4984
    %v4989 = vld [vmem:[%s11] sm:$0xf]
    %v4990 = vld [vmem:[%s11 + $0x4] sm:$0xf]
    %v4991 = vld [vmem:[%s11 + $0x8] sm:$0xf]
    %v4992 = vld [vmem:[%s11 + $0xc] sm:$0xf]
    %v4993 = vld [vmem:[%s11 + $0x10] sm:$0xf]
    %v4994 = vld [vmem:[%s11 + $0x14] sm:$0xf]
    %v4995 = vld [vmem:[%s11 + $0x18] sm:$0xf]
    %v4996 = vld [vmem:[%s11 + $0x1c] sm:$0xf]
    %v4997 = vld [vmem:[%s11 + $0x20] sm:$0xf]
    %v4998 = vld [vmem:[%s11 + $0x24] sm:$0xf]
    %v4999 = vld [vmem:[%s11 + $0x28] sm:$0xf]
    %v5000 = vld [vmem:[%s11 + $0x2c] sm:$0xf]
    %v5001 = vld [vmem:[%s11 + $0x30] sm:$0xf]
    %v5002 = vld [vmem:[%s11 + $0x34] sm:$0xf]
    %v5003 = vld [vmem:[%s11 + $0x38] sm:$0xf]
    %v5004 = vld [vmem:[%s11 + $0x3c] sm:$0xf]
    %v5005 = vld [vmem:[%s11 + $0x40] sm:$0xf]
    %v5006 = vld [vmem:[%s11 + $0x44] sm:$0xf]
    %v5007 = vld [vmem:[%s11 + $0x48] sm:$0xf]
    %v5008 = vld [vmem:[%s11 + $0x4c] sm:$0xf]
    %v5009 = vld [vmem:[%s11 + $0x50] sm:$0xf]
    %v5010 = vld [vmem:[%s11 + $0x54] sm:$0xf]
    %v5011 = vld [vmem:[%s11 + $0x58] sm:$0xf]
    %v5012 = vld [vmem:[%s11 + $0x5c] sm:$0xf]
    %v5013 = vld [vmem:[%s11 + $0x60] sm:$0xf]
    %v5014 = vld [vmem:[%s11 + $0x64] sm:$0xf]
    %v5015 = vld [vmem:[%s11 + $0x68] sm:$0xf]
    %v5016 = vld [vmem:[%s11 + $0x6c] sm:$0xf]
    %v5017 = vld [vmem:[%s11 + $0x70] sm:$0xf]
    %v5018 = vld [vmem:[%s11 + $0x74] sm:$0xf]
    %v5019 = vld [vmem:[%s11 + $0x78] sm:$0xf]
    %v5020 = vld [vmem:[%s11 + $0x7c] sm:$0xf]
    %v5021 = vld [vmem:[%s11 + $0x80] sm:$0xf]
    %v5022 = vld [vmem:[%s11 + $0x84] sm:$0xf]
    %v5023 = vld [vmem:[%s11 + $0x88] sm:$0xf]
    %v5024 = vld [vmem:[%s11 + $0x8c] sm:$0xf]
    %v5025 = vld [vmem:[%s11 + $0x90] sm:$0xf]
    %v5026 = vld [vmem:[%s11 + $0x94] sm:$0xf]
    %v5027 = vld [vmem:[%s11 + $0x98] sm:$0xf]
    %v5028 = vld [vmem:[%s11 + $0x9c] sm:$0xf]
    %v5029 = vld [vmem:[%s11 + $0xa0] sm:$0xf]
    %v5030 = vld [vmem:[%s11 + $0xa4] sm:$0xf]
    %v5031 = vld [vmem:[%s11 + $0xa8] sm:$0xf]
    %v5032 = vld [vmem:[%s11 + $0xac] sm:$0xf]
    %v5033 = vld [vmem:[%s11 + $0xb0] sm:$0xf]
    %v5034 = vld [vmem:[%s11 + $0xb4] sm:$0xf]
    %v5035 = vld [vmem:[%s11 + $0xb8] sm:$0xf]
    %v5036 = vld [vmem:[%s11 + $0xbc] sm:$0xf]
    %v5037 = vld [vmem:[%s11 + $0xc0] sm:$0xf]
    %v5038 = vld [vmem:[%s11 + $0xc4] sm:$0xf]
    %v5039 = vld [vmem:[%s11 + $0xc8] sm:$0xf]
    %v5040 = vld [vmem:[%s11 + $0xcc] sm:$0xf]
    %v5041 = vld [vmem:[%s11 + $0xd0] sm:$0xf]
    %v5042 = vld [vmem:[%s11 + $0xd4] sm:$0xf]
    %v5043 = vld [vmem:[%s11 + $0xd8] sm:$0xf]
    %v5044 = vld [vmem:[%s11 + $0xdc] sm:$0xf]
    %v5045 = vld [vmem:[%s11 + $0xe0] sm:$0xf]
    %v5046 = vld [vmem:[%s11 + $0xe4] sm:$0xf]
    %v5047 = vld [vmem:[%s11 + $0xe8] sm:$0xf]
    %v5048 = vld [vmem:[%s11 + $0xec] sm:$0xf]
    %v5049 = vld [vmem:[%s11 + $0xf0] sm:$0xf]
    %v5050 = vld [vmem:[%s11 + $0xf4] sm:$0xf]
    %v5051 = vld [vmem:[%s11 + $0xf8] sm:$0xf]
    %v5052 = vld [vmem:[%s11 + $0xfc] sm:$0xf]
    %v5053 = vld [vmem:[%s12] sm:$0x1]
    %v5055 = vperm.slane %v5053, 0
    %v5121 = vunpack.c.l.b16 %v4989
    %v5122 = vunpack.c.l.b16 %v4990
    %v5123 = vunpack.c.l.b16 %v4991
    %v5124 = vunpack.c.l.b16 %v4992
    %v5125 = vunpack.c.l.b16 %v4993
    %v5126 = vunpack.c.l.b16 %v4994
    %v5127 = vunpack.c.l.b16 %v4995
    %v5128 = vunpack.c.l.b16 %v4996
    %v5129 = vunpack.c.l.b16 %v4997
    %v5130 = vunpack.c.l.b16 %v4998
    %v5131 = vunpack.c.l.b16 %v4999
    %v5132 = vunpack.c.l.b16 %v5000
    %v5133 = vunpack.c.l.b16 %v5001
    %v5134 = vunpack.c.l.b16 %v5002
    %v5135 = vunpack.c.l.b16 %v5003
    %v5136 = vunpack.c.l.b16 %v5004
    %v5137 = vunpack.c.l.b16 %v5005
    %v5138 = vunpack.c.l.b16 %v5006
    %v5139 = vunpack.c.l.b16 %v5007
    %v5140 = vunpack.c.l.b16 %v5008
    %v5141 = vunpack.c.l.b16 %v5009
    %v5142 = vunpack.c.l.b16 %v5010
    %v5143 = vunpack.c.l.b16 %v5011
    %v5144 = vunpack.c.l.b16 %v5012
    %v5145 = vunpack.c.l.b16 %v5013
    %v5146 = vunpack.c.l.b16 %v5014
    %v5147 = vunpack.c.l.b16 %v5015
    %v5148 = vunpack.c.l.b16 %v5016
    %v5149 = vunpack.c.l.b16 %v5017
    %v5150 = vunpack.c.l.b16 %v5018
    %v5151 = vunpack.c.l.b16 %v5019
    %v5152 = vunpack.c.l.b16 %v5020
    %v5153 = vunpack.c.l.b16 %v5021
    %v5154 = vunpack.c.l.b16 %v5022
    %v5155 = vunpack.c.l.b16 %v5023
    %v5156 = vunpack.c.l.b16 %v5024
    %v5157 = vunpack.c.l.b16 %v5025
    %v5158 = vunpack.c.l.b16 %v5026
    %v5159 = vunpack.c.l.b16 %v5027
    %v5160 = vunpack.c.l.b16 %v5028
    %v5161 = vunpack.c.l.b16 %v5029
    %v5162 = vunpack.c.l.b16 %v5030
    %v5163 = vunpack.c.l.b16 %v5031
    %v5164 = vunpack.c.l.b16 %v5032
    %v5165 = vunpack.c.l.b16 %v5033
    %v5166 = vunpack.c.l.b16 %v5034
    %v5167 = vunpack.c.l.b16 %v5035
    %v5168 = vunpack.c.l.b16 %v5036
    %v5169 = vunpack.c.l.b16 %v5037
    %v5170 = vunpack.c.l.b16 %v5038
    %v5171 = vunpack.c.l.b16 %v5039
    %v5172 = vunpack.c.l.b16 %v5040
    %v5173 = vunpack.c.l.b16 %v5041
    %v5174 = vunpack.c.l.b16 %v5042
    %v5175 = vunpack.c.l.b16 %v5043
    %v5176 = vunpack.c.l.b16 %v5044
    %v5177 = vunpack.c.l.b16 %v5045
    %v5178 = vunpack.c.l.b16 %v5046
    %v5179 = vunpack.c.l.b16 %v5047
    %v5180 = vunpack.c.l.b16 %v5048
    %v5181 = vunpack.c.l.b16 %v5049
    %v5182 = vunpack.c.l.b16 %v5050
    %v5183 = vunpack.c.l.b16 %v5051
    %v5184 = vunpack.c.l.b16 %v5052
    %v5185 = vpack.c.b16 %v5122, %v5121
    %v5186 = vpack.c.b16 %v5124, %v5123
    %v5187 = vpack.c.b16 %v5126, %v5125
    %v5188 = vpack.c.b16 %v5128, %v5127
    %v5189 = vpack.c.b16 %v5130, %v5129
    %v5190 = vpack.c.b16 %v5132, %v5131
    %v5191 = vpack.c.b16 %v5134, %v5133
    %v5192 = vpack.c.b16 %v5136, %v5135
    %v5193 = vpack.c.b16 %v5138, %v5137
    %v5194 = vpack.c.b16 %v5140, %v5139
    %v5195 = vpack.c.b16 %v5142, %v5141
    %v5196 = vpack.c.b16 %v5144, %v5143
    %v5197 = vpack.c.b16 %v5146, %v5145
    %v5198 = vpack.c.b16 %v5148, %v5147
    %v5199 = vpack.c.b16 %v5150, %v5149
    %v5200 = vpack.c.b16 %v5152, %v5151
    %v5201 = vpack.c.b16 %v5154, %v5153
    %v5202 = vpack.c.b16 %v5156, %v5155
    %v5203 = vpack.c.b16 %v5158, %v5157
    %v5204 = vpack.c.b16 %v5160, %v5159
    %v5205 = vpack.c.b16 %v5162, %v5161
    %v5206 = vpack.c.b16 %v5164, %v5163
    %v5207 = vpack.c.b16 %v5166, %v5165
    %v5208 = vpack.c.b16 %v5168, %v5167
    %v5209 = vpack.c.b16 %v5170, %v5169
    %v5210 = vpack.c.b16 %v5172, %v5171
    %v5211 = vpack.c.b16 %v5174, %v5173
    %v5212 = vpack.c.b16 %v5176, %v5175
    %v5213 = vpack.c.b16 %v5178, %v5177
    %v5214 = vpack.c.b16 %v5180, %v5179
    %v5215 = vpack.c.b16 %v5182, %v5181
    %v5216 = vpack.c.b16 %v5184, %v5183
    %5249 = vmatpush.bf16.msra.mxu0 %v5192
    %5250 = vmatpush.bf16.msra.mxu0 %v5191
    %5251 = vmatpush.bf16.msra.mxu0 %v5190
    %5252 = vmatpush.bf16.msra.mxu0 %v5189
    %5253 = vmatpush.bf16.msra.mxu0 %v5188
    %5254 = vmatpush.bf16.msra.mxu0 %v5187
    %5255 = vmatpush.bf16.msra.mxu0 %v5186
    %5256 = vmatpush.bf16.msra.mxu0 %v5185
    %5257 = vmatmul.bf16.gmra.mxu0 %v4985
    %v5258 = vpop.f32.mrf.mxu0
    %v5259 = vadd.f32 %v5055, %v5258
    %v5260 = vpop.f32.mrf.mxu0
    %5261 = vdwg.mxu0
    %5262 = vmatpush.bf16.msra.mxu0 %v5200
    %5263 = vmatpush.bf16.msra.mxu0 %v5199
    %5264 = vmatpush.bf16.msra.mxu0 %v5198
    %5265 = vmatpush.bf16.msra.mxu0 %v5197
    %5266 = vmatpush.bf16.msra.mxu0 %v5196
    %5267 = vmatpush.bf16.msra.mxu0 %v5195
    %5268 = vmatpush.bf16.msra.mxu0 %v5194
    %5269 = vmatpush.bf16.msra.mxu0 %v5193
    %5270 = vmatmul.bf16.gmra.mxu0 %v4986
    %v5271 = vpop.f32.mrf.mxu0
    %v5272 = vadd.f32 %v5259, %v5271
    %v5273 = vpop.f32.mrf.mxu0
    %5274 = vdwg.mxu0
    %5275 = vmatpush.bf16.msra.mxu0 %v5208
    %5276 = vmatpush.bf16.msra.mxu0 %v5207
    %5277 = vmatpush.bf16.msra.mxu0 %v5206
    %5278 = vmatpush.bf16.msra.mxu0 %v5205
    %5279 = vmatpush.bf16.msra.mxu0 %v5204
    %5280 = vmatpush.bf16.msra.mxu0 %v5203
    %5281 = vmatpush.bf16.msra.mxu0 %v5202
    %5282 = vmatpush.bf16.msra.mxu0 %v5201
    %5283 = vmatmul.bf16.gmra.mxu0 %v4987
    %v5284 = vpop.f32.mrf.mxu0
    %v5285 = vadd.f32 %v5272, %v5284
    %v5286 = vpop.f32.mrf.mxu0
    %5287 = vdwg.mxu0
    %5288 = vmatpush.bf16.msra.mxu0 %v5216
    %5289 = vmatpush.bf16.msra.mxu0 %v5215
    %5290 = vmatpush.bf16.msra.mxu0 %v5214
    %5291 = vmatpush.bf16.msra.mxu0 %v5213
    %5292 = vmatpush.bf16.msra.mxu0 %v5212
    %5293 = vmatpush.bf16.msra.mxu0 %v5211
    %5294 = vmatpush.bf16.msra.mxu0 %v5210
    %5295 = vmatpush.bf16.msra.mxu0 %v5209
    %5296 = vmatmul.bf16.gmra.mxu0 %v4988
    %v5297 = vpop.f32.mrf.mxu0
    %v5298 = vadd.f32 %v5285, %v5297
    %v5299 = vpop.f32.mrf.mxu0
    %5300 = vdwg.mxu0
    %vm5301 = vcmask 17408
    %5302 = vst.msk [vmem:[#allocation4] sm:$0x3] %vm5301, %v5298
    // Predicated region
    $region54: #{efficientnet_vslam_forward.11} parent=1 // pred_check
      _
    $region55: #{efficientnet_vslam_forward.11} parent=1 // pred_check_branch
      %5304 = sbr.rel (0) target = $region57
    $region56: #{efficientnet_vslam_forward.11} parent=1 // pred_region
      %5306 = vsyncadd [#allocation3], 0
      %s5308 = sshll.u32 [#allocation2], 4
      %s5309 = int_to_ptr.vmem [resolvable:$true] %s5308
      %s5310 = sshll.u32 %s13, 4
      %s5311 = int_to_ptr.hbm [resolvable:$true] %s5310
      %5313 = dma.vmem_to_hbm [thread:$0]  %s5309, 320, %s5311, [#allocation3]
    $region57: #{efficientnet_vslam_forward.11} parent=1 // pred_fallthru
      _
    // Predicated region
    $region58: #{efficientnet_vslam_forward.11} parent=1 // pred_check
      _
    $region59: #{efficientnet_vslam_forward.11} parent=1 // pred_check_branch
      %5315 = sbr.rel (0) target = $region61
    $region60: #{efficientnet_vslam_forward.11} parent=1 // pred_region
      %5317 = vsyncadd [#allocation5], 0
      %s5319 = sshll.u32 [#allocation4], 4
      %s5320 = int_to_ptr.vmem [resolvable:$true] %s5319
      %s5321 = sshll.u32 %s14, 4
      %s5322 = int_to_ptr.hbm [resolvable:$true] %s5321
      %5324 = dma.vmem_to_hbm [thread:$0]  %s5320, 32, %s5322, [#allocation5]
    $region61: #{efficientnet_vslam_forward.11} parent=1 // pred_fallthru
      _
    // Predicated region
    $region62: #{efficientnet_vslam_forward.11} parent=1 // pred_check
      _
    $region63: #{efficientnet_vslam_forward.11} parent=1 // pred_check_branch
      %5326 = sbr.rel (0) target = $region65
    $region64: #{efficientnet_vslam_forward.11} parent=1 // pred_region
      %5328 = dma.done [#allocation3], 320
    $region65: #{efficientnet_vslam_forward.11} parent=1 // pred_fallthru
      _
    // Predicated region
    $region66: #{efficientnet_vslam_forward.11} parent=1 // pred_check
      _
    $region67: #{efficientnet_vslam_forward.11} parent=1 // pred_check_branch
      %5330 = sbr.rel (0) target = $region69
    $region68: #{efficientnet_vslam_forward.11} parent=1 // pred_region
      %5332 = dma.done [#allocation5], 32
    $region69: #{efficientnet_vslam_forward.11} parent=1 // pred_fallthru
      _
    %5333 = vsyncpa [#allocation3], 1
    %5334 = vsyncpa [#allocation5], 1

</llo_original>
